<compile_context>
chip_gen: v7x
topology: tpu7x:2x2x1
jax: 0.10.0
libtpu: 0.0.40
codegen_flags: <defaults>
</compile_context>

<pallas_src>
import jax
import jax.numpy as jnp
from jax.experimental import pallas as pl
from jax.experimental.pallas import tpu as pltpu

EPS = 1e-5


def _rup8(n):
    return (n + 7) // 8 * 8


def _dims(d, kernel_size, pool_size):
    L1 = (d - kernel_size) // 2 + 1      # conv1 (stride 2) output length
    L2 = L1 - 7                          # conv2 (k=8) output length
    L3 = L2 - 7                          # conv3 (k=8) output length
    L4 = L3 // pool_size                 # maxpool output length
    # padded lengths (multiples of 8) so slices/reshapes stay tile-aligned and each
    # conv has enough (dead) input rows for its padded output length.
    L3p = _rup8(L3)
    L2p = _rup8(max(L2, L3p + 7))
    L1p = _rup8(max(L1, L2p + 7))
    dh_pad = _rup8((kernel_size - 1) // 2 + L1p)   # padded even/odd half length
    return L1, L2, L3, L4, L1p, L2p, L3p, dh_pad


def _make_kernel(b, k, d, kernel_size, pool_size, out_size):
    N = b * k
    L1, L2, L3, L4, L1p, L2p, L3p, dh_pad = _dims(d, kernel_size, pool_size)
    dim4 = L4 * 16

    def inorm(xp):
        # InstanceNorm1d (no affine, training): per (b, d) stats over k, one pass.
        mu = jnp.mean(xp, axis=1, keepdims=True)
        ex2 = jnp.mean(xp * xp, axis=1, keepdims=True)
        var = jnp.maximum(ex2 - mu * mu, 0.0)
        return (xp - mu) * jax.lax.rsqrt(var + EPS)

    def bn_train(h, g_ref, be_ref, l_valid):
        # BatchNorm1d (training): biased batch stats over (N, L_valid) per channel,
        # one pass, fused into a single scale + shift (applied to padded rows too —
        # those rows are dead and never reach a real output).
        c = h.shape[-1]
        hv = h[:, :l_valid, :]
        mu = jnp.mean(hv, axis=(0, 1), keepdims=True)
        ex2 = jnp.mean(hv * hv, axis=(0, 1), keepdims=True)
        var = jnp.maximum(ex2 - mu * mu, 0.0)
        scale = g_ref[...].reshape(1, 1, c) * jax.lax.rsqrt(var + EPS)
        shift = be_ref[...].reshape(1, 1, c) - mu * scale
        return h * scale + shift

    def conv_mxu(h, w_bf_ref, b_ref, l_out_pad, taps=8):
        # im2col over the taps along the channel (lane) axis -> a single
        # K = taps*Cin bf16 matmul with f32 accumulation on the MXU.
        n_, l_in, c_in = h.shape
        c_out = w_bf_ref.shape[-1]
        cols = jnp.concatenate([h[:, j:j + l_out_pad, :] for j in range(taps)],
                               axis=2)                         # (N, Lp, taps*Cin)
        a = cols.reshape(n_ * l_out_pad, taps * c_in).astype(jnp.bfloat16)
        out = jnp.dot(a, w_bf_ref[...], preferred_element_type=jnp.float32)
        return out.reshape(n_, l_out_pad, c_out) + b_ref[...].reshape(1, 1, c_out)

    def kernel(xe_ref, xo_ref, w1_ref, b1_ref, g1_ref, be1_ref,
               w2_ref, b2_ref, g2_ref, be2_ref,
               w3_ref, b3_ref, g3_ref, be3_ref,
               lw1_ref, lb1_ref, lw2_ref, lb2_ref, out_ref):
        # ---- InstanceNorm1d over k, applied to the even/odd halves (stats are per
        # (b, d) position, so the wrapper-side deinterleave commutes with the norm).
        xe = inorm(xe_ref[...]).reshape(N, dh_pad)
        xo = inorm(xo_ref[...]).reshape(N, dh_pad)

        # ---- conv1: Conv1d(1, 32, ks, stride=2) as ks VPU FMAs over contiguous
        # slices of the even/odd halves (no strided loads, no scratch); f32.
        w1 = w1_ref[...]                                       # (ks, 32)
        h1 = None
        for j in range(kernel_size):                           # unrolled at trace time
            src = xe if j % 2 == 0 else xo
            seg = src[:, j // 2:j // 2 + L1p]                  # (N, L1p) contiguous
            term = seg[:, :, None] * w1[j:j + 1, :].reshape(1, 1, 32)
            h1 = term if h1 is None else h1 + term
        h1 = h1 + b1_ref[...].reshape(1, 1, 32)
        h1 = bn_train(h1, g1_ref, be1_ref, L1)                 # rows >= L1 are dead

        # ---- conv2 / conv3: fused K=256 bf16 MXU matmuls + fused BatchNorm ----
        h2 = bn_train(conv_mxu(h1, w2_ref, b2_ref, L2p), g2_ref, be2_ref, L2)
        h3 = bn_train(conv_mxu(h2, w3_ref, b3_ref, L3p), g3_ref, be3_ref, L3)

        # ---- MaxPool1d(pool_size) over L; flatten order p*16+c (Linear-1 weight
        # was permuted in the wrapper to match this order).
        pooled = jnp.max(
            h3[:, :L4 * pool_size, :].reshape(N, L4, pool_size, 16), axis=2)
        feats = pooled.reshape(N, dim4)

        # ---- Linear(dim4, 32) -> LeakyReLU(0.2) -> Linear(32, out_size) ----
        z = jnp.dot(feats.astype(jnp.bfloat16), lw1_ref[...],
                    preferred_element_type=jnp.float32) + lb1_ref[...]
        z = jnp.where(z > 0, z, 0.2 * z)
        y = jnp.dot(z.astype(jnp.bfloat16), lw2_ref[...],
                    preferred_element_type=jnp.float32) + lb2_ref[...]
        out_ref[...] = y.reshape(b, k, out_size)

    return kernel


def conv_k_region_forward(x, params, *, kernel_size=8, pool_size=16, out_size=8):
    x = x.astype(jnp.float32)
    b, k, d = x.shape
    assert d % 2 == 0, "time_series length must be even (conv1 stride=2 deinterleave)"
    N = b * k
    L1, L2, L3, L4, L1p, L2p, L3p, dh_pad = _dims(d, kernel_size, pool_size)
    dim4 = L4 * 16

    # --- glue: layout-only repacking (deinterleave, zero-pad, transpose, dtype) ---
    xe = x[:, :, 0::2]
    xo = x[:, :, 1::2]
    pad = dh_pad - d // 2
    if pad > 0:
        z = jnp.zeros((b, k, pad), jnp.float32)
        xe = jnp.concatenate([xe, z], axis=2)
        xo = jnp.concatenate([xo, z], axis=2)

    w1t = jnp.transpose(params["w1"][:, 0, :], (1, 0))                   # (ks, 32) f32
    w2col = jnp.transpose(params["w2"], (2, 1, 0)).reshape(8 * 32, 32)   # (256, 32)
    w3col = jnp.transpose(params["w3"], (2, 1, 0)).reshape(8 * 32, 16)   # (256, 16)
    # permute Linear-1 weight from torch flatten order (c*L4+p) to kernel order (p*16+c)
    lw1 = jnp.transpose(params["lw1"].T.reshape(16, L4, 32), (1, 0, 2)).reshape(dim4, 32)
    lw2 = params["lw2"].T                                                # (32, out_size)
    bf = lambda v: v.astype(jnp.bfloat16)
    r2 = lambda v: v.reshape(1, -1).astype(jnp.float32)

    args = (xe, xo,
            w1t, r2(params["b1"]), r2(params["g1"]), r2(params["be1"]),
            bf(w2col), r2(params["b2"]), r2(params["g2"]), r2(params["be2"]),
            bf(w3col), r2(params["b3"]), r2(params["g3"]), r2(params["be3"]),
            bf(lw1), r2(params["c1"]), bf(lw2), r2(params["c2"]))

    # rough all-resident VMEM footprint (activations + im2col dominate), clamped to
    # the v7x physical budget; at these shapes it is a few MiB.
    act_bytes = 4 * N * (2 * dh_pad + L1p * 32 + L2p * (256 + 32)
                         + L3p * (256 + 16) + dim4 + 64)
    vmem_limit = int(min(64 * 1024 * 1024, max(16 * 1024 * 1024, 2 * act_bytes)))

    kernel = _make_kernel(b, k, d, kernel_size, pool_size, out_size)
    return pl.pallas_call(
        kernel,
        out_shape=jax.ShapeDtypeStruct((b, k, out_size), jnp.float32),
        in_specs=[pl.BlockSpec(memory_space=pltpu.MemorySpace.VMEM)] * len(args),
        out_specs=pl.BlockSpec(memory_space=pltpu.MemorySpace.VMEM),
        compiler_params=pltpu.CompilerParams(vmem_limit_bytes=vmem_limit),
    )(*args)


def reference_forward(x, params, *, kernel_size=8, pool_size=16, out_size=8):
    """Pure-JAX (f32) reference mirroring the PyTorch forward (training-mode norms)."""
    b, k, d = x.shape
    xt = jnp.transpose(x, (0, 2, 1))                            # (b, d, k)
    mu = jnp.mean(xt, axis=2, keepdims=True)
    var = jnp.mean((xt - mu) ** 2, axis=2, keepdims=True)
    xt = (xt - mu) / jnp.sqrt(var + EPS)
    h = jnp.transpose(xt, (0, 2, 1)).reshape(b * k, 1, d)

    def conv1d(h, w, bias, stride=1):
        out = jax.lax.conv_general_dilated(
            h, w, window_strides=(stride,), padding="VALID",
            dimension_numbers=("NCH", "OIH", "NCH"))
        return out + bias[None, :, None]

    def bn(h, g, be):
        mu = jnp.mean(h, axis=(0, 2), keepdims=True)
        var = jnp.mean((h - mu) ** 2, axis=(0, 2), keepdims=True)
        return (h - mu) / jnp.sqrt(var + EPS) * g[None, :, None] + be[None, :, None]

    h = bn(conv1d(h, params["w1"], params["b1"], stride=2), params["g1"], params["be1"])
    h = bn(conv1d(h, params["w2"], params["b2"]), params["g2"], params["be2"])
    h = bn(conv1d(h, params["w3"], params["b3"]), params["g3"], params["be3"])
    L3 = h.shape[2]
    L4 = L3 // pool_size
    h = jnp.max(h[:, :, :L4 * pool_size].reshape(b * k, 16, L4, pool_size), axis=3)
    h = h.reshape(b, k, -1)
    z = h @ params["lw1"].T + params["c1"]
    z = jnp.where(z > 0, z, 0.2 * z)
    return z @ params["lw2"].T + params["c2"]


if __name__ == "__main__":
    b, k, d = 2, 4, 128          # batch, regions (k), time_series
    kernel_size, pool_size, out_size = 8, 16, 8
    L1 = (d - kernel_size) // 2 + 1
    L4 = ((L1 - 7) - 7) // pool_size
    dim4 = L4 * 16

    keys = jax.random.split(jax.random.PRNGKey(0), 17)
    rnd = lambda kk, shape, s=0.1: (s * jax.random.normal(kk, shape, dtype=jnp.float32))

    params = dict(
        w1=rnd(keys[0], (32, 1, kernel_size)), b1=rnd(keys[1], (32,)),
        w2=rnd(keys[2], (32, 32, 8)),          b2=rnd(keys[3], (32,)),
        w3=rnd(keys[4], (16, 32, 8)),          b3=rnd(keys[5], (16,)),
        g1=1.0 + rnd(keys[6], (32,)),  be1=rnd(keys[7], (32,)),
        g2=1.0 + rnd(keys[8], (32,)),  be2=rnd(keys[9], (32,)),
        g3=1.0 + rnd(keys[10], (16,)), be3=rnd(keys[11], (16,)),
        lw1=rnd(keys[12], (32, dim4)), c1=rnd(keys[13], (32,)),
        lw2=rnd(keys[14], (out_size, 32)), c2=rnd(keys[15], (out_size,)),
    )
    x = jax.random.normal(keys[16], (b, k, d), dtype=jnp.float32)

    out = conv_k_region_forward(x, params, kernel_size=kernel_size,
                                pool_size=pool_size, out_size=out_size)
    out = jax.block_until_ready(out)

    ref = jax.block_until_ready(
        reference_forward(x, params, kernel_size=kernel_size,
                          pool_size=pool_size, out_size=out_size))

    assert out.shape == (b, k, out_size), out.shape
    # bf16 MXU inputs (f32 accumulation) contribute ~1e-3..5e-3 abs error vs the f32 ref.
    max_err = float(jnp.max(jnp.abs(out - ref)))
    assert max_err < 1e-2, f"max abs error too large: {max_err}"
    print("KERNEL_OK")
</pallas_src>

<mosaic_0001>
module attributes {stable_mosaic.version = 11 : i64} {
  func.func @kernel(%arg0: memref<2x4x72xf32, #tpu.memory_space<vmem>>, %arg1: memref<2x4x72xf32, #tpu.memory_space<vmem>>, %arg2: memref<8x32xf32, #tpu.memory_space<vmem>>, %arg3: memref<1x32xf32, #tpu.memory_space<vmem>>, %arg4: memref<1x32xf32, #tpu.memory_space<vmem>>, %arg5: memref<1x32xf32, #tpu.memory_space<vmem>>, %arg6: memref<256x32xbf16, #tpu.memory_space<vmem>>, %arg7: memref<1x32xf32, #tpu.memory_space<vmem>>, %arg8: memref<1x32xf32, #tpu.memory_space<vmem>>, %arg9: memref<1x32xf32, #tpu.memory_space<vmem>>, %arg10: memref<256x16xbf16, #tpu.memory_space<vmem>>, %arg11: memref<1x16xf32, #tpu.memory_space<vmem>>, %arg12: memref<1x16xf32, #tpu.memory_space<vmem>>, %arg13: memref<1x16xf32, #tpu.memory_space<vmem>>, %arg14: memref<32x32xbf16, #tpu.memory_space<vmem>>, %arg15: memref<1x32xf32, #tpu.memory_space<vmem>>, %arg16: memref<32x8xbf16, #tpu.memory_space<vmem>>, %arg17: memref<1x8xf32, #tpu.memory_space<vmem>>, %arg18: memref<2x4x8xf32, #tpu.memory_space<vmem>>) attributes {dimension_semantics = [], scalar_prefetch = 0 : i64, scratch_operands = 0 : i64, tpu.core_type = #tpu.core_type<tc>} {
    %c0 = arith.constant 0 : index
    %c0_0 = arith.constant 0 : index
    %c0_1 = arith.constant 0 : index
    %0 = vector.load %arg0[%c0, %c0_0, %c0_1] : memref<2x4x72xf32, #tpu.memory_space<vmem>>, vector<2x4x72xf32>
    %cst = arith.constant dense<0.000000e+00> : vector<2x72xf32>
    %1 = vector.multi_reduction <add>, %0, %cst [1] : vector<2x4x72xf32> to vector<2x72xf32>
    %2 = vector.shape_cast %1 : vector<2x72xf32> to vector<2x1x72xf32>
    %cst_2 = arith.constant 4.000000e+00 : f32
    %3 = vector.broadcast %cst_2 : f32 to vector<2x1x72xf32>
    %4 = arith.divf %2, %3 : vector<2x1x72xf32>
    %5 = arith.mulf %0, %0 : vector<2x4x72xf32>
    %cst_3 = arith.constant dense<0.000000e+00> : vector<2x72xf32>
    %6 = vector.multi_reduction <add>, %5, %cst_3 [1] : vector<2x4x72xf32> to vector<2x72xf32>
    %7 = vector.shape_cast %6 : vector<2x72xf32> to vector<2x1x72xf32>
    %cst_4 = arith.constant 4.000000e+00 : f32
    %8 = vector.broadcast %cst_4 : f32 to vector<2x1x72xf32>
    %9 = arith.divf %7, %8 : vector<2x1x72xf32>
    %10 = arith.mulf %4, %4 : vector<2x1x72xf32>
    %11 = arith.subf %9, %10 : vector<2x1x72xf32>
    %cst_5 = arith.constant 0.000000e+00 : f32
    %12 = vector.broadcast %cst_5 : f32 to vector<2x1x72xf32>
    %13 = arith.maximumf %11, %12 : vector<2x1x72xf32>
    %14 = vector.broadcast %4 : vector<2x1x72xf32> to vector<2x4x72xf32>
    %15 = arith.subf %0, %14 : vector<2x4x72xf32>
    %cst_6 = arith.constant 9.99999974E-6 : f32
    %16 = vector.broadcast %cst_6 : f32 to vector<2x1x72xf32>
    %17 = arith.addf %13, %16 : vector<2x1x72xf32>
    %18 = math.rsqrt %17 : vector<2x1x72xf32>
    %19 = vector.broadcast %18 : vector<2x1x72xf32> to vector<2x4x72xf32>
    %20 = arith.mulf %15, %19 : vector<2x4x72xf32>
    %21 = vector.shape_cast %20 : vector<2x4x72xf32> to vector<8x72xf32>
    %c0_7 = arith.constant 0 : index
    %c0_8 = arith.constant 0 : index
    %c0_9 = arith.constant 0 : index
    %22 = vector.load %arg1[%c0_7, %c0_8, %c0_9] : memref<2x4x72xf32, #tpu.memory_space<vmem>>, vector<2x4x72xf32>
    %cst_10 = arith.constant dense<0.000000e+00> : vector<2x72xf32>
    %23 = vector.multi_reduction <add>, %22, %cst_10 [1] : vector<2x4x72xf32> to vector<2x72xf32>
    %24 = vector.shape_cast %23 : vector<2x72xf32> to vector<2x1x72xf32>
    %cst_11 = arith.constant 4.000000e+00 : f32
    %25 = vector.broadcast %cst_11 : f32 to vector<2x1x72xf32>
    %26 = arith.divf %24, %25 : vector<2x1x72xf32>
    %27 = arith.mulf %22, %22 : vector<2x4x72xf32>
    %cst_12 = arith.constant dense<0.000000e+00> : vector<2x72xf32>
    %28 = vector.multi_reduction <add>, %27, %cst_12 [1] : vector<2x4x72xf32> to vector<2x72xf32>
    %29 = vector.shape_cast %28 : vector<2x72xf32> to vector<2x1x72xf32>
    %cst_13 = arith.constant 4.000000e+00 : f32
    %30 = vector.broadcast %cst_13 : f32 to vector<2x1x72xf32>
    %31 = arith.divf %29, %30 : vector<2x1x72xf32>
    %32 = arith.mulf %26, %26 : vector<2x1x72xf32>
    %33 = arith.subf %31, %32 : vector<2x1x72xf32>
    %cst_14 = arith.constant 0.000000e+00 : f32
    %34 = vector.broadcast %cst_14 : f32 to vector<2x1x72xf32>
    %35 = arith.maximumf %33, %34 : vector<2x1x72xf32>
    %36 = vector.broadcast %26 : vector<2x1x72xf32> to vector<2x4x72xf32>
    %37 = arith.subf %22, %36 : vector<2x4x72xf32>
    %cst_15 = arith.constant 9.99999974E-6 : f32
    %38 = vector.broadcast %cst_15 : f32 to vector<2x1x72xf32>
    %39 = arith.addf %35, %38 : vector<2x1x72xf32>
    %40 = math.rsqrt %39 : vector<2x1x72xf32>
    %41 = vector.broadcast %40 : vector<2x1x72xf32> to vector<2x4x72xf32>
    %42 = arith.mulf %37, %41 : vector<2x4x72xf32>
    %43 = vector.shape_cast %42 : vector<2x4x72xf32> to vector<8x72xf32>
    %c0_16 = arith.constant 0 : index
    %c0_17 = arith.constant 0 : index
    %44 = vector.load %arg2[%c0_16, %c0_17] : memref<8x32xf32, #tpu.memory_space<vmem>>, vector<8x32xf32>
    %45 = vector.extract_strided_slice %21 {offsets = [0, 0], sizes = [8, 64], strides = [1, 1]} : vector<8x72xf32> to vector<8x64xf32>
    %46 = vector.shape_cast %45 : vector<8x64xf32> to vector<8x64x1xf32>
    %47 = vector.extract_strided_slice %44 {offsets = [0, 0], sizes = [1, 32], strides = [1, 1]} : vector<8x32xf32> to vector<1x32xf32>
    %48 = vector.shape_cast %47 : vector<1x32xf32> to vector<1x1x32xf32>
    %49 = vector.broadcast %46 : vector<8x64x1xf32> to vector<8x64x32xf32>
    %50 = vector.broadcast %48 : vector<1x1x32xf32> to vector<8x64x32xf32>
    %51 = arith.mulf %49, %50 : vector<8x64x32xf32>
    %52 = vector.extract_strided_slice %43 {offsets = [0, 0], sizes = [8, 64], strides = [1, 1]} : vector<8x72xf32> to vector<8x64xf32>
    %53 = vector.shape_cast %52 : vector<8x64xf32> to vector<8x64x1xf32>
    %54 = vector.extract_strided_slice %44 {offsets = [1, 0], sizes = [1, 32], strides = [1, 1]} : vector<8x32xf32> to vector<1x32xf32>
    %55 = vector.shape_cast %54 : vector<1x32xf32> to vector<1x1x32xf32>
    %56 = vector.broadcast %53 : vector<8x64x1xf32> to vector<8x64x32xf32>
    %57 = vector.broadcast %55 : vector<1x1x32xf32> to vector<8x64x32xf32>
    %58 = arith.mulf %56, %57 : vector<8x64x32xf32>
    %59 = arith.addf %51, %58 : vector<8x64x32xf32>
    %60 = vector.extract_strided_slice %21 {offsets = [0, 1], sizes = [8, 64], strides = [1, 1]} : vector<8x72xf32> to vector<8x64xf32>
    %61 = vector.shape_cast %60 : vector<8x64xf32> to vector<8x64x1xf32>
    %62 = vector.extract_strided_slice %44 {offsets = [2, 0], sizes = [1, 32], strides = [1, 1]} : vector<8x32xf32> to vector<1x32xf32>
    %63 = vector.shape_cast %62 : vector<1x32xf32> to vector<1x1x32xf32>
    %64 = vector.broadcast %61 : vector<8x64x1xf32> to vector<8x64x32xf32>
    %65 = vector.broadcast %63 : vector<1x1x32xf32> to vector<8x64x32xf32>
    %66 = arith.mulf %64, %65 : vector<8x64x32xf32>
    %67 = arith.addf %59, %66 : vector<8x64x32xf32>
    %68 = vector.extract_strided_slice %43 {offsets = [0, 1], sizes = [8, 64], strides = [1, 1]} : vector<8x72xf32> to vector<8x64xf32>
    %69 = vector.shape_cast %68 : vector<8x64xf32> to vector<8x64x1xf32>
    %70 = vector.extract_strided_slice %44 {offsets = [3, 0], sizes = [1, 32], strides = [1, 1]} : vector<8x32xf32> to vector<1x32xf32>
    %71 = vector.shape_cast %70 : vector<1x32xf32> to vector<1x1x32xf32>
    %72 = vector.broadcast %69 : vector<8x64x1xf32> to vector<8x64x32xf32>
    %73 = vector.broadcast %71 : vector<1x1x32xf32> to vector<8x64x32xf32>
    %74 = arith.mulf %72, %73 : vector<8x64x32xf32>
    %75 = arith.addf %67, %74 : vector<8x64x32xf32>
    %76 = vector.extract_strided_slice %21 {offsets = [0, 2], sizes = [8, 64], strides = [1, 1]} : vector<8x72xf32> to vector<8x64xf32>
    %77 = vector.shape_cast %76 : vector<8x64xf32> to vector<8x64x1xf32>
    %78 = vector.extract_strided_slice %44 {offsets = [4, 0], sizes = [1, 32], strides = [1, 1]} : vector<8x32xf32> to vector<1x32xf32>
    %79 = vector.shape_cast %78 : vector<1x32xf32> to vector<1x1x32xf32>
    %80 = vector.broadcast %77 : vector<8x64x1xf32> to vector<8x64x32xf32>
    %81 = vector.broadcast %79 : vector<1x1x32xf32> to vector<8x64x32xf32>
    %82 = arith.mulf %80, %81 : vector<8x64x32xf32>
    %83 = arith.addf %75, %82 : vector<8x64x32xf32>
    %84 = vector.extract_strided_slice %43 {offsets = [0, 2], sizes = [8, 64], strides = [1, 1]} : vector<8x72xf32> to vector<8x64xf32>
    %85 = vector.shape_cast %84 : vector<8x64xf32> to vector<8x64x1xf32>
    %86 = vector.extract_strided_slice %44 {offsets = [5, 0], sizes = [1, 32], strides = [1, 1]} : vector<8x32xf32> to vector<1x32xf32>
    %87 = vector.shape_cast %86 : vector<1x32xf32> to vector<1x1x32xf32>
    %88 = vector.broadcast %85 : vector<8x64x1xf32> to vector<8x64x32xf32>
    %89 = vector.broadcast %87 : vector<1x1x32xf32> to vector<8x64x32xf32>
    %90 = arith.mulf %88, %89 : vector<8x64x32xf32>
    %91 = arith.addf %83, %90 : vector<8x64x32xf32>
    %92 = vector.extract_strided_slice %21 {offsets = [0, 3], sizes = [8, 64], strides = [1, 1]} : vector<8x72xf32> to vector<8x64xf32>
    %93 = vector.shape_cast %92 : vector<8x64xf32> to vector<8x64x1xf32>
    %94 = vector.extract_strided_slice %44 {offsets = [6, 0], sizes = [1, 32], strides = [1, 1]} : vector<8x32xf32> to vector<1x32xf32>
    %95 = vector.shape_cast %94 : vector<1x32xf32> to vector<1x1x32xf32>
    %96 = vector.broadcast %93 : vector<8x64x1xf32> to vector<8x64x32xf32>
    %97 = vector.broadcast %95 : vector<1x1x32xf32> to vector<8x64x32xf32>
    %98 = arith.mulf %96, %97 : vector<8x64x32xf32>
    %99 = arith.addf %91, %98 : vector<8x64x32xf32>
    %100 = vector.extract_strided_slice %43 {offsets = [0, 3], sizes = [8, 64], strides = [1, 1]} : vector<8x72xf32> to vector<8x64xf32>
    %101 = vector.shape_cast %100 : vector<8x64xf32> to vector<8x64x1xf32>
    %102 = vector.extract_strided_slice %44 {offsets = [7, 0], sizes = [1, 32], strides = [1, 1]} : vector<8x32xf32> to vector<1x32xf32>
    %103 = vector.shape_cast %102 : vector<1x32xf32> to vector<1x1x32xf32>
    %104 = vector.broadcast %101 : vector<8x64x1xf32> to vector<8x64x32xf32>
    %105 = vector.broadcast %103 : vector<1x1x32xf32> to vector<8x64x32xf32>
    %106 = arith.mulf %104, %105 : vector<8x64x32xf32>
    %107 = arith.addf %99, %106 : vector<8x64x32xf32>
    %c0_18 = arith.constant 0 : index
    %c0_19 = arith.constant 0 : index
    %108 = vector.load %arg3[%c0_18, %c0_19] : memref<1x32xf32, #tpu.memory_space<vmem>>, vector<1x32xf32>
    %109 = vector.shape_cast %108 : vector<1x32xf32> to vector<1x1x32xf32>
    %110 = vector.broadcast %109 : vector<1x1x32xf32> to vector<8x64x32xf32>
    %111 = arith.addf %107, %110 : vector<8x64x32xf32>
    %112 = vector.extract_strided_slice %111 {offsets = [0, 0, 0], sizes = [8, 61, 32], strides = [1, 1, 1]} : vector<8x64x32xf32> to vector<8x61x32xf32>
    %cst_20 = arith.constant dense<0.000000e+00> : vector<32xf32>
    %113 = vector.multi_reduction <add>, %112, %cst_20 [0, 1] : vector<8x61x32xf32> to vector<32xf32>
    %114 = vector.shape_cast %113 : vector<32xf32> to vector<1x1x32xf32>
    %cst_21 = arith.constant 4.880000e+02 : f32
    %115 = vector.broadcast %cst_21 : f32 to vector<1x1x32xf32>
    %116 = arith.divf %114, %115 : vector<1x1x32xf32>
    %117 = arith.mulf %112, %112 : vector<8x61x32xf32>
    %cst_22 = arith.constant dense<0.000000e+00> : vector<32xf32>
    %118 = vector.multi_reduction <add>, %117, %cst_22 [0, 1] : vector<8x61x32xf32> to vector<32xf32>
    %119 = vector.shape_cast %118 : vector<32xf32> to vector<1x1x32xf32>
    %cst_23 = arith.constant 4.880000e+02 : f32
    %120 = vector.broadcast %cst_23 : f32 to vector<1x1x32xf32>
    %121 = arith.divf %119, %120 : vector<1x1x32xf32>
    %122 = arith.mulf %116, %116 : vector<1x1x32xf32>
    %123 = arith.subf %121, %122 : vector<1x1x32xf32>
    %cst_24 = arith.constant 0.000000e+00 : f32
    %124 = vector.broadcast %cst_24 : f32 to vector<1x1x32xf32>
    %125 = arith.maximumf %123, %124 : vector<1x1x32xf32>
    %c0_25 = arith.constant 0 : index
    %c0_26 = arith.constant 0 : index
    %126 = vector.load %arg4[%c0_25, %c0_26] : memref<1x32xf32, #tpu.memory_space<vmem>>, vector<1x32xf32>
    %127 = vector.shape_cast %126 : vector<1x32xf32> to vector<1x1x32xf32>
    %cst_27 = arith.constant 9.99999974E-6 : f32
    %128 = vector.broadcast %cst_27 : f32 to vector<1x1x32xf32>
    %129 = arith.addf %125, %128 : vector<1x1x32xf32>
    %130 = math.rsqrt %129 : vector<1x1x32xf32>
    %131 = arith.mulf %127, %130 : vector<1x1x32xf32>
    %c0_28 = arith.constant 0 : index
    %c0_29 = arith.constant 0 : index
    %132 = vector.load %arg5[%c0_28, %c0_29] : memref<1x32xf32, #tpu.memory_space<vmem>>, vector<1x32xf32>
    %133 = vector.shape_cast %132 : vector<1x32xf32> to vector<1x1x32xf32>
    %134 = arith.mulf %116, %131 : vector<1x1x32xf32>
    %135 = arith.subf %133, %134 : vector<1x1x32xf32>
    %136 = vector.broadcast %131 : vector<1x1x32xf32> to vector<8x64x32xf32>
    %137 = arith.mulf %111, %136 : vector<8x64x32xf32>
    %138 = vector.broadcast %135 : vector<1x1x32xf32> to vector<8x64x32xf32>
    %139 = arith.addf %137, %138 : vector<8x64x32xf32>
    %140 = vector.extract_strided_slice %139 {offsets = [0, 0, 0], sizes = [8, 56, 32], strides = [1, 1, 1]} : vector<8x64x32xf32> to vector<8x56x32xf32>
    %141 = vector.extract_strided_slice %139 {offsets = [0, 1, 0], sizes = [8, 56, 32], strides = [1, 1, 1]} : vector<8x64x32xf32> to vector<8x56x32xf32>
    %142 = vector.extract_strided_slice %139 {offsets = [0, 2, 0], sizes = [8, 56, 32], strides = [1, 1, 1]} : vector<8x64x32xf32> to vector<8x56x32xf32>
    %143 = vector.extract_strided_slice %139 {offsets = [0, 3, 0], sizes = [8, 56, 32], strides = [1, 1, 1]} : vector<8x64x32xf32> to vector<8x56x32xf32>
    %144 = vector.extract_strided_slice %139 {offsets = [0, 4, 0], sizes = [8, 56, 32], strides = [1, 1, 1]} : vector<8x64x32xf32> to vector<8x56x32xf32>
    %145 = vector.extract_strided_slice %139 {offsets = [0, 5, 0], sizes = [8, 56, 32], strides = [1, 1, 1]} : vector<8x64x32xf32> to vector<8x56x32xf32>
    %146 = vector.extract_strided_slice %139 {offsets = [0, 6, 0], sizes = [8, 56, 32], strides = [1, 1, 1]} : vector<8x64x32xf32> to vector<8x56x32xf32>
    %147 = vector.extract_strided_slice %139 {offsets = [0, 7, 0], sizes = [8, 56, 32], strides = [1, 1, 1]} : vector<8x64x32xf32> to vector<8x56x32xf32>
    %148 = tpu.concatenate %140, %141, %142, %143, %144, %145, %146, %147 in 2 : vector<8x56x32xf32>, vector<8x56x32xf32>, vector<8x56x32xf32>, vector<8x56x32xf32>, vector<8x56x32xf32>, vector<8x56x32xf32>, vector<8x56x32xf32>, vector<8x56x32xf32> -> vector<8x56x256xf32>
    %149 = vector.shape_cast %148 : vector<8x56x256xf32> to vector<448x256xf32>
    %150 = arith.truncf %149 : vector<448x256xf32> to vector<448x256xbf16>
    %c0_30 = arith.constant 0 : index
    %c0_31 = arith.constant 0 : index
    %151 = vector.load %arg6[%c0_30, %c0_31] : memref<256x32xbf16, #tpu.memory_space<vmem>>, vector<256x32xbf16>
    %cst_32 = arith.constant dense<0.000000e+00> : vector<448x32xf32>
    %152 = tpu.matmul %150, %151, %cst_32 {dimension_numbers = #tpu.dot_dimension_numbers<[1], [0], [0], [1], [0, 0, 1, 1], [], []>} : vector<448x256xbf16>, vector<256x32xbf16>, vector<448x32xf32> -> vector<448x32xf32>
    %153 = vector.shape_cast %152 : vector<448x32xf32> to vector<8x56x32xf32>
    %c0_33 = arith.constant 0 : index
    %c0_34 = arith.constant 0 : index
    %154 = vector.load %arg7[%c0_33, %c0_34] : memref<1x32xf32, #tpu.memory_space<vmem>>, vector<1x32xf32>
    %155 = vector.shape_cast %154 : vector<1x32xf32> to vector<1x1x32xf32>
    %156 = vector.broadcast %155 : vector<1x1x32xf32> to vector<8x56x32xf32>
    %157 = arith.addf %153, %156 : vector<8x56x32xf32>
    %158 = vector.extract_strided_slice %157 {offsets = [0, 0, 0], sizes = [8, 54, 32], strides = [1, 1, 1]} : vector<8x56x32xf32> to vector<8x54x32xf32>
    %cst_35 = arith.constant dense<0.000000e+00> : vector<32xf32>
    %159 = vector.multi_reduction <add>, %158, %cst_35 [0, 1] : vector<8x54x32xf32> to vector<32xf32>
    %160 = vector.shape_cast %159 : vector<32xf32> to vector<1x1x32xf32>
    %cst_36 = arith.constant 4.320000e+02 : f32
    %161 = vector.broadcast %cst_36 : f32 to vector<1x1x32xf32>
    %162 = arith.divf %160, %161 : vector<1x1x32xf32>
    %163 = arith.mulf %158, %158 : vector<8x54x32xf32>
    %cst_37 = arith.constant dense<0.000000e+00> : vector<32xf32>
    %164 = vector.multi_reduction <add>, %163, %cst_37 [0, 1] : vector<8x54x32xf32> to vector<32xf32>
    %165 = vector.shape_cast %164 : vector<32xf32> to vector<1x1x32xf32>
    %cst_38 = arith.constant 4.320000e+02 : f32
    %166 = vector.broadcast %cst_38 : f32 to vector<1x1x32xf32>
    %167 = arith.divf %165, %166 : vector<1x1x32xf32>
    %168 = arith.mulf %162, %162 : vector<1x1x32xf32>
    %169 = arith.subf %167, %168 : vector<1x1x32xf32>
    %cst_39 = arith.constant 0.000000e+00 : f32
    %170 = vector.broadcast %cst_39 : f32 to vector<1x1x32xf32>
    %171 = arith.maximumf %169, %170 : vector<1x1x32xf32>
    %c0_40 = arith.constant 0 : index
    %c0_41 = arith.constant 0 : index
    %172 = vector.load %arg8[%c0_40, %c0_41] : memref<1x32xf32, #tpu.memory_space<vmem>>, vector<1x32xf32>
    %173 = vector.shape_cast %172 : vector<1x32xf32> to vector<1x1x32xf32>
    %cst_42 = arith.constant 9.99999974E-6 : f32
    %174 = vector.broadcast %cst_42 : f32 to vector<1x1x32xf32>
    %175 = arith.addf %171, %174 : vector<1x1x32xf32>
    %176 = math.rsqrt %175 : vector<1x1x32xf32>
    %177 = arith.mulf %173, %176 : vector<1x1x32xf32>
    %c0_43 = arith.constant 0 : index
    %c0_44 = arith.constant 0 : index
    %178 = vector.load %arg9[%c0_43, %c0_44] : memref<1x32xf32, #tpu.memory_space<vmem>>, vector<1x32xf32>
    %179 = vector.shape_cast %178 : vector<1x32xf32> to vector<1x1x32xf32>
    %180 = arith.mulf %162, %177 : vector<1x1x32xf32>
    %181 = arith.subf %179, %180 : vector<1x1x32xf32>
    %182 = vector.broadcast %177 : vector<1x1x32xf32> to vector<8x56x32xf32>
    %183 = arith.mulf %157, %182 : vector<8x56x32xf32>
    %184 = vector.broadcast %181 : vector<1x1x32xf32> to vector<8x56x32xf32>
    %185 = arith.addf %183, %184 : vector<8x56x32xf32>
    %186 = vector.extract_strided_slice %185 {offsets = [0, 0, 0], sizes = [8, 48, 32], strides = [1, 1, 1]} : vector<8x56x32xf32> to vector<8x48x32xf32>
    %187 = vector.extract_strided_slice %185 {offsets = [0, 1, 0], sizes = [8, 48, 32], strides = [1, 1, 1]} : vector<8x56x32xf32> to vector<8x48x32xf32>
    %188 = vector.extract_strided_slice %185 {offsets = [0, 2, 0], sizes = [8, 48, 32], strides = [1, 1, 1]} : vector<8x56x32xf32> to vector<8x48x32xf32>
    %189 = vector.extract_strided_slice %185 {offsets = [0, 3, 0], sizes = [8, 48, 32], strides = [1, 1, 1]} : vector<8x56x32xf32> to vector<8x48x32xf32>
    %190 = vector.extract_strided_slice %185 {offsets = [0, 4, 0], sizes = [8, 48, 32], strides = [1, 1, 1]} : vector<8x56x32xf32> to vector<8x48x32xf32>
    %191 = vector.extract_strided_slice %185 {offsets = [0, 5, 0], sizes = [8, 48, 32], strides = [1, 1, 1]} : vector<8x56x32xf32> to vector<8x48x32xf32>
    %192 = vector.extract_strided_slice %185 {offsets = [0, 6, 0], sizes = [8, 48, 32], strides = [1, 1, 1]} : vector<8x56x32xf32> to vector<8x48x32xf32>
    %193 = vector.extract_strided_slice %185 {offsets = [0, 7, 0], sizes = [8, 48, 32], strides = [1, 1, 1]} : vector<8x56x32xf32> to vector<8x48x32xf32>
    %194 = tpu.concatenate %186, %187, %188, %189, %190, %191, %192, %193 in 2 : vector<8x48x32xf32>, vector<8x48x32xf32>, vector<8x48x32xf32>, vector<8x48x32xf32>, vector<8x48x32xf32>, vector<8x48x32xf32>, vector<8x48x32xf32>, vector<8x48x32xf32> -> vector<8x48x256xf32>
    %195 = vector.shape_cast %194 : vector<8x48x256xf32> to vector<384x256xf32>
    %196 = arith.truncf %195 : vector<384x256xf32> to vector<384x256xbf16>
    %c0_45 = arith.constant 0 : index
    %c0_46 = arith.constant 0 : index
    %197 = vector.load %arg10[%c0_45, %c0_46] : memref<256x16xbf16, #tpu.memory_space<vmem>>, vector<256x16xbf16>
    %cst_47 = arith.constant dense<0.000000e+00> : vector<384x16xf32>
    %198 = tpu.matmul %196, %197, %cst_47 {dimension_numbers = #tpu.dot_dimension_numbers<[1], [0], [0], [1], [0, 0, 1, 1], [], []>} : vector<384x256xbf16>, vector<256x16xbf16>, vector<384x16xf32> -> vector<384x16xf32>
    %199 = vector.shape_cast %198 : vector<384x16xf32> to vector<8x48x16xf32>
    %c0_48 = arith.constant 0 : index
    %c0_49 = arith.constant 0 : index
    %200 = vector.load %arg11[%c0_48, %c0_49] : memref<1x16xf32, #tpu.memory_space<vmem>>, vector<1x16xf32>
    %201 = vector.shape_cast %200 : vector<1x16xf32> to vector<1x1x16xf32>
    %202 = vector.broadcast %201 : vector<1x1x16xf32> to vector<8x48x16xf32>
    %203 = arith.addf %199, %202 : vector<8x48x16xf32>
    %204 = vector.extract_strided_slice %203 {offsets = [0, 0, 0], sizes = [8, 47, 16], strides = [1, 1, 1]} : vector<8x48x16xf32> to vector<8x47x16xf32>
    %cst_50 = arith.constant dense<0.000000e+00> : vector<16xf32>
    %205 = vector.multi_reduction <add>, %204, %cst_50 [0, 1] : vector<8x47x16xf32> to vector<16xf32>
    %206 = vector.shape_cast %205 : vector<16xf32> to vector<1x1x16xf32>
    %cst_51 = arith.constant 3.760000e+02 : f32
    %207 = vector.broadcast %cst_51 : f32 to vector<1x1x16xf32>
    %208 = arith.divf %206, %207 : vector<1x1x16xf32>
    %209 = arith.mulf %204, %204 : vector<8x47x16xf32>
    %cst_52 = arith.constant dense<0.000000e+00> : vector<16xf32>
    %210 = vector.multi_reduction <add>, %209, %cst_52 [0, 1] : vector<8x47x16xf32> to vector<16xf32>
    %211 = vector.shape_cast %210 : vector<16xf32> to vector<1x1x16xf32>
    %cst_53 = arith.constant 3.760000e+02 : f32
    %212 = vector.broadcast %cst_53 : f32 to vector<1x1x16xf32>
    %213 = arith.divf %211, %212 : vector<1x1x16xf32>
    %214 = arith.mulf %208, %208 : vector<1x1x16xf32>
    %215 = arith.subf %213, %214 : vector<1x1x16xf32>
    %cst_54 = arith.constant 0.000000e+00 : f32
    %216 = vector.broadcast %cst_54 : f32 to vector<1x1x16xf32>
    %217 = arith.maximumf %215, %216 : vector<1x1x16xf32>
    %c0_55 = arith.constant 0 : index
    %c0_56 = arith.constant 0 : index
    %218 = vector.load %arg12[%c0_55, %c0_56] : memref<1x16xf32, #tpu.memory_space<vmem>>, vector<1x16xf32>
    %219 = vector.shape_cast %218 : vector<1x16xf32> to vector<1x1x16xf32>
    %cst_57 = arith.constant 9.99999974E-6 : f32
    %220 = vector.broadcast %cst_57 : f32 to vector<1x1x16xf32>
    %221 = arith.addf %217, %220 : vector<1x1x16xf32>
    %222 = math.rsqrt %221 : vector<1x1x16xf32>
    %223 = arith.mulf %219, %222 : vector<1x1x16xf32>
    %c0_58 = arith.constant 0 : index
    %c0_59 = arith.constant 0 : index
    %224 = vector.load %arg13[%c0_58, %c0_59] : memref<1x16xf32, #tpu.memory_space<vmem>>, vector<1x16xf32>
    %225 = vector.shape_cast %224 : vector<1x16xf32> to vector<1x1x16xf32>
    %226 = arith.mulf %208, %223 : vector<1x1x16xf32>
    %227 = arith.subf %225, %226 : vector<1x1x16xf32>
    %228 = vector.broadcast %223 : vector<1x1x16xf32> to vector<8x48x16xf32>
    %229 = arith.mulf %203, %228 : vector<8x48x16xf32>
    %230 = vector.broadcast %227 : vector<1x1x16xf32> to vector<8x48x16xf32>
    %231 = arith.addf %229, %230 : vector<8x48x16xf32>
    %232 = vector.extract_strided_slice %231 {offsets = [0, 0, 0], sizes = [8, 32, 16], strides = [1, 1, 1]} : vector<8x48x16xf32> to vector<8x32x16xf32>
    %233 = vector.shape_cast %232 : vector<8x32x16xf32> to vector<8x2x16x16xf32>
    %cst_60 = arith.constant dense<0xFF800000> : vector<8x2x16xf32>
    %234 = vector.multi_reduction <maximumf>, %233, %cst_60 [2] : vector<8x2x16x16xf32> to vector<8x2x16xf32>
    %235 = vector.shape_cast %234 : vector<8x2x16xf32> to vector<8x32xf32>
    %236 = arith.truncf %235 : vector<8x32xf32> to vector<8x32xbf16>
    %c0_61 = arith.constant 0 : index
    %c0_62 = arith.constant 0 : index
    %237 = vector.load %arg14[%c0_61, %c0_62] : memref<32x32xbf16, #tpu.memory_space<vmem>>, vector<32x32xbf16>
    %cst_63 = arith.constant dense<0.000000e+00> : vector<8x32xf32>
    %238 = tpu.matmul %236, %237, %cst_63 {dimension_numbers = #tpu.dot_dimension_numbers<[1], [0], [0], [1], [0, 0, 1, 1], [], []>} : vector<8x32xbf16>, vector<32x32xbf16>, vector<8x32xf32> -> vector<8x32xf32>
    %c0_64 = arith.constant 0 : index
    %c0_65 = arith.constant 0 : index
    %239 = vector.load %arg15[%c0_64, %c0_65] : memref<1x32xf32, #tpu.memory_space<vmem>>, vector<1x32xf32>
    %240 = vector.broadcast %239 : vector<1x32xf32> to vector<8x32xf32>
    %241 = arith.addf %238, %240 : vector<8x32xf32>
    %cst_66 = arith.constant 0.000000e+00 : f32
    %242 = vector.broadcast %cst_66 : f32 to vector<8x32xf32>
    %243 = arith.cmpf ogt, %241, %242 : vector<8x32xf32>
    %cst_67 = arith.constant 2.000000e-01 : f32
    %244 = vector.broadcast %cst_67 : f32 to vector<8x32xf32>
    %245 = arith.mulf %244, %241 : vector<8x32xf32>
    %246 = arith.select %243, %241, %245 : vector<8x32xi1>, vector<8x32xf32>
    %247 = arith.truncf %246 : vector<8x32xf32> to vector<8x32xbf16>
    %c0_68 = arith.constant 0 : index
    %c0_69 = arith.constant 0 : index
    %248 = vector.load %arg16[%c0_68, %c0_69] : memref<32x8xbf16, #tpu.memory_space<vmem>>, vector<32x8xbf16>
    %cst_70 = arith.constant dense<0.000000e+00> : vector<8x8xf32>
    %249 = tpu.matmul %247, %248, %cst_70 {dimension_numbers = #tpu.dot_dimension_numbers<[1], [0], [0], [1], [0, 0, 1, 1], [], []>} : vector<8x32xbf16>, vector<32x8xbf16>, vector<8x8xf32> -> vector<8x8xf32>
    %c0_71 = arith.constant 0 : index
    %c0_72 = arith.constant 0 : index
    %250 = vector.load %arg17[%c0_71, %c0_72] : memref<1x8xf32, #tpu.memory_space<vmem>>, vector<1x8xf32>
    %251 = vector.broadcast %250 : vector<1x8xf32> to vector<8x8xf32>
    %252 = arith.addf %249, %251 : vector<8x8xf32>
    %253 = vector.shape_cast %252 : vector<8x8xf32> to vector<2x4x8xf32>
    %c0_73 = arith.constant 0 : index
    %c0_74 = arith.constant 0 : index
    %c0_75 = arith.constant 0 : index
    %254 = vector.load %arg18[%c0_73, %c0_74, %c0_75] : memref<2x4x8xf32, #tpu.memory_space<vmem>>, vector<2x4x8xf32>
    tpu.vector_store %arg18[%c0_73, %c0_74, %c0_75], %253 {strides = array<i32>} : memref<2x4x8xf32, #tpu.memory_space<vmem>>, vector<2x4x8xf32>,
    return
  }
}

</mosaic_0001>

<llo_original>
// kernel: tpu_custom_call.1
$region0: #{tpu_custom_call.1}
  #allocation0 [shape = 'u32[]', space=smem, size = 0x4, offset = 0x4, fixed_abs, tag = 'smem constant byte address 0x4 - core index']
  #allocation1 [shape = 'u32[144,128]{1,0:T(1,128)}', space=vmem, size = 0x12000, scoped, tag = 'internal scratch']
  %s0 = inlined_call_operand.vmem [shape: f32[2,4,72], index: 0, kind: input, shape index: {}]
  %s1 = inlined_call_operand.vmem [shape: f32[2,4,72], index: 1, kind: input, shape index: {}]
  %s2 = inlined_call_operand.vmem [shape: f32[8,32], index: 2, kind: input, shape index: {}]
  %s3 = inlined_call_operand.vmem [shape: f32[1,32], index: 3, kind: input, shape index: {}]
  %s4 = inlined_call_operand.vmem [shape: f32[1,32], index: 4, kind: input, shape index: {}]
  %s5 = inlined_call_operand.vmem [shape: f32[1,32], index: 5, kind: input, shape index: {}]
  %s6 = inlined_call_operand.vmem [shape: bf16[256,32], index: 6, kind: input, shape index: {}]
  %s7 = inlined_call_operand.vmem [shape: f32[1,32], index: 7, kind: input, shape index: {}]
  %s8 = inlined_call_operand.vmem [shape: f32[1,32], index: 8, kind: input, shape index: {}]
  %s9 = inlined_call_operand.vmem [shape: f32[1,32], index: 9, kind: input, shape index: {}]
  %s10 = inlined_call_operand.vmem [shape: bf16[256,16], index: 10, kind: input, shape index: {}]
  %s11 = inlined_call_operand.vmem [shape: f32[1,16], index: 11, kind: input, shape index: {}]
  %s12 = inlined_call_operand.vmem [shape: f32[1,16], index: 12, kind: input, shape index: {}]
  %s13 = inlined_call_operand.vmem [shape: f32[1,16], index: 13, kind: input, shape index: {}]
  %s14 = inlined_call_operand.vmem [shape: bf16[32,32], index: 14, kind: input, shape index: {}]
  %s15 = inlined_call_operand.vmem [shape: f32[1,32], index: 15, kind: input, shape index: {}]
  %s16 = inlined_call_operand.vmem [shape: bf16[32,8], index: 16, kind: input, shape index: {}]
  %s17 = inlined_call_operand.vmem [shape: f32[1,8], index: 17, kind: input, shape index: {}]
  %s18 = inlined_call_operand.hbm [shape: f32[2,4,8], index: 18, kind: output, shape index: {}]
  %s19 = sld [smem:[#allocation0]]
  $region82: #{tpu_custom_call.1} parent=0
    _
  %s21 = ssub.s32 1, %s19
  %s22 = scalar_select 0, %s21, %s19
  $region1: #{tpu_custom_call.1} parent=0
    #allocation2 [shape = 'u8[4096]{0}', space=vmem, size = 0x1000, scoped, tag = 'output window, operand 0, single buffered']
    #allocation3 [shape = 's32[1]{0}', space=sflag, size = 0x4, scoped, tag = 'scoped memory for tpu_custom_call.1']
    %23 = vsyncpa [#allocation3], 0
    // Predicated region
    $region2: #{tpu_custom_call.1} parent=1 // pred_check
      _
    $region3: #{tpu_custom_call.1} parent=1 // pred_check_branch
      %25 = sbr.rel (0) target = $region5
    $region4: #{tpu_custom_call.1} parent=1 // pred_region
      _
    $region5: #{tpu_custom_call.1} parent=1 // pred_fallthru
      _
    // Predicated region
    $region6: #{tpu_custom_call.1} parent=1 // pred_check
      _
    $region7: #{tpu_custom_call.1} parent=1 // pred_check_branch
      %27 = sbr.rel (0) target = $region9
    $region8: #{tpu_custom_call.1} parent=1 // pred_region
      _
    $region9: #{tpu_custom_call.1} parent=1 // pred_fallthru
      _
    // Predicated region
    $region10: #{tpu_custom_call.1} parent=1 // pred_check
      _
    $region11: #{tpu_custom_call.1} parent=1 // pred_check_branch
      %29 = sbr.rel (0) target = $region13
    $region12: #{tpu_custom_call.1} parent=1 // pred_region
      _
    $region13: #{tpu_custom_call.1} parent=1 // pred_fallthru
      _
    // Predicated region
    $region14: #{tpu_custom_call.1} parent=1 // pred_check
      _
    $region15: #{tpu_custom_call.1} parent=1 // pred_check_branch
      %31 = sbr.rel (0) target = $region17
    $region16: #{tpu_custom_call.1} parent=1 // pred_region
      _
    $region17: #{tpu_custom_call.1} parent=1 // pred_fallthru
      _
    // Predicated region
    $region18: #{tpu_custom_call.1} parent=1 // pred_check
      _
    $region19: #{tpu_custom_call.1} parent=1 // pred_check_branch
      %33 = sbr.rel (0) target = $region21
    $region20: #{tpu_custom_call.1} parent=1 // pred_region
      _
    $region21: #{tpu_custom_call.1} parent=1 // pred_fallthru
      _
    // Predicated region
    $region22: #{tpu_custom_call.1} parent=1 // pred_check
      _
    $region23: #{tpu_custom_call.1} parent=1 // pred_check_branch
      %35 = sbr.rel (0) target = $region25
    $region24: #{tpu_custom_call.1} parent=1 // pred_region
      _
    $region25: #{tpu_custom_call.1} parent=1 // pred_fallthru
      _
    // Predicated region
    $region26: #{tpu_custom_call.1} parent=1 // pred_check
      _
    $region27: #{tpu_custom_call.1} parent=1 // pred_check_branch
      %37 = sbr.rel (0) target = $region29
    $region28: #{tpu_custom_call.1} parent=1 // pred_region
      _
    $region29: #{tpu_custom_call.1} parent=1 // pred_fallthru
      _
    // Predicated region
    $region30: #{tpu_custom_call.1} parent=1 // pred_check
      _
    $region31: #{tpu_custom_call.1} parent=1 // pred_check_branch
      %39 = sbr.rel (0) target = $region33
    $region32: #{tpu_custom_call.1} parent=1 // pred_region
      _
    $region33: #{tpu_custom_call.1} parent=1 // pred_fallthru
      _
    // Predicated region
    $region34: #{tpu_custom_call.1} parent=1 // pred_check
      _
    $region35: #{tpu_custom_call.1} parent=1 // pred_check_branch
      %41 = sbr.rel (0) target = $region37
    $region36: #{tpu_custom_call.1} parent=1 // pred_region
      _
    $region37: #{tpu_custom_call.1} parent=1 // pred_fallthru
      _
    // Predicated region
    $region38: #{tpu_custom_call.1} parent=1 // pred_check
      _
    $region39: #{tpu_custom_call.1} parent=1 // pred_check_branch
      %43 = sbr.rel (0) target = $region41
    $region40: #{tpu_custom_call.1} parent=1 // pred_region
      _
    $region41: #{tpu_custom_call.1} parent=1 // pred_fallthru
      _
    // Predicated region
    $region42: #{tpu_custom_call.1} parent=1 // pred_check
      _
    $region43: #{tpu_custom_call.1} parent=1 // pred_check_branch
      %45 = sbr.rel (0) target = $region45
    $region44: #{tpu_custom_call.1} parent=1 // pred_region
      _
    $region45: #{tpu_custom_call.1} parent=1 // pred_fallthru
      _
    // Predicated region
    $region46: #{tpu_custom_call.1} parent=1 // pred_check
      _
    $region47: #{tpu_custom_call.1} parent=1 // pred_check_branch
      %47 = sbr.rel (0) target = $region49
    $region48: #{tpu_custom_call.1} parent=1 // pred_region
      _
    $region49: #{tpu_custom_call.1} parent=1 // pred_fallthru
      _
    // Predicated region
    $region50: #{tpu_custom_call.1} parent=1 // pred_check
      _
    $region51: #{tpu_custom_call.1} parent=1 // pred_check_branch
      %49 = sbr.rel (0) target = $region53
    $region52: #{tpu_custom_call.1} parent=1 // pred_region
      _
    $region53: #{tpu_custom_call.1} parent=1 // pred_fallthru
      _
    // Predicated region
    $region54: #{tpu_custom_call.1} parent=1 // pred_check
      _
    $region55: #{tpu_custom_call.1} parent=1 // pred_check_branch
      %51 = sbr.rel (0) target = $region57
    $region56: #{tpu_custom_call.1} parent=1 // pred_region
      _
    $region57: #{tpu_custom_call.1} parent=1 // pred_fallthru
      _
    // Predicated region
    $region58: #{tpu_custom_call.1} parent=1 // pred_check
      _
    $region59: #{tpu_custom_call.1} parent=1 // pred_check_branch
      %53 = sbr.rel (0) target = $region61
    $region60: #{tpu_custom_call.1} parent=1 // pred_region
      _
    $region61: #{tpu_custom_call.1} parent=1 // pred_fallthru
      _
    // Predicated region
    $region62: #{tpu_custom_call.1} parent=1 // pred_check
      _
    $region63: #{tpu_custom_call.1} parent=1 // pred_check_branch
      %55 = sbr.rel (0) target = $region65
    $region64: #{tpu_custom_call.1} parent=1 // pred_region
      _
    $region65: #{tpu_custom_call.1} parent=1 // pred_fallthru
      _
    // Predicated region
    $region66: #{tpu_custom_call.1} parent=1 // pred_check
      _
    $region67: #{tpu_custom_call.1} parent=1 // pred_check_branch
      %57 = sbr.rel (0) target = $region69
    $region68: #{tpu_custom_call.1} parent=1 // pred_region
      _
    $region69: #{tpu_custom_call.1} parent=1 // pred_fallthru
      _
    // Predicated region
    $region70: #{tpu_custom_call.1} parent=1 // pred_check
      _
    $region71: #{tpu_custom_call.1} parent=1 // pred_check_branch
      %59 = sbr.rel (0) target = $region73
    $region72: #{tpu_custom_call.1} parent=1 // pred_region
      _
    $region73: #{tpu_custom_call.1} parent=1 // pred_fallthru
      _
    %v61 = vld [vmem:[%s0] sm:$0xf]
    %v62 = vld [vmem:[%s0 + $0x4] sm:$0xf]
    %vm63 = vcmask 584704
    %v64 = vsel %vm63, %v61, 0.0
    %v65 = vrot.slane %v64, 4
    %v66 = vadd.f32 %v64, %v65
    %v67 = vrot.slane %v66, 2
    %v68 = vadd.f32 %v66, %v67
    %v69 = vrot.slane %v68, 1
    %v70 = vadd.f32 %v68, %v69
    %v71 = vsel %vm63, %v62, 0.0
    %v72 = vrot.slane %v71, 4
    %v73 = vadd.f32 %v71, %v72
    %v74 = vrot.slane %v73, 2
    %v75 = vadd.f32 %v73, %v74
    %v76 = vrot.slane %v75, 1
    %v77 = vadd.f32 %v75, %v76
    %v78 = vrcp.pop 4.0
    %v79 = vmul.f32 %v70, %v78
    %v80 = vmul.f32 %v77, %v78
    %v81 = vmul.f32 %v61, %v61
    %v82 = vmul.f32 %v62, %v62
    %v83 = vsel %vm63, %v81, 0.0
    %v84 = vrot.slane %v83, 4
    %v85 = vadd.f32 %v83, %v84
    %v86 = vrot.slane %v85, 2
    %v87 = vadd.f32 %v85, %v86
    %v88 = vrot.slane %v87, 1
    %v89 = vadd.f32 %v87, %v88
    %v90 = vsel %vm63, %v82, 0.0
    %v91 = vrot.slane %v90, 4
    %v92 = vadd.f32 %v90, %v91
    %v93 = vrot.slane %v92, 2
    %v94 = vadd.f32 %v92, %v93
    %v95 = vrot.slane %v94, 1
    %v96 = vadd.f32 %v94, %v95
    %v97 = vmul.f32 %v89, %v78
    %v98 = vmul.f32 %v96, %v78
    %v99 = vmul.f32 %v79, %v79
    %v100 = vmul.f32 %v80, %v80
    %v101 = vsub.f32 %v97, %v99
    %v102 = vsub.f32 %v98, %v100
    %v103 = vmax.f32 %v101, 0.0
    %v104 = vmax.f32 %v102, 0.0
    %v105 = vsub.f32 %v61, %v79
    %v106 = vsub.f32 %v62, %v80
    %v107 = vadd.f32 %v103, 1e-05
    %v108 = vadd.f32 %v104, 1e-05
    %v109 = vrsqrt.pop %v107
    %v110 = vrsqrt.pop %v108
    %v111 = vmul.f32 %v105, %v109
    %v112 = vmul.f32 %v106, %v110
    %v113 = vld [vmem:[%s1] sm:$0xf]
    %v114 = vld [vmem:[%s1 + $0x4] sm:$0xf]
    %v115 = vsel %vm63, %v113, 0.0
    %v116 = vrot.slane %v115, 4
    %v117 = vadd.f32 %v115, %v116
    %v118 = vrot.slane %v117, 2
    %v119 = vadd.f32 %v117, %v118
    %v120 = vrot.slane %v119, 1
    %v121 = vadd.f32 %v119, %v120
    %v122 = vsel %vm63, %v114, 0.0
    %v123 = vrot.slane %v122, 4
    %v124 = vadd.f32 %v122, %v123
    %v125 = vrot.slane %v124, 2
    %v126 = vadd.f32 %v124, %v125
    %v127 = vrot.slane %v126, 1
    %v128 = vadd.f32 %v126, %v127
    %v129 = vmul.f32 %v121, %v78
    %v130 = vmul.f32 %v128, %v78
    %v131 = vmul.f32 %v113, %v113
    %v132 = vmul.f32 %v114, %v114
    %v133 = vsel %vm63, %v131, 0.0
    %v134 = vrot.slane %v133, 4
    %v135 = vadd.f32 %v133, %v134
    %v136 = vrot.slane %v135, 2
    %v137 = vadd.f32 %v135, %v136
    %v138 = vrot.slane %v137, 1
    %v139 = vadd.f32 %v137, %v138
    %v140 = vsel %vm63, %v132, 0.0
    %v141 = vrot.slane %v140, 4
    %v142 = vadd.f32 %v140, %v141
    %v143 = vrot.slane %v142, 2
    %v144 = vadd.f32 %v142, %v143
    %v145 = vrot.slane %v144, 1
    %v146 = vadd.f32 %v144, %v145
    %v147 = vmul.f32 %v139, %v78
    %v148 = vmul.f32 %v146, %v78
    %v149 = vmul.f32 %v129, %v129
    %v150 = vmul.f32 %v130, %v130
    %v151 = vsub.f32 %v147, %v149
    %v152 = vsub.f32 %v148, %v150
    %v153 = vmax.f32 %v151, 0.0
    %v154 = vmax.f32 %v152, 0.0
    %v155 = vsub.f32 %v113, %v129
    %v156 = vsub.f32 %v114, %v130
    %v157 = vadd.f32 %v153, 1e-05
    %v158 = vadd.f32 %v154, 1e-05
    %v159 = vrsqrt.pop %v157
    %v160 = vrsqrt.pop %v158
    %v161 = vmul.f32 %v155, %v159
    %v162 = vmul.f32 %v156, %v160
    %v163 = vld [vmem:[%s2] sm:$0xff]
    %v166 = vcombine.low %v111, %v112
    %v168 = vlaneseq
    %v169 = vshrl.u32 %v168, 7
    %v170 = vsub.s32 0, %v169
    %v171 = vrot.slane %v166, %v170
    %173 = vbcast.lane.b32.xlu0 %v171, 256
    %v174 = vpop.permute.xlu0 %173
    %s176 = sor.u32 256, 8
    %177 = vbcast.lane.b32.xlu0 %v171, %s176
    %v178 = vpop.permute.xlu0 %177
    %s180 = sor.u32 256, 16
    %181 = vbcast.lane.b32.xlu0 %v171, %s180
    %v182 = vpop.permute.xlu0 %181
    %s184 = sor.u32 256, 24
    %185 = vbcast.lane.b32.xlu0 %v171, %s184
    %v186 = vpop.permute.xlu0 %185
    %s188 = sor.u32 256, 32
    %189 = vbcast.lane.b32.xlu0 %v171, %s188
    %v190 = vpop.permute.xlu0 %189
    %s192 = sor.u32 256, 40
    %193 = vbcast.lane.b32.xlu0 %v171, %s192
    %v194 = vpop.permute.xlu0 %193
    %s196 = sor.u32 256, 48
    %197 = vbcast.lane.b32.xlu0 %v171, %s196
    %v198 = vpop.permute.xlu0 %197
    %s200 = sor.u32 256, 56
    %201 = vbcast.lane.b32.xlu0 %v171, %s200
    %v202 = vpop.permute.xlu0 %201
    %v203 = vlaneseq
    %v204 = vshrl.u32 %v203, 7
    %v205 = vsub.s32 1, %v204
    %v206 = vrot.slane %v166, %v205
    %208 = vbcast.lane.b32.xlu0 %v206, 256
    %v209 = vpop.permute.xlu0 %208
    %s211 = sor.u32 256, 8
    %212 = vbcast.lane.b32.xlu0 %v206, %s211
    %v213 = vpop.permute.xlu0 %212
    %s215 = sor.u32 256, 16
    %216 = vbcast.lane.b32.xlu0 %v206, %s215
    %v217 = vpop.permute.xlu0 %216
    %s219 = sor.u32 256, 24
    %220 = vbcast.lane.b32.xlu0 %v206, %s219
    %v221 = vpop.permute.xlu0 %220
    %s223 = sor.u32 256, 32
    %224 = vbcast.lane.b32.xlu0 %v206, %s223
    %v225 = vpop.permute.xlu0 %224
    %s227 = sor.u32 256, 40
    %228 = vbcast.lane.b32.xlu0 %v206, %s227
    %v229 = vpop.permute.xlu0 %228
    %s231 = sor.u32 256, 48
    %232 = vbcast.lane.b32.xlu0 %v206, %s231
    %v233 = vpop.permute.xlu0 %232
    %s235 = sor.u32 256, 56
    %236 = vbcast.lane.b32.xlu0 %v206, %s235
    %v237 = vpop.permute.xlu0 %236
    %v238 = vlaneseq
    %v239 = vshrl.u32 %v238, 7
    %v240 = vsub.s32 2, %v239
    %v241 = vrot.slane %v166, %v240
    %243 = vbcast.lane.b32.xlu0 %v241, 256
    %v244 = vpop.permute.xlu0 %243
    %s246 = sor.u32 256, 8
    %247 = vbcast.lane.b32.xlu0 %v241, %s246
    %v248 = vpop.permute.xlu0 %247
    %s250 = sor.u32 256, 16
    %251 = vbcast.lane.b32.xlu0 %v241, %s250
    %v252 = vpop.permute.xlu0 %251
    %s254 = sor.u32 256, 24
    %255 = vbcast.lane.b32.xlu0 %v241, %s254
    %v256 = vpop.permute.xlu0 %255
    %s258 = sor.u32 256, 32
    %259 = vbcast.lane.b32.xlu0 %v241, %s258
    %v260 = vpop.permute.xlu0 %259
    %s262 = sor.u32 256, 40
    %263 = vbcast.lane.b32.xlu0 %v241, %s262
    %v264 = vpop.permute.xlu0 %263
    %s266 = sor.u32 256, 48
    %267 = vbcast.lane.b32.xlu0 %v241, %s266
    %v268 = vpop.permute.xlu0 %267
    %s270 = sor.u32 256, 56
    %271 = vbcast.lane.b32.xlu0 %v241, %s270
    %v272 = vpop.permute.xlu0 %271
    %v273 = vlaneseq
    %v274 = vshrl.u32 %v273, 7
    %v275 = vsub.s32 3, %v274
    %v276 = vrot.slane %v166, %v275
    %278 = vbcast.lane.b32.xlu0 %v276, 256
    %v279 = vpop.permute.xlu0 %278
    %s281 = sor.u32 256, 8
    %282 = vbcast.lane.b32.xlu0 %v276, %s281
    %v283 = vpop.permute.xlu0 %282
    %s285 = sor.u32 256, 16
    %286 = vbcast.lane.b32.xlu0 %v276, %s285
    %v287 = vpop.permute.xlu0 %286
    %s289 = sor.u32 256, 24
    %290 = vbcast.lane.b32.xlu0 %v276, %s289
    %v291 = vpop.permute.xlu0 %290
    %s293 = sor.u32 256, 32
    %294 = vbcast.lane.b32.xlu0 %v276, %s293
    %v295 = vpop.permute.xlu0 %294
    %s297 = sor.u32 256, 40
    %298 = vbcast.lane.b32.xlu0 %v276, %s297
    %v299 = vpop.permute.xlu0 %298
    %s301 = sor.u32 256, 48
    %302 = vbcast.lane.b32.xlu0 %v276, %s301
    %v303 = vpop.permute.xlu0 %302
    %s305 = sor.u32 256, 56
    %306 = vbcast.lane.b32.xlu0 %v276, %s305
    %v307 = vpop.permute.xlu0 %306
    %v308 = vlaneseq
    %v309 = vshrl.u32 %v308, 7
    %v310 = vsub.s32 4, %v309
    %v311 = vrot.slane %v166, %v310
    %313 = vbcast.lane.b32.xlu0 %v311, 256
    %v314 = vpop.permute.xlu0 %313
    %s316 = sor.u32 256, 8
    %317 = vbcast.lane.b32.xlu0 %v311, %s316
    %v318 = vpop.permute.xlu0 %317
    %s320 = sor.u32 256, 16
    %321 = vbcast.lane.b32.xlu0 %v311, %s320
    %v322 = vpop.permute.xlu0 %321
    %s324 = sor.u32 256, 24
    %325 = vbcast.lane.b32.xlu0 %v311, %s324
    %v326 = vpop.permute.xlu0 %325
    %s328 = sor.u32 256, 32
    %329 = vbcast.lane.b32.xlu0 %v311, %s328
    %v330 = vpop.permute.xlu0 %329
    %s332 = sor.u32 256, 40
    %333 = vbcast.lane.b32.xlu0 %v311, %s332
    %v334 = vpop.permute.xlu0 %333
    %s336 = sor.u32 256, 48
    %337 = vbcast.lane.b32.xlu0 %v311, %s336
    %v338 = vpop.permute.xlu0 %337
    %s340 = sor.u32 256, 56
    %341 = vbcast.lane.b32.xlu0 %v311, %s340
    %v342 = vpop.permute.xlu0 %341
    %v343 = vlaneseq
    %v344 = vshrl.u32 %v343, 7
    %v345 = vsub.s32 5, %v344
    %v346 = vrot.slane %v166, %v345
    %348 = vbcast.lane.b32.xlu0 %v346, 256
    %v349 = vpop.permute.xlu0 %348
    %s351 = sor.u32 256, 8
    %352 = vbcast.lane.b32.xlu0 %v346, %s351
    %v353 = vpop.permute.xlu0 %352
    %s355 = sor.u32 256, 16
    %356 = vbcast.lane.b32.xlu0 %v346, %s355
    %v357 = vpop.permute.xlu0 %356
    %s359 = sor.u32 256, 24
    %360 = vbcast.lane.b32.xlu0 %v346, %s359
    %v361 = vpop.permute.xlu0 %360
    %s363 = sor.u32 256, 32
    %364 = vbcast.lane.b32.xlu0 %v346, %s363
    %v365 = vpop.permute.xlu0 %364
    %s367 = sor.u32 256, 40
    %368 = vbcast.lane.b32.xlu0 %v346, %s367
    %v369 = vpop.permute.xlu0 %368
    %s371 = sor.u32 256, 48
    %372 = vbcast.lane.b32.xlu0 %v346, %s371
    %v373 = vpop.permute.xlu0 %372
    %s375 = sor.u32 256, 56
    %376 = vbcast.lane.b32.xlu0 %v346, %s375
    %v377 = vpop.permute.xlu0 %376
    %v378 = vlaneseq
    %v379 = vshrl.u32 %v378, 7
    %v380 = vsub.s32 6, %v379
    %v381 = vrot.slane %v166, %v380
    %383 = vbcast.lane.b32.xlu0 %v381, 256
    %v384 = vpop.permute.xlu0 %383
    %s386 = sor.u32 256, 8
    %387 = vbcast.lane.b32.xlu0 %v381, %s386
    %v388 = vpop.permute.xlu0 %387
    %s390 = sor.u32 256, 16
    %391 = vbcast.lane.b32.xlu0 %v381, %s390
    %v392 = vpop.permute.xlu0 %391
    %s394 = sor.u32 256, 24
    %395 = vbcast.lane.b32.xlu0 %v381, %s394
    %v396 = vpop.permute.xlu0 %395
    %s398 = sor.u32 256, 32
    %399 = vbcast.lane.b32.xlu0 %v381, %s398
    %v400 = vpop.permute.xlu0 %399
    %s402 = sor.u32 256, 40
    %403 = vbcast.lane.b32.xlu0 %v381, %s402
    %v404 = vpop.permute.xlu0 %403
    %s406 = sor.u32 256, 48
    %407 = vbcast.lane.b32.xlu0 %v381, %s406
    %v408 = vpop.permute.xlu0 %407
    %s410 = sor.u32 256, 56
    %411 = vbcast.lane.b32.xlu0 %v381, %s410
    %v412 = vpop.permute.xlu0 %411
    %v413 = vlaneseq
    %v414 = vshrl.u32 %v413, 7
    %v415 = vsub.s32 7, %v414
    %v416 = vrot.slane %v166, %v415
    %418 = vbcast.lane.b32.xlu0 %v416, 256
    %v419 = vpop.permute.xlu0 %418
    %s421 = sor.u32 256, 8
    %422 = vbcast.lane.b32.xlu0 %v416, %s421
    %v423 = vpop.permute.xlu0 %422
    %s425 = sor.u32 256, 16
    %426 = vbcast.lane.b32.xlu0 %v416, %s425
    %v427 = vpop.permute.xlu0 %426
    %s429 = sor.u32 256, 24
    %430 = vbcast.lane.b32.xlu0 %v416, %s429
    %v431 = vpop.permute.xlu0 %430
    %s433 = sor.u32 256, 32
    %434 = vbcast.lane.b32.xlu0 %v416, %s433
    %v435 = vpop.permute.xlu0 %434
    %s437 = sor.u32 256, 40
    %438 = vbcast.lane.b32.xlu0 %v416, %s437
    %v439 = vpop.permute.xlu0 %438
    %s441 = sor.u32 256, 48
    %442 = vbcast.lane.b32.xlu0 %v416, %s441
    %v443 = vpop.permute.xlu0 %442
    %s445 = sor.u32 256, 56
    %446 = vbcast.lane.b32.xlu0 %v416, %s445
    %v447 = vpop.permute.xlu0 %446
    %v448 = vlaneseq
    %v449 = vshrl.u32 %v448, 7
    %v450 = vsub.s32 0, %v449
    %v451 = vrot.slane %v163, %v450
    %v452 = vmul.f32 %v174, %v451
    %v453 = vmul.f32 %v178, %v451
    %v454 = vmul.f32 %v182, %v451
    %v455 = vmul.f32 %v186, %v451
    %v456 = vmul.f32 %v190, %v451
    %v457 = vmul.f32 %v194, %v451
    %v458 = vmul.f32 %v198, %v451
    %v459 = vmul.f32 %v202, %v451
    %v460 = vmul.f32 %v209, %v451
    %v461 = vmul.f32 %v213, %v451
    %v462 = vmul.f32 %v217, %v451
    %v463 = vmul.f32 %v221, %v451
    %v464 = vmul.f32 %v225, %v451
    %v465 = vmul.f32 %v229, %v451
    %v466 = vmul.f32 %v233, %v451
    %v467 = vmul.f32 %v237, %v451
    %v468 = vmul.f32 %v244, %v451
    %v469 = vmul.f32 %v248, %v451
    %v470 = vmul.f32 %v252, %v451
    %v471 = vmul.f32 %v256, %v451
    %v472 = vmul.f32 %v260, %v451
    %v473 = vmul.f32 %v264, %v451
    %v474 = vmul.f32 %v268, %v451
    %v475 = vmul.f32 %v272, %v451
    %v476 = vmul.f32 %v279, %v451
    %v477 = vmul.f32 %v283, %v451
    %v478 = vmul.f32 %v287, %v451
    %v479 = vmul.f32 %v291, %v451
    %v480 = vmul.f32 %v295, %v451
    %v481 = vmul.f32 %v299, %v451
    %v482 = vmul.f32 %v303, %v451
    %v483 = vmul.f32 %v307, %v451
    %v484 = vmul.f32 %v314, %v451
    %v485 = vmul.f32 %v318, %v451
    %v486 = vmul.f32 %v322, %v451
    %v487 = vmul.f32 %v326, %v451
    %v488 = vmul.f32 %v330, %v451
    %v489 = vmul.f32 %v334, %v451
    %v490 = vmul.f32 %v338, %v451
    %v491 = vmul.f32 %v342, %v451
    %v492 = vmul.f32 %v349, %v451
    %v493 = vmul.f32 %v353, %v451
    %v494 = vmul.f32 %v357, %v451
    %v495 = vmul.f32 %v361, %v451
    %v496 = vmul.f32 %v365, %v451
    %v497 = vmul.f32 %v369, %v451
    %v498 = vmul.f32 %v373, %v451
    %v499 = vmul.f32 %v377, %v451
    %v500 = vmul.f32 %v384, %v451
    %v501 = vmul.f32 %v388, %v451
    %v502 = vmul.f32 %v392, %v451
    %v503 = vmul.f32 %v396, %v451
    %v504 = vmul.f32 %v400, %v451
    %v505 = vmul.f32 %v404, %v451
    %v506 = vmul.f32 %v408, %v451
    %v507 = vmul.f32 %v412, %v451
    %v508 = vmul.f32 %v419, %v451
    %v509 = vmul.f32 %v423, %v451
    %v510 = vmul.f32 %v427, %v451
    %v511 = vmul.f32 %v431, %v451
    %v512 = vmul.f32 %v435, %v451
    %v513 = vmul.f32 %v439, %v451
    %v514 = vmul.f32 %v443, %v451
    %v515 = vmul.f32 %v447, %v451
    %v518 = vcombine.low %v161, %v162
    %v520 = vlaneseq
    %v521 = vshrl.u32 %v520, 7
    %v522 = vsub.s32 0, %v521
    %v523 = vrot.slane %v518, %v522
    %525 = vbcast.lane.b32.xlu0 %v523, 256
    %v526 = vpop.permute.xlu0 %525
    %s528 = sor.u32 256, 8
    %529 = vbcast.lane.b32.xlu0 %v523, %s528
    %v530 = vpop.permute.xlu0 %529
    %s532 = sor.u32 256, 16
    %533 = vbcast.lane.b32.xlu0 %v523, %s532
    %v534 = vpop.permute.xlu0 %533
    %s536 = sor.u32 256, 24
    %537 = vbcast.lane.b32.xlu0 %v523, %s536
    %v538 = vpop.permute.xlu0 %537
    %s540 = sor.u32 256, 32
    %541 = vbcast.lane.b32.xlu0 %v523, %s540
    %v542 = vpop.permute.xlu0 %541
    %s544 = sor.u32 256, 40
    %545 = vbcast.lane.b32.xlu0 %v523, %s544
    %v546 = vpop.permute.xlu0 %545
    %s548 = sor.u32 256, 48
    %549 = vbcast.lane.b32.xlu0 %v523, %s548
    %v550 = vpop.permute.xlu0 %549
    %s552 = sor.u32 256, 56
    %553 = vbcast.lane.b32.xlu0 %v523, %s552
    %v554 = vpop.permute.xlu0 %553
    %v555 = vlaneseq
    %v556 = vshrl.u32 %v555, 7
    %v557 = vsub.s32 1, %v556
    %v558 = vrot.slane %v518, %v557
    %560 = vbcast.lane.b32.xlu0 %v558, 256
    %v561 = vpop.permute.xlu0 %560
    %s563 = sor.u32 256, 8
    %564 = vbcast.lane.b32.xlu0 %v558, %s563
    %v565 = vpop.permute.xlu0 %564
    %s567 = sor.u32 256, 16
    %568 = vbcast.lane.b32.xlu0 %v558, %s567
    %v569 = vpop.permute.xlu0 %568
    %s571 = sor.u32 256, 24
    %572 = vbcast.lane.b32.xlu0 %v558, %s571
    %v573 = vpop.permute.xlu0 %572
    %s575 = sor.u32 256, 32
    %576 = vbcast.lane.b32.xlu0 %v558, %s575
    %v577 = vpop.permute.xlu0 %576
    %s579 = sor.u32 256, 40
    %580 = vbcast.lane.b32.xlu0 %v558, %s579
    %v581 = vpop.permute.xlu0 %580
    %s583 = sor.u32 256, 48
    %584 = vbcast.lane.b32.xlu0 %v558, %s583
    %v585 = vpop.permute.xlu0 %584
    %s587 = sor.u32 256, 56
    %588 = vbcast.lane.b32.xlu0 %v558, %s587
    %v589 = vpop.permute.xlu0 %588
    %v590 = vlaneseq
    %v591 = vshrl.u32 %v590, 7
    %v592 = vsub.s32 2, %v591
    %v593 = vrot.slane %v518, %v592
    %595 = vbcast.lane.b32.xlu0 %v593, 256
    %v596 = vpop.permute.xlu0 %595
    %s598 = sor.u32 256, 8
    %599 = vbcast.lane.b32.xlu0 %v593, %s598
    %v600 = vpop.permute.xlu0 %599
    %s602 = sor.u32 256, 16
    %603 = vbcast.lane.b32.xlu0 %v593, %s602
    %v604 = vpop.permute.xlu0 %603
    %s606 = sor.u32 256, 24
    %607 = vbcast.lane.b32.xlu0 %v593, %s606
    %v608 = vpop.permute.xlu0 %607
    %s610 = sor.u32 256, 32
    %611 = vbcast.lane.b32.xlu0 %v593, %s610
    %v612 = vpop.permute.xlu0 %611
    %s614 = sor.u32 256, 40
    %615 = vbcast.lane.b32.xlu0 %v593, %s614
    %v616 = vpop.permute.xlu0 %615
    %s618 = sor.u32 256, 48
    %619 = vbcast.lane.b32.xlu0 %v593, %s618
    %v620 = vpop.permute.xlu0 %619
    %s622 = sor.u32 256, 56
    %623 = vbcast.lane.b32.xlu0 %v593, %s622
    %v624 = vpop.permute.xlu0 %623
    %v625 = vlaneseq
    %v626 = vshrl.u32 %v625, 7
    %v627 = vsub.s32 3, %v626
    %v628 = vrot.slane %v518, %v627
    %630 = vbcast.lane.b32.xlu0 %v628, 256
    %v631 = vpop.permute.xlu0 %630
    %s633 = sor.u32 256, 8
    %634 = vbcast.lane.b32.xlu0 %v628, %s633
    %v635 = vpop.permute.xlu0 %634
    %s637 = sor.u32 256, 16
    %638 = vbcast.lane.b32.xlu0 %v628, %s637
    %v639 = vpop.permute.xlu0 %638
    %s641 = sor.u32 256, 24
    %642 = vbcast.lane.b32.xlu0 %v628, %s641
    %v643 = vpop.permute.xlu0 %642
    %s645 = sor.u32 256, 32
    %646 = vbcast.lane.b32.xlu0 %v628, %s645
    %v647 = vpop.permute.xlu0 %646
    %s649 = sor.u32 256, 40
    %650 = vbcast.lane.b32.xlu0 %v628, %s649
    %v651 = vpop.permute.xlu0 %650
    %s653 = sor.u32 256, 48
    %654 = vbcast.lane.b32.xlu0 %v628, %s653
    %v655 = vpop.permute.xlu0 %654
    %s657 = sor.u32 256, 56
    %658 = vbcast.lane.b32.xlu0 %v628, %s657
    %v659 = vpop.permute.xlu0 %658
    %v660 = vlaneseq
    %v661 = vshrl.u32 %v660, 7
    %v662 = vsub.s32 4, %v661
    %v663 = vrot.slane %v518, %v662
    %665 = vbcast.lane.b32.xlu0 %v663, 256
    %v666 = vpop.permute.xlu0 %665
    %s668 = sor.u32 256, 8
    %669 = vbcast.lane.b32.xlu0 %v663, %s668
    %v670 = vpop.permute.xlu0 %669
    %s672 = sor.u32 256, 16
    %673 = vbcast.lane.b32.xlu0 %v663, %s672
    %v674 = vpop.permute.xlu0 %673
    %s676 = sor.u32 256, 24
    %677 = vbcast.lane.b32.xlu0 %v663, %s676
    %v678 = vpop.permute.xlu0 %677
    %s680 = sor.u32 256, 32
    %681 = vbcast.lane.b32.xlu0 %v663, %s680
    %v682 = vpop.permute.xlu0 %681
    %s684 = sor.u32 256, 40
    %685 = vbcast.lane.b32.xlu0 %v663, %s684
    %v686 = vpop.permute.xlu0 %685
    %s688 = sor.u32 256, 48
    %689 = vbcast.lane.b32.xlu0 %v663, %s688
    %v690 = vpop.permute.xlu0 %689
    %s692 = sor.u32 256, 56
    %693 = vbcast.lane.b32.xlu0 %v663, %s692
    %v694 = vpop.permute.xlu0 %693
    %v695 = vlaneseq
    %v696 = vshrl.u32 %v695, 7
    %v697 = vsub.s32 5, %v696
    %v698 = vrot.slane %v518, %v697
    %700 = vbcast.lane.b32.xlu0 %v698, 256
    %v701 = vpop.permute.xlu0 %700
    %s703 = sor.u32 256, 8
    %704 = vbcast.lane.b32.xlu0 %v698, %s703
    %v705 = vpop.permute.xlu0 %704
    %s707 = sor.u32 256, 16
    %708 = vbcast.lane.b32.xlu0 %v698, %s707
    %v709 = vpop.permute.xlu0 %708
    %s711 = sor.u32 256, 24
    %712 = vbcast.lane.b32.xlu0 %v698, %s711
    %v713 = vpop.permute.xlu0 %712
    %s715 = sor.u32 256, 32
    %716 = vbcast.lane.b32.xlu0 %v698, %s715
    %v717 = vpop.permute.xlu0 %716
    %s719 = sor.u32 256, 40
    %720 = vbcast.lane.b32.xlu0 %v698, %s719
    %v721 = vpop.permute.xlu0 %720
    %s723 = sor.u32 256, 48
    %724 = vbcast.lane.b32.xlu0 %v698, %s723
    %v725 = vpop.permute.xlu0 %724
    %s727 = sor.u32 256, 56
    %728 = vbcast.lane.b32.xlu0 %v698, %s727
    %v729 = vpop.permute.xlu0 %728
    %v730 = vlaneseq
    %v731 = vshrl.u32 %v730, 7
    %v732 = vsub.s32 6, %v731
    %v733 = vrot.slane %v518, %v732
    %735 = vbcast.lane.b32.xlu0 %v733, 256
    %v736 = vpop.permute.xlu0 %735
    %s738 = sor.u32 256, 8
    %739 = vbcast.lane.b32.xlu0 %v733, %s738
    %v740 = vpop.permute.xlu0 %739
    %s742 = sor.u32 256, 16
    %743 = vbcast.lane.b32.xlu0 %v733, %s742
    %v744 = vpop.permute.xlu0 %743
    %s746 = sor.u32 256, 24
    %747 = vbcast.lane.b32.xlu0 %v733, %s746
    %v748 = vpop.permute.xlu0 %747
    %s750 = sor.u32 256, 32
    %751 = vbcast.lane.b32.xlu0 %v733, %s750
    %v752 = vpop.permute.xlu0 %751
    %s754 = sor.u32 256, 40
    %755 = vbcast.lane.b32.xlu0 %v733, %s754
    %v756 = vpop.permute.xlu0 %755
    %s758 = sor.u32 256, 48
    %759 = vbcast.lane.b32.xlu0 %v733, %s758
    %v760 = vpop.permute.xlu0 %759
    %s762 = sor.u32 256, 56
    %763 = vbcast.lane.b32.xlu0 %v733, %s762
    %v764 = vpop.permute.xlu0 %763
    %v765 = vlaneseq
    %v766 = vshrl.u32 %v765, 7
    %v767 = vsub.s32 7, %v766
    %v768 = vrot.slane %v518, %v767
    %770 = vbcast.lane.b32.xlu0 %v768, 256
    %v771 = vpop.permute.xlu0 %770
    %s773 = sor.u32 256, 8
    %774 = vbcast.lane.b32.xlu0 %v768, %s773
    %v775 = vpop.permute.xlu0 %774
    %s777 = sor.u32 256, 16
    %778 = vbcast.lane.b32.xlu0 %v768, %s777
    %v779 = vpop.permute.xlu0 %778
    %s781 = sor.u32 256, 24
    %782 = vbcast.lane.b32.xlu0 %v768, %s781
    %v783 = vpop.permute.xlu0 %782
    %s785 = sor.u32 256, 32
    %786 = vbcast.lane.b32.xlu0 %v768, %s785
    %v787 = vpop.permute.xlu0 %786
    %s789 = sor.u32 256, 40
    %790 = vbcast.lane.b32.xlu0 %v768, %s789
    %v791 = vpop.permute.xlu0 %790
    %s793 = sor.u32 256, 48
    %794 = vbcast.lane.b32.xlu0 %v768, %s793
    %v795 = vpop.permute.xlu0 %794
    %s797 = sor.u32 256, 56
    %798 = vbcast.lane.b32.xlu0 %v768, %s797
    %v799 = vpop.permute.xlu0 %798
    %v800 = vlaneseq
    %v801 = vshrl.u32 %v800, 7
    %v802 = vsub.s32 1, %v801
    %v803 = vrot.slane %v163, %v802
    %v804 = vmul.f32 %v526, %v803
    %v805 = vmul.f32 %v530, %v803
    %v806 = vmul.f32 %v534, %v803
    %v807 = vmul.f32 %v538, %v803
    %v808 = vmul.f32 %v542, %v803
    %v809 = vmul.f32 %v546, %v803
    %v810 = vmul.f32 %v550, %v803
    %v811 = vmul.f32 %v554, %v803
    %v812 = vmul.f32 %v561, %v803
    %v813 = vmul.f32 %v565, %v803
    %v814 = vmul.f32 %v569, %v803
    %v815 = vmul.f32 %v573, %v803
    %v816 = vmul.f32 %v577, %v803
    %v817 = vmul.f32 %v581, %v803
    %v818 = vmul.f32 %v585, %v803
    %v819 = vmul.f32 %v589, %v803
    %v820 = vmul.f32 %v596, %v803
    %v821 = vmul.f32 %v600, %v803
    %v822 = vmul.f32 %v604, %v803
    %v823 = vmul.f32 %v608, %v803
    %v824 = vmul.f32 %v612, %v803
    %v825 = vmul.f32 %v616, %v803
    %v826 = vmul.f32 %v620, %v803
    %v827 = vmul.f32 %v624, %v803
    %v828 = vmul.f32 %v631, %v803
    %v829 = vmul.f32 %v635, %v803
    %v830 = vmul.f32 %v639, %v803
    %v831 = vmul.f32 %v643, %v803
    %v832 = vmul.f32 %v647, %v803
    %v833 = vmul.f32 %v651, %v803
    %v834 = vmul.f32 %v655, %v803
    %v835 = vmul.f32 %v659, %v803
    %v836 = vmul.f32 %v666, %v803
    %v837 = vmul.f32 %v670, %v803
    %v838 = vmul.f32 %v674, %v803
    %v839 = vmul.f32 %v678, %v803
    %v840 = vmul.f32 %v682, %v803
    %v841 = vmul.f32 %v686, %v803
    %v842 = vmul.f32 %v690, %v803
    %v843 = vmul.f32 %v694, %v803
    %v844 = vmul.f32 %v701, %v803
    %v845 = vmul.f32 %v705, %v803
    %v846 = vmul.f32 %v709, %v803
    %v847 = vmul.f32 %v713, %v803
    %v848 = vmul.f32 %v717, %v803
    %v849 = vmul.f32 %v721, %v803
    %v850 = vmul.f32 %v725, %v803
    %v851 = vmul.f32 %v729, %v803
    %v852 = vmul.f32 %v736, %v803
    %v853 = vmul.f32 %v740, %v803
    %v854 = vmul.f32 %v744, %v803
    %v855 = vmul.f32 %v748, %v803
    %v856 = vmul.f32 %v752, %v803
    %v857 = vmul.f32 %v756, %v803
    %v858 = vmul.f32 %v760, %v803
    %v859 = vmul.f32 %v764, %v803
    %v860 = vmul.f32 %v771, %v803
    %v861 = vmul.f32 %v775, %v803
    %v862 = vmul.f32 %v779, %v803
    %v863 = vmul.f32 %v783, %v803
    %v864 = vmul.f32 %v787, %v803
    %v865 = vmul.f32 %v791, %v803
    %v866 = vmul.f32 %v795, %v803
    %v867 = vmul.f32 %v799, %v803
    %v868 = vadd.f32 %v452, %v804
    %v869 = vadd.f32 %v453, %v805
    %v870 = vadd.f32 %v454, %v806
    %v871 = vadd.f32 %v455, %v807
    %v872 = vadd.f32 %v456, %v808
    %v873 = vadd.f32 %v457, %v809
    %v874 = vadd.f32 %v458, %v810
    %v875 = vadd.f32 %v459, %v811
    %v876 = vadd.f32 %v460, %v812
    %v877 = vadd.f32 %v461, %v813
    %v878 = vadd.f32 %v462, %v814
    %v879 = vadd.f32 %v463, %v815
    %v880 = vadd.f32 %v464, %v816
    %v881 = vadd.f32 %v465, %v817
    %v882 = vadd.f32 %v466, %v818
    %v883 = vadd.f32 %v467, %v819
    %v884 = vadd.f32 %v468, %v820
    %v885 = vadd.f32 %v469, %v821
    %v886 = vadd.f32 %v470, %v822
    %v887 = vadd.f32 %v471, %v823
    %v888 = vadd.f32 %v472, %v824
    %v889 = vadd.f32 %v473, %v825
    %v890 = vadd.f32 %v474, %v826
    %v891 = vadd.f32 %v475, %v827
    %v892 = vadd.f32 %v476, %v828
    %v893 = vadd.f32 %v477, %v829
    %v894 = vadd.f32 %v478, %v830
    %v895 = vadd.f32 %v479, %v831
    %v896 = vadd.f32 %v480, %v832
    %v897 = vadd.f32 %v481, %v833
    %v898 = vadd.f32 %v482, %v834
    %v899 = vadd.f32 %v483, %v835
    %v900 = vadd.f32 %v484, %v836
    %v901 = vadd.f32 %v485, %v837
    %v902 = vadd.f32 %v486, %v838
    %v903 = vadd.f32 %v487, %v839
    %v904 = vadd.f32 %v488, %v840
    %v905 = vadd.f32 %v489, %v841
    %v906 = vadd.f32 %v490, %v842
    %v907 = vadd.f32 %v491, %v843
    %v908 = vadd.f32 %v492, %v844
    %v909 = vadd.f32 %v493, %v845
    %v910 = vadd.f32 %v494, %v846
    %v911 = vadd.f32 %v495, %v847
    %v912 = vadd.f32 %v496, %v848
    %v913 = vadd.f32 %v497, %v849
    %v914 = vadd.f32 %v498, %v850
    %v915 = vadd.f32 %v499, %v851
    %v916 = vadd.f32 %v500, %v852
    %v917 = vadd.f32 %v501, %v853
    %v918 = vadd.f32 %v502, %v854
    %v919 = vadd.f32 %v503, %v855
    %v920 = vadd.f32 %v504, %v856
    %v921 = vadd.f32 %v505, %v857
    %v922 = vadd.f32 %v506, %v858
    %v923 = vadd.f32 %v507, %v859
    %v924 = vadd.f32 %v508, %v860
    %v925 = vadd.f32 %v509, %v861
    %v926 = vadd.f32 %v510, %v862
    %v927 = vadd.f32 %v511, %v863
    %v928 = vadd.f32 %v512, %v864
    %v929 = vadd.f32 %v513, %v865
    %v930 = vadd.f32 %v514, %v866
    %v931 = vadd.f32 %v515, %v867
    %s933 = sor.u32 256, 1
    %934 = vbcast.lane.b32.xlu0 %v171, %s933
    %v935 = vpop.permute.xlu0 %934
    %s937 = sor.u32 256, 9
    %938 = vbcast.lane.b32.xlu0 %v171, %s937
    %v939 = vpop.permute.xlu0 %938
    %s941 = sor.u32 256, 17
    %942 = vbcast.lane.b32.xlu0 %v171, %s941
    %v943 = vpop.permute.xlu0 %942
    %s945 = sor.u32 256, 25
    %946 = vbcast.lane.b32.xlu0 %v171, %s945
    %v947 = vpop.permute.xlu0 %946
    %s949 = sor.u32 256, 33
    %950 = vbcast.lane.b32.xlu0 %v171, %s949
    %v951 = vpop.permute.xlu0 %950
    %s953 = sor.u32 256, 41
    %954 = vbcast.lane.b32.xlu0 %v171, %s953
    %v955 = vpop.permute.xlu0 %954
    %s957 = sor.u32 256, 49
    %958 = vbcast.lane.b32.xlu0 %v171, %s957
    %v959 = vpop.permute.xlu0 %958
    %s961 = sor.u32 256, 57
    %962 = vbcast.lane.b32.xlu0 %v171, %s961
    %v963 = vpop.permute.xlu0 %962
    %s965 = sor.u32 256, 1
    %966 = vbcast.lane.b32.xlu0 %v206, %s965
    %v967 = vpop.permute.xlu0 %966
    %s969 = sor.u32 256, 9
    %970 = vbcast.lane.b32.xlu0 %v206, %s969
    %v971 = vpop.permute.xlu0 %970
    %s973 = sor.u32 256, 17
    %974 = vbcast.lane.b32.xlu0 %v206, %s973
    %v975 = vpop.permute.xlu0 %974
    %s977 = sor.u32 256, 25
    %978 = vbcast.lane.b32.xlu0 %v206, %s977
    %v979 = vpop.permute.xlu0 %978
    %s981 = sor.u32 256, 33
    %982 = vbcast.lane.b32.xlu0 %v206, %s981
    %v983 = vpop.permute.xlu0 %982
    %s985 = sor.u32 256, 41
    %986 = vbcast.lane.b32.xlu0 %v206, %s985
    %v987 = vpop.permute.xlu0 %986
    %s989 = sor.u32 256, 49
    %990 = vbcast.lane.b32.xlu0 %v206, %s989
    %v991 = vpop.permute.xlu0 %990
    %s993 = sor.u32 256, 57
    %994 = vbcast.lane.b32.xlu0 %v206, %s993
    %v995 = vpop.permute.xlu0 %994
    %s997 = sor.u32 256, 1
    %998 = vbcast.lane.b32.xlu0 %v241, %s997
    %v999 = vpop.permute.xlu0 %998
    %s1001 = sor.u32 256, 9
    %1002 = vbcast.lane.b32.xlu0 %v241, %s1001
    %v1003 = vpop.permute.xlu0 %1002
    %s1005 = sor.u32 256, 17
    %1006 = vbcast.lane.b32.xlu0 %v241, %s1005
    %v1007 = vpop.permute.xlu0 %1006
    %s1009 = sor.u32 256, 25
    %1010 = vbcast.lane.b32.xlu0 %v241, %s1009
    %v1011 = vpop.permute.xlu0 %1010
    %s1013 = sor.u32 256, 33
    %1014 = vbcast.lane.b32.xlu0 %v241, %s1013
    %v1015 = vpop.permute.xlu0 %1014
    %s1017 = sor.u32 256, 41
    %1018 = vbcast.lane.b32.xlu0 %v241, %s1017
    %v1019 = vpop.permute.xlu0 %1018
    %s1021 = sor.u32 256, 49
    %1022 = vbcast.lane.b32.xlu0 %v241, %s1021
    %v1023 = vpop.permute.xlu0 %1022
    %s1025 = sor.u32 256, 57
    %1026 = vbcast.lane.b32.xlu0 %v241, %s1025
    %v1027 = vpop.permute.xlu0 %1026
    %s1029 = sor.u32 256, 1
    %1030 = vbcast.lane.b32.xlu0 %v276, %s1029
    %v1031 = vpop.permute.xlu0 %1030
    %s1033 = sor.u32 256, 9
    %1034 = vbcast.lane.b32.xlu0 %v276, %s1033
    %v1035 = vpop.permute.xlu0 %1034
    %s1037 = sor.u32 256, 17
    %1038 = vbcast.lane.b32.xlu0 %v276, %s1037
    %v1039 = vpop.permute.xlu0 %1038
    %s1041 = sor.u32 256, 25
    %1042 = vbcast.lane.b32.xlu0 %v276, %s1041
    %v1043 = vpop.permute.xlu0 %1042
    %s1045 = sor.u32 256, 33
    %1046 = vbcast.lane.b32.xlu0 %v276, %s1045
    %v1047 = vpop.permute.xlu0 %1046
    %s1049 = sor.u32 256, 41
    %1050 = vbcast.lane.b32.xlu0 %v276, %s1049
    %v1051 = vpop.permute.xlu0 %1050
    %s1053 = sor.u32 256, 49
    %1054 = vbcast.lane.b32.xlu0 %v276, %s1053
    %v1055 = vpop.permute.xlu0 %1054
    %s1057 = sor.u32 256, 57
    %1058 = vbcast.lane.b32.xlu0 %v276, %s1057
    %v1059 = vpop.permute.xlu0 %1058
    %s1061 = sor.u32 256, 1
    %1062 = vbcast.lane.b32.xlu0 %v311, %s1061
    %v1063 = vpop.permute.xlu0 %1062
    %s1065 = sor.u32 256, 9
    %1066 = vbcast.lane.b32.xlu0 %v311, %s1065
    %v1067 = vpop.permute.xlu0 %1066
    %s1069 = sor.u32 256, 17
    %1070 = vbcast.lane.b32.xlu0 %v311, %s1069
    %v1071 = vpop.permute.xlu0 %1070
    %s1073 = sor.u32 256, 25
    %1074 = vbcast.lane.b32.xlu0 %v311, %s1073
    %v1075 = vpop.permute.xlu0 %1074
    %s1077 = sor.u32 256, 33
    %1078 = vbcast.lane.b32.xlu0 %v311, %s1077
    %v1079 = vpop.permute.xlu0 %1078
    %s1081 = sor.u32 256, 41
    %1082 = vbcast.lane.b32.xlu0 %v311, %s1081
    %v1083 = vpop.permute.xlu0 %1082
    %s1085 = sor.u32 256, 49
    %1086 = vbcast.lane.b32.xlu0 %v311, %s1085
    %v1087 = vpop.permute.xlu0 %1086
    %s1089 = sor.u32 256, 57
    %1090 = vbcast.lane.b32.xlu0 %v311, %s1089
    %v1091 = vpop.permute.xlu0 %1090
    %s1093 = sor.u32 256, 1
    %1094 = vbcast.lane.b32.xlu0 %v346, %s1093
    %v1095 = vpop.permute.xlu0 %1094
    %s1097 = sor.u32 256, 9
    %1098 = vbcast.lane.b32.xlu0 %v346, %s1097
    %v1099 = vpop.permute.xlu0 %1098
    %s1101 = sor.u32 256, 17
    %1102 = vbcast.lane.b32.xlu0 %v346, %s1101
    %v1103 = vpop.permute.xlu0 %1102
    %s1105 = sor.u32 256, 25
    %1106 = vbcast.lane.b32.xlu0 %v346, %s1105
    %v1107 = vpop.permute.xlu0 %1106
    %s1109 = sor.u32 256, 33
    %1110 = vbcast.lane.b32.xlu0 %v346, %s1109
    %v1111 = vpop.permute.xlu0 %1110
    %s1113 = sor.u32 256, 41
    %1114 = vbcast.lane.b32.xlu0 %v346, %s1113
    %v1115 = vpop.permute.xlu0 %1114
    %s1117 = sor.u32 256, 49
    %1118 = vbcast.lane.b32.xlu0 %v346, %s1117
    %v1119 = vpop.permute.xlu0 %1118
    %s1121 = sor.u32 256, 57
    %1122 = vbcast.lane.b32.xlu0 %v346, %s1121
    %v1123 = vpop.permute.xlu0 %1122
    %s1125 = sor.u32 256, 1
    %1126 = vbcast.lane.b32.xlu0 %v381, %s1125
    %v1127 = vpop.permute.xlu0 %1126
    %s1129 = sor.u32 256, 9
    %1130 = vbcast.lane.b32.xlu0 %v381, %s1129
    %v1131 = vpop.permute.xlu0 %1130
    %s1133 = sor.u32 256, 17
    %1134 = vbcast.lane.b32.xlu0 %v381, %s1133
    %v1135 = vpop.permute.xlu0 %1134
    %s1137 = sor.u32 256, 25
    %1138 = vbcast.lane.b32.xlu0 %v381, %s1137
    %v1139 = vpop.permute.xlu0 %1138
    %s1141 = sor.u32 256, 33
    %1142 = vbcast.lane.b32.xlu0 %v381, %s1141
    %v1143 = vpop.permute.xlu0 %1142
    %s1145 = sor.u32 256, 41
    %1146 = vbcast.lane.b32.xlu0 %v381, %s1145
    %v1147 = vpop.permute.xlu0 %1146
    %s1149 = sor.u32 256, 49
    %1150 = vbcast.lane.b32.xlu0 %v381, %s1149
    %v1151 = vpop.permute.xlu0 %1150
    %s1153 = sor.u32 256, 57
    %1154 = vbcast.lane.b32.xlu0 %v381, %s1153
    %v1155 = vpop.permute.xlu0 %1154
    %s1157 = sor.u32 256, 1
    %1158 = vbcast.lane.b32.xlu0 %v416, %s1157
    %v1159 = vpop.permute.xlu0 %1158
    %s1161 = sor.u32 256, 9
    %1162 = vbcast.lane.b32.xlu0 %v416, %s1161
    %v1163 = vpop.permute.xlu0 %1162
    %s1165 = sor.u32 256, 17
    %1166 = vbcast.lane.b32.xlu0 %v416, %s1165
    %v1167 = vpop.permute.xlu0 %1166
    %s1169 = sor.u32 256, 25
    %1170 = vbcast.lane.b32.xlu0 %v416, %s1169
    %v1171 = vpop.permute.xlu0 %1170
    %s1173 = sor.u32 256, 33
    %1174 = vbcast.lane.b32.xlu0 %v416, %s1173
    %v1175 = vpop.permute.xlu0 %1174
    %s1177 = sor.u32 256, 41
    %1178 = vbcast.lane.b32.xlu0 %v416, %s1177
    %v1179 = vpop.permute.xlu0 %1178
    %s1181 = sor.u32 256, 49
    %1182 = vbcast.lane.b32.xlu0 %v416, %s1181
    %v1183 = vpop.permute.xlu0 %1182
    %s1185 = sor.u32 256, 57
    %1186 = vbcast.lane.b32.xlu0 %v416, %s1185
    %v1187 = vpop.permute.xlu0 %1186
    %v1188 = vlaneseq
    %v1189 = vshrl.u32 %v1188, 7
    %v1190 = vsub.s32 2, %v1189
    %v1191 = vrot.slane %v163, %v1190
    %v1192 = vmul.f32 %v935, %v1191
    %v1193 = vmul.f32 %v939, %v1191
    %v1194 = vmul.f32 %v943, %v1191
    %v1195 = vmul.f32 %v947, %v1191
    %v1196 = vmul.f32 %v951, %v1191
    %v1197 = vmul.f32 %v955, %v1191
    %v1198 = vmul.f32 %v959, %v1191
    %v1199 = vmul.f32 %v963, %v1191
    %v1200 = vmul.f32 %v967, %v1191
    %v1201 = vmul.f32 %v971, %v1191
    %v1202 = vmul.f32 %v975, %v1191
    %v1203 = vmul.f32 %v979, %v1191
    %v1204 = vmul.f32 %v983, %v1191
    %v1205 = vmul.f32 %v987, %v1191
    %v1206 = vmul.f32 %v991, %v1191
    %v1207 = vmul.f32 %v995, %v1191
    %v1208 = vmul.f32 %v999, %v1191
    %v1209 = vmul.f32 %v1003, %v1191
    %v1210 = vmul.f32 %v1007, %v1191
    %v1211 = vmul.f32 %v1011, %v1191
    %v1212 = vmul.f32 %v1015, %v1191
    %v1213 = vmul.f32 %v1019, %v1191
    %v1214 = vmul.f32 %v1023, %v1191
    %v1215 = vmul.f32 %v1027, %v1191
    %v1216 = vmul.f32 %v1031, %v1191
    %v1217 = vmul.f32 %v1035, %v1191
    %v1218 = vmul.f32 %v1039, %v1191
    %v1219 = vmul.f32 %v1043, %v1191
    %v1220 = vmul.f32 %v1047, %v1191
    %v1221 = vmul.f32 %v1051, %v1191
    %v1222 = vmul.f32 %v1055, %v1191
    %v1223 = vmul.f32 %v1059, %v1191
    %v1224 = vmul.f32 %v1063, %v1191
    %v1225 = vmul.f32 %v1067, %v1191
    %v1226 = vmul.f32 %v1071, %v1191
    %v1227 = vmul.f32 %v1075, %v1191
    %v1228 = vmul.f32 %v1079, %v1191
    %v1229 = vmul.f32 %v1083, %v1191
    %v1230 = vmul.f32 %v1087, %v1191
    %v1231 = vmul.f32 %v1091, %v1191
    %v1232 = vmul.f32 %v1095, %v1191
    %v1233 = vmul.f32 %v1099, %v1191
    %v1234 = vmul.f32 %v1103, %v1191
    %v1235 = vmul.f32 %v1107, %v1191
    %v1236 = vmul.f32 %v1111, %v1191
    %v1237 = vmul.f32 %v1115, %v1191
    %v1238 = vmul.f32 %v1119, %v1191
    %v1239 = vmul.f32 %v1123, %v1191
    %v1240 = vmul.f32 %v1127, %v1191
    %v1241 = vmul.f32 %v1131, %v1191
    %v1242 = vmul.f32 %v1135, %v1191
    %v1243 = vmul.f32 %v1139, %v1191
    %v1244 = vmul.f32 %v1143, %v1191
    %v1245 = vmul.f32 %v1147, %v1191
    %v1246 = vmul.f32 %v1151, %v1191
    %v1247 = vmul.f32 %v1155, %v1191
    %v1248 = vmul.f32 %v1159, %v1191
    %v1249 = vmul.f32 %v1163, %v1191
    %v1250 = vmul.f32 %v1167, %v1191
    %v1251 = vmul.f32 %v1171, %v1191
    %v1252 = vmul.f32 %v1175, %v1191
    %v1253 = vmul.f32 %v1179, %v1191
    %v1254 = vmul.f32 %v1183, %v1191
    %v1255 = vmul.f32 %v1187, %v1191
    %v1256 = vadd.f32 %v868, %v1192
    %v1257 = vadd.f32 %v869, %v1193
    %v1258 = vadd.f32 %v870, %v1194
    %v1259 = vadd.f32 %v871, %v1195
    %v1260 = vadd.f32 %v872, %v1196
    %v1261 = vadd.f32 %v873, %v1197
    %v1262 = vadd.f32 %v874, %v1198
    %v1263 = vadd.f32 %v875, %v1199
    %v1264 = vadd.f32 %v876, %v1200
    %v1265 = vadd.f32 %v877, %v1201
    %v1266 = vadd.f32 %v878, %v1202
    %v1267 = vadd.f32 %v879, %v1203
    %v1268 = vadd.f32 %v880, %v1204
    %v1269 = vadd.f32 %v881, %v1205
    %v1270 = vadd.f32 %v882, %v1206
    %v1271 = vadd.f32 %v883, %v1207
    %v1272 = vadd.f32 %v884, %v1208
    %v1273 = vadd.f32 %v885, %v1209
    %v1274 = vadd.f32 %v886, %v1210
    %v1275 = vadd.f32 %v887, %v1211
    %v1276 = vadd.f32 %v888, %v1212
    %v1277 = vadd.f32 %v889, %v1213
    %v1278 = vadd.f32 %v890, %v1214
    %v1279 = vadd.f32 %v891, %v1215
    %v1280 = vadd.f32 %v892, %v1216
    %v1281 = vadd.f32 %v893, %v1217
    %v1282 = vadd.f32 %v894, %v1218
    %v1283 = vadd.f32 %v895, %v1219
    %v1284 = vadd.f32 %v896, %v1220
    %v1285 = vadd.f32 %v897, %v1221
    %v1286 = vadd.f32 %v898, %v1222
    %v1287 = vadd.f32 %v899, %v1223
    %v1288 = vadd.f32 %v900, %v1224
    %v1289 = vadd.f32 %v901, %v1225
    %v1290 = vadd.f32 %v902, %v1226
    %v1291 = vadd.f32 %v903, %v1227
    %v1292 = vadd.f32 %v904, %v1228
    %v1293 = vadd.f32 %v905, %v1229
    %v1294 = vadd.f32 %v906, %v1230
    %v1295 = vadd.f32 %v907, %v1231
    %v1296 = vadd.f32 %v908, %v1232
    %v1297 = vadd.f32 %v909, %v1233
    %v1298 = vadd.f32 %v910, %v1234
    %v1299 = vadd.f32 %v911, %v1235
    %v1300 = vadd.f32 %v912, %v1236
    %v1301 = vadd.f32 %v913, %v1237
    %v1302 = vadd.f32 %v914, %v1238
    %v1303 = vadd.f32 %v915, %v1239
    %v1304 = vadd.f32 %v916, %v1240
    %v1305 = vadd.f32 %v917, %v1241
    %v1306 = vadd.f32 %v918, %v1242
    %v1307 = vadd.f32 %v919, %v1243
    %v1308 = vadd.f32 %v920, %v1244
    %v1309 = vadd.f32 %v921, %v1245
    %v1310 = vadd.f32 %v922, %v1246
    %v1311 = vadd.f32 %v923, %v1247
    %v1312 = vadd.f32 %v924, %v1248
    %v1313 = vadd.f32 %v925, %v1249
    %v1314 = vadd.f32 %v926, %v1250
    %v1315 = vadd.f32 %v927, %v1251
    %v1316 = vadd.f32 %v928, %v1252
    %v1317 = vadd.f32 %v929, %v1253
    %v1318 = vadd.f32 %v930, %v1254
    %v1319 = vadd.f32 %v931, %v1255
    %s1321 = sor.u32 256, 1
    %1322 = vbcast.lane.b32.xlu0 %v523, %s1321
    %v1323 = vpop.permute.xlu0 %1322
    %s1325 = sor.u32 256, 9
    %1326 = vbcast.lane.b32.xlu0 %v523, %s1325
    %v1327 = vpop.permute.xlu0 %1326
    %s1329 = sor.u32 256, 17
    %1330 = vbcast.lane.b32.xlu0 %v523, %s1329
    %v1331 = vpop.permute.xlu0 %1330
    %s1333 = sor.u32 256, 25
    %1334 = vbcast.lane.b32.xlu0 %v523, %s1333
    %v1335 = vpop.permute.xlu0 %1334
    %s1337 = sor.u32 256, 33
    %1338 = vbcast.lane.b32.xlu0 %v523, %s1337
    %v1339 = vpop.permute.xlu0 %1338
    %s1341 = sor.u32 256, 41
    %1342 = vbcast.lane.b32.xlu0 %v523, %s1341
    %v1343 = vpop.permute.xlu0 %1342
    %s1345 = sor.u32 256, 49
    %1346 = vbcast.lane.b32.xlu0 %v523, %s1345
    %v1347 = vpop.permute.xlu0 %1346
    %s1349 = sor.u32 256, 57
    %1350 = vbcast.lane.b32.xlu0 %v523, %s1349
    %v1351 = vpop.permute.xlu0 %1350
    %s1353 = sor.u32 256, 1
    %1354 = vbcast.lane.b32.xlu0 %v558, %s1353
    %v1355 = vpop.permute.xlu0 %1354
    %s1357 = sor.u32 256, 9
    %1358 = vbcast.lane.b32.xlu0 %v558, %s1357
    %v1359 = vpop.permute.xlu0 %1358
    %s1361 = sor.u32 256, 17
    %1362 = vbcast.lane.b32.xlu0 %v558, %s1361
    %v1363 = vpop.permute.xlu0 %1362
    %s1365 = sor.u32 256, 25
    %1366 = vbcast.lane.b32.xlu0 %v558, %s1365
    %v1367 = vpop.permute.xlu0 %1366
    %s1369 = sor.u32 256, 33
    %1370 = vbcast.lane.b32.xlu0 %v558, %s1369
    %v1371 = vpop.permute.xlu0 %1370
    %s1373 = sor.u32 256, 41
    %1374 = vbcast.lane.b32.xlu0 %v558, %s1373
    %v1375 = vpop.permute.xlu0 %1374
    %s1377 = sor.u32 256, 49
    %1378 = vbcast.lane.b32.xlu0 %v558, %s1377
    %v1379 = vpop.permute.xlu0 %1378
    %s1381 = sor.u32 256, 57
    %1382 = vbcast.lane.b32.xlu0 %v558, %s1381
    %v1383 = vpop.permute.xlu0 %1382
    %s1385 = sor.u32 256, 1
    %1386 = vbcast.lane.b32.xlu0 %v593, %s1385
    %v1387 = vpop.permute.xlu0 %1386
    %s1389 = sor.u32 256, 9
    %1390 = vbcast.lane.b32.xlu0 %v593, %s1389
    %v1391 = vpop.permute.xlu0 %1390
    %s1393 = sor.u32 256, 17
    %1394 = vbcast.lane.b32.xlu0 %v593, %s1393
    %v1395 = vpop.permute.xlu0 %1394
    %s1397 = sor.u32 256, 25
    %1398 = vbcast.lane.b32.xlu0 %v593, %s1397
    %v1399 = vpop.permute.xlu0 %1398
    %s1401 = sor.u32 256, 33
    %1402 = vbcast.lane.b32.xlu0 %v593, %s1401
    %v1403 = vpop.permute.xlu0 %1402
    %s1405 = sor.u32 256, 41
    %1406 = vbcast.lane.b32.xlu0 %v593, %s1405
    %v1407 = vpop.permute.xlu0 %1406
    %s1409 = sor.u32 256, 49
    %1410 = vbcast.lane.b32.xlu0 %v593, %s1409
    %v1411 = vpop.permute.xlu0 %1410
    %s1413 = sor.u32 256, 57
    %1414 = vbcast.lane.b32.xlu0 %v593, %s1413
    %v1415 = vpop.permute.xlu0 %1414
    %s1417 = sor.u32 256, 1
    %1418 = vbcast.lane.b32.xlu0 %v628, %s1417
    %v1419 = vpop.permute.xlu0 %1418
    %s1421 = sor.u32 256, 9
    %1422 = vbcast.lane.b32.xlu0 %v628, %s1421
    %v1423 = vpop.permute.xlu0 %1422
    %s1425 = sor.u32 256, 17
    %1426 = vbcast.lane.b32.xlu0 %v628, %s1425
    %v1427 = vpop.permute.xlu0 %1426
    %s1429 = sor.u32 256, 25
    %1430 = vbcast.lane.b32.xlu0 %v628, %s1429
    %v1431 = vpop.permute.xlu0 %1430
    %s1433 = sor.u32 256, 33
    %1434 = vbcast.lane.b32.xlu0 %v628, %s1433
    %v1435 = vpop.permute.xlu0 %1434
    %s1437 = sor.u32 256, 41
    %1438 = vbcast.lane.b32.xlu0 %v628, %s1437
    %v1439 = vpop.permute.xlu0 %1438
    %s1441 = sor.u32 256, 49
    %1442 = vbcast.lane.b32.xlu0 %v628, %s1441
    %v1443 = vpop.permute.xlu0 %1442
    %s1445 = sor.u32 256, 57
    %1446 = vbcast.lane.b32.xlu0 %v628, %s1445
    %v1447 = vpop.permute.xlu0 %1446
    %s1449 = sor.u32 256, 1
    %1450 = vbcast.lane.b32.xlu0 %v663, %s1449
    %v1451 = vpop.permute.xlu0 %1450
    %s1453 = sor.u32 256, 9
    %1454 = vbcast.lane.b32.xlu0 %v663, %s1453
    %v1455 = vpop.permute.xlu0 %1454
    %s1457 = sor.u32 256, 17
    %1458 = vbcast.lane.b32.xlu0 %v663, %s1457
    %v1459 = vpop.permute.xlu0 %1458
    %s1461 = sor.u32 256, 25
    %1462 = vbcast.lane.b32.xlu0 %v663, %s1461
    %v1463 = vpop.permute.xlu0 %1462
    %s1465 = sor.u32 256, 33
    %1466 = vbcast.lane.b32.xlu0 %v663, %s1465
    %v1467 = vpop.permute.xlu0 %1466
    %s1469 = sor.u32 256, 41
    %1470 = vbcast.lane.b32.xlu0 %v663, %s1469
    %v1471 = vpop.permute.xlu0 %1470
    %s1473 = sor.u32 256, 49
    %1474 = vbcast.lane.b32.xlu0 %v663, %s1473
    %v1475 = vpop.permute.xlu0 %1474
    %s1477 = sor.u32 256, 57
    %1478 = vbcast.lane.b32.xlu0 %v663, %s1477
    %v1479 = vpop.permute.xlu0 %1478
    %s1481 = sor.u32 256, 1
    %1482 = vbcast.lane.b32.xlu0 %v698, %s1481
    %v1483 = vpop.permute.xlu0 %1482
    %s1485 = sor.u32 256, 9
    %1486 = vbcast.lane.b32.xlu0 %v698, %s1485
    %v1487 = vpop.permute.xlu0 %1486
    %s1489 = sor.u32 256, 17
    %1490 = vbcast.lane.b32.xlu0 %v698, %s1489
    %v1491 = vpop.permute.xlu0 %1490
    %s1493 = sor.u32 256, 25
    %1494 = vbcast.lane.b32.xlu0 %v698, %s1493
    %v1495 = vpop.permute.xlu0 %1494
    %s1497 = sor.u32 256, 33
    %1498 = vbcast.lane.b32.xlu0 %v698, %s1497
    %v1499 = vpop.permute.xlu0 %1498
    %s1501 = sor.u32 256, 41
    %1502 = vbcast.lane.b32.xlu0 %v698, %s1501
    %v1503 = vpop.permute.xlu0 %1502
    %s1505 = sor.u32 256, 49
    %1506 = vbcast.lane.b32.xlu0 %v698, %s1505
    %v1507 = vpop.permute.xlu0 %1506
    %s1509 = sor.u32 256, 57
    %1510 = vbcast.lane.b32.xlu0 %v698, %s1509
    %v1511 = vpop.permute.xlu0 %1510
    %s1513 = sor.u32 256, 1
    %1514 = vbcast.lane.b32.xlu0 %v733, %s1513
    %v1515 = vpop.permute.xlu0 %1514
    %s1517 = sor.u32 256, 9
    %1518 = vbcast.lane.b32.xlu0 %v733, %s1517
    %v1519 = vpop.permute.xlu0 %1518
    %s1521 = sor.u32 256, 17
    %1522 = vbcast.lane.b32.xlu0 %v733, %s1521
    %v1523 = vpop.permute.xlu0 %1522
    %s1525 = sor.u32 256, 25
    %1526 = vbcast.lane.b32.xlu0 %v733, %s1525
    %v1527 = vpop.permute.xlu0 %1526
    %s1529 = sor.u32 256, 33
    %1530 = vbcast.lane.b32.xlu0 %v733, %s1529
    %v1531 = vpop.permute.xlu0 %1530
    %s1533 = sor.u32 256, 41
    %1534 = vbcast.lane.b32.xlu0 %v733, %s1533
    %v1535 = vpop.permute.xlu0 %1534
    %s1537 = sor.u32 256, 49
    %1538 = vbcast.lane.b32.xlu0 %v733, %s1537
    %v1539 = vpop.permute.xlu0 %1538
    %s1541 = sor.u32 256, 57
    %1542 = vbcast.lane.b32.xlu0 %v733, %s1541
    %v1543 = vpop.permute.xlu0 %1542
    %s1545 = sor.u32 256, 1
    %1546 = vbcast.lane.b32.xlu0 %v768, %s1545
    %v1547 = vpop.permute.xlu0 %1546
    %s1549 = sor.u32 256, 9
    %1550 = vbcast.lane.b32.xlu0 %v768, %s1549
    %v1551 = vpop.permute.xlu0 %1550
    %s1553 = sor.u32 256, 17
    %1554 = vbcast.lane.b32.xlu0 %v768, %s1553
    %v1555 = vpop.permute.xlu0 %1554
    %s1557 = sor.u32 256, 25
    %1558 = vbcast.lane.b32.xlu0 %v768, %s1557
    %v1559 = vpop.permute.xlu0 %1558
    %s1561 = sor.u32 256, 33
    %1562 = vbcast.lane.b32.xlu0 %v768, %s1561
    %v1563 = vpop.permute.xlu0 %1562
    %s1565 = sor.u32 256, 41
    %1566 = vbcast.lane.b32.xlu0 %v768, %s1565
    %v1567 = vpop.permute.xlu0 %1566
    %s1569 = sor.u32 256, 49
    %1570 = vbcast.lane.b32.xlu0 %v768, %s1569
    %v1571 = vpop.permute.xlu0 %1570
    %s1573 = sor.u32 256, 57
    %1574 = vbcast.lane.b32.xlu0 %v768, %s1573
    %v1575 = vpop.permute.xlu0 %1574
    %v1576 = vlaneseq
    %v1577 = vshrl.u32 %v1576, 7
    %v1578 = vsub.s32 3, %v1577
    %v1579 = vrot.slane %v163, %v1578
    %v1580 = vmul.f32 %v1323, %v1579
    %v1581 = vmul.f32 %v1327, %v1579
    %v1582 = vmul.f32 %v1331, %v1579
    %v1583 = vmul.f32 %v1335, %v1579
    %v1584 = vmul.f32 %v1339, %v1579
    %v1585 = vmul.f32 %v1343, %v1579
    %v1586 = vmul.f32 %v1347, %v1579
    %v1587 = vmul.f32 %v1351, %v1579
    %v1588 = vmul.f32 %v1355, %v1579
    %v1589 = vmul.f32 %v1359, %v1579
    %v1590 = vmul.f32 %v1363, %v1579
    %v1591 = vmul.f32 %v1367, %v1579
    %v1592 = vmul.f32 %v1371, %v1579
    %v1593 = vmul.f32 %v1375, %v1579
    %v1594 = vmul.f32 %v1379, %v1579
    %v1595 = vmul.f32 %v1383, %v1579
    %v1596 = vmul.f32 %v1387, %v1579
    %v1597 = vmul.f32 %v1391, %v1579
    %v1598 = vmul.f32 %v1395, %v1579
    %v1599 = vmul.f32 %v1399, %v1579
    %v1600 = vmul.f32 %v1403, %v1579
    %v1601 = vmul.f32 %v1407, %v1579
    %v1602 = vmul.f32 %v1411, %v1579
    %v1603 = vmul.f32 %v1415, %v1579
    %v1604 = vmul.f32 %v1419, %v1579
    %v1605 = vmul.f32 %v1423, %v1579
    %v1606 = vmul.f32 %v1427, %v1579
    %v1607 = vmul.f32 %v1431, %v1579
    %v1608 = vmul.f32 %v1435, %v1579
    %v1609 = vmul.f32 %v1439, %v1579
    %v1610 = vmul.f32 %v1443, %v1579
    %v1611 = vmul.f32 %v1447, %v1579
    %v1612 = vmul.f32 %v1451, %v1579
    %v1613 = vmul.f32 %v1455, %v1579
    %v1614 = vmul.f32 %v1459, %v1579
    %v1615 = vmul.f32 %v1463, %v1579
    %v1616 = vmul.f32 %v1467, %v1579
    %v1617 = vmul.f32 %v1471, %v1579
    %v1618 = vmul.f32 %v1475, %v1579
    %v1619 = vmul.f32 %v1479, %v1579
    %v1620 = vmul.f32 %v1483, %v1579
    %v1621 = vmul.f32 %v1487, %v1579
    %v1622 = vmul.f32 %v1491, %v1579
    %v1623 = vmul.f32 %v1495, %v1579
    %v1624 = vmul.f32 %v1499, %v1579
    %v1625 = vmul.f32 %v1503, %v1579
    %v1626 = vmul.f32 %v1507, %v1579
    %v1627 = vmul.f32 %v1511, %v1579
    %v1628 = vmul.f32 %v1515, %v1579
    %v1629 = vmul.f32 %v1519, %v1579
    %v1630 = vmul.f32 %v1523, %v1579
    %v1631 = vmul.f32 %v1527, %v1579
    %v1632 = vmul.f32 %v1531, %v1579
    %v1633 = vmul.f32 %v1535, %v1579
    %v1634 = vmul.f32 %v1539, %v1579
    %v1635 = vmul.f32 %v1543, %v1579
    %v1636 = vmul.f32 %v1547, %v1579
    %v1637 = vmul.f32 %v1551, %v1579
    %v1638 = vmul.f32 %v1555, %v1579
    %v1639 = vmul.f32 %v1559, %v1579
    %v1640 = vmul.f32 %v1563, %v1579
    %v1641 = vmul.f32 %v1567, %v1579
    %v1642 = vmul.f32 %v1571, %v1579
    %v1643 = vmul.f32 %v1575, %v1579
    %v1644 = vadd.f32 %v1256, %v1580
    %v1645 = vadd.f32 %v1257, %v1581
    %v1646 = vadd.f32 %v1258, %v1582
    %v1647 = vadd.f32 %v1259, %v1583
    %v1648 = vadd.f32 %v1260, %v1584
    %v1649 = vadd.f32 %v1261, %v1585
    %v1650 = vadd.f32 %v1262, %v1586
    %v1651 = vadd.f32 %v1263, %v1587
    %v1652 = vadd.f32 %v1264, %v1588
    %v1653 = vadd.f32 %v1265, %v1589
    %v1654 = vadd.f32 %v1266, %v1590
    %v1655 = vadd.f32 %v1267, %v1591
    %v1656 = vadd.f32 %v1268, %v1592
    %v1657 = vadd.f32 %v1269, %v1593
    %v1658 = vadd.f32 %v1270, %v1594
    %v1659 = vadd.f32 %v1271, %v1595
    %v1660 = vadd.f32 %v1272, %v1596
    %v1661 = vadd.f32 %v1273, %v1597
    %v1662 = vadd.f32 %v1274, %v1598
    %v1663 = vadd.f32 %v1275, %v1599
    %v1664 = vadd.f32 %v1276, %v1600
    %v1665 = vadd.f32 %v1277, %v1601
    %v1666 = vadd.f32 %v1278, %v1602
    %v1667 = vadd.f32 %v1279, %v1603
    %v1668 = vadd.f32 %v1280, %v1604
    %v1669 = vadd.f32 %v1281, %v1605
    %v1670 = vadd.f32 %v1282, %v1606
    %v1671 = vadd.f32 %v1283, %v1607
    %v1672 = vadd.f32 %v1284, %v1608
    %v1673 = vadd.f32 %v1285, %v1609
    %v1674 = vadd.f32 %v1286, %v1610
    %v1675 = vadd.f32 %v1287, %v1611
    %v1676 = vadd.f32 %v1288, %v1612
    %v1677 = vadd.f32 %v1289, %v1613
    %v1678 = vadd.f32 %v1290, %v1614
    %v1679 = vadd.f32 %v1291, %v1615
    %v1680 = vadd.f32 %v1292, %v1616
    %v1681 = vadd.f32 %v1293, %v1617
    %v1682 = vadd.f32 %v1294, %v1618
    %v1683 = vadd.f32 %v1295, %v1619
    %v1684 = vadd.f32 %v1296, %v1620
    %v1685 = vadd.f32 %v1297, %v1621
    %v1686 = vadd.f32 %v1298, %v1622
    %v1687 = vadd.f32 %v1299, %v1623
    %v1688 = vadd.f32 %v1300, %v1624
    %v1689 = vadd.f32 %v1301, %v1625
    %v1690 = vadd.f32 %v1302, %v1626
    %v1691 = vadd.f32 %v1303, %v1627
    %v1692 = vadd.f32 %v1304, %v1628
    %v1693 = vadd.f32 %v1305, %v1629
    %v1694 = vadd.f32 %v1306, %v1630
    %v1695 = vadd.f32 %v1307, %v1631
    %v1696 = vadd.f32 %v1308, %v1632
    %v1697 = vadd.f32 %v1309, %v1633
    %v1698 = vadd.f32 %v1310, %v1634
    %v1699 = vadd.f32 %v1311, %v1635
    %v1700 = vadd.f32 %v1312, %v1636
    %v1701 = vadd.f32 %v1313, %v1637
    %v1702 = vadd.f32 %v1314, %v1638
    %v1703 = vadd.f32 %v1315, %v1639
    %v1704 = vadd.f32 %v1316, %v1640
    %v1705 = vadd.f32 %v1317, %v1641
    %v1706 = vadd.f32 %v1318, %v1642
    %v1707 = vadd.f32 %v1319, %v1643
    %s1709 = sor.u32 256, 2
    %1710 = vbcast.lane.b32.xlu0 %v171, %s1709
    %v1711 = vpop.permute.xlu0 %1710
    %s1713 = sor.u32 256, 10
    %1714 = vbcast.lane.b32.xlu0 %v171, %s1713
    %v1715 = vpop.permute.xlu0 %1714
    %s1717 = sor.u32 256, 18
    %1718 = vbcast.lane.b32.xlu0 %v171, %s1717
    %v1719 = vpop.permute.xlu0 %1718
    %s1721 = sor.u32 256, 26
    %1722 = vbcast.lane.b32.xlu0 %v171, %s1721
    %v1723 = vpop.permute.xlu0 %1722
    %s1725 = sor.u32 256, 34
    %1726 = vbcast.lane.b32.xlu0 %v171, %s1725
    %v1727 = vpop.permute.xlu0 %1726
    %s1729 = sor.u32 256, 42
    %1730 = vbcast.lane.b32.xlu0 %v171, %s1729
    %v1731 = vpop.permute.xlu0 %1730
    %s1733 = sor.u32 256, 50
    %1734 = vbcast.lane.b32.xlu0 %v171, %s1733
    %v1735 = vpop.permute.xlu0 %1734
    %s1737 = sor.u32 256, 58
    %1738 = vbcast.lane.b32.xlu0 %v171, %s1737
    %v1739 = vpop.permute.xlu0 %1738
    %s1741 = sor.u32 256, 2
    %1742 = vbcast.lane.b32.xlu0 %v206, %s1741
    %v1743 = vpop.permute.xlu0 %1742
    %s1745 = sor.u32 256, 10
    %1746 = vbcast.lane.b32.xlu0 %v206, %s1745
    %v1747 = vpop.permute.xlu0 %1746
    %s1749 = sor.u32 256, 18
    %1750 = vbcast.lane.b32.xlu0 %v206, %s1749
    %v1751 = vpop.permute.xlu0 %1750
    %s1753 = sor.u32 256, 26
    %1754 = vbcast.lane.b32.xlu0 %v206, %s1753
    %v1755 = vpop.permute.xlu0 %1754
    %s1757 = sor.u32 256, 34
    %1758 = vbcast.lane.b32.xlu0 %v206, %s1757
    %v1759 = vpop.permute.xlu0 %1758
    %s1761 = sor.u32 256, 42
    %1762 = vbcast.lane.b32.xlu0 %v206, %s1761
    %v1763 = vpop.permute.xlu0 %1762
    %s1765 = sor.u32 256, 50
    %1766 = vbcast.lane.b32.xlu0 %v206, %s1765
    %v1767 = vpop.permute.xlu0 %1766
    %s1769 = sor.u32 256, 58
    %1770 = vbcast.lane.b32.xlu0 %v206, %s1769
    %v1771 = vpop.permute.xlu0 %1770
    %s1773 = sor.u32 256, 2
    %1774 = vbcast.lane.b32.xlu0 %v241, %s1773
    %v1775 = vpop.permute.xlu0 %1774
    %s1777 = sor.u32 256, 10
    %1778 = vbcast.lane.b32.xlu0 %v241, %s1777
    %v1779 = vpop.permute.xlu0 %1778
    %s1781 = sor.u32 256, 18
    %1782 = vbcast.lane.b32.xlu0 %v241, %s1781
    %v1783 = vpop.permute.xlu0 %1782
    %s1785 = sor.u32 256, 26
    %1786 = vbcast.lane.b32.xlu0 %v241, %s1785
    %v1787 = vpop.permute.xlu0 %1786
    %s1789 = sor.u32 256, 34
    %1790 = vbcast.lane.b32.xlu0 %v241, %s1789
    %v1791 = vpop.permute.xlu0 %1790
    %s1793 = sor.u32 256, 42
    %1794 = vbcast.lane.b32.xlu0 %v241, %s1793
    %v1795 = vpop.permute.xlu0 %1794
    %s1797 = sor.u32 256, 50
    %1798 = vbcast.lane.b32.xlu0 %v241, %s1797
    %v1799 = vpop.permute.xlu0 %1798
    %s1801 = sor.u32 256, 58
    %1802 = vbcast.lane.b32.xlu0 %v241, %s1801
    %v1803 = vpop.permute.xlu0 %1802
    %s1805 = sor.u32 256, 2
    %1806 = vbcast.lane.b32.xlu0 %v276, %s1805
    %v1807 = vpop.permute.xlu0 %1806
    %s1809 = sor.u32 256, 10
    %1810 = vbcast.lane.b32.xlu0 %v276, %s1809
    %v1811 = vpop.permute.xlu0 %1810
    %s1813 = sor.u32 256, 18
    %1814 = vbcast.lane.b32.xlu0 %v276, %s1813
    %v1815 = vpop.permute.xlu0 %1814
    %s1817 = sor.u32 256, 26
    %1818 = vbcast.lane.b32.xlu0 %v276, %s1817
    %v1819 = vpop.permute.xlu0 %1818
    %s1821 = sor.u32 256, 34
    %1822 = vbcast.lane.b32.xlu0 %v276, %s1821
    %v1823 = vpop.permute.xlu0 %1822
    %s1825 = sor.u32 256, 42
    %1826 = vbcast.lane.b32.xlu0 %v276, %s1825
    %v1827 = vpop.permute.xlu0 %1826
    %s1829 = sor.u32 256, 50
    %1830 = vbcast.lane.b32.xlu0 %v276, %s1829
    %v1831 = vpop.permute.xlu0 %1830
    %s1833 = sor.u32 256, 58
    %1834 = vbcast.lane.b32.xlu0 %v276, %s1833
    %v1835 = vpop.permute.xlu0 %1834
    %s1837 = sor.u32 256, 2
    %1838 = vbcast.lane.b32.xlu0 %v311, %s1837
    %v1839 = vpop.permute.xlu0 %1838
    %s1841 = sor.u32 256, 10
    %1842 = vbcast.lane.b32.xlu0 %v311, %s1841
    %v1843 = vpop.permute.xlu0 %1842
    %s1845 = sor.u32 256, 18
    %1846 = vbcast.lane.b32.xlu0 %v311, %s1845
    %v1847 = vpop.permute.xlu0 %1846
    %s1849 = sor.u32 256, 26
    %1850 = vbcast.lane.b32.xlu0 %v311, %s1849
    %v1851 = vpop.permute.xlu0 %1850
    %s1853 = sor.u32 256, 34
    %1854 = vbcast.lane.b32.xlu0 %v311, %s1853
    %v1855 = vpop.permute.xlu0 %1854
    %s1857 = sor.u32 256, 42
    %1858 = vbcast.lane.b32.xlu0 %v311, %s1857
    %v1859 = vpop.permute.xlu0 %1858
    %s1861 = sor.u32 256, 50
    %1862 = vbcast.lane.b32.xlu0 %v311, %s1861
    %v1863 = vpop.permute.xlu0 %1862
    %s1865 = sor.u32 256, 58
    %1866 = vbcast.lane.b32.xlu0 %v311, %s1865
    %v1867 = vpop.permute.xlu0 %1866
    %s1869 = sor.u32 256, 2
    %1870 = vbcast.lane.b32.xlu0 %v346, %s1869
    %v1871 = vpop.permute.xlu0 %1870
    %s1873 = sor.u32 256, 10
    %1874 = vbcast.lane.b32.xlu0 %v346, %s1873
    %v1875 = vpop.permute.xlu0 %1874
    %s1877 = sor.u32 256, 18
    %1878 = vbcast.lane.b32.xlu0 %v346, %s1877
    %v1879 = vpop.permute.xlu0 %1878
    %s1881 = sor.u32 256, 26
    %1882 = vbcast.lane.b32.xlu0 %v346, %s1881
    %v1883 = vpop.permute.xlu0 %1882
    %s1885 = sor.u32 256, 34
    %1886 = vbcast.lane.b32.xlu0 %v346, %s1885
    %v1887 = vpop.permute.xlu0 %1886
    %s1889 = sor.u32 256, 42
    %1890 = vbcast.lane.b32.xlu0 %v346, %s1889
    %v1891 = vpop.permute.xlu0 %1890
    %s1893 = sor.u32 256, 50
    %1894 = vbcast.lane.b32.xlu0 %v346, %s1893
    %v1895 = vpop.permute.xlu0 %1894
    %s1897 = sor.u32 256, 58
    %1898 = vbcast.lane.b32.xlu0 %v346, %s1897
    %v1899 = vpop.permute.xlu0 %1898
    %s1901 = sor.u32 256, 2
    %1902 = vbcast.lane.b32.xlu0 %v381, %s1901
    %v1903 = vpop.permute.xlu0 %1902
    %s1905 = sor.u32 256, 10
    %1906 = vbcast.lane.b32.xlu0 %v381, %s1905
    %v1907 = vpop.permute.xlu0 %1906
    %s1909 = sor.u32 256, 18
    %1910 = vbcast.lane.b32.xlu0 %v381, %s1909
    %v1911 = vpop.permute.xlu0 %1910
    %s1913 = sor.u32 256, 26
    %1914 = vbcast.lane.b32.xlu0 %v381, %s1913
    %v1915 = vpop.permute.xlu0 %1914
    %s1917 = sor.u32 256, 34
    %1918 = vbcast.lane.b32.xlu0 %v381, %s1917
    %v1919 = vpop.permute.xlu0 %1918
    %s1921 = sor.u32 256, 42
    %1922 = vbcast.lane.b32.xlu0 %v381, %s1921
    %v1923 = vpop.permute.xlu0 %1922
    %s1925 = sor.u32 256, 50
    %1926 = vbcast.lane.b32.xlu0 %v381, %s1925
    %v1927 = vpop.permute.xlu0 %1926
    %s1929 = sor.u32 256, 58
    %1930 = vbcast.lane.b32.xlu0 %v381, %s1929
    %v1931 = vpop.permute.xlu0 %1930
    %s1933 = sor.u32 256, 2
    %1934 = vbcast.lane.b32.xlu0 %v416, %s1933
    %v1935 = vpop.permute.xlu0 %1934
    %s1937 = sor.u32 256, 10
    %1938 = vbcast.lane.b32.xlu0 %v416, %s1937
    %v1939 = vpop.permute.xlu0 %1938
    %s1941 = sor.u32 256, 18
    %1942 = vbcast.lane.b32.xlu0 %v416, %s1941
    %v1943 = vpop.permute.xlu0 %1942
    %s1945 = sor.u32 256, 26
    %1946 = vbcast.lane.b32.xlu0 %v416, %s1945
    %v1947 = vpop.permute.xlu0 %1946
    %s1949 = sor.u32 256, 34
    %1950 = vbcast.lane.b32.xlu0 %v416, %s1949
    %v1951 = vpop.permute.xlu0 %1950
    %s1953 = sor.u32 256, 42
    %1954 = vbcast.lane.b32.xlu0 %v416, %s1953
    %v1955 = vpop.permute.xlu0 %1954
    %s1957 = sor.u32 256, 50
    %1958 = vbcast.lane.b32.xlu0 %v416, %s1957
    %v1959 = vpop.permute.xlu0 %1958
    %s1961 = sor.u32 256, 58
    %1962 = vbcast.lane.b32.xlu0 %v416, %s1961
    %v1963 = vpop.permute.xlu0 %1962
    %v1964 = vlaneseq
    %v1965 = vshrl.u32 %v1964, 7
    %v1966 = vsub.s32 4, %v1965
    %v1967 = vrot.slane %v163, %v1966
    %v1968 = vmul.f32 %v1711, %v1967
    %v1969 = vmul.f32 %v1715, %v1967
    %v1970 = vmul.f32 %v1719, %v1967
    %v1971 = vmul.f32 %v1723, %v1967
    %v1972 = vmul.f32 %v1727, %v1967
    %v1973 = vmul.f32 %v1731, %v1967
    %v1974 = vmul.f32 %v1735, %v1967
    %v1975 = vmul.f32 %v1739, %v1967
    %v1976 = vmul.f32 %v1743, %v1967
    %v1977 = vmul.f32 %v1747, %v1967
    %v1978 = vmul.f32 %v1751, %v1967
    %v1979 = vmul.f32 %v1755, %v1967
    %v1980 = vmul.f32 %v1759, %v1967
    %v1981 = vmul.f32 %v1763, %v1967
    %v1982 = vmul.f32 %v1767, %v1967
    %v1983 = vmul.f32 %v1771, %v1967
    %v1984 = vmul.f32 %v1775, %v1967
    %v1985 = vmul.f32 %v1779, %v1967
    %v1986 = vmul.f32 %v1783, %v1967
    %v1987 = vmul.f32 %v1787, %v1967
    %v1988 = vmul.f32 %v1791, %v1967
    %v1989 = vmul.f32 %v1795, %v1967
    %v1990 = vmul.f32 %v1799, %v1967
    %v1991 = vmul.f32 %v1803, %v1967
    %v1992 = vmul.f32 %v1807, %v1967
    %v1993 = vmul.f32 %v1811, %v1967
    %v1994 = vmul.f32 %v1815, %v1967
    %v1995 = vmul.f32 %v1819, %v1967
    %v1996 = vmul.f32 %v1823, %v1967
    %v1997 = vmul.f32 %v1827, %v1967
    %v1998 = vmul.f32 %v1831, %v1967
    %v1999 = vmul.f32 %v1835, %v1967
    %v2000 = vmul.f32 %v1839, %v1967
    %v2001 = vmul.f32 %v1843, %v1967
    %v2002 = vmul.f32 %v1847, %v1967
    %v2003 = vmul.f32 %v1851, %v1967
    %v2004 = vmul.f32 %v1855, %v1967
    %v2005 = vmul.f32 %v1859, %v1967
    %v2006 = vmul.f32 %v1863, %v1967
    %v2007 = vmul.f32 %v1867, %v1967
    %v2008 = vmul.f32 %v1871, %v1967
    %v2009 = vmul.f32 %v1875, %v1967
    %v2010 = vmul.f32 %v1879, %v1967
    %v2011 = vmul.f32 %v1883, %v1967
    %v2012 = vmul.f32 %v1887, %v1967
    %v2013 = vmul.f32 %v1891, %v1967
    %v2014 = vmul.f32 %v1895, %v1967
    %v2015 = vmul.f32 %v1899, %v1967
    %v2016 = vmul.f32 %v1903, %v1967
    %v2017 = vmul.f32 %v1907, %v1967
    %v2018 = vmul.f32 %v1911, %v1967
    %v2019 = vmul.f32 %v1915, %v1967
    %v2020 = vmul.f32 %v1919, %v1967
    %v2021 = vmul.f32 %v1923, %v1967
    %v2022 = vmul.f32 %v1927, %v1967
    %v2023 = vmul.f32 %v1931, %v1967
    %v2024 = vmul.f32 %v1935, %v1967
    %v2025 = vmul.f32 %v1939, %v1967
    %v2026 = vmul.f32 %v1943, %v1967
    %v2027 = vmul.f32 %v1947, %v1967
    %v2028 = vmul.f32 %v1951, %v1967
    %v2029 = vmul.f32 %v1955, %v1967
    %v2030 = vmul.f32 %v1959, %v1967
    %v2031 = vmul.f32 %v1963, %v1967
    %v2032 = vadd.f32 %v1644, %v1968
    %v2033 = vadd.f32 %v1645, %v1969
    %v2034 = vadd.f32 %v1646, %v1970
    %v2035 = vadd.f32 %v1647, %v1971
    %v2036 = vadd.f32 %v1648, %v1972
    %v2037 = vadd.f32 %v1649, %v1973
    %v2038 = vadd.f32 %v1650, %v1974
    %v2039 = vadd.f32 %v1651, %v1975
    %v2040 = vadd.f32 %v1652, %v1976
    %v2041 = vadd.f32 %v1653, %v1977
    %v2042 = vadd.f32 %v1654, %v1978
    %v2043 = vadd.f32 %v1655, %v1979
    %v2044 = vadd.f32 %v1656, %v1980
    %v2045 = vadd.f32 %v1657, %v1981
    %v2046 = vadd.f32 %v1658, %v1982
    %v2047 = vadd.f32 %v1659, %v1983
    %v2048 = vadd.f32 %v1660, %v1984
    %v2049 = vadd.f32 %v1661, %v1985
    %v2050 = vadd.f32 %v1662, %v1986
    %v2051 = vadd.f32 %v1663, %v1987
    %v2052 = vadd.f32 %v1664, %v1988
    %v2053 = vadd.f32 %v1665, %v1989
    %v2054 = vadd.f32 %v1666, %v1990
    %v2055 = vadd.f32 %v1667, %v1991
    %v2056 = vadd.f32 %v1668, %v1992
    %v2057 = vadd.f32 %v1669, %v1993
    %v2058 = vadd.f32 %v1670, %v1994
    %v2059 = vadd.f32 %v1671, %v1995
    %v2060 = vadd.f32 %v1672, %v1996
    %v2061 = vadd.f32 %v1673, %v1997
    %v2062 = vadd.f32 %v1674, %v1998
    %v2063 = vadd.f32 %v1675, %v1999
    %v2064 = vadd.f32 %v1676, %v2000
    %v2065 = vadd.f32 %v1677, %v2001
    %v2066 = vadd.f32 %v1678, %v2002
    %v2067 = vadd.f32 %v1679, %v2003
    %v2068 = vadd.f32 %v1680, %v2004
    %v2069 = vadd.f32 %v1681, %v2005
    %v2070 = vadd.f32 %v1682, %v2006
    %v2071 = vadd.f32 %v1683, %v2007
    %v2072 = vadd.f32 %v1684, %v2008
    %v2073 = vadd.f32 %v1685, %v2009
    %v2074 = vadd.f32 %v1686, %v2010
    %v2075 = vadd.f32 %v1687, %v2011
    %v2076 = vadd.f32 %v1688, %v2012
    %v2077 = vadd.f32 %v1689, %v2013
    %v2078 = vadd.f32 %v1690, %v2014
    %v2079 = vadd.f32 %v1691, %v2015
    %v2080 = vadd.f32 %v1692, %v2016
    %v2081 = vadd.f32 %v1693, %v2017
    %v2082 = vadd.f32 %v1694, %v2018
    %v2083 = vadd.f32 %v1695, %v2019
    %v2084 = vadd.f32 %v1696, %v2020
    %v2085 = vadd.f32 %v1697, %v2021
    %v2086 = vadd.f32 %v1698, %v2022
    %v2087 = vadd.f32 %v1699, %v2023
    %v2088 = vadd.f32 %v1700, %v2024
    %v2089 = vadd.f32 %v1701, %v2025
    %v2090 = vadd.f32 %v1702, %v2026
    %v2091 = vadd.f32 %v1703, %v2027
    %v2092 = vadd.f32 %v1704, %v2028
    %v2093 = vadd.f32 %v1705, %v2029
    %v2094 = vadd.f32 %v1706, %v2030
    %v2095 = vadd.f32 %v1707, %v2031
    %s2097 = sor.u32 256, 2
    %2098 = vbcast.lane.b32.xlu0 %v523, %s2097
    %v2099 = vpop.permute.xlu0 %2098
    %s2101 = sor.u32 256, 10
    %2102 = vbcast.lane.b32.xlu0 %v523, %s2101
    %v2103 = vpop.permute.xlu0 %2102
    %s2105 = sor.u32 256, 18
    %2106 = vbcast.lane.b32.xlu0 %v523, %s2105
    %v2107 = vpop.permute.xlu0 %2106
    %s2109 = sor.u32 256, 26
    %2110 = vbcast.lane.b32.xlu0 %v523, %s2109
    %v2111 = vpop.permute.xlu0 %2110
    %s2113 = sor.u32 256, 34
    %2114 = vbcast.lane.b32.xlu0 %v523, %s2113
    %v2115 = vpop.permute.xlu0 %2114
    %s2117 = sor.u32 256, 42
    %2118 = vbcast.lane.b32.xlu0 %v523, %s2117
    %v2119 = vpop.permute.xlu0 %2118
    %s2121 = sor.u32 256, 50
    %2122 = vbcast.lane.b32.xlu0 %v523, %s2121
    %v2123 = vpop.permute.xlu0 %2122
    %s2125 = sor.u32 256, 58
    %2126 = vbcast.lane.b32.xlu0 %v523, %s2125
    %v2127 = vpop.permute.xlu0 %2126
    %s2129 = sor.u32 256, 2
    %2130 = vbcast.lane.b32.xlu0 %v558, %s2129
    %v2131 = vpop.permute.xlu0 %2130
    %s2133 = sor.u32 256, 10
    %2134 = vbcast.lane.b32.xlu0 %v558, %s2133
    %v2135 = vpop.permute.xlu0 %2134
    %s2137 = sor.u32 256, 18
    %2138 = vbcast.lane.b32.xlu0 %v558, %s2137
    %v2139 = vpop.permute.xlu0 %2138
    %s2141 = sor.u32 256, 26
    %2142 = vbcast.lane.b32.xlu0 %v558, %s2141
    %v2143 = vpop.permute.xlu0 %2142
    %s2145 = sor.u32 256, 34
    %2146 = vbcast.lane.b32.xlu0 %v558, %s2145
    %v2147 = vpop.permute.xlu0 %2146
    %s2149 = sor.u32 256, 42
    %2150 = vbcast.lane.b32.xlu0 %v558, %s2149
    %v2151 = vpop.permute.xlu0 %2150
    %s2153 = sor.u32 256, 50
    %2154 = vbcast.lane.b32.xlu0 %v558, %s2153
    %v2155 = vpop.permute.xlu0 %2154
    %s2157 = sor.u32 256, 58
    %2158 = vbcast.lane.b32.xlu0 %v558, %s2157
    %v2159 = vpop.permute.xlu0 %2158
    %s2161 = sor.u32 256, 2
    %2162 = vbcast.lane.b32.xlu0 %v593, %s2161
    %v2163 = vpop.permute.xlu0 %2162
    %s2165 = sor.u32 256, 10
    %2166 = vbcast.lane.b32.xlu0 %v593, %s2165
    %v2167 = vpop.permute.xlu0 %2166
    %s2169 = sor.u32 256, 18
    %2170 = vbcast.lane.b32.xlu0 %v593, %s2169
    %v2171 = vpop.permute.xlu0 %2170
    %s2173 = sor.u32 256, 26
    %2174 = vbcast.lane.b32.xlu0 %v593, %s2173
    %v2175 = vpop.permute.xlu0 %2174
    %s2177 = sor.u32 256, 34
    %2178 = vbcast.lane.b32.xlu0 %v593, %s2177
    %v2179 = vpop.permute.xlu0 %2178
    %s2181 = sor.u32 256, 42
    %2182 = vbcast.lane.b32.xlu0 %v593, %s2181
    %v2183 = vpop.permute.xlu0 %2182
    %s2185 = sor.u32 256, 50
    %2186 = vbcast.lane.b32.xlu0 %v593, %s2185
    %v2187 = vpop.permute.xlu0 %2186
    %s2189 = sor.u32 256, 58
    %2190 = vbcast.lane.b32.xlu0 %v593, %s2189
    %v2191 = vpop.permute.xlu0 %2190
    %s2193 = sor.u32 256, 2
    %2194 = vbcast.lane.b32.xlu0 %v628, %s2193
    %v2195 = vpop.permute.xlu0 %2194
    %s2197 = sor.u32 256, 10
    %2198 = vbcast.lane.b32.xlu0 %v628, %s2197
    %v2199 = vpop.permute.xlu0 %2198
    %s2201 = sor.u32 256, 18
    %2202 = vbcast.lane.b32.xlu0 %v628, %s2201
    %v2203 = vpop.permute.xlu0 %2202
    %s2205 = sor.u32 256, 26
    %2206 = vbcast.lane.b32.xlu0 %v628, %s2205
    %v2207 = vpop.permute.xlu0 %2206
    %s2209 = sor.u32 256, 34
    %2210 = vbcast.lane.b32.xlu0 %v628, %s2209
    %v2211 = vpop.permute.xlu0 %2210
    %s2213 = sor.u32 256, 42
    %2214 = vbcast.lane.b32.xlu0 %v628, %s2213
    %v2215 = vpop.permute.xlu0 %2214
    %s2217 = sor.u32 256, 50
    %2218 = vbcast.lane.b32.xlu0 %v628, %s2217
    %v2219 = vpop.permute.xlu0 %2218
    %s2221 = sor.u32 256, 58
    %2222 = vbcast.lane.b32.xlu0 %v628, %s2221
    %v2223 = vpop.permute.xlu0 %2222
    %s2225 = sor.u32 256, 2
    %2226 = vbcast.lane.b32.xlu0 %v663, %s2225
    %v2227 = vpop.permute.xlu0 %2226
    %s2229 = sor.u32 256, 10
    %2230 = vbcast.lane.b32.xlu0 %v663, %s2229
    %v2231 = vpop.permute.xlu0 %2230
    %s2233 = sor.u32 256, 18
    %2234 = vbcast.lane.b32.xlu0 %v663, %s2233
    %v2235 = vpop.permute.xlu0 %2234
    %s2237 = sor.u32 256, 26
    %2238 = vbcast.lane.b32.xlu0 %v663, %s2237
    %v2239 = vpop.permute.xlu0 %2238
    %s2241 = sor.u32 256, 34
    %2242 = vbcast.lane.b32.xlu0 %v663, %s2241
    %v2243 = vpop.permute.xlu0 %2242
    %s2245 = sor.u32 256, 42
    %2246 = vbcast.lane.b32.xlu0 %v663, %s2245
    %v2247 = vpop.permute.xlu0 %2246
    %s2249 = sor.u32 256, 50
    %2250 = vbcast.lane.b32.xlu0 %v663, %s2249
    %v2251 = vpop.permute.xlu0 %2250
    %s2253 = sor.u32 256, 58
    %2254 = vbcast.lane.b32.xlu0 %v663, %s2253
    %v2255 = vpop.permute.xlu0 %2254
    %s2257 = sor.u32 256, 2
    %2258 = vbcast.lane.b32.xlu0 %v698, %s2257
    %v2259 = vpop.permute.xlu0 %2258
    %s2261 = sor.u32 256, 10
    %2262 = vbcast.lane.b32.xlu0 %v698, %s2261
    %v2263 = vpop.permute.xlu0 %2262
    %s2265 = sor.u32 256, 18
    %2266 = vbcast.lane.b32.xlu0 %v698, %s2265
    %v2267 = vpop.permute.xlu0 %2266
    %s2269 = sor.u32 256, 26
    %2270 = vbcast.lane.b32.xlu0 %v698, %s2269
    %v2271 = vpop.permute.xlu0 %2270
    %s2273 = sor.u32 256, 34
    %2274 = vbcast.lane.b32.xlu0 %v698, %s2273
    %v2275 = vpop.permute.xlu0 %2274
    %s2277 = sor.u32 256, 42
    %2278 = vbcast.lane.b32.xlu0 %v698, %s2277
    %v2279 = vpop.permute.xlu0 %2278
    %s2281 = sor.u32 256, 50
    %2282 = vbcast.lane.b32.xlu0 %v698, %s2281
    %v2283 = vpop.permute.xlu0 %2282
    %s2285 = sor.u32 256, 58
    %2286 = vbcast.lane.b32.xlu0 %v698, %s2285
    %v2287 = vpop.permute.xlu0 %2286
    %s2289 = sor.u32 256, 2
    %2290 = vbcast.lane.b32.xlu0 %v733, %s2289
    %v2291 = vpop.permute.xlu0 %2290
    %s2293 = sor.u32 256, 10
    %2294 = vbcast.lane.b32.xlu0 %v733, %s2293
    %v2295 = vpop.permute.xlu0 %2294
    %s2297 = sor.u32 256, 18
    %2298 = vbcast.lane.b32.xlu0 %v733, %s2297
    %v2299 = vpop.permute.xlu0 %2298
    %s2301 = sor.u32 256, 26
    %2302 = vbcast.lane.b32.xlu0 %v733, %s2301
    %v2303 = vpop.permute.xlu0 %2302
    %s2305 = sor.u32 256, 34
    %2306 = vbcast.lane.b32.xlu0 %v733, %s2305
    %v2307 = vpop.permute.xlu0 %2306
    %s2309 = sor.u32 256, 42
    %2310 = vbcast.lane.b32.xlu0 %v733, %s2309
    %v2311 = vpop.permute.xlu0 %2310
    %s2313 = sor.u32 256, 50
    %2314 = vbcast.lane.b32.xlu0 %v733, %s2313
    %v2315 = vpop.permute.xlu0 %2314
    %s2317 = sor.u32 256, 58
    %2318 = vbcast.lane.b32.xlu0 %v733, %s2317
    %v2319 = vpop.permute.xlu0 %2318
    %s2321 = sor.u32 256, 2
    %2322 = vbcast.lane.b32.xlu0 %v768, %s2321
    %v2323 = vpop.permute.xlu0 %2322
    %s2325 = sor.u32 256, 10
    %2326 = vbcast.lane.b32.xlu0 %v768, %s2325
    %v2327 = vpop.permute.xlu0 %2326
    %s2329 = sor.u32 256, 18
    %2330 = vbcast.lane.b32.xlu0 %v768, %s2329
    %v2331 = vpop.permute.xlu0 %2330
    %s2333 = sor.u32 256, 26
    %2334 = vbcast.lane.b32.xlu0 %v768, %s2333
    %v2335 = vpop.permute.xlu0 %2334
    %s2337 = sor.u32 256, 34
    %2338 = vbcast.lane.b32.xlu0 %v768, %s2337
    %v2339 = vpop.permute.xlu0 %2338
    %s2341 = sor.u32 256, 42
    %2342 = vbcast.lane.b32.xlu0 %v768, %s2341
    %v2343 = vpop.permute.xlu0 %2342
    %s2345 = sor.u32 256, 50
    %2346 = vbcast.lane.b32.xlu0 %v768, %s2345
    %v2347 = vpop.permute.xlu0 %2346
    %s2349 = sor.u32 256, 58
    %2350 = vbcast.lane.b32.xlu0 %v768, %s2349
    %v2351 = vpop.permute.xlu0 %2350
    %v2352 = vlaneseq
    %v2353 = vshrl.u32 %v2352, 7
    %v2354 = vsub.s32 5, %v2353
    %v2355 = vrot.slane %v163, %v2354
    %v2356 = vmul.f32 %v2099, %v2355
    %v2357 = vmul.f32 %v2103, %v2355
    %v2358 = vmul.f32 %v2107, %v2355
    %v2359 = vmul.f32 %v2111, %v2355
    %v2360 = vmul.f32 %v2115, %v2355
    %v2361 = vmul.f32 %v2119, %v2355
    %v2362 = vmul.f32 %v2123, %v2355
    %v2363 = vmul.f32 %v2127, %v2355
    %v2364 = vmul.f32 %v2131, %v2355
    %v2365 = vmul.f32 %v2135, %v2355
    %v2366 = vmul.f32 %v2139, %v2355
    %v2367 = vmul.f32 %v2143, %v2355
    %v2368 = vmul.f32 %v2147, %v2355
    %v2369 = vmul.f32 %v2151, %v2355
    %v2370 = vmul.f32 %v2155, %v2355
    %v2371 = vmul.f32 %v2159, %v2355
    %v2372 = vmul.f32 %v2163, %v2355
    %v2373 = vmul.f32 %v2167, %v2355
    %v2374 = vmul.f32 %v2171, %v2355
    %v2375 = vmul.f32 %v2175, %v2355
    %v2376 = vmul.f32 %v2179, %v2355
    %v2377 = vmul.f32 %v2183, %v2355
    %v2378 = vmul.f32 %v2187, %v2355
    %v2379 = vmul.f32 %v2191, %v2355
    %v2380 = vmul.f32 %v2195, %v2355
    %v2381 = vmul.f32 %v2199, %v2355
    %v2382 = vmul.f32 %v2203, %v2355
    %v2383 = vmul.f32 %v2207, %v2355
    %v2384 = vmul.f32 %v2211, %v2355
    %v2385 = vmul.f32 %v2215, %v2355
    %v2386 = vmul.f32 %v2219, %v2355
    %v2387 = vmul.f32 %v2223, %v2355
    %v2388 = vmul.f32 %v2227, %v2355
    %v2389 = vmul.f32 %v2231, %v2355
    %v2390 = vmul.f32 %v2235, %v2355
    %v2391 = vmul.f32 %v2239, %v2355
    %v2392 = vmul.f32 %v2243, %v2355
    %v2393 = vmul.f32 %v2247, %v2355
    %v2394 = vmul.f32 %v2251, %v2355
    %v2395 = vmul.f32 %v2255, %v2355
    %v2396 = vmul.f32 %v2259, %v2355
    %v2397 = vmul.f32 %v2263, %v2355
    %v2398 = vmul.f32 %v2267, %v2355
    %v2399 = vmul.f32 %v2271, %v2355
    %v2400 = vmul.f32 %v2275, %v2355
    %v2401 = vmul.f32 %v2279, %v2355
    %v2402 = vmul.f32 %v2283, %v2355
    %v2403 = vmul.f32 %v2287, %v2355
    %v2404 = vmul.f32 %v2291, %v2355
    %v2405 = vmul.f32 %v2295, %v2355
    %v2406 = vmul.f32 %v2299, %v2355
    %v2407 = vmul.f32 %v2303, %v2355
    %v2408 = vmul.f32 %v2307, %v2355
    %v2409 = vmul.f32 %v2311, %v2355
    %v2410 = vmul.f32 %v2315, %v2355
    %v2411 = vmul.f32 %v2319, %v2355
    %v2412 = vmul.f32 %v2323, %v2355
    %v2413 = vmul.f32 %v2327, %v2355
    %v2414 = vmul.f32 %v2331, %v2355
    %v2415 = vmul.f32 %v2335, %v2355
    %v2416 = vmul.f32 %v2339, %v2355
    %v2417 = vmul.f32 %v2343, %v2355
    %v2418 = vmul.f32 %v2347, %v2355
    %v2419 = vmul.f32 %v2351, %v2355
    %v2420 = vadd.f32 %v2032, %v2356
    %v2421 = vadd.f32 %v2033, %v2357
    %v2422 = vadd.f32 %v2034, %v2358
    %v2423 = vadd.f32 %v2035, %v2359
    %v2424 = vadd.f32 %v2036, %v2360
    %v2425 = vadd.f32 %v2037, %v2361
    %v2426 = vadd.f32 %v2038, %v2362
    %v2427 = vadd.f32 %v2039, %v2363
    %v2428 = vadd.f32 %v2040, %v2364
    %v2429 = vadd.f32 %v2041, %v2365
    %v2430 = vadd.f32 %v2042, %v2366
    %v2431 = vadd.f32 %v2043, %v2367
    %v2432 = vadd.f32 %v2044, %v2368
    %v2433 = vadd.f32 %v2045, %v2369
    %v2434 = vadd.f32 %v2046, %v2370
    %v2435 = vadd.f32 %v2047, %v2371
    %v2436 = vadd.f32 %v2048, %v2372
    %v2437 = vadd.f32 %v2049, %v2373
    %v2438 = vadd.f32 %v2050, %v2374
    %v2439 = vadd.f32 %v2051, %v2375
    %v2440 = vadd.f32 %v2052, %v2376
    %v2441 = vadd.f32 %v2053, %v2377
    %v2442 = vadd.f32 %v2054, %v2378
    %v2443 = vadd.f32 %v2055, %v2379
    %v2444 = vadd.f32 %v2056, %v2380
    %v2445 = vadd.f32 %v2057, %v2381
    %v2446 = vadd.f32 %v2058, %v2382
    %v2447 = vadd.f32 %v2059, %v2383
    %v2448 = vadd.f32 %v2060, %v2384
    %v2449 = vadd.f32 %v2061, %v2385
    %v2450 = vadd.f32 %v2062, %v2386
    %v2451 = vadd.f32 %v2063, %v2387
    %v2452 = vadd.f32 %v2064, %v2388
    %v2453 = vadd.f32 %v2065, %v2389
    %v2454 = vadd.f32 %v2066, %v2390
    %v2455 = vadd.f32 %v2067, %v2391
    %v2456 = vadd.f32 %v2068, %v2392
    %v2457 = vadd.f32 %v2069, %v2393
    %v2458 = vadd.f32 %v2070, %v2394
    %v2459 = vadd.f32 %v2071, %v2395
    %v2460 = vadd.f32 %v2072, %v2396
    %v2461 = vadd.f32 %v2073, %v2397
    %v2462 = vadd.f32 %v2074, %v2398
    %v2463 = vadd.f32 %v2075, %v2399
    %v2464 = vadd.f32 %v2076, %v2400
    %v2465 = vadd.f32 %v2077, %v2401
    %v2466 = vadd.f32 %v2078, %v2402
    %v2467 = vadd.f32 %v2079, %v2403
    %v2468 = vadd.f32 %v2080, %v2404
    %v2469 = vadd.f32 %v2081, %v2405
    %v2470 = vadd.f32 %v2082, %v2406
    %v2471 = vadd.f32 %v2083, %v2407
    %v2472 = vadd.f32 %v2084, %v2408
    %v2473 = vadd.f32 %v2085, %v2409
    %v2474 = vadd.f32 %v2086, %v2410
    %v2475 = vadd.f32 %v2087, %v2411
    %v2476 = vadd.f32 %v2088, %v2412
    %v2477 = vadd.f32 %v2089, %v2413
    %v2478 = vadd.f32 %v2090, %v2414
    %v2479 = vadd.f32 %v2091, %v2415
    %v2480 = vadd.f32 %v2092, %v2416
    %v2481 = vadd.f32 %v2093, %v2417
    %v2482 = vadd.f32 %v2094, %v2418
    %v2483 = vadd.f32 %v2095, %v2419
    %s2485 = sor.u32 256, 3
    %2486 = vbcast.lane.b32.xlu0 %v171, %s2485
    %v2487 = vpop.permute.xlu0 %2486
    %s2489 = sor.u32 256, 11
    %2490 = vbcast.lane.b32.xlu0 %v171, %s2489
    %v2491 = vpop.permute.xlu0 %2490
    %s2493 = sor.u32 256, 19
    %2494 = vbcast.lane.b32.xlu0 %v171, %s2493
    %v2495 = vpop.permute.xlu0 %2494
    %s2497 = sor.u32 256, 27
    %2498 = vbcast.lane.b32.xlu0 %v171, %s2497
    %v2499 = vpop.permute.xlu0 %2498
    %s2501 = sor.u32 256, 35
    %2502 = vbcast.lane.b32.xlu0 %v171, %s2501
    %v2503 = vpop.permute.xlu0 %2502
    %s2505 = sor.u32 256, 43
    %2506 = vbcast.lane.b32.xlu0 %v171, %s2505
    %v2507 = vpop.permute.xlu0 %2506
    %s2509 = sor.u32 256, 51
    %2510 = vbcast.lane.b32.xlu0 %v171, %s2509
    %v2511 = vpop.permute.xlu0 %2510
    %s2513 = sor.u32 256, 59
    %2514 = vbcast.lane.b32.xlu0 %v171, %s2513
    %v2515 = vpop.permute.xlu0 %2514
    %s2517 = sor.u32 256, 3
    %2518 = vbcast.lane.b32.xlu0 %v206, %s2517
    %v2519 = vpop.permute.xlu0 %2518
    %s2521 = sor.u32 256, 11
    %2522 = vbcast.lane.b32.xlu0 %v206, %s2521
    %v2523 = vpop.permute.xlu0 %2522
    %s2525 = sor.u32 256, 19
    %2526 = vbcast.lane.b32.xlu0 %v206, %s2525
    %v2527 = vpop.permute.xlu0 %2526
    %s2529 = sor.u32 256, 27
    %2530 = vbcast.lane.b32.xlu0 %v206, %s2529
    %v2531 = vpop.permute.xlu0 %2530
    %s2533 = sor.u32 256, 35
    %2534 = vbcast.lane.b32.xlu0 %v206, %s2533
    %v2535 = vpop.permute.xlu0 %2534
    %s2537 = sor.u32 256, 43
    %2538 = vbcast.lane.b32.xlu0 %v206, %s2537
    %v2539 = vpop.permute.xlu0 %2538
    %s2541 = sor.u32 256, 51
    %2542 = vbcast.lane.b32.xlu0 %v206, %s2541
    %v2543 = vpop.permute.xlu0 %2542
    %s2545 = sor.u32 256, 59
    %2546 = vbcast.lane.b32.xlu0 %v206, %s2545
    %v2547 = vpop.permute.xlu0 %2546
    %s2549 = sor.u32 256, 3
    %2550 = vbcast.lane.b32.xlu0 %v241, %s2549
    %v2551 = vpop.permute.xlu0 %2550
    %s2553 = sor.u32 256, 11
    %2554 = vbcast.lane.b32.xlu0 %v241, %s2553
    %v2555 = vpop.permute.xlu0 %2554
    %s2557 = sor.u32 256, 19
    %2558 = vbcast.lane.b32.xlu0 %v241, %s2557
    %v2559 = vpop.permute.xlu0 %2558
    %s2561 = sor.u32 256, 27
    %2562 = vbcast.lane.b32.xlu0 %v241, %s2561
    %v2563 = vpop.permute.xlu0 %2562
    %s2565 = sor.u32 256, 35
    %2566 = vbcast.lane.b32.xlu0 %v241, %s2565
    %v2567 = vpop.permute.xlu0 %2566
    %s2569 = sor.u32 256, 43
    %2570 = vbcast.lane.b32.xlu0 %v241, %s2569
    %v2571 = vpop.permute.xlu0 %2570
    %s2573 = sor.u32 256, 51
    %2574 = vbcast.lane.b32.xlu0 %v241, %s2573
    %v2575 = vpop.permute.xlu0 %2574
    %s2577 = sor.u32 256, 59
    %2578 = vbcast.lane.b32.xlu0 %v241, %s2577
    %v2579 = vpop.permute.xlu0 %2578
    %s2581 = sor.u32 256, 3
    %2582 = vbcast.lane.b32.xlu0 %v276, %s2581
    %v2583 = vpop.permute.xlu0 %2582
    %s2585 = sor.u32 256, 11
    %2586 = vbcast.lane.b32.xlu0 %v276, %s2585
    %v2587 = vpop.permute.xlu0 %2586
    %s2589 = sor.u32 256, 19
    %2590 = vbcast.lane.b32.xlu0 %v276, %s2589
    %v2591 = vpop.permute.xlu0 %2590
    %s2593 = sor.u32 256, 27
    %2594 = vbcast.lane.b32.xlu0 %v276, %s2593
    %v2595 = vpop.permute.xlu0 %2594
    %s2597 = sor.u32 256, 35
    %2598 = vbcast.lane.b32.xlu0 %v276, %s2597
    %v2599 = vpop.permute.xlu0 %2598
    %s2601 = sor.u32 256, 43
    %2602 = vbcast.lane.b32.xlu0 %v276, %s2601
    %v2603 = vpop.permute.xlu0 %2602
    %s2605 = sor.u32 256, 51
    %2606 = vbcast.lane.b32.xlu0 %v276, %s2605
    %v2607 = vpop.permute.xlu0 %2606
    %s2609 = sor.u32 256, 59
    %2610 = vbcast.lane.b32.xlu0 %v276, %s2609
    %v2611 = vpop.permute.xlu0 %2610
    %s2613 = sor.u32 256, 3
    %2614 = vbcast.lane.b32.xlu0 %v311, %s2613
    %v2615 = vpop.permute.xlu0 %2614
    %s2617 = sor.u32 256, 11
    %2618 = vbcast.lane.b32.xlu0 %v311, %s2617
    %v2619 = vpop.permute.xlu0 %2618
    %s2621 = sor.u32 256, 19
    %2622 = vbcast.lane.b32.xlu0 %v311, %s2621
    %v2623 = vpop.permute.xlu0 %2622
    %s2625 = sor.u32 256, 27
    %2626 = vbcast.lane.b32.xlu0 %v311, %s2625
    %v2627 = vpop.permute.xlu0 %2626
    %s2629 = sor.u32 256, 35
    %2630 = vbcast.lane.b32.xlu0 %v311, %s2629
    %v2631 = vpop.permute.xlu0 %2630
    %s2633 = sor.u32 256, 43
    %2634 = vbcast.lane.b32.xlu0 %v311, %s2633
    %v2635 = vpop.permute.xlu0 %2634
    %s2637 = sor.u32 256, 51
    %2638 = vbcast.lane.b32.xlu0 %v311, %s2637
    %v2639 = vpop.permute.xlu0 %2638
    %s2641 = sor.u32 256, 59
    %2642 = vbcast.lane.b32.xlu0 %v311, %s2641
    %v2643 = vpop.permute.xlu0 %2642
    %s2645 = sor.u32 256, 3
    %2646 = vbcast.lane.b32.xlu0 %v346, %s2645
    %v2647 = vpop.permute.xlu0 %2646
    %s2649 = sor.u32 256, 11
    %2650 = vbcast.lane.b32.xlu0 %v346, %s2649
    %v2651 = vpop.permute.xlu0 %2650
    %s2653 = sor.u32 256, 19
    %2654 = vbcast.lane.b32.xlu0 %v346, %s2653
    %v2655 = vpop.permute.xlu0 %2654
    %s2657 = sor.u32 256, 27
    %2658 = vbcast.lane.b32.xlu0 %v346, %s2657
    %v2659 = vpop.permute.xlu0 %2658
    %s2661 = sor.u32 256, 35
    %2662 = vbcast.lane.b32.xlu0 %v346, %s2661
    %v2663 = vpop.permute.xlu0 %2662
    %s2665 = sor.u32 256, 43
    %2666 = vbcast.lane.b32.xlu0 %v346, %s2665
    %v2667 = vpop.permute.xlu0 %2666
    %s2669 = sor.u32 256, 51
    %2670 = vbcast.lane.b32.xlu0 %v346, %s2669
    %v2671 = vpop.permute.xlu0 %2670
    %s2673 = sor.u32 256, 59
    %2674 = vbcast.lane.b32.xlu0 %v346, %s2673
    %v2675 = vpop.permute.xlu0 %2674
    %s2677 = sor.u32 256, 3
    %2678 = vbcast.lane.b32.xlu0 %v381, %s2677
    %v2679 = vpop.permute.xlu0 %2678
    %s2681 = sor.u32 256, 11
    %2682 = vbcast.lane.b32.xlu0 %v381, %s2681
    %v2683 = vpop.permute.xlu0 %2682
    %s2685 = sor.u32 256, 19
    %2686 = vbcast.lane.b32.xlu0 %v381, %s2685
    %v2687 = vpop.permute.xlu0 %2686
    %s2689 = sor.u32 256, 27
    %2690 = vbcast.lane.b32.xlu0 %v381, %s2689
    %v2691 = vpop.permute.xlu0 %2690
    %s2693 = sor.u32 256, 35
    %2694 = vbcast.lane.b32.xlu0 %v381, %s2693
    %v2695 = vpop.permute.xlu0 %2694
    %s2697 = sor.u32 256, 43
    %2698 = vbcast.lane.b32.xlu0 %v381, %s2697
    %v2699 = vpop.permute.xlu0 %2698
    %s2701 = sor.u32 256, 51
    %2702 = vbcast.lane.b32.xlu0 %v381, %s2701
    %v2703 = vpop.permute.xlu0 %2702
    %s2705 = sor.u32 256, 59
    %2706 = vbcast.lane.b32.xlu0 %v381, %s2705
    %v2707 = vpop.permute.xlu0 %2706
    %s2709 = sor.u32 256, 3
    %2710 = vbcast.lane.b32.xlu0 %v416, %s2709
    %v2711 = vpop.permute.xlu0 %2710
    %s2713 = sor.u32 256, 11
    %2714 = vbcast.lane.b32.xlu0 %v416, %s2713
    %v2715 = vpop.permute.xlu0 %2714
    %s2717 = sor.u32 256, 19
    %2718 = vbcast.lane.b32.xlu0 %v416, %s2717
    %v2719 = vpop.permute.xlu0 %2718
    %s2721 = sor.u32 256, 27
    %2722 = vbcast.lane.b32.xlu0 %v416, %s2721
    %v2723 = vpop.permute.xlu0 %2722
    %s2725 = sor.u32 256, 35
    %2726 = vbcast.lane.b32.xlu0 %v416, %s2725
    %v2727 = vpop.permute.xlu0 %2726
    %s2729 = sor.u32 256, 43
    %2730 = vbcast.lane.b32.xlu0 %v416, %s2729
    %v2731 = vpop.permute.xlu0 %2730
    %s2733 = sor.u32 256, 51
    %2734 = vbcast.lane.b32.xlu0 %v416, %s2733
    %v2735 = vpop.permute.xlu0 %2734
    %s2737 = sor.u32 256, 59
    %2738 = vbcast.lane.b32.xlu0 %v416, %s2737
    %v2739 = vpop.permute.xlu0 %2738
    %v2740 = vlaneseq
    %v2741 = vshrl.u32 %v2740, 7
    %v2742 = vsub.s32 6, %v2741
    %v2743 = vrot.slane %v163, %v2742
    %v2744 = vmul.f32 %v2487, %v2743
    %v2745 = vmul.f32 %v2491, %v2743
    %v2746 = vmul.f32 %v2495, %v2743
    %v2747 = vmul.f32 %v2499, %v2743
    %v2748 = vmul.f32 %v2503, %v2743
    %v2749 = vmul.f32 %v2507, %v2743
    %v2750 = vmul.f32 %v2511, %v2743
    %v2751 = vmul.f32 %v2515, %v2743
    %v2752 = vmul.f32 %v2519, %v2743
    %v2753 = vmul.f32 %v2523, %v2743
    %v2754 = vmul.f32 %v2527, %v2743
    %v2755 = vmul.f32 %v2531, %v2743
    %v2756 = vmul.f32 %v2535, %v2743
    %v2757 = vmul.f32 %v2539, %v2743
    %v2758 = vmul.f32 %v2543, %v2743
    %v2759 = vmul.f32 %v2547, %v2743
    %v2760 = vmul.f32 %v2551, %v2743
    %v2761 = vmul.f32 %v2555, %v2743
    %v2762 = vmul.f32 %v2559, %v2743
    %v2763 = vmul.f32 %v2563, %v2743
    %v2764 = vmul.f32 %v2567, %v2743
    %v2765 = vmul.f32 %v2571, %v2743
    %v2766 = vmul.f32 %v2575, %v2743
    %v2767 = vmul.f32 %v2579, %v2743
    %v2768 = vmul.f32 %v2583, %v2743
    %v2769 = vmul.f32 %v2587, %v2743
    %v2770 = vmul.f32 %v2591, %v2743
    %v2771 = vmul.f32 %v2595, %v2743
    %v2772 = vmul.f32 %v2599, %v2743
    %v2773 = vmul.f32 %v2603, %v2743
    %v2774 = vmul.f32 %v2607, %v2743
    %v2775 = vmul.f32 %v2611, %v2743
    %v2776 = vmul.f32 %v2615, %v2743
    %v2777 = vmul.f32 %v2619, %v2743
    %v2778 = vmul.f32 %v2623, %v2743
    %v2779 = vmul.f32 %v2627, %v2743
    %v2780 = vmul.f32 %v2631, %v2743
    %v2781 = vmul.f32 %v2635, %v2743
    %v2782 = vmul.f32 %v2639, %v2743
    %v2783 = vmul.f32 %v2643, %v2743
    %v2784 = vmul.f32 %v2647, %v2743
    %v2785 = vmul.f32 %v2651, %v2743
    %v2786 = vmul.f32 %v2655, %v2743
    %v2787 = vmul.f32 %v2659, %v2743
    %v2788 = vmul.f32 %v2663, %v2743
    %v2789 = vmul.f32 %v2667, %v2743
    %v2790 = vmul.f32 %v2671, %v2743
    %v2791 = vmul.f32 %v2675, %v2743
    %v2792 = vmul.f32 %v2679, %v2743
    %v2793 = vmul.f32 %v2683, %v2743
    %v2794 = vmul.f32 %v2687, %v2743
    %v2795 = vmul.f32 %v2691, %v2743
    %v2796 = vmul.f32 %v2695, %v2743
    %v2797 = vmul.f32 %v2699, %v2743
    %v2798 = vmul.f32 %v2703, %v2743
    %v2799 = vmul.f32 %v2707, %v2743
    %v2800 = vmul.f32 %v2711, %v2743
    %v2801 = vmul.f32 %v2715, %v2743
    %v2802 = vmul.f32 %v2719, %v2743
    %v2803 = vmul.f32 %v2723, %v2743
    %v2804 = vmul.f32 %v2727, %v2743
    %v2805 = vmul.f32 %v2731, %v2743
    %v2806 = vmul.f32 %v2735, %v2743
    %v2807 = vmul.f32 %v2739, %v2743
    %v2808 = vadd.f32 %v2420, %v2744
    %v2809 = vadd.f32 %v2421, %v2745
    %v2810 = vadd.f32 %v2422, %v2746
    %v2811 = vadd.f32 %v2423, %v2747
    %v2812 = vadd.f32 %v2424, %v2748
    %v2813 = vadd.f32 %v2425, %v2749
    %v2814 = vadd.f32 %v2426, %v2750
    %v2815 = vadd.f32 %v2427, %v2751
    %v2816 = vadd.f32 %v2428, %v2752
    %v2817 = vadd.f32 %v2429, %v2753
    %v2818 = vadd.f32 %v2430, %v2754
    %v2819 = vadd.f32 %v2431, %v2755
    %v2820 = vadd.f32 %v2432, %v2756
    %v2821 = vadd.f32 %v2433, %v2757
    %v2822 = vadd.f32 %v2434, %v2758
    %v2823 = vadd.f32 %v2435, %v2759
    %v2824 = vadd.f32 %v2436, %v2760
    %v2825 = vadd.f32 %v2437, %v2761
    %v2826 = vadd.f32 %v2438, %v2762
    %v2827 = vadd.f32 %v2439, %v2763
    %v2828 = vadd.f32 %v2440, %v2764
    %v2829 = vadd.f32 %v2441, %v2765
    %v2830 = vadd.f32 %v2442, %v2766
    %v2831 = vadd.f32 %v2443, %v2767
    %v2832 = vadd.f32 %v2444, %v2768
    %v2833 = vadd.f32 %v2445, %v2769
    %v2834 = vadd.f32 %v2446, %v2770
    %v2835 = vadd.f32 %v2447, %v2771
    %v2836 = vadd.f32 %v2448, %v2772
    %v2837 = vadd.f32 %v2449, %v2773
    %v2838 = vadd.f32 %v2450, %v2774
    %v2839 = vadd.f32 %v2451, %v2775
    %v2840 = vadd.f32 %v2452, %v2776
    %v2841 = vadd.f32 %v2453, %v2777
    %v2842 = vadd.f32 %v2454, %v2778
    %v2843 = vadd.f32 %v2455, %v2779
    %v2844 = vadd.f32 %v2456, %v2780
    %v2845 = vadd.f32 %v2457, %v2781
    %v2846 = vadd.f32 %v2458, %v2782
    %v2847 = vadd.f32 %v2459, %v2783
    %v2848 = vadd.f32 %v2460, %v2784
    %v2849 = vadd.f32 %v2461, %v2785
    %v2850 = vadd.f32 %v2462, %v2786
    %v2851 = vadd.f32 %v2463, %v2787
    %v2852 = vadd.f32 %v2464, %v2788
    %v2853 = vadd.f32 %v2465, %v2789
    %v2854 = vadd.f32 %v2466, %v2790
    %v2855 = vadd.f32 %v2467, %v2791
    %v2856 = vadd.f32 %v2468, %v2792
    %v2857 = vadd.f32 %v2469, %v2793
    %v2858 = vadd.f32 %v2470, %v2794
    %v2859 = vadd.f32 %v2471, %v2795
    %v2860 = vadd.f32 %v2472, %v2796
    %v2861 = vadd.f32 %v2473, %v2797
    %v2862 = vadd.f32 %v2474, %v2798
    %v2863 = vadd.f32 %v2475, %v2799
    %v2864 = vadd.f32 %v2476, %v2800
    %v2865 = vadd.f32 %v2477, %v2801
    %v2866 = vadd.f32 %v2478, %v2802
    %v2867 = vadd.f32 %v2479, %v2803
    %v2868 = vadd.f32 %v2480, %v2804
    %v2869 = vadd.f32 %v2481, %v2805
    %v2870 = vadd.f32 %v2482, %v2806
    %v2871 = vadd.f32 %v2483, %v2807
    %s2873 = sor.u32 256, 3
    %2874 = vbcast.lane.b32.xlu0 %v523, %s2873
    %v2875 = vpop.permute.xlu0 %2874
    %s2877 = sor.u32 256, 11
    %2878 = vbcast.lane.b32.xlu0 %v523, %s2877
    %v2879 = vpop.permute.xlu0 %2878
    %s2881 = sor.u32 256, 19
    %2882 = vbcast.lane.b32.xlu0 %v523, %s2881
    %v2883 = vpop.permute.xlu0 %2882
    %s2885 = sor.u32 256, 27
    %2886 = vbcast.lane.b32.xlu0 %v523, %s2885
    %v2887 = vpop.permute.xlu0 %2886
    %s2889 = sor.u32 256, 35
    %2890 = vbcast.lane.b32.xlu0 %v523, %s2889
    %v2891 = vpop.permute.xlu0 %2890
    %s2893 = sor.u32 256, 43
    %2894 = vbcast.lane.b32.xlu0 %v523, %s2893
    %v2895 = vpop.permute.xlu0 %2894
    %s2897 = sor.u32 256, 51
    %2898 = vbcast.lane.b32.xlu0 %v523, %s2897
    %v2899 = vpop.permute.xlu0 %2898
    %s2901 = sor.u32 256, 59
    %2902 = vbcast.lane.b32.xlu0 %v523, %s2901
    %v2903 = vpop.permute.xlu0 %2902
    %s2905 = sor.u32 256, 3
    %2906 = vbcast.lane.b32.xlu0 %v558, %s2905
    %v2907 = vpop.permute.xlu0 %2906
    %s2909 = sor.u32 256, 11
    %2910 = vbcast.lane.b32.xlu0 %v558, %s2909
    %v2911 = vpop.permute.xlu0 %2910
    %s2913 = sor.u32 256, 19
    %2914 = vbcast.lane.b32.xlu0 %v558, %s2913
    %v2915 = vpop.permute.xlu0 %2914
    %s2917 = sor.u32 256, 27
    %2918 = vbcast.lane.b32.xlu0 %v558, %s2917
    %v2919 = vpop.permute.xlu0 %2918
    %s2921 = sor.u32 256, 35
    %2922 = vbcast.lane.b32.xlu0 %v558, %s2921
    %v2923 = vpop.permute.xlu0 %2922
    %s2925 = sor.u32 256, 43
    %2926 = vbcast.lane.b32.xlu0 %v558, %s2925
    %v2927 = vpop.permute.xlu0 %2926
    %s2929 = sor.u32 256, 51
    %2930 = vbcast.lane.b32.xlu0 %v558, %s2929
    %v2931 = vpop.permute.xlu0 %2930
    %s2933 = sor.u32 256, 59
    %2934 = vbcast.lane.b32.xlu0 %v558, %s2933
    %v2935 = vpop.permute.xlu0 %2934
    %s2937 = sor.u32 256, 3
    %2938 = vbcast.lane.b32.xlu0 %v593, %s2937
    %v2939 = vpop.permute.xlu0 %2938
    %s2941 = sor.u32 256, 11
    %2942 = vbcast.lane.b32.xlu0 %v593, %s2941
    %v2943 = vpop.permute.xlu0 %2942
    %s2945 = sor.u32 256, 19
    %2946 = vbcast.lane.b32.xlu0 %v593, %s2945
    %v2947 = vpop.permute.xlu0 %2946
    %s2949 = sor.u32 256, 27
    %2950 = vbcast.lane.b32.xlu0 %v593, %s2949
    %v2951 = vpop.permute.xlu0 %2950
    %s2953 = sor.u32 256, 35
    %2954 = vbcast.lane.b32.xlu0 %v593, %s2953
    %v2955 = vpop.permute.xlu0 %2954
    %s2957 = sor.u32 256, 43
    %2958 = vbcast.lane.b32.xlu0 %v593, %s2957
    %v2959 = vpop.permute.xlu0 %2958
    %s2961 = sor.u32 256, 51
    %2962 = vbcast.lane.b32.xlu0 %v593, %s2961
    %v2963 = vpop.permute.xlu0 %2962
    %s2965 = sor.u32 256, 59
    %2966 = vbcast.lane.b32.xlu0 %v593, %s2965
    %v2967 = vpop.permute.xlu0 %2966
    %s2969 = sor.u32 256, 3
    %2970 = vbcast.lane.b32.xlu0 %v628, %s2969
    %v2971 = vpop.permute.xlu0 %2970
    %s2973 = sor.u32 256, 11
    %2974 = vbcast.lane.b32.xlu0 %v628, %s2973
    %v2975 = vpop.permute.xlu0 %2974
    %s2977 = sor.u32 256, 19
    %2978 = vbcast.lane.b32.xlu0 %v628, %s2977
    %v2979 = vpop.permute.xlu0 %2978
    %s2981 = sor.u32 256, 27
    %2982 = vbcast.lane.b32.xlu0 %v628, %s2981
    %v2983 = vpop.permute.xlu0 %2982
    %s2985 = sor.u32 256, 35
    %2986 = vbcast.lane.b32.xlu0 %v628, %s2985
    %v2987 = vpop.permute.xlu0 %2986
    %s2989 = sor.u32 256, 43
    %2990 = vbcast.lane.b32.xlu0 %v628, %s2989
    %v2991 = vpop.permute.xlu0 %2990
    %s2993 = sor.u32 256, 51
    %2994 = vbcast.lane.b32.xlu0 %v628, %s2993
    %v2995 = vpop.permute.xlu0 %2994
    %s2997 = sor.u32 256, 59
    %2998 = vbcast.lane.b32.xlu0 %v628, %s2997
    %v2999 = vpop.permute.xlu0 %2998
    %s3001 = sor.u32 256, 3
    %3002 = vbcast.lane.b32.xlu0 %v663, %s3001
    %v3003 = vpop.permute.xlu0 %3002
    %s3005 = sor.u32 256, 11
    %3006 = vbcast.lane.b32.xlu0 %v663, %s3005
    %v3007 = vpop.permute.xlu0 %3006
    %s3009 = sor.u32 256, 19
    %3010 = vbcast.lane.b32.xlu0 %v663, %s3009
    %v3011 = vpop.permute.xlu0 %3010
    %s3013 = sor.u32 256, 27
    %3014 = vbcast.lane.b32.xlu0 %v663, %s3013
    %v3015 = vpop.permute.xlu0 %3014
    %s3017 = sor.u32 256, 35
    %3018 = vbcast.lane.b32.xlu0 %v663, %s3017
    %v3019 = vpop.permute.xlu0 %3018
    %s3021 = sor.u32 256, 43
    %3022 = vbcast.lane.b32.xlu0 %v663, %s3021
    %v3023 = vpop.permute.xlu0 %3022
    %s3025 = sor.u32 256, 51
    %3026 = vbcast.lane.b32.xlu0 %v663, %s3025
    %v3027 = vpop.permute.xlu0 %3026
    %s3029 = sor.u32 256, 59
    %3030 = vbcast.lane.b32.xlu0 %v663, %s3029
    %v3031 = vpop.permute.xlu0 %3030
    %s3033 = sor.u32 256, 3
    %3034 = vbcast.lane.b32.xlu0 %v698, %s3033
    %v3035 = vpop.permute.xlu0 %3034
    %s3037 = sor.u32 256, 11
    %3038 = vbcast.lane.b32.xlu0 %v698, %s3037
    %v3039 = vpop.permute.xlu0 %3038
    %s3041 = sor.u32 256, 19
    %3042 = vbcast.lane.b32.xlu0 %v698, %s3041
    %v3043 = vpop.permute.xlu0 %3042
    %s3045 = sor.u32 256, 27
    %3046 = vbcast.lane.b32.xlu0 %v698, %s3045
    %v3047 = vpop.permute.xlu0 %3046
    %s3049 = sor.u32 256, 35
    %3050 = vbcast.lane.b32.xlu0 %v698, %s3049
    %v3051 = vpop.permute.xlu0 %3050
    %s3053 = sor.u32 256, 43
    %3054 = vbcast.lane.b32.xlu0 %v698, %s3053
    %v3055 = vpop.permute.xlu0 %3054
    %s3057 = sor.u32 256, 51
    %3058 = vbcast.lane.b32.xlu0 %v698, %s3057
    %v3059 = vpop.permute.xlu0 %3058
    %s3061 = sor.u32 256, 59
    %3062 = vbcast.lane.b32.xlu0 %v698, %s3061
    %v3063 = vpop.permute.xlu0 %3062
    %s3065 = sor.u32 256, 3
    %3066 = vbcast.lane.b32.xlu0 %v733, %s3065
    %v3067 = vpop.permute.xlu0 %3066
    %s3069 = sor.u32 256, 11
    %3070 = vbcast.lane.b32.xlu0 %v733, %s3069
    %v3071 = vpop.permute.xlu0 %3070
    %s3073 = sor.u32 256, 19
    %3074 = vbcast.lane.b32.xlu0 %v733, %s3073
    %v3075 = vpop.permute.xlu0 %3074
    %s3077 = sor.u32 256, 27
    %3078 = vbcast.lane.b32.xlu0 %v733, %s3077
    %v3079 = vpop.permute.xlu0 %3078
    %s3081 = sor.u32 256, 35
    %3082 = vbcast.lane.b32.xlu0 %v733, %s3081
    %v3083 = vpop.permute.xlu0 %3082
    %s3085 = sor.u32 256, 43
    %3086 = vbcast.lane.b32.xlu0 %v733, %s3085
    %v3087 = vpop.permute.xlu0 %3086
    %s3089 = sor.u32 256, 51
    %3090 = vbcast.lane.b32.xlu0 %v733, %s3089
    %v3091 = vpop.permute.xlu0 %3090
    %s3093 = sor.u32 256, 59
    %3094 = vbcast.lane.b32.xlu0 %v733, %s3093
    %v3095 = vpop.permute.xlu0 %3094
    %s3097 = sor.u32 256, 3
    %3098 = vbcast.lane.b32.xlu0 %v768, %s3097
    %v3099 = vpop.permute.xlu0 %3098
    %s3101 = sor.u32 256, 11
    %3102 = vbcast.lane.b32.xlu0 %v768, %s3101
    %v3103 = vpop.permute.xlu0 %3102
    %s3105 = sor.u32 256, 19
    %3106 = vbcast.lane.b32.xlu0 %v768, %s3105
    %v3107 = vpop.permute.xlu0 %3106
    %s3109 = sor.u32 256, 27
    %3110 = vbcast.lane.b32.xlu0 %v768, %s3109
    %v3111 = vpop.permute.xlu0 %3110
    %s3113 = sor.u32 256, 35
    %3114 = vbcast.lane.b32.xlu0 %v768, %s3113
    %v3115 = vpop.permute.xlu0 %3114
    %s3117 = sor.u32 256, 43
    %3118 = vbcast.lane.b32.xlu0 %v768, %s3117
    %v3119 = vpop.permute.xlu0 %3118
    %s3121 = sor.u32 256, 51
    %3122 = vbcast.lane.b32.xlu0 %v768, %s3121
    %v3123 = vpop.permute.xlu0 %3122
    %s3125 = sor.u32 256, 59
    %3126 = vbcast.lane.b32.xlu0 %v768, %s3125
    %v3127 = vpop.permute.xlu0 %3126
    %v3128 = vlaneseq
    %v3129 = vshrl.u32 %v3128, 7
    %v3130 = vsub.s32 7, %v3129
    %v3131 = vrot.slane %v163, %v3130
    %v3132 = vmul.f32 %v2875, %v3131
    %v3133 = vmul.f32 %v2879, %v3131
    %v3134 = vmul.f32 %v2883, %v3131
    %v3135 = vmul.f32 %v2887, %v3131
    %v3136 = vmul.f32 %v2891, %v3131
    %v3137 = vmul.f32 %v2895, %v3131
    %v3138 = vmul.f32 %v2899, %v3131
    %v3139 = vmul.f32 %v2903, %v3131
    %v3140 = vmul.f32 %v2907, %v3131
    %v3141 = vmul.f32 %v2911, %v3131
    %v3142 = vmul.f32 %v2915, %v3131
    %v3143 = vmul.f32 %v2919, %v3131
    %v3144 = vmul.f32 %v2923, %v3131
    %v3145 = vmul.f32 %v2927, %v3131
    %v3146 = vmul.f32 %v2931, %v3131
    %v3147 = vmul.f32 %v2935, %v3131
    %v3148 = vmul.f32 %v2939, %v3131
    %v3149 = vmul.f32 %v2943, %v3131
    %v3150 = vmul.f32 %v2947, %v3131
    %v3151 = vmul.f32 %v2951, %v3131
    %v3152 = vmul.f32 %v2955, %v3131
    %v3153 = vmul.f32 %v2959, %v3131
    %v3154 = vmul.f32 %v2963, %v3131
    %v3155 = vmul.f32 %v2967, %v3131
    %v3156 = vmul.f32 %v2971, %v3131
    %v3157 = vmul.f32 %v2975, %v3131
    %v3158 = vmul.f32 %v2979, %v3131
    %v3159 = vmul.f32 %v2983, %v3131
    %v3160 = vmul.f32 %v2987, %v3131
    %v3161 = vmul.f32 %v2991, %v3131
    %v3162 = vmul.f32 %v2995, %v3131
    %v3163 = vmul.f32 %v2999, %v3131
    %v3164 = vmul.f32 %v3003, %v3131
    %v3165 = vmul.f32 %v3007, %v3131
    %v3166 = vmul.f32 %v3011, %v3131
    %v3167 = vmul.f32 %v3015, %v3131
    %v3168 = vmul.f32 %v3019, %v3131
    %v3169 = vmul.f32 %v3023, %v3131
    %v3170 = vmul.f32 %v3027, %v3131
    %v3171 = vmul.f32 %v3031, %v3131
    %v3172 = vmul.f32 %v3035, %v3131
    %v3173 = vmul.f32 %v3039, %v3131
    %v3174 = vmul.f32 %v3043, %v3131
    %v3175 = vmul.f32 %v3047, %v3131
    %v3176 = vmul.f32 %v3051, %v3131
    %v3177 = vmul.f32 %v3055, %v3131
    %v3178 = vmul.f32 %v3059, %v3131
    %v3179 = vmul.f32 %v3063, %v3131
    %v3180 = vmul.f32 %v3067, %v3131
    %v3181 = vmul.f32 %v3071, %v3131
    %v3182 = vmul.f32 %v3075, %v3131
    %v3183 = vmul.f32 %v3079, %v3131
    %v3184 = vmul.f32 %v3083, %v3131
    %v3185 = vmul.f32 %v3087, %v3131
    %v3186 = vmul.f32 %v3091, %v3131
    %v3187 = vmul.f32 %v3095, %v3131
    %v3188 = vmul.f32 %v3099, %v3131
    %v3189 = vmul.f32 %v3103, %v3131
    %v3190 = vmul.f32 %v3107, %v3131
    %v3191 = vmul.f32 %v3111, %v3131
    %v3192 = vmul.f32 %v3115, %v3131
    %v3193 = vmul.f32 %v3119, %v3131
    %v3194 = vmul.f32 %v3123, %v3131
    %v3195 = vmul.f32 %v3127, %v3131
    %v3196 = vadd.f32 %v2808, %v3132
    %v3197 = vadd.f32 %v2809, %v3133
    %v3198 = vadd.f32 %v2810, %v3134
    %v3199 = vadd.f32 %v2811, %v3135
    %v3200 = vadd.f32 %v2812, %v3136
    %v3201 = vadd.f32 %v2813, %v3137
    %v3202 = vadd.f32 %v2814, %v3138
    %v3203 = vadd.f32 %v2815, %v3139
    %v3204 = vadd.f32 %v2816, %v3140
    %v3205 = vadd.f32 %v2817, %v3141
    %v3206 = vadd.f32 %v2818, %v3142
    %v3207 = vadd.f32 %v2819, %v3143
    %v3208 = vadd.f32 %v2820, %v3144
    %v3209 = vadd.f32 %v2821, %v3145
    %v3210 = vadd.f32 %v2822, %v3146
    %v3211 = vadd.f32 %v2823, %v3147
    %v3212 = vadd.f32 %v2824, %v3148
    %v3213 = vadd.f32 %v2825, %v3149
    %v3214 = vadd.f32 %v2826, %v3150
    %v3215 = vadd.f32 %v2827, %v3151
    %v3216 = vadd.f32 %v2828, %v3152
    %v3217 = vadd.f32 %v2829, %v3153
    %v3218 = vadd.f32 %v2830, %v3154
    %v3219 = vadd.f32 %v2831, %v3155
    %v3220 = vadd.f32 %v2832, %v3156
    %v3221 = vadd.f32 %v2833, %v3157
    %v3222 = vadd.f32 %v2834, %v3158
    %v3223 = vadd.f32 %v2835, %v3159
    %v3224 = vadd.f32 %v2836, %v3160
    %v3225 = vadd.f32 %v2837, %v3161
    %v3226 = vadd.f32 %v2838, %v3162
    %v3227 = vadd.f32 %v2839, %v3163
    %v3228 = vadd.f32 %v2840, %v3164
    %v3229 = vadd.f32 %v2841, %v3165
    %v3230 = vadd.f32 %v2842, %v3166
    %v3231 = vadd.f32 %v2843, %v3167
    %v3232 = vadd.f32 %v2844, %v3168
    %v3233 = vadd.f32 %v2845, %v3169
    %v3234 = vadd.f32 %v2846, %v3170
    %v3235 = vadd.f32 %v2847, %v3171
    %v3236 = vadd.f32 %v2848, %v3172
    %v3237 = vadd.f32 %v2849, %v3173
    %v3238 = vadd.f32 %v2850, %v3174
    %v3239 = vadd.f32 %v2851, %v3175
    %v3240 = vadd.f32 %v2852, %v3176
    %v3241 = vadd.f32 %v2853, %v3177
    %v3242 = vadd.f32 %v2854, %v3178
    %v3243 = vadd.f32 %v2855, %v3179
    %v3244 = vadd.f32 %v2856, %v3180
    %v3245 = vadd.f32 %v2857, %v3181
    %v3246 = vadd.f32 %v2858, %v3182
    %v3247 = vadd.f32 %v2859, %v3183
    %v3248 = vadd.f32 %v2860, %v3184
    %v3249 = vadd.f32 %v2861, %v3185
    %v3250 = vadd.f32 %v2862, %v3186
    %v3251 = vadd.f32 %v2863, %v3187
    %v3252 = vadd.f32 %v2864, %v3188
    %v3253 = vadd.f32 %v2865, %v3189
    %v3254 = vadd.f32 %v2866, %v3190
    %v3255 = vadd.f32 %v2867, %v3191
    %v3256 = vadd.f32 %v2868, %v3192
    %v3257 = vadd.f32 %v2869, %v3193
    %v3258 = vadd.f32 %v2870, %v3194
    %v3259 = vadd.f32 %v2871, %v3195
    %v3260 = vld [vmem:[%s3] sm:$0x1]
    %v3262 = vlaneseq
    %v3263 = vshrl.u32 %v3262, 7
    %v3264 = vsub.s32 0, %v3263
    %v3265 = vrot.slane %v3260, %v3264
    %v3267 = vadd.f32 %v3196, %v3265
    %v3268 = vadd.f32 %v3197, %v3265
    %v3269 = vadd.f32 %v3198, %v3265
    %v3270 = vadd.f32 %v3199, %v3265
    %v3271 = vadd.f32 %v3200, %v3265
    %v3272 = vadd.f32 %v3201, %v3265
    %v3273 = vadd.f32 %v3202, %v3265
    %v3274 = vadd.f32 %v3203, %v3265
    %v3275 = vadd.f32 %v3204, %v3265
    %v3276 = vadd.f32 %v3205, %v3265
    %v3277 = vadd.f32 %v3206, %v3265
    %v3278 = vadd.f32 %v3207, %v3265
    %v3279 = vadd.f32 %v3208, %v3265
    %v3280 = vadd.f32 %v3209, %v3265
    %v3281 = vadd.f32 %v3210, %v3265
    %v3282 = vadd.f32 %v3211, %v3265
    %v3283 = vadd.f32 %v3212, %v3265
    %v3284 = vadd.f32 %v3213, %v3265
    %v3285 = vadd.f32 %v3214, %v3265
    %v3286 = vadd.f32 %v3215, %v3265
    %v3287 = vadd.f32 %v3216, %v3265
    %v3288 = vadd.f32 %v3217, %v3265
    %v3289 = vadd.f32 %v3218, %v3265
    %v3290 = vadd.f32 %v3219, %v3265
    %v3291 = vadd.f32 %v3220, %v3265
    %v3292 = vadd.f32 %v3221, %v3265
    %v3293 = vadd.f32 %v3222, %v3265
    %v3294 = vadd.f32 %v3223, %v3265
    %v3295 = vadd.f32 %v3224, %v3265
    %v3296 = vadd.f32 %v3225, %v3265
    %v3297 = vadd.f32 %v3226, %v3265
    %v3298 = vadd.f32 %v3227, %v3265
    %v3299 = vadd.f32 %v3228, %v3265
    %v3300 = vadd.f32 %v3229, %v3265
    %v3301 = vadd.f32 %v3230, %v3265
    %v3302 = vadd.f32 %v3231, %v3265
    %v3303 = vadd.f32 %v3232, %v3265
    %v3304 = vadd.f32 %v3233, %v3265
    %v3305 = vadd.f32 %v3234, %v3265
    %v3306 = vadd.f32 %v3235, %v3265
    %v3307 = vadd.f32 %v3236, %v3265
    %v3308 = vadd.f32 %v3237, %v3265
    %v3309 = vadd.f32 %v3238, %v3265
    %v3310 = vadd.f32 %v3239, %v3265
    %v3311 = vadd.f32 %v3240, %v3265
    %v3312 = vadd.f32 %v3241, %v3265
    %v3313 = vadd.f32 %v3242, %v3265
    %v3314 = vadd.f32 %v3243, %v3265
    %v3315 = vadd.f32 %v3244, %v3265
    %v3316 = vadd.f32 %v3245, %v3265
    %v3317 = vadd.f32 %v3246, %v3265
    %v3318 = vadd.f32 %v3247, %v3265
    %v3319 = vadd.f32 %v3248, %v3265
    %v3320 = vadd.f32 %v3249, %v3265
    %v3321 = vadd.f32 %v3250, %v3265
    %v3322 = vadd.f32 %v3251, %v3265
    %v3323 = vadd.f32 %v3252, %v3265
    %v3324 = vadd.f32 %v3253, %v3265
    %v3325 = vadd.f32 %v3254, %v3265
    %v3326 = vadd.f32 %v3255, %v3265
    %v3327 = vadd.f32 %v3256, %v3265
    %v3328 = vadd.f32 %v3257, %v3265
    %v3329 = vadd.f32 %v3258, %v3265
    %v3330 = vadd.f32 %v3259, %v3265
    %vm3331 = vcmask 261120
    %v3332 = vsel %vm3331, %v3267, 0.0
    %v3333 = vsel %vm3331, %v3268, 0.0
    %v3334 = vadd.f32 %v3332, %v3333
    %v3335 = vsel %vm3331, %v3269, 0.0
    %v3336 = vadd.f32 %v3334, %v3335
    %v3337 = vsel %vm3331, %v3270, 0.0
    %v3338 = vadd.f32 %v3336, %v3337
    %v3339 = vsel %vm3331, %v3271, 0.0
    %v3340 = vadd.f32 %v3338, %v3339
    %v3341 = vsel %vm3331, %v3272, 0.0
    %v3342 = vadd.f32 %v3340, %v3341
    %v3343 = vsel %vm3331, %v3273, 0.0
    %v3344 = vadd.f32 %v3342, %v3343
    %vm3345 = vcmask 258048
    %v3346 = vsel %vm3345, %v3274, 0.0
    %v3347 = vadd.f32 %v3344, %v3346
    %v3348 = vsel %vm3331, %v3275, 0.0
    %v3349 = vadd.f32 %v3347, %v3348
    %v3350 = vsel %vm3331, %v3276, 0.0
    %v3351 = vadd.f32 %v3349, %v3350
    %v3352 = vsel %vm3331, %v3277, 0.0
    %v3353 = vadd.f32 %v3351, %v3352
    %v3354 = vsel %vm3331, %v3278, 0.0
    %v3355 = vadd.f32 %v3353, %v3354
    %v3356 = vsel %vm3331, %v3279, 0.0
    %v3357 = vadd.f32 %v3355, %v3356
    %v3358 = vsel %vm3331, %v3280, 0.0
    %v3359 = vadd.f32 %v3357, %v3358
    %v3360 = vsel %vm3331, %v3281, 0.0
    %v3361 = vadd.f32 %v3359, %v3360
    %v3362 = vsel %vm3345, %v3282, 0.0
    %v3363 = vadd.f32 %v3361, %v3362
    %v3364 = vsel %vm3331, %v3283, 0.0
    %v3365 = vadd.f32 %v3363, %v3364
    %v3366 = vsel %vm3331, %v3284, 0.0
    %v3367 = vadd.f32 %v3365, %v3366
    %v3368 = vsel %vm3331, %v3285, 0.0
    %v3369 = vadd.f32 %v3367, %v3368
    %v3370 = vsel %vm3331, %v3286, 0.0
    %v3371 = vadd.f32 %v3369, %v3370
    %v3372 = vsel %vm3331, %v3287, 0.0
    %v3373 = vadd.f32 %v3371, %v3372
    %v3374 = vsel %vm3331, %v3288, 0.0
    %v3375 = vadd.f32 %v3373, %v3374
    %v3376 = vsel %vm3331, %v3289, 0.0
    %v3377 = vadd.f32 %v3375, %v3376
    %v3378 = vsel %vm3345, %v3290, 0.0
    %v3379 = vadd.f32 %v3377, %v3378
    %v3380 = vsel %vm3331, %v3291, 0.0
    %v3381 = vadd.f32 %v3379, %v3380
    %v3382 = vsel %vm3331, %v3292, 0.0
    %v3383 = vadd.f32 %v3381, %v3382
    %v3384 = vsel %vm3331, %v3293, 0.0
    %v3385 = vadd.f32 %v3383, %v3384
    %v3386 = vsel %vm3331, %v3294, 0.0
    %v3387 = vadd.f32 %v3385, %v3386
    %v3388 = vsel %vm3331, %v3295, 0.0
    %v3389 = vadd.f32 %v3387, %v3388
    %v3390 = vsel %vm3331, %v3296, 0.0
    %v3391 = vadd.f32 %v3389, %v3390
    %v3392 = vsel %vm3331, %v3297, 0.0
    %v3393 = vadd.f32 %v3391, %v3392
    %v3394 = vsel %vm3345, %v3298, 0.0
    %v3395 = vadd.f32 %v3393, %v3394
    %v3396 = vsel %vm3331, %v3299, 0.0
    %v3397 = vadd.f32 %v3395, %v3396
    %v3398 = vsel %vm3331, %v3300, 0.0
    %v3399 = vadd.f32 %v3397, %v3398
    %v3400 = vsel %vm3331, %v3301, 0.0
    %v3401 = vadd.f32 %v3399, %v3400
    %v3402 = vsel %vm3331, %v3302, 0.0
    %v3403 = vadd.f32 %v3401, %v3402
    %v3404 = vsel %vm3331, %v3303, 0.0
    %v3405 = vadd.f32 %v3403, %v3404
    %v3406 = vsel %vm3331, %v3304, 0.0
    %v3407 = vadd.f32 %v3405, %v3406
    %v3408 = vsel %vm3331, %v3305, 0.0
    %v3409 = vadd.f32 %v3407, %v3408
    %v3410 = vsel %vm3345, %v3306, 0.0
    %v3411 = vadd.f32 %v3409, %v3410
    %v3412 = vsel %vm3331, %v3307, 0.0
    %v3413 = vadd.f32 %v3411, %v3412
    %v3414 = vsel %vm3331, %v3308, 0.0
    %v3415 = vadd.f32 %v3413, %v3414
    %v3416 = vsel %vm3331, %v3309, 0.0
    %v3417 = vadd.f32 %v3415, %v3416
    %v3418 = vsel %vm3331, %v3310, 0.0
    %v3419 = vadd.f32 %v3417, %v3418
    %v3420 = vsel %vm3331, %v3311, 0.0
    %v3421 = vadd.f32 %v3419, %v3420
    %v3422 = vsel %vm3331, %v3312, 0.0
    %v3423 = vadd.f32 %v3421, %v3422
    %v3424 = vsel %vm3331, %v3313, 0.0
    %v3425 = vadd.f32 %v3423, %v3424
    %v3426 = vsel %vm3345, %v3314, 0.0
    %v3427 = vadd.f32 %v3425, %v3426
    %v3428 = vsel %vm3331, %v3315, 0.0
    %v3429 = vadd.f32 %v3427, %v3428
    %v3430 = vsel %vm3331, %v3316, 0.0
    %v3431 = vadd.f32 %v3429, %v3430
    %v3432 = vsel %vm3331, %v3317, 0.0
    %v3433 = vadd.f32 %v3431, %v3432
    %v3434 = vsel %vm3331, %v3318, 0.0
    %v3435 = vadd.f32 %v3433, %v3434
    %v3436 = vsel %vm3331, %v3319, 0.0
    %v3437 = vadd.f32 %v3435, %v3436
    %v3438 = vsel %vm3331, %v3320, 0.0
    %v3439 = vadd.f32 %v3437, %v3438
    %v3440 = vsel %vm3331, %v3321, 0.0
    %v3441 = vadd.f32 %v3439, %v3440
    %v3442 = vsel %vm3345, %v3322, 0.0
    %v3443 = vadd.f32 %v3441, %v3442
    %v3444 = vsel %vm3331, %v3323, 0.0
    %v3445 = vadd.f32 %v3443, %v3444
    %v3446 = vsel %vm3331, %v3324, 0.0
    %v3447 = vadd.f32 %v3445, %v3446
    %v3448 = vsel %vm3331, %v3325, 0.0
    %v3449 = vadd.f32 %v3447, %v3448
    %v3450 = vsel %vm3331, %v3326, 0.0
    %v3451 = vadd.f32 %v3449, %v3450
    %v3452 = vsel %vm3331, %v3327, 0.0
    %v3453 = vadd.f32 %v3451, %v3452
    %v3454 = vsel %vm3331, %v3328, 0.0
    %v3455 = vadd.f32 %v3453, %v3454
    %v3456 = vsel %vm3331, %v3329, 0.0
    %v3457 = vadd.f32 %v3455, %v3456
    %v3458 = vsel %vm3345, %v3330, 0.0
    %v3459 = vadd.f32 %v3457, %v3458
    %v3460 = vrot.slane %v3459, 4
    %v3461 = vadd.f32 %v3459, %v3460
    %v3462 = vrot.slane %v3461, 2
    %v3463 = vadd.f32 %v3461, %v3462
    %v3464 = vrot.slane %v3463, 1
    %v3465 = vadd.f32 %v3463, %v3464
    %v3466 = vrcp.pop 488.0
    %v3467 = vmul.f32 %v3465, %v3466
    %v3468 = vmul.f32 %v3267, %v3267
    %v3469 = vmul.f32 %v3268, %v3268
    %v3470 = vmul.f32 %v3269, %v3269
    %v3471 = vmul.f32 %v3270, %v3270
    %v3472 = vmul.f32 %v3271, %v3271
    %v3473 = vmul.f32 %v3272, %v3272
    %v3474 = vmul.f32 %v3273, %v3273
    %v3475 = vmul.f32 %v3274, %v3274
    %v3476 = vmul.f32 %v3275, %v3275
    %v3477 = vmul.f32 %v3276, %v3276
    %v3478 = vmul.f32 %v3277, %v3277
    %v3479 = vmul.f32 %v3278, %v3278
    %v3480 = vmul.f32 %v3279, %v3279
    %v3481 = vmul.f32 %v3280, %v3280
    %v3482 = vmul.f32 %v3281, %v3281
    %v3483 = vmul.f32 %v3282, %v3282
    %v3484 = vmul.f32 %v3283, %v3283
    %v3485 = vmul.f32 %v3284, %v3284
    %v3486 = vmul.f32 %v3285, %v3285
    %v3487 = vmul.f32 %v3286, %v3286
    %v3488 = vmul.f32 %v3287, %v3287
    %v3489 = vmul.f32 %v3288, %v3288
    %v3490 = vmul.f32 %v3289, %v3289
    %v3491 = vmul.f32 %v3290, %v3290
    %v3492 = vmul.f32 %v3291, %v3291
    %v3493 = vmul.f32 %v3292, %v3292
    %v3494 = vmul.f32 %v3293, %v3293
    %v3495 = vmul.f32 %v3294, %v3294
    %v3496 = vmul.f32 %v3295, %v3295
    %v3497 = vmul.f32 %v3296, %v3296
    %v3498 = vmul.f32 %v3297, %v3297
    %v3499 = vmul.f32 %v3298, %v3298
    %v3500 = vmul.f32 %v3299, %v3299
    %v3501 = vmul.f32 %v3300, %v3300
    %v3502 = vmul.f32 %v3301, %v3301
    %v3503 = vmul.f32 %v3302, %v3302
    %v3504 = vmul.f32 %v3303, %v3303
    %v3505 = vmul.f32 %v3304, %v3304
    %v3506 = vmul.f32 %v3305, %v3305
    %v3507 = vmul.f32 %v3306, %v3306
    %v3508 = vmul.f32 %v3307, %v3307
    %v3509 = vmul.f32 %v3308, %v3308
    %v3510 = vmul.f32 %v3309, %v3309
    %v3511 = vmul.f32 %v3310, %v3310
    %v3512 = vmul.f32 %v3311, %v3311
    %v3513 = vmul.f32 %v3312, %v3312
    %v3514 = vmul.f32 %v3313, %v3313
    %v3515 = vmul.f32 %v3314, %v3314
    %v3516 = vmul.f32 %v3315, %v3315
    %v3517 = vmul.f32 %v3316, %v3316
    %v3518 = vmul.f32 %v3317, %v3317
    %v3519 = vmul.f32 %v3318, %v3318
    %v3520 = vmul.f32 %v3319, %v3319
    %v3521 = vmul.f32 %v3320, %v3320
    %v3522 = vmul.f32 %v3321, %v3321
    %v3523 = vmul.f32 %v3322, %v3322
    %v3524 = vmul.f32 %v3323, %v3323
    %v3525 = vmul.f32 %v3324, %v3324
    %v3526 = vmul.f32 %v3325, %v3325
    %v3527 = vmul.f32 %v3326, %v3326
    %v3528 = vmul.f32 %v3327, %v3327
    %v3529 = vmul.f32 %v3328, %v3328
    %v3530 = vmul.f32 %v3329, %v3329
    %v3531 = vmul.f32 %v3330, %v3330
    %v3532 = vsel %vm3331, %v3468, 0.0
    %v3533 = vsel %vm3331, %v3469, 0.0
    %v3534 = vadd.f32 %v3532, %v3533
    %v3535 = vsel %vm3331, %v3470, 0.0
    %v3536 = vadd.f32 %v3534, %v3535
    %v3537 = vsel %vm3331, %v3471, 0.0
    %v3538 = vadd.f32 %v3536, %v3537
    %v3539 = vsel %vm3331, %v3472, 0.0
    %v3540 = vadd.f32 %v3538, %v3539
    %v3541 = vsel %vm3331, %v3473, 0.0
    %v3542 = vadd.f32 %v3540, %v3541
    %v3543 = vsel %vm3331, %v3474, 0.0
    %v3544 = vadd.f32 %v3542, %v3543
    %v3545 = vsel %vm3345, %v3475, 0.0
    %v3546 = vadd.f32 %v3544, %v3545
    %v3547 = vsel %vm3331, %v3476, 0.0
    %v3548 = vadd.f32 %v3546, %v3547
    %v3549 = vsel %vm3331, %v3477, 0.0
    %v3550 = vadd.f32 %v3548, %v3549
    %v3551 = vsel %vm3331, %v3478, 0.0
    %v3552 = vadd.f32 %v3550, %v3551
    %v3553 = vsel %vm3331, %v3479, 0.0
    %v3554 = vadd.f32 %v3552, %v3553
    %v3555 = vsel %vm3331, %v3480, 0.0
    %v3556 = vadd.f32 %v3554, %v3555
    %v3557 = vsel %vm3331, %v3481, 0.0
    %v3558 = vadd.f32 %v3556, %v3557
    %v3559 = vsel %vm3331, %v3482, 0.0
    %v3560 = vadd.f32 %v3558, %v3559
    %v3561 = vsel %vm3345, %v3483, 0.0
    %v3562 = vadd.f32 %v3560, %v3561
    %v3563 = vsel %vm3331, %v3484, 0.0
    %v3564 = vadd.f32 %v3562, %v3563
    %v3565 = vsel %vm3331, %v3485, 0.0
    %v3566 = vadd.f32 %v3564, %v3565
    %v3567 = vsel %vm3331, %v3486, 0.0
    %v3568 = vadd.f32 %v3566, %v3567
    %v3569 = vsel %vm3331, %v3487, 0.0
    %v3570 = vadd.f32 %v3568, %v3569
    %v3571 = vsel %vm3331, %v3488, 0.0
    %v3572 = vadd.f32 %v3570, %v3571
    %v3573 = vsel %vm3331, %v3489, 0.0
    %v3574 = vadd.f32 %v3572, %v3573
    %v3575 = vsel %vm3331, %v3490, 0.0
    %v3576 = vadd.f32 %v3574, %v3575
    %v3577 = vsel %vm3345, %v3491, 0.0
    %v3578 = vadd.f32 %v3576, %v3577
    %v3579 = vsel %vm3331, %v3492, 0.0
    %v3580 = vadd.f32 %v3578, %v3579
    %v3581 = vsel %vm3331, %v3493, 0.0
    %v3582 = vadd.f32 %v3580, %v3581
    %v3583 = vsel %vm3331, %v3494, 0.0
    %v3584 = vadd.f32 %v3582, %v3583
    %v3585 = vsel %vm3331, %v3495, 0.0
    %v3586 = vadd.f32 %v3584, %v3585
    %v3587 = vsel %vm3331, %v3496, 0.0
    %v3588 = vadd.f32 %v3586, %v3587
    %v3589 = vsel %vm3331, %v3497, 0.0
    %v3590 = vadd.f32 %v3588, %v3589
    %v3591 = vsel %vm3331, %v3498, 0.0
    %v3592 = vadd.f32 %v3590, %v3591
    %v3593 = vsel %vm3345, %v3499, 0.0
    %v3594 = vadd.f32 %v3592, %v3593
    %v3595 = vsel %vm3331, %v3500, 0.0
    %v3596 = vadd.f32 %v3594, %v3595
    %v3597 = vsel %vm3331, %v3501, 0.0
    %v3598 = vadd.f32 %v3596, %v3597
    %v3599 = vsel %vm3331, %v3502, 0.0
    %v3600 = vadd.f32 %v3598, %v3599
    %v3601 = vsel %vm3331, %v3503, 0.0
    %v3602 = vadd.f32 %v3600, %v3601
    %v3603 = vsel %vm3331, %v3504, 0.0
    %v3604 = vadd.f32 %v3602, %v3603
    %v3605 = vsel %vm3331, %v3505, 0.0
    %v3606 = vadd.f32 %v3604, %v3605
    %v3607 = vsel %vm3331, %v3506, 0.0
    %v3608 = vadd.f32 %v3606, %v3607
    %v3609 = vsel %vm3345, %v3507, 0.0
    %v3610 = vadd.f32 %v3608, %v3609
    %v3611 = vsel %vm3331, %v3508, 0.0
    %v3612 = vadd.f32 %v3610, %v3611
    %v3613 = vsel %vm3331, %v3509, 0.0
    %v3614 = vadd.f32 %v3612, %v3613
    %v3615 = vsel %vm3331, %v3510, 0.0
    %v3616 = vadd.f32 %v3614, %v3615
    %v3617 = vsel %vm3331, %v3511, 0.0
    %v3618 = vadd.f32 %v3616, %v3617
    %v3619 = vsel %vm3331, %v3512, 0.0
    %v3620 = vadd.f32 %v3618, %v3619
    %v3621 = vsel %vm3331, %v3513, 0.0
    %v3622 = vadd.f32 %v3620, %v3621
    %v3623 = vsel %vm3331, %v3514, 0.0
    %v3624 = vadd.f32 %v3622, %v3623
    %v3625 = vsel %vm3345, %v3515, 0.0
    %v3626 = vadd.f32 %v3624, %v3625
    %v3627 = vsel %vm3331, %v3516, 0.0
    %v3628 = vadd.f32 %v3626, %v3627
    %v3629 = vsel %vm3331, %v3517, 0.0
    %v3630 = vadd.f32 %v3628, %v3629
    %v3631 = vsel %vm3331, %v3518, 0.0
    %v3632 = vadd.f32 %v3630, %v3631
    %v3633 = vsel %vm3331, %v3519, 0.0
    %v3634 = vadd.f32 %v3632, %v3633
    %v3635 = vsel %vm3331, %v3520, 0.0
    %v3636 = vadd.f32 %v3634, %v3635
    %v3637 = vsel %vm3331, %v3521, 0.0
    %v3638 = vadd.f32 %v3636, %v3637
    %v3639 = vsel %vm3331, %v3522, 0.0
    %v3640 = vadd.f32 %v3638, %v3639
    %v3641 = vsel %vm3345, %v3523, 0.0
    %v3642 = vadd.f32 %v3640, %v3641
    %v3643 = vsel %vm3331, %v3524, 0.0
    %v3644 = vadd.f32 %v3642, %v3643
    %v3645 = vsel %vm3331, %v3525, 0.0
    %v3646 = vadd.f32 %v3644, %v3645
    %v3647 = vsel %vm3331, %v3526, 0.0
    %v3648 = vadd.f32 %v3646, %v3647
    %v3649 = vsel %vm3331, %v3527, 0.0
    %v3650 = vadd.f32 %v3648, %v3649
    %v3651 = vsel %vm3331, %v3528, 0.0
    %v3652 = vadd.f32 %v3650, %v3651
    %v3653 = vsel %vm3331, %v3529, 0.0
    %v3654 = vadd.f32 %v3652, %v3653
    %v3655 = vsel %vm3331, %v3530, 0.0
    %v3656 = vadd.f32 %v3654, %v3655
    %v3657 = vsel %vm3345, %v3531, 0.0
    %v3658 = vadd.f32 %v3656, %v3657
    %v3659 = vrot.slane %v3658, 4
    %v3660 = vadd.f32 %v3658, %v3659
    %v3661 = vrot.slane %v3660, 2
    %v3662 = vadd.f32 %v3660, %v3661
    %v3663 = vrot.slane %v3662, 1
    %v3664 = vadd.f32 %v3662, %v3663
    %v3665 = vmul.f32 %v3664, %v3466
    %v3666 = vmul.f32 %v3467, %v3467
    %v3667 = vsub.f32 %v3665, %v3666
    %v3668 = vmax.f32 %v3667, 0.0
    %v3669 = vld [vmem:[%s4] sm:$0x1]
    %v3670 = vadd.f32 %v3668, 1e-05
    %v3671 = vrsqrt.pop %v3670
    %v3672 = vmul.f32 %v3669, %v3671
    %v3673 = vld [vmem:[%s5] sm:$0x1]
    %v3674 = vmul.f32 %v3467, %v3672
    %v3675 = vsub.f32 %v3673, %v3674
    %v3677 = vlaneseq
    %v3678 = vshrl.u32 %v3677, 7
    %v3679 = vsub.s32 0, %v3678
    %v3680 = vrot.slane %v3672, %v3679
    %v3682 = vmul.f32 %v3267, %v3680
    %v3683 = vmul.f32 %v3268, %v3680
    %v3684 = vmul.f32 %v3269, %v3680
    %v3685 = vmul.f32 %v3270, %v3680
    %v3686 = vmul.f32 %v3271, %v3680
    %v3687 = vmul.f32 %v3272, %v3680
    %v3688 = vmul.f32 %v3273, %v3680
    %v3689 = vmul.f32 %v3274, %v3680
    %v3690 = vmul.f32 %v3275, %v3680
    %v3691 = vmul.f32 %v3276, %v3680
    %v3692 = vmul.f32 %v3277, %v3680
    %v3693 = vmul.f32 %v3278, %v3680
    %v3694 = vmul.f32 %v3279, %v3680
    %v3695 = vmul.f32 %v3280, %v3680
    %v3696 = vmul.f32 %v3281, %v3680
    %v3697 = vmul.f32 %v3282, %v3680
    %v3698 = vmul.f32 %v3283, %v3680
    %v3699 = vmul.f32 %v3284, %v3680
    %v3700 = vmul.f32 %v3285, %v3680
    %v3701 = vmul.f32 %v3286, %v3680
    %v3702 = vmul.f32 %v3287, %v3680
    %v3703 = vmul.f32 %v3288, %v3680
    %v3704 = vmul.f32 %v3289, %v3680
    %v3705 = vmul.f32 %v3290, %v3680
    %v3706 = vmul.f32 %v3291, %v3680
    %v3707 = vmul.f32 %v3292, %v3680
    %v3708 = vmul.f32 %v3293, %v3680
    %v3709 = vmul.f32 %v3294, %v3680
    %v3710 = vmul.f32 %v3295, %v3680
    %v3711 = vmul.f32 %v3296, %v3680
    %v3712 = vmul.f32 %v3297, %v3680
    %v3713 = vmul.f32 %v3298, %v3680
    %v3714 = vmul.f32 %v3299, %v3680
    %v3715 = vmul.f32 %v3300, %v3680
    %v3716 = vmul.f32 %v3301, %v3680
    %v3717 = vmul.f32 %v3302, %v3680
    %v3718 = vmul.f32 %v3303, %v3680
    %v3719 = vmul.f32 %v3304, %v3680
    %v3720 = vmul.f32 %v3305, %v3680
    %v3721 = vmul.f32 %v3306, %v3680
    %v3722 = vmul.f32 %v3307, %v3680
    %v3723 = vmul.f32 %v3308, %v3680
    %v3724 = vmul.f32 %v3309, %v3680
    %v3725 = vmul.f32 %v3310, %v3680
    %v3726 = vmul.f32 %v3311, %v3680
    %v3727 = vmul.f32 %v3312, %v3680
    %v3728 = vmul.f32 %v3313, %v3680
    %v3729 = vmul.f32 %v3314, %v3680
    %v3730 = vmul.f32 %v3315, %v3680
    %v3731 = vmul.f32 %v3316, %v3680
    %v3732 = vmul.f32 %v3317, %v3680
    %v3733 = vmul.f32 %v3318, %v3680
    %v3734 = vmul.f32 %v3319, %v3680
    %v3735 = vmul.f32 %v3320, %v3680
    %v3736 = vmul.f32 %v3321, %v3680
    %v3737 = vmul.f32 %v3322, %v3680
    %v3738 = vmul.f32 %v3323, %v3680
    %v3739 = vmul.f32 %v3324, %v3680
    %v3740 = vmul.f32 %v3325, %v3680
    %v3741 = vmul.f32 %v3326, %v3680
    %v3742 = vmul.f32 %v3327, %v3680
    %v3743 = vmul.f32 %v3328, %v3680
    %v3744 = vmul.f32 %v3329, %v3680
    %v3745 = vmul.f32 %v3330, %v3680
    %v3747 = vlaneseq
    %v3748 = vshrl.u32 %v3747, 7
    %v3749 = vsub.s32 0, %v3748
    %v3750 = vrot.slane %v3675, %v3749
    %v3752 = vadd.f32 %v3682, %v3750
    %v3753 = vadd.f32 %v3683, %v3750
    %v3754 = vadd.f32 %v3684, %v3750
    %v3755 = vadd.f32 %v3685, %v3750
    %v3756 = vadd.f32 %v3686, %v3750
    %v3757 = vadd.f32 %v3687, %v3750
    %v3758 = vadd.f32 %v3688, %v3750
    %v3759 = vadd.f32 %v3689, %v3750
    %v3760 = vadd.f32 %v3690, %v3750
    %v3761 = vadd.f32 %v3691, %v3750
    %v3762 = vadd.f32 %v3692, %v3750
    %v3763 = vadd.f32 %v3693, %v3750
    %v3764 = vadd.f32 %v3694, %v3750
    %v3765 = vadd.f32 %v3695, %v3750
    %v3766 = vadd.f32 %v3696, %v3750
    %v3767 = vadd.f32 %v3697, %v3750
    %v3768 = vadd.f32 %v3698, %v3750
    %v3769 = vadd.f32 %v3699, %v3750
    %v3770 = vadd.f32 %v3700, %v3750
    %v3771 = vadd.f32 %v3701, %v3750
    %v3772 = vadd.f32 %v3702, %v3750
    %v3773 = vadd.f32 %v3703, %v3750
    %v3774 = vadd.f32 %v3704, %v3750
    %v3775 = vadd.f32 %v3705, %v3750
    %v3776 = vadd.f32 %v3706, %v3750
    %v3777 = vadd.f32 %v3707, %v3750
    %v3778 = vadd.f32 %v3708, %v3750
    %v3779 = vadd.f32 %v3709, %v3750
    %v3780 = vadd.f32 %v3710, %v3750
    %v3781 = vadd.f32 %v3711, %v3750
    %v3782 = vadd.f32 %v3712, %v3750
    %v3783 = vadd.f32 %v3713, %v3750
    %v3784 = vadd.f32 %v3714, %v3750
    %v3785 = vadd.f32 %v3715, %v3750
    %v3786 = vadd.f32 %v3716, %v3750
    %v3787 = vadd.f32 %v3717, %v3750
    %v3788 = vadd.f32 %v3718, %v3750
    %v3789 = vadd.f32 %v3719, %v3750
    %v3790 = vadd.f32 %v3720, %v3750
    %v3791 = vadd.f32 %v3721, %v3750
    %v3792 = vadd.f32 %v3722, %v3750
    %v3793 = vadd.f32 %v3723, %v3750
    %v3794 = vadd.f32 %v3724, %v3750
    %v3795 = vadd.f32 %v3725, %v3750
    %v3796 = vadd.f32 %v3726, %v3750
    %v3797 = vadd.f32 %v3727, %v3750
    %v3798 = vadd.f32 %v3728, %v3750
    %v3799 = vadd.f32 %v3729, %v3750
    %v3800 = vadd.f32 %v3730, %v3750
    %v3801 = vadd.f32 %v3731, %v3750
    %v3802 = vadd.f32 %v3732, %v3750
    %v3803 = vadd.f32 %v3733, %v3750
    %v3804 = vadd.f32 %v3734, %v3750
    %v3805 = vadd.f32 %v3735, %v3750
    %v3806 = vadd.f32 %v3736, %v3750
    %v3807 = vadd.f32 %v3737, %v3750
    %v3808 = vadd.f32 %v3738, %v3750
    %v3809 = vadd.f32 %v3739, %v3750
    %v3810 = vadd.f32 %v3740, %v3750
    %v3811 = vadd.f32 %v3741, %v3750
    %v3812 = vadd.f32 %v3742, %v3750
    %v3813 = vadd.f32 %v3743, %v3750
    %v3814 = vadd.f32 %v3744, %v3750
    %v3815 = vadd.f32 %v3745, %v3750
    %vm3880 = vcmask 1046528
    %v3881 = vrot.slane %v3752, 1
    %v3882 = vrot.slane %v3753, 1
    %v3883 = vsel %vm3880, %v3881, %v3882
    %v3884 = vrot.slane %v3754, 1
    %v3885 = vsel %vm3880, %v3882, %v3884
    %v3886 = vrot.slane %v3755, 1
    %v3887 = vsel %vm3880, %v3884, %v3886
    %v3888 = vrot.slane %v3756, 1
    %v3889 = vsel %vm3880, %v3886, %v3888
    %v3890 = vrot.slane %v3757, 1
    %v3891 = vsel %vm3880, %v3888, %v3890
    %v3892 = vrot.slane %v3758, 1
    %v3893 = vsel %vm3880, %v3890, %v3892
    %v3894 = vrot.slane %v3759, 1
    %v3895 = vsel %vm3880, %v3892, %v3894
    %v3896 = vrot.slane %v3760, 1
    %v3897 = vrot.slane %v3761, 1
    %v3898 = vsel %vm3880, %v3896, %v3897
    %v3899 = vrot.slane %v3762, 1
    %v3900 = vsel %vm3880, %v3897, %v3899
    %v3901 = vrot.slane %v3763, 1
    %v3902 = vsel %vm3880, %v3899, %v3901
    %v3903 = vrot.slane %v3764, 1
    %v3904 = vsel %vm3880, %v3901, %v3903
    %v3905 = vrot.slane %v3765, 1
    %v3906 = vsel %vm3880, %v3903, %v3905
    %v3907 = vrot.slane %v3766, 1
    %v3908 = vsel %vm3880, %v3905, %v3907
    %v3909 = vrot.slane %v3767, 1
    %v3910 = vsel %vm3880, %v3907, %v3909
    %v3911 = vrot.slane %v3768, 1
    %v3912 = vrot.slane %v3769, 1
    %v3913 = vsel %vm3880, %v3911, %v3912
    %v3914 = vrot.slane %v3770, 1
    %v3915 = vsel %vm3880, %v3912, %v3914
    %v3916 = vrot.slane %v3771, 1
    %v3917 = vsel %vm3880, %v3914, %v3916
    %v3918 = vrot.slane %v3772, 1
    %v3919 = vsel %vm3880, %v3916, %v3918
    %v3920 = vrot.slane %v3773, 1
    %v3921 = vsel %vm3880, %v3918, %v3920
    %v3922 = vrot.slane %v3774, 1
    %v3923 = vsel %vm3880, %v3920, %v3922
    %v3924 = vrot.slane %v3775, 1
    %v3925 = vsel %vm3880, %v3922, %v3924
    %v3926 = vrot.slane %v3776, 1
    %v3927 = vrot.slane %v3777, 1
    %v3928 = vsel %vm3880, %v3926, %v3927
    %v3929 = vrot.slane %v3778, 1
    %v3930 = vsel %vm3880, %v3927, %v3929
    %v3931 = vrot.slane %v3779, 1
    %v3932 = vsel %vm3880, %v3929, %v3931
    %v3933 = vrot.slane %v3780, 1
    %v3934 = vsel %vm3880, %v3931, %v3933
    %v3935 = vrot.slane %v3781, 1
    %v3936 = vsel %vm3880, %v3933, %v3935
    %v3937 = vrot.slane %v3782, 1
    %v3938 = vsel %vm3880, %v3935, %v3937
    %v3939 = vrot.slane %v3783, 1
    %v3940 = vsel %vm3880, %v3937, %v3939
    %v3941 = vrot.slane %v3784, 1
    %v3942 = vrot.slane %v3785, 1
    %v3943 = vsel %vm3880, %v3941, %v3942
    %v3944 = vrot.slane %v3786, 1
    %v3945 = vsel %vm3880, %v3942, %v3944
    %v3946 = vrot.slane %v3787, 1
    %v3947 = vsel %vm3880, %v3944, %v3946
    %v3948 = vrot.slane %v3788, 1
    %v3949 = vsel %vm3880, %v3946, %v3948
    %v3950 = vrot.slane %v3789, 1
    %v3951 = vsel %vm3880, %v3948, %v3950
    %v3952 = vrot.slane %v3790, 1
    %v3953 = vsel %vm3880, %v3950, %v3952
    %v3954 = vrot.slane %v3791, 1
    %v3955 = vsel %vm3880, %v3952, %v3954
    %v3956 = vrot.slane %v3792, 1
    %v3957 = vrot.slane %v3793, 1
    %v3958 = vsel %vm3880, %v3956, %v3957
    %v3959 = vrot.slane %v3794, 1
    %v3960 = vsel %vm3880, %v3957, %v3959
    %v3961 = vrot.slane %v3795, 1
    %v3962 = vsel %vm3880, %v3959, %v3961
    %v3963 = vrot.slane %v3796, 1
    %v3964 = vsel %vm3880, %v3961, %v3963
    %v3965 = vrot.slane %v3797, 1
    %v3966 = vsel %vm3880, %v3963, %v3965
    %v3967 = vrot.slane %v3798, 1
    %v3968 = vsel %vm3880, %v3965, %v3967
    %v3969 = vrot.slane %v3799, 1
    %v3970 = vsel %vm3880, %v3967, %v3969
    %v3971 = vrot.slane %v3800, 1
    %v3972 = vrot.slane %v3801, 1
    %v3973 = vsel %vm3880, %v3971, %v3972
    %v3974 = vrot.slane %v3802, 1
    %v3975 = vsel %vm3880, %v3972, %v3974
    %v3976 = vrot.slane %v3803, 1
    %v3977 = vsel %vm3880, %v3974, %v3976
    %v3978 = vrot.slane %v3804, 1
    %v3979 = vsel %vm3880, %v3976, %v3978
    %v3980 = vrot.slane %v3805, 1
    %v3981 = vsel %vm3880, %v3978, %v3980
    %v3982 = vrot.slane %v3806, 1
    %v3983 = vsel %vm3880, %v3980, %v3982
    %v3984 = vrot.slane %v3807, 1
    %v3985 = vsel %vm3880, %v3982, %v3984
    %v3986 = vrot.slane %v3808, 1
    %v3987 = vrot.slane %v3809, 1
    %v3988 = vsel %vm3880, %v3986, %v3987
    %v3989 = vrot.slane %v3810, 1
    %v3990 = vsel %vm3880, %v3987, %v3989
    %v3991 = vrot.slane %v3811, 1
    %v3992 = vsel %vm3880, %v3989, %v3991
    %v3993 = vrot.slane %v3812, 1
    %v3994 = vsel %vm3880, %v3991, %v3993
    %v3995 = vrot.slane %v3813, 1
    %v3996 = vsel %vm3880, %v3993, %v3995
    %v3997 = vrot.slane %v3814, 1
    %v3998 = vsel %vm3880, %v3995, %v3997
    %v3999 = vrot.slane %v3815, 1
    %v4000 = vsel %vm3880, %v3997, %v3999
    %4001 = vrot.lane.b32.xlu0 %v3883, 32
    %v4002 = vpop.permute.xlu0 %4001
    %4003 = vrot.lane.b32.xlu0 %v3885, 32
    %v4004 = vpop.permute.xlu0 %4003
    %4005 = vrot.lane.b32.xlu0 %v3887, 32
    %v4006 = vpop.permute.xlu0 %4005
    %4007 = vrot.lane.b32.xlu0 %v3889, 32
    %v4008 = vpop.permute.xlu0 %4007
    %4009 = vrot.lane.b32.xlu0 %v3891, 32
    %v4010 = vpop.permute.xlu0 %4009
    %4011 = vrot.lane.b32.xlu0 %v3893, 32
    %v4012 = vpop.permute.xlu0 %4011
    %4013 = vrot.lane.b32.xlu0 %v3895, 32
    %v4014 = vpop.permute.xlu0 %4013
    %4015 = vrot.lane.b32.xlu0 %v3898, 32
    %v4016 = vpop.permute.xlu0 %4015
    %4017 = vrot.lane.b32.xlu0 %v3900, 32
    %v4018 = vpop.permute.xlu0 %4017
    %4019 = vrot.lane.b32.xlu0 %v3902, 32
    %v4020 = vpop.permute.xlu0 %4019
    %4021 = vrot.lane.b32.xlu0 %v3904, 32
    %v4022 = vpop.permute.xlu0 %4021
    %4023 = vrot.lane.b32.xlu0 %v3906, 32
    %v4024 = vpop.permute.xlu0 %4023
    %4025 = vrot.lane.b32.xlu0 %v3908, 32
    %v4026 = vpop.permute.xlu0 %4025
    %4027 = vrot.lane.b32.xlu0 %v3910, 32
    %v4028 = vpop.permute.xlu0 %4027
    %4029 = vrot.lane.b32.xlu0 %v3913, 32
    %v4030 = vpop.permute.xlu0 %4029
    %4031 = vrot.lane.b32.xlu0 %v3915, 32
    %v4032 = vpop.permute.xlu0 %4031
    %4033 = vrot.lane.b32.xlu0 %v3917, 32
    %v4034 = vpop.permute.xlu0 %4033
    %4035 = vrot.lane.b32.xlu0 %v3919, 32
    %v4036 = vpop.permute.xlu0 %4035
    %4037 = vrot.lane.b32.xlu0 %v3921, 32
    %v4038 = vpop.permute.xlu0 %4037
    %4039 = vrot.lane.b32.xlu0 %v3923, 32
    %v4040 = vpop.permute.xlu0 %4039
    %4041 = vrot.lane.b32.xlu0 %v3925, 32
    %v4042 = vpop.permute.xlu0 %4041
    %4043 = vrot.lane.b32.xlu0 %v3928, 32
    %v4044 = vpop.permute.xlu0 %4043
    %4045 = vrot.lane.b32.xlu0 %v3930, 32
    %v4046 = vpop.permute.xlu0 %4045
    %4047 = vrot.lane.b32.xlu0 %v3932, 32
    %v4048 = vpop.permute.xlu0 %4047
    %4049 = vrot.lane.b32.xlu0 %v3934, 32
    %v4050 = vpop.permute.xlu0 %4049
    %4051 = vrot.lane.b32.xlu0 %v3936, 32
    %v4052 = vpop.permute.xlu0 %4051
    %4053 = vrot.lane.b32.xlu0 %v3938, 32
    %v4054 = vpop.permute.xlu0 %4053
    %4055 = vrot.lane.b32.xlu0 %v3940, 32
    %v4056 = vpop.permute.xlu0 %4055
    %4057 = vrot.lane.b32.xlu0 %v3943, 32
    %v4058 = vpop.permute.xlu0 %4057
    %4059 = vrot.lane.b32.xlu0 %v3945, 32
    %v4060 = vpop.permute.xlu0 %4059
    %4061 = vrot.lane.b32.xlu0 %v3947, 32
    %v4062 = vpop.permute.xlu0 %4061
    %4063 = vrot.lane.b32.xlu0 %v3949, 32
    %v4064 = vpop.permute.xlu0 %4063
    %4065 = vrot.lane.b32.xlu0 %v3951, 32
    %v4066 = vpop.permute.xlu0 %4065
    %4067 = vrot.lane.b32.xlu0 %v3953, 32
    %v4068 = vpop.permute.xlu0 %4067
    %4069 = vrot.lane.b32.xlu0 %v3955, 32
    %v4070 = vpop.permute.xlu0 %4069
    %4071 = vrot.lane.b32.xlu0 %v3958, 32
    %v4072 = vpop.permute.xlu0 %4071
    %4073 = vrot.lane.b32.xlu0 %v3960, 32
    %v4074 = vpop.permute.xlu0 %4073
    %4075 = vrot.lane.b32.xlu0 %v3962, 32
    %v4076 = vpop.permute.xlu0 %4075
    %4077 = vrot.lane.b32.xlu0 %v3964, 32
    %v4078 = vpop.permute.xlu0 %4077
    %4079 = vrot.lane.b32.xlu0 %v3966, 32
    %v4080 = vpop.permute.xlu0 %4079
    %4081 = vrot.lane.b32.xlu0 %v3968, 32
    %v4082 = vpop.permute.xlu0 %4081
    %4083 = vrot.lane.b32.xlu0 %v3970, 32
    %v4084 = vpop.permute.xlu0 %4083
    %4085 = vrot.lane.b32.xlu0 %v3973, 32
    %v4086 = vpop.permute.xlu0 %4085
    %4087 = vrot.lane.b32.xlu0 %v3975, 32
    %v4088 = vpop.permute.xlu0 %4087
    %4089 = vrot.lane.b32.xlu0 %v3977, 32
    %v4090 = vpop.permute.xlu0 %4089
    %4091 = vrot.lane.b32.xlu0 %v3979, 32
    %v4092 = vpop.permute.xlu0 %4091
    %4093 = vrot.lane.b32.xlu0 %v3981, 32
    %v4094 = vpop.permute.xlu0 %4093
    %4095 = vrot.lane.b32.xlu0 %v3983, 32
    %v4096 = vpop.permute.xlu0 %4095
    %4097 = vrot.lane.b32.xlu0 %v3985, 32
    %v4098 = vpop.permute.xlu0 %4097
    %4099 = vrot.lane.b32.xlu0 %v3988, 32
    %v4100 = vpop.permute.xlu0 %4099
    %4101 = vrot.lane.b32.xlu0 %v3990, 32
    %v4102 = vpop.permute.xlu0 %4101
    %4103 = vrot.lane.b32.xlu0 %v3992, 32
    %v4104 = vpop.permute.xlu0 %4103
    %4105 = vrot.lane.b32.xlu0 %v3994, 32
    %v4106 = vpop.permute.xlu0 %4105
    %4107 = vrot.lane.b32.xlu0 %v3996, 32
    %v4108 = vpop.permute.xlu0 %4107
    %4109 = vrot.lane.b32.xlu0 %v3998, 32
    %v4110 = vpop.permute.xlu0 %4109
    %4111 = vrot.lane.b32.xlu0 %v4000, 32
    %v4112 = vpop.permute.xlu0 %4111
    %vm4169 = vcmask 1045504
    %v4170 = vrot.slane %v3752, 2
    %v4171 = vrot.slane %v3753, 2
    %v4172 = vsel %vm4169, %v4170, %v4171
    %v4173 = vrot.slane %v3754, 2
    %v4174 = vsel %vm4169, %v4171, %v4173
    %v4175 = vrot.slane %v3755, 2
    %v4176 = vsel %vm4169, %v4173, %v4175
    %v4177 = vrot.slane %v3756, 2
    %v4178 = vsel %vm4169, %v4175, %v4177
    %v4179 = vrot.slane %v3757, 2
    %v4180 = vsel %vm4169, %v4177, %v4179
    %v4181 = vrot.slane %v3758, 2
    %v4182 = vsel %vm4169, %v4179, %v4181
    %v4183 = vrot.slane %v3759, 2
    %v4184 = vsel %vm4169, %v4181, %v4183
    %v4185 = vrot.slane %v3760, 2
    %v4186 = vrot.slane %v3761, 2
    %v4187 = vsel %vm4169, %v4185, %v4186
    %v4188 = vrot.slane %v3762, 2
    %v4189 = vsel %vm4169, %v4186, %v4188
    %v4190 = vrot.slane %v3763, 2
    %v4191 = vsel %vm4169, %v4188, %v4190
    %v4192 = vrot.slane %v3764, 2
    %v4193 = vsel %vm4169, %v4190, %v4192
    %v4194 = vrot.slane %v3765, 2
    %v4195 = vsel %vm4169, %v4192, %v4194
    %v4196 = vrot.slane %v3766, 2
    %v4197 = vsel %vm4169, %v4194, %v4196
    %v4198 = vrot.slane %v3767, 2
    %v4199 = vsel %vm4169, %v4196, %v4198
    %v4200 = vrot.slane %v3768, 2
    %v4201 = vrot.slane %v3769, 2
    %v4202 = vsel %vm4169, %v4200, %v4201
    %v4203 = vrot.slane %v3770, 2
    %v4204 = vsel %vm4169, %v4201, %v4203
    %v4205 = vrot.slane %v3771, 2
    %v4206 = vsel %vm4169, %v4203, %v4205
    %v4207 = vrot.slane %v3772, 2
    %v4208 = vsel %vm4169, %v4205, %v4207
    %v4209 = vrot.slane %v3773, 2
    %v4210 = vsel %vm4169, %v4207, %v4209
    %v4211 = vrot.slane %v3774, 2
    %v4212 = vsel %vm4169, %v4209, %v4211
    %v4213 = vrot.slane %v3775, 2
    %v4214 = vsel %vm4169, %v4211, %v4213
    %v4215 = vrot.slane %v3776, 2
    %v4216 = vrot.slane %v3777, 2
    %v4217 = vsel %vm4169, %v4215, %v4216
    %v4218 = vrot.slane %v3778, 2
    %v4219 = vsel %vm4169, %v4216, %v4218
    %v4220 = vrot.slane %v3779, 2
    %v4221 = vsel %vm4169, %v4218, %v4220
    %v4222 = vrot.slane %v3780, 2
    %v4223 = vsel %vm4169, %v4220, %v4222
    %v4224 = vrot.slane %v3781, 2
    %v4225 = vsel %vm4169, %v4222, %v4224
    %v4226 = vrot.slane %v3782, 2
    %v4227 = vsel %vm4169, %v4224, %v4226
    %v4228 = vrot.slane %v3783, 2
    %v4229 = vsel %vm4169, %v4226, %v4228
    %v4230 = vrot.slane %v3784, 2
    %v4231 = vrot.slane %v3785, 2
    %v4232 = vsel %vm4169, %v4230, %v4231
    %v4233 = vrot.slane %v3786, 2
    %v4234 = vsel %vm4169, %v4231, %v4233
    %v4235 = vrot.slane %v3787, 2
    %v4236 = vsel %vm4169, %v4233, %v4235
    %v4237 = vrot.slane %v3788, 2
    %v4238 = vsel %vm4169, %v4235, %v4237
    %v4239 = vrot.slane %v3789, 2
    %v4240 = vsel %vm4169, %v4237, %v4239
    %v4241 = vrot.slane %v3790, 2
    %v4242 = vsel %vm4169, %v4239, %v4241
    %v4243 = vrot.slane %v3791, 2
    %v4244 = vsel %vm4169, %v4241, %v4243
    %v4245 = vrot.slane %v3792, 2
    %v4246 = vrot.slane %v3793, 2
    %v4247 = vsel %vm4169, %v4245, %v4246
    %v4248 = vrot.slane %v3794, 2
    %v4249 = vsel %vm4169, %v4246, %v4248
    %v4250 = vrot.slane %v3795, 2
    %v4251 = vsel %vm4169, %v4248, %v4250
    %v4252 = vrot.slane %v3796, 2
    %v4253 = vsel %vm4169, %v4250, %v4252
    %v4254 = vrot.slane %v3797, 2
    %v4255 = vsel %vm4169, %v4252, %v4254
    %v4256 = vrot.slane %v3798, 2
    %v4257 = vsel %vm4169, %v4254, %v4256
    %v4258 = vrot.slane %v3799, 2
    %v4259 = vsel %vm4169, %v4256, %v4258
    %v4260 = vrot.slane %v3800, 2
    %v4261 = vrot.slane %v3801, 2
    %v4262 = vsel %vm4169, %v4260, %v4261
    %v4263 = vrot.slane %v3802, 2
    %v4264 = vsel %vm4169, %v4261, %v4263
    %v4265 = vrot.slane %v3803, 2
    %v4266 = vsel %vm4169, %v4263, %v4265
    %v4267 = vrot.slane %v3804, 2
    %v4268 = vsel %vm4169, %v4265, %v4267
    %v4269 = vrot.slane %v3805, 2
    %v4270 = vsel %vm4169, %v4267, %v4269
    %v4271 = vrot.slane %v3806, 2
    %v4272 = vsel %vm4169, %v4269, %v4271
    %v4273 = vrot.slane %v3807, 2
    %v4274 = vsel %vm4169, %v4271, %v4273
    %v4275 = vrot.slane %v3808, 2
    %v4276 = vrot.slane %v3809, 2
    %v4277 = vsel %vm4169, %v4275, %v4276
    %v4278 = vrot.slane %v3810, 2
    %v4279 = vsel %vm4169, %v4276, %v4278
    %v4280 = vrot.slane %v3811, 2
    %v4281 = vsel %vm4169, %v4278, %v4280
    %v4282 = vrot.slane %v3812, 2
    %v4283 = vsel %vm4169, %v4280, %v4282
    %v4284 = vrot.slane %v3813, 2
    %v4285 = vsel %vm4169, %v4282, %v4284
    %v4286 = vrot.slane %v3814, 2
    %v4287 = vsel %vm4169, %v4284, %v4286
    %v4288 = vrot.slane %v3815, 2
    %v4289 = vsel %vm4169, %v4286, %v4288
    %4290 = vrot.lane.b32.xlu0 %v4172, 64
    %v4291 = vpop.permute.xlu0 %4290
    %4292 = vrot.lane.b32.xlu0 %v4174, 64
    %v4293 = vpop.permute.xlu0 %4292
    %4294 = vrot.lane.b32.xlu0 %v4176, 64
    %v4295 = vpop.permute.xlu0 %4294
    %4296 = vrot.lane.b32.xlu0 %v4178, 64
    %v4297 = vpop.permute.xlu0 %4296
    %4298 = vrot.lane.b32.xlu0 %v4180, 64
    %v4299 = vpop.permute.xlu0 %4298
    %4300 = vrot.lane.b32.xlu0 %v4182, 64
    %v4301 = vpop.permute.xlu0 %4300
    %4302 = vrot.lane.b32.xlu0 %v4184, 64
    %v4303 = vpop.permute.xlu0 %4302
    %4304 = vrot.lane.b32.xlu0 %v4187, 64
    %v4305 = vpop.permute.xlu0 %4304
    %4306 = vrot.lane.b32.xlu0 %v4189, 64
    %v4307 = vpop.permute.xlu0 %4306
    %4308 = vrot.lane.b32.xlu0 %v4191, 64
    %v4309 = vpop.permute.xlu0 %4308
    %4310 = vrot.lane.b32.xlu0 %v4193, 64
    %v4311 = vpop.permute.xlu0 %4310
    %4312 = vrot.lane.b32.xlu0 %v4195, 64
    %v4313 = vpop.permute.xlu0 %4312
    %4314 = vrot.lane.b32.xlu0 %v4197, 64
    %v4315 = vpop.permute.xlu0 %4314
    %4316 = vrot.lane.b32.xlu0 %v4199, 64
    %v4317 = vpop.permute.xlu0 %4316
    %4318 = vrot.lane.b32.xlu0 %v4202, 64
    %v4319 = vpop.permute.xlu0 %4318
    %4320 = vrot.lane.b32.xlu0 %v4204, 64
    %v4321 = vpop.permute.xlu0 %4320
    %4322 = vrot.lane.b32.xlu0 %v4206, 64
    %v4323 = vpop.permute.xlu0 %4322
    %4324 = vrot.lane.b32.xlu0 %v4208, 64
    %v4325 = vpop.permute.xlu0 %4324
    %4326 = vrot.lane.b32.xlu0 %v4210, 64
    %v4327 = vpop.permute.xlu0 %4326
    %4328 = vrot.lane.b32.xlu0 %v4212, 64
    %v4329 = vpop.permute.xlu0 %4328
    %4330 = vrot.lane.b32.xlu0 %v4214, 64
    %v4331 = vpop.permute.xlu0 %4330
    %4332 = vrot.lane.b32.xlu0 %v4217, 64
    %v4333 = vpop.permute.xlu0 %4332
    %4334 = vrot.lane.b32.xlu0 %v4219, 64
    %v4335 = vpop.permute.xlu0 %4334
    %4336 = vrot.lane.b32.xlu0 %v4221, 64
    %v4337 = vpop.permute.xlu0 %4336
    %4338 = vrot.lane.b32.xlu0 %v4223, 64
    %v4339 = vpop.permute.xlu0 %4338
    %4340 = vrot.lane.b32.xlu0 %v4225, 64
    %v4341 = vpop.permute.xlu0 %4340
    %4342 = vrot.lane.b32.xlu0 %v4227, 64
    %v4343 = vpop.permute.xlu0 %4342
    %4344 = vrot.lane.b32.xlu0 %v4229, 64
    %v4345 = vpop.permute.xlu0 %4344
    %4346 = vrot.lane.b32.xlu0 %v4232, 64
    %v4347 = vpop.permute.xlu0 %4346
    %4348 = vrot.lane.b32.xlu0 %v4234, 64
    %v4349 = vpop.permute.xlu0 %4348
    %4350 = vrot.lane.b32.xlu0 %v4236, 64
    %v4351 = vpop.permute.xlu0 %4350
    %4352 = vrot.lane.b32.xlu0 %v4238, 64
    %v4353 = vpop.permute.xlu0 %4352
    %4354 = vrot.lane.b32.xlu0 %v4240, 64
    %v4355 = vpop.permute.xlu0 %4354
    %4356 = vrot.lane.b32.xlu0 %v4242, 64
    %v4357 = vpop.permute.xlu0 %4356
    %4358 = vrot.lane.b32.xlu0 %v4244, 64
    %v4359 = vpop.permute.xlu0 %4358
    %4360 = vrot.lane.b32.xlu0 %v4247, 64
    %v4361 = vpop.permute.xlu0 %4360
    %4362 = vrot.lane.b32.xlu0 %v4249, 64
    %v4363 = vpop.permute.xlu0 %4362
    %4364 = vrot.lane.b32.xlu0 %v4251, 64
    %v4365 = vpop.permute.xlu0 %4364
    %4366 = vrot.lane.b32.xlu0 %v4253, 64
    %v4367 = vpop.permute.xlu0 %4366
    %4368 = vrot.lane.b32.xlu0 %v4255, 64
    %v4369 = vpop.permute.xlu0 %4368
    %4370 = vrot.lane.b32.xlu0 %v4257, 64
    %v4371 = vpop.permute.xlu0 %4370
    %4372 = vrot.lane.b32.xlu0 %v4259, 64
    %v4373 = vpop.permute.xlu0 %4372
    %4374 = vrot.lane.b32.xlu0 %v4262, 64
    %v4375 = vpop.permute.xlu0 %4374
    %4376 = vrot.lane.b32.xlu0 %v4264, 64
    %v4377 = vpop.permute.xlu0 %4376
    %4378 = vrot.lane.b32.xlu0 %v4266, 64
    %v4379 = vpop.permute.xlu0 %4378
    %4380 = vrot.lane.b32.xlu0 %v4268, 64
    %v4381 = vpop.permute.xlu0 %4380
    %4382 = vrot.lane.b32.xlu0 %v4270, 64
    %v4383 = vpop.permute.xlu0 %4382
    %4384 = vrot.lane.b32.xlu0 %v4272, 64
    %v4385 = vpop.permute.xlu0 %4384
    %4386 = vrot.lane.b32.xlu0 %v4274, 64
    %v4387 = vpop.permute.xlu0 %4386
    %4388 = vrot.lane.b32.xlu0 %v4277, 64
    %v4389 = vpop.permute.xlu0 %4388
    %4390 = vrot.lane.b32.xlu0 %v4279, 64
    %v4391 = vpop.permute.xlu0 %4390
    %4392 = vrot.lane.b32.xlu0 %v4281, 64
    %v4393 = vpop.permute.xlu0 %4392
    %4394 = vrot.lane.b32.xlu0 %v4283, 64
    %v4395 = vpop.permute.xlu0 %4394
    %4396 = vrot.lane.b32.xlu0 %v4285, 64
    %v4397 = vpop.permute.xlu0 %4396
    %4398 = vrot.lane.b32.xlu0 %v4287, 64
    %v4399 = vpop.permute.xlu0 %4398
    %4400 = vrot.lane.b32.xlu0 %v4289, 64
    %v4401 = vpop.permute.xlu0 %4400
    %vm4458 = vcmask 1044480
    %v4459 = vrot.slane %v3752, 3
    %v4460 = vrot.slane %v3753, 3
    %v4461 = vsel %vm4458, %v4459, %v4460
    %v4462 = vrot.slane %v3754, 3
    %v4463 = vsel %vm4458, %v4460, %v4462
    %v4464 = vrot.slane %v3755, 3
    %v4465 = vsel %vm4458, %v4462, %v4464
    %v4466 = vrot.slane %v3756, 3
    %v4467 = vsel %vm4458, %v4464, %v4466
    %v4468 = vrot.slane %v3757, 3
    %v4469 = vsel %vm4458, %v4466, %v4468
    %v4470 = vrot.slane %v3758, 3
    %v4471 = vsel %vm4458, %v4468, %v4470
    %v4472 = vrot.slane %v3759, 3
    %v4473 = vsel %vm4458, %v4470, %v4472
    %v4474 = vrot.slane %v3760, 3
    %v4475 = vrot.slane %v3761, 3
    %v4476 = vsel %vm4458, %v4474, %v4475
    %v4477 = vrot.slane %v3762, 3
    %v4478 = vsel %vm4458, %v4475, %v4477
    %v4479 = vrot.slane %v3763, 3
    %v4480 = vsel %vm4458, %v4477, %v4479
    %v4481 = vrot.slane %v3764, 3
    %v4482 = vsel %vm4458, %v4479, %v4481
    %v4483 = vrot.slane %v3765, 3
    %v4484 = vsel %vm4458, %v4481, %v4483
    %v4485 = vrot.slane %v3766, 3
    %v4486 = vsel %vm4458, %v4483, %v4485
    %v4487 = vrot.slane %v3767, 3
    %v4488 = vsel %vm4458, %v4485, %v4487
    %v4489 = vrot.slane %v3768, 3
    %v4490 = vrot.slane %v3769, 3
    %v4491 = vsel %vm4458, %v4489, %v4490
    %v4492 = vrot.slane %v3770, 3
    %v4493 = vsel %vm4458, %v4490, %v4492
    %v4494 = vrot.slane %v3771, 3
    %v4495 = vsel %vm4458, %v4492, %v4494
    %v4496 = vrot.slane %v3772, 3
    %v4497 = vsel %vm4458, %v4494, %v4496
    %v4498 = vrot.slane %v3773, 3
    %v4499 = vsel %vm4458, %v4496, %v4498
    %v4500 = vrot.slane %v3774, 3
    %v4501 = vsel %vm4458, %v4498, %v4500
    %v4502 = vrot.slane %v3775, 3
    %v4503 = vsel %vm4458, %v4500, %v4502
    %v4504 = vrot.slane %v3776, 3
    %v4505 = vrot.slane %v3777, 3
    %v4506 = vsel %vm4458, %v4504, %v4505
    %v4507 = vrot.slane %v3778, 3
    %v4508 = vsel %vm4458, %v4505, %v4507
    %v4509 = vrot.slane %v3779, 3
    %v4510 = vsel %vm4458, %v4507, %v4509
    %v4511 = vrot.slane %v3780, 3
    %v4512 = vsel %vm4458, %v4509, %v4511
    %v4513 = vrot.slane %v3781, 3
    %v4514 = vsel %vm4458, %v4511, %v4513
    %v4515 = vrot.slane %v3782, 3
    %v4516 = vsel %vm4458, %v4513, %v4515
    %v4517 = vrot.slane %v3783, 3
    %v4518 = vsel %vm4458, %v4515, %v4517
    %v4519 = vrot.slane %v3784, 3
    %v4520 = vrot.slane %v3785, 3
    %v4521 = vsel %vm4458, %v4519, %v4520
    %v4522 = vrot.slane %v3786, 3
    %v4523 = vsel %vm4458, %v4520, %v4522
    %v4524 = vrot.slane %v3787, 3
    %v4525 = vsel %vm4458, %v4522, %v4524
    %v4526 = vrot.slane %v3788, 3
    %v4527 = vsel %vm4458, %v4524, %v4526
    %v4528 = vrot.slane %v3789, 3
    %v4529 = vsel %vm4458, %v4526, %v4528
    %v4530 = vrot.slane %v3790, 3
    %v4531 = vsel %vm4458, %v4528, %v4530
    %v4532 = vrot.slane %v3791, 3
    %v4533 = vsel %vm4458, %v4530, %v4532
    %v4534 = vrot.slane %v3792, 3
    %v4535 = vrot.slane %v3793, 3
    %v4536 = vsel %vm4458, %v4534, %v4535
    %v4537 = vrot.slane %v3794, 3
    %v4538 = vsel %vm4458, %v4535, %v4537
    %v4539 = vrot.slane %v3795, 3
    %v4540 = vsel %vm4458, %v4537, %v4539
    %v4541 = vrot.slane %v3796, 3
    %v4542 = vsel %vm4458, %v4539, %v4541
    %v4543 = vrot.slane %v3797, 3
    %v4544 = vsel %vm4458, %v4541, %v4543
    %v4545 = vrot.slane %v3798, 3
    %v4546 = vsel %vm4458, %v4543, %v4545
    %v4547 = vrot.slane %v3799, 3
    %v4548 = vsel %vm4458, %v4545, %v4547
    %v4549 = vrot.slane %v3800, 3
    %v4550 = vrot.slane %v3801, 3
    %v4551 = vsel %vm4458, %v4549, %v4550
    %v4552 = vrot.slane %v3802, 3
    %v4553 = vsel %vm4458, %v4550, %v4552
    %v4554 = vrot.slane %v3803, 3
    %v4555 = vsel %vm4458, %v4552, %v4554
    %v4556 = vrot.slane %v3804, 3
    %v4557 = vsel %vm4458, %v4554, %v4556
    %v4558 = vrot.slane %v3805, 3
    %v4559 = vsel %vm4458, %v4556, %v4558
    %v4560 = vrot.slane %v3806, 3
    %v4561 = vsel %vm4458, %v4558, %v4560
    %v4562 = vrot.slane %v3807, 3
    %v4563 = vsel %vm4458, %v4560, %v4562
    %v4564 = vrot.slane %v3808, 3
    %v4565 = vrot.slane %v3809, 3
    %v4566 = vsel %vm4458, %v4564, %v4565
    %v4567 = vrot.slane %v3810, 3
    %v4568 = vsel %vm4458, %v4565, %v4567
    %v4569 = vrot.slane %v3811, 3
    %v4570 = vsel %vm4458, %v4567, %v4569
    %v4571 = vrot.slane %v3812, 3
    %v4572 = vsel %vm4458, %v4569, %v4571
    %v4573 = vrot.slane %v3813, 3
    %v4574 = vsel %vm4458, %v4571, %v4573
    %v4575 = vrot.slane %v3814, 3
    %v4576 = vsel %vm4458, %v4573, %v4575
    %v4577 = vrot.slane %v3815, 3
    %v4578 = vsel %vm4458, %v4575, %v4577
    %4579 = vrot.lane.b32.xlu0 %v4461, 96
    %v4580 = vpop.permute.xlu0 %4579
    %4581 = vrot.lane.b32.xlu0 %v4463, 96
    %v4582 = vpop.permute.xlu0 %4581
    %4583 = vrot.lane.b32.xlu0 %v4465, 96
    %v4584 = vpop.permute.xlu0 %4583
    %4585 = vrot.lane.b32.xlu0 %v4467, 96
    %v4586 = vpop.permute.xlu0 %4585
    %4587 = vrot.lane.b32.xlu0 %v4469, 96
    %v4588 = vpop.permute.xlu0 %4587
    %4589 = vrot.lane.b32.xlu0 %v4471, 96
    %v4590 = vpop.permute.xlu0 %4589
    %4591 = vrot.lane.b32.xlu0 %v4473, 96
    %v4592 = vpop.permute.xlu0 %4591
    %4593 = vrot.lane.b32.xlu0 %v4476, 96
    %v4594 = vpop.permute.xlu0 %4593
    %4595 = vrot.lane.b32.xlu0 %v4478, 96
    %v4596 = vpop.permute.xlu0 %4595
    %4597 = vrot.lane.b32.xlu0 %v4480, 96
    %v4598 = vpop.permute.xlu0 %4597
    %4599 = vrot.lane.b32.xlu0 %v4482, 96
    %v4600 = vpop.permute.xlu0 %4599
    %4601 = vrot.lane.b32.xlu0 %v4484, 96
    %v4602 = vpop.permute.xlu0 %4601
    %4603 = vrot.lane.b32.xlu0 %v4486, 96
    %v4604 = vpop.permute.xlu0 %4603
    %4605 = vrot.lane.b32.xlu0 %v4488, 96
    %v4606 = vpop.permute.xlu0 %4605
    %4607 = vrot.lane.b32.xlu0 %v4491, 96
    %v4608 = vpop.permute.xlu0 %4607
    %4609 = vrot.lane.b32.xlu0 %v4493, 96
    %v4610 = vpop.permute.xlu0 %4609
    %4611 = vrot.lane.b32.xlu0 %v4495, 96
    %v4612 = vpop.permute.xlu0 %4611
    %4613 = vrot.lane.b32.xlu0 %v4497, 96
    %v4614 = vpop.permute.xlu0 %4613
    %4615 = vrot.lane.b32.xlu0 %v4499, 96
    %v4616 = vpop.permute.xlu0 %4615
    %4617 = vrot.lane.b32.xlu0 %v4501, 96
    %v4618 = vpop.permute.xlu0 %4617
    %4619 = vrot.lane.b32.xlu0 %v4503, 96
    %v4620 = vpop.permute.xlu0 %4619
    %4621 = vrot.lane.b32.xlu0 %v4506, 96
    %v4622 = vpop.permute.xlu0 %4621
    %4623 = vrot.lane.b32.xlu0 %v4508, 96
    %v4624 = vpop.permute.xlu0 %4623
    %4625 = vrot.lane.b32.xlu0 %v4510, 96
    %v4626 = vpop.permute.xlu0 %4625
    %4627 = vrot.lane.b32.xlu0 %v4512, 96
    %v4628 = vpop.permute.xlu0 %4627
    %4629 = vrot.lane.b32.xlu0 %v4514, 96
    %v4630 = vpop.permute.xlu0 %4629
    %4631 = vrot.lane.b32.xlu0 %v4516, 96
    %v4632 = vpop.permute.xlu0 %4631
    %4633 = vrot.lane.b32.xlu0 %v4518, 96
    %v4634 = vpop.permute.xlu0 %4633
    %4635 = vrot.lane.b32.xlu0 %v4521, 96
    %v4636 = vpop.permute.xlu0 %4635
    %4637 = vrot.lane.b32.xlu0 %v4523, 96
    %v4638 = vpop.permute.xlu0 %4637
    %4639 = vrot.lane.b32.xlu0 %v4525, 96
    %v4640 = vpop.permute.xlu0 %4639
    %4641 = vrot.lane.b32.xlu0 %v4527, 96
    %v4642 = vpop.permute.xlu0 %4641
    %4643 = vrot.lane.b32.xlu0 %v4529, 96
    %v4644 = vpop.permute.xlu0 %4643
    %4645 = vrot.lane.b32.xlu0 %v4531, 96
    %v4646 = vpop.permute.xlu0 %4645
    %4647 = vrot.lane.b32.xlu0 %v4533, 96
    %v4648 = vpop.permute.xlu0 %4647
    %4649 = vrot.lane.b32.xlu0 %v4536, 96
    %v4650 = vpop.permute.xlu0 %4649
    %4651 = vrot.lane.b32.xlu0 %v4538, 96
    %v4652 = vpop.permute.xlu0 %4651
    %4653 = vrot.lane.b32.xlu0 %v4540, 96
    %v4654 = vpop.permute.xlu0 %4653
    %4655 = vrot.lane.b32.xlu0 %v4542, 96
    %v4656 = vpop.permute.xlu0 %4655
    %4657 = vrot.lane.b32.xlu0 %v4544, 96
    %v4658 = vpop.permute.xlu0 %4657
    %4659 = vrot.lane.b32.xlu0 %v4546, 96
    %v4660 = vpop.permute.xlu0 %4659
    %4661 = vrot.lane.b32.xlu0 %v4548, 96
    %v4662 = vpop.permute.xlu0 %4661
    %4663 = vrot.lane.b32.xlu0 %v4551, 96
    %v4664 = vpop.permute.xlu0 %4663
    %4665 = vrot.lane.b32.xlu0 %v4553, 96
    %v4666 = vpop.permute.xlu0 %4665
    %4667 = vrot.lane.b32.xlu0 %v4555, 96
    %v4668 = vpop.permute.xlu0 %4667
    %4669 = vrot.lane.b32.xlu0 %v4557, 96
    %v4670 = vpop.permute.xlu0 %4669
    %4671 = vrot.lane.b32.xlu0 %v4559, 96
    %v4672 = vpop.permute.xlu0 %4671
    %4673 = vrot.lane.b32.xlu0 %v4561, 96
    %v4674 = vpop.permute.xlu0 %4673
    %4675 = vrot.lane.b32.xlu0 %v4563, 96
    %v4676 = vpop.permute.xlu0 %4675
    %4677 = vrot.lane.b32.xlu0 %v4566, 96
    %v4678 = vpop.permute.xlu0 %4677
    %4679 = vrot.lane.b32.xlu0 %v4568, 96
    %v4680 = vpop.permute.xlu0 %4679
    %4681 = vrot.lane.b32.xlu0 %v4570, 96
    %v4682 = vpop.permute.xlu0 %4681
    %4683 = vrot.lane.b32.xlu0 %v4572, 96
    %v4684 = vpop.permute.xlu0 %4683
    %4685 = vrot.lane.b32.xlu0 %v4574, 96
    %v4686 = vpop.permute.xlu0 %4685
    %4687 = vrot.lane.b32.xlu0 %v4576, 96
    %v4688 = vpop.permute.xlu0 %4687
    %4689 = vrot.lane.b32.xlu0 %v4578, 96
    %v4690 = vpop.permute.xlu0 %4689
    %vm4747 = vcmask 1043456
    %v4748 = vrot.slane %v3752, 4
    %v4749 = vrot.slane %v3753, 4
    %v4750 = vsel %vm4747, %v4748, %v4749
    %v4751 = vrot.slane %v3754, 4
    %v4752 = vsel %vm4747, %v4749, %v4751
    %v4753 = vrot.slane %v3755, 4
    %v4754 = vsel %vm4747, %v4751, %v4753
    %v4755 = vrot.slane %v3756, 4
    %v4756 = vsel %vm4747, %v4753, %v4755
    %v4757 = vrot.slane %v3757, 4
    %v4758 = vsel %vm4747, %v4755, %v4757
    %v4759 = vrot.slane %v3758, 4
    %v4760 = vsel %vm4747, %v4757, %v4759
    %v4761 = vrot.slane %v3759, 4
    %v4762 = vsel %vm4747, %v4759, %v4761
    %v4763 = vrot.slane %v3760, 4
    %v4764 = vrot.slane %v3761, 4
    %v4765 = vsel %vm4747, %v4763, %v4764
    %v4766 = vrot.slane %v3762, 4
    %v4767 = vsel %vm4747, %v4764, %v4766
    %v4768 = vrot.slane %v3763, 4
    %v4769 = vsel %vm4747, %v4766, %v4768
    %v4770 = vrot.slane %v3764, 4
    %v4771 = vsel %vm4747, %v4768, %v4770
    %v4772 = vrot.slane %v3765, 4
    %v4773 = vsel %vm4747, %v4770, %v4772
    %v4774 = vrot.slane %v3766, 4
    %v4775 = vsel %vm4747, %v4772, %v4774
    %v4776 = vrot.slane %v3767, 4
    %v4777 = vsel %vm4747, %v4774, %v4776
    %v4778 = vrot.slane %v3768, 4
    %v4779 = vrot.slane %v3769, 4
    %v4780 = vsel %vm4747, %v4778, %v4779
    %v4781 = vrot.slane %v3770, 4
    %v4782 = vsel %vm4747, %v4779, %v4781
    %v4783 = vrot.slane %v3771, 4
    %v4784 = vsel %vm4747, %v4781, %v4783
    %v4785 = vrot.slane %v3772, 4
    %v4786 = vsel %vm4747, %v4783, %v4785
    %v4787 = vrot.slane %v3773, 4
    %v4788 = vsel %vm4747, %v4785, %v4787
    %v4789 = vrot.slane %v3774, 4
    %v4790 = vsel %vm4747, %v4787, %v4789
    %v4791 = vrot.slane %v3775, 4
    %v4792 = vsel %vm4747, %v4789, %v4791
    %v4793 = vrot.slane %v3776, 4
    %v4794 = vrot.slane %v3777, 4
    %v4795 = vsel %vm4747, %v4793, %v4794
    %v4796 = vrot.slane %v3778, 4
    %v4797 = vsel %vm4747, %v4794, %v4796
    %v4798 = vrot.slane %v3779, 4
    %v4799 = vsel %vm4747, %v4796, %v4798
    %v4800 = vrot.slane %v3780, 4
    %v4801 = vsel %vm4747, %v4798, %v4800
    %v4802 = vrot.slane %v3781, 4
    %v4803 = vsel %vm4747, %v4800, %v4802
    %v4804 = vrot.slane %v3782, 4
    %v4805 = vsel %vm4747, %v4802, %v4804
    %v4806 = vrot.slane %v3783, 4
    %v4807 = vsel %vm4747, %v4804, %v4806
    %v4808 = vrot.slane %v3784, 4
    %v4809 = vrot.slane %v3785, 4
    %v4810 = vsel %vm4747, %v4808, %v4809
    %v4811 = vrot.slane %v3786, 4
    %v4812 = vsel %vm4747, %v4809, %v4811
    %v4813 = vrot.slane %v3787, 4
    %v4814 = vsel %vm4747, %v4811, %v4813
    %v4815 = vrot.slane %v3788, 4
    %v4816 = vsel %vm4747, %v4813, %v4815
    %v4817 = vrot.slane %v3789, 4
    %v4818 = vsel %vm4747, %v4815, %v4817
    %v4819 = vrot.slane %v3790, 4
    %v4820 = vsel %vm4747, %v4817, %v4819
    %v4821 = vrot.slane %v3791, 4
    %v4822 = vsel %vm4747, %v4819, %v4821
    %v4823 = vrot.slane %v3792, 4
    %v4824 = vrot.slane %v3793, 4
    %v4825 = vsel %vm4747, %v4823, %v4824
    %v4826 = vrot.slane %v3794, 4
    %v4827 = vsel %vm4747, %v4824, %v4826
    %v4828 = vrot.slane %v3795, 4
    %v4829 = vsel %vm4747, %v4826, %v4828
    %v4830 = vrot.slane %v3796, 4
    %v4831 = vsel %vm4747, %v4828, %v4830
    %v4832 = vrot.slane %v3797, 4
    %v4833 = vsel %vm4747, %v4830, %v4832
    %v4834 = vrot.slane %v3798, 4
    %v4835 = vsel %vm4747, %v4832, %v4834
    %v4836 = vrot.slane %v3799, 4
    %v4837 = vsel %vm4747, %v4834, %v4836
    %v4838 = vrot.slane %v3800, 4
    %v4839 = vrot.slane %v3801, 4
    %v4840 = vsel %vm4747, %v4838, %v4839
    %v4841 = vrot.slane %v3802, 4
    %v4842 = vsel %vm4747, %v4839, %v4841
    %v4843 = vrot.slane %v3803, 4
    %v4844 = vsel %vm4747, %v4841, %v4843
    %v4845 = vrot.slane %v3804, 4
    %v4846 = vsel %vm4747, %v4843, %v4845
    %v4847 = vrot.slane %v3805, 4
    %v4848 = vsel %vm4747, %v4845, %v4847
    %v4849 = vrot.slane %v3806, 4
    %v4850 = vsel %vm4747, %v4847, %v4849
    %v4851 = vrot.slane %v3807, 4
    %v4852 = vsel %vm4747, %v4849, %v4851
    %v4853 = vrot.slane %v3808, 4
    %v4854 = vrot.slane %v3809, 4
    %v4855 = vsel %vm4747, %v4853, %v4854
    %v4856 = vrot.slane %v3810, 4
    %v4857 = vsel %vm4747, %v4854, %v4856
    %v4858 = vrot.slane %v3811, 4
    %v4859 = vsel %vm4747, %v4856, %v4858
    %v4860 = vrot.slane %v3812, 4
    %v4861 = vsel %vm4747, %v4858, %v4860
    %v4862 = vrot.slane %v3813, 4
    %v4863 = vsel %vm4747, %v4860, %v4862
    %v4864 = vrot.slane %v3814, 4
    %v4865 = vsel %vm4747, %v4862, %v4864
    %v4866 = vrot.slane %v3815, 4
    %v4867 = vsel %vm4747, %v4864, %v4866
    %vm4924 = vcmask 1042432
    %v4925 = vrot.slane %v3752, 5
    %v4926 = vrot.slane %v3753, 5
    %v4927 = vsel %vm4924, %v4925, %v4926
    %v4928 = vrot.slane %v3754, 5
    %v4929 = vsel %vm4924, %v4926, %v4928
    %v4930 = vrot.slane %v3755, 5
    %v4931 = vsel %vm4924, %v4928, %v4930
    %v4932 = vrot.slane %v3756, 5
    %v4933 = vsel %vm4924, %v4930, %v4932
    %v4934 = vrot.slane %v3757, 5
    %v4935 = vsel %vm4924, %v4932, %v4934
    %v4936 = vrot.slane %v3758, 5
    %v4937 = vsel %vm4924, %v4934, %v4936
    %v4938 = vrot.slane %v3759, 5
    %v4939 = vsel %vm4924, %v4936, %v4938
    %v4940 = vrot.slane %v3760, 5
    %v4941 = vrot.slane %v3761, 5
    %v4942 = vsel %vm4924, %v4940, %v4941
    %v4943 = vrot.slane %v3762, 5
    %v4944 = vsel %vm4924, %v4941, %v4943
    %v4945 = vrot.slane %v3763, 5
    %v4946 = vsel %vm4924, %v4943, %v4945
    %v4947 = vrot.slane %v3764, 5
    %v4948 = vsel %vm4924, %v4945, %v4947
    %v4949 = vrot.slane %v3765, 5
    %v4950 = vsel %vm4924, %v4947, %v4949
    %v4951 = vrot.slane %v3766, 5
    %v4952 = vsel %vm4924, %v4949, %v4951
    %v4953 = vrot.slane %v3767, 5
    %v4954 = vsel %vm4924, %v4951, %v4953
    %v4955 = vrot.slane %v3768, 5
    %v4956 = vrot.slane %v3769, 5
    %v4957 = vsel %vm4924, %v4955, %v4956
    %v4958 = vrot.slane %v3770, 5
    %v4959 = vsel %vm4924, %v4956, %v4958
    %v4960 = vrot.slane %v3771, 5
    %v4961 = vsel %vm4924, %v4958, %v4960
    %v4962 = vrot.slane %v3772, 5
    %v4963 = vsel %vm4924, %v4960, %v4962
    %v4964 = vrot.slane %v3773, 5
    %v4965 = vsel %vm4924, %v4962, %v4964
    %v4966 = vrot.slane %v3774, 5
    %v4967 = vsel %vm4924, %v4964, %v4966
    %v4968 = vrot.slane %v3775, 5
    %v4969 = vsel %vm4924, %v4966, %v4968
    %v4970 = vrot.slane %v3776, 5
    %v4971 = vrot.slane %v3777, 5
    %v4972 = vsel %vm4924, %v4970, %v4971
    %v4973 = vrot.slane %v3778, 5
    %v4974 = vsel %vm4924, %v4971, %v4973
    %v4975 = vrot.slane %v3779, 5
    %v4976 = vsel %vm4924, %v4973, %v4975
    %v4977 = vrot.slane %v3780, 5
    %v4978 = vsel %vm4924, %v4975, %v4977
    %v4979 = vrot.slane %v3781, 5
    %v4980 = vsel %vm4924, %v4977, %v4979
    %v4981 = vrot.slane %v3782, 5
    %v4982 = vsel %vm4924, %v4979, %v4981
    %v4983 = vrot.slane %v3783, 5
    %v4984 = vsel %vm4924, %v4981, %v4983
    %v4985 = vrot.slane %v3784, 5
    %v4986 = vrot.slane %v3785, 5
    %v4987 = vsel %vm4924, %v4985, %v4986
    %v4988 = vrot.slane %v3786, 5
    %v4989 = vsel %vm4924, %v4986, %v4988
    %v4990 = vrot.slane %v3787, 5
    %v4991 = vsel %vm4924, %v4988, %v4990
    %v4992 = vrot.slane %v3788, 5
    %v4993 = vsel %vm4924, %v4990, %v4992
    %v4994 = vrot.slane %v3789, 5
    %v4995 = vsel %vm4924, %v4992, %v4994
    %v4996 = vrot.slane %v3790, 5
    %v4997 = vsel %vm4924, %v4994, %v4996
    %v4998 = vrot.slane %v3791, 5
    %v4999 = vsel %vm4924, %v4996, %v4998
    %v5000 = vrot.slane %v3792, 5
    %v5001 = vrot.slane %v3793, 5
    %v5002 = vsel %vm4924, %v5000, %v5001
    %v5003 = vrot.slane %v3794, 5
    %v5004 = vsel %vm4924, %v5001, %v5003
    %v5005 = vrot.slane %v3795, 5
    %v5006 = vsel %vm4924, %v5003, %v5005
    %v5007 = vrot.slane %v3796, 5
    %v5008 = vsel %vm4924, %v5005, %v5007
    %v5009 = vrot.slane %v3797, 5
    %v5010 = vsel %vm4924, %v5007, %v5009
    %v5011 = vrot.slane %v3798, 5
    %v5012 = vsel %vm4924, %v5009, %v5011
    %v5013 = vrot.slane %v3799, 5
    %v5014 = vsel %vm4924, %v5011, %v5013
    %v5015 = vrot.slane %v3800, 5
    %v5016 = vrot.slane %v3801, 5
    %v5017 = vsel %vm4924, %v5015, %v5016
    %v5018 = vrot.slane %v3802, 5
    %v5019 = vsel %vm4924, %v5016, %v5018
    %v5020 = vrot.slane %v3803, 5
    %v5021 = vsel %vm4924, %v5018, %v5020
    %v5022 = vrot.slane %v3804, 5
    %v5023 = vsel %vm4924, %v5020, %v5022
    %v5024 = vrot.slane %v3805, 5
    %v5025 = vsel %vm4924, %v5022, %v5024
    %v5026 = vrot.slane %v3806, 5
    %v5027 = vsel %vm4924, %v5024, %v5026
    %v5028 = vrot.slane %v3807, 5
    %v5029 = vsel %vm4924, %v5026, %v5028
    %v5030 = vrot.slane %v3808, 5
    %v5031 = vrot.slane %v3809, 5
    %v5032 = vsel %vm4924, %v5030, %v5031
    %v5033 = vrot.slane %v3810, 5
    %v5034 = vsel %vm4924, %v5031, %v5033
    %v5035 = vrot.slane %v3811, 5
    %v5036 = vsel %vm4924, %v5033, %v5035
    %v5037 = vrot.slane %v3812, 5
    %v5038 = vsel %vm4924, %v5035, %v5037
    %v5039 = vrot.slane %v3813, 5
    %v5040 = vsel %vm4924, %v5037, %v5039
    %v5041 = vrot.slane %v3814, 5
    %v5042 = vsel %vm4924, %v5039, %v5041
    %v5043 = vrot.slane %v3815, 5
    %v5044 = vsel %vm4924, %v5041, %v5043
    %5045 = vrot.lane.b32.xlu0 %v4927, 32
    %v5046 = vpop.permute.xlu0 %5045
    %5047 = vrot.lane.b32.xlu0 %v4929, 32
    %v5048 = vpop.permute.xlu0 %5047
    %5049 = vrot.lane.b32.xlu0 %v4931, 32
    %v5050 = vpop.permute.xlu0 %5049
    %5051 = vrot.lane.b32.xlu0 %v4933, 32
    %v5052 = vpop.permute.xlu0 %5051
    %5053 = vrot.lane.b32.xlu0 %v4935, 32
    %v5054 = vpop.permute.xlu0 %5053
    %5055 = vrot.lane.b32.xlu0 %v4937, 32
    %v5056 = vpop.permute.xlu0 %5055
    %5057 = vrot.lane.b32.xlu0 %v4939, 32
    %v5058 = vpop.permute.xlu0 %5057
    %5059 = vrot.lane.b32.xlu0 %v4942, 32
    %v5060 = vpop.permute.xlu0 %5059
    %5061 = vrot.lane.b32.xlu0 %v4944, 32
    %v5062 = vpop.permute.xlu0 %5061
    %5063 = vrot.lane.b32.xlu0 %v4946, 32
    %v5064 = vpop.permute.xlu0 %5063
    %5065 = vrot.lane.b32.xlu0 %v4948, 32
    %v5066 = vpop.permute.xlu0 %5065
    %5067 = vrot.lane.b32.xlu0 %v4950, 32
    %v5068 = vpop.permute.xlu0 %5067
    %5069 = vrot.lane.b32.xlu0 %v4952, 32
    %v5070 = vpop.permute.xlu0 %5069
    %5071 = vrot.lane.b32.xlu0 %v4954, 32
    %v5072 = vpop.permute.xlu0 %5071
    %5073 = vrot.lane.b32.xlu0 %v4957, 32
    %v5074 = vpop.permute.xlu0 %5073
    %5075 = vrot.lane.b32.xlu0 %v4959, 32
    %v5076 = vpop.permute.xlu0 %5075
    %5077 = vrot.lane.b32.xlu0 %v4961, 32
    %v5078 = vpop.permute.xlu0 %5077
    %5079 = vrot.lane.b32.xlu0 %v4963, 32
    %v5080 = vpop.permute.xlu0 %5079
    %5081 = vrot.lane.b32.xlu0 %v4965, 32
    %v5082 = vpop.permute.xlu0 %5081
    %5083 = vrot.lane.b32.xlu0 %v4967, 32
    %v5084 = vpop.permute.xlu0 %5083
    %5085 = vrot.lane.b32.xlu0 %v4969, 32
    %v5086 = vpop.permute.xlu0 %5085
    %5087 = vrot.lane.b32.xlu0 %v4972, 32
    %v5088 = vpop.permute.xlu0 %5087
    %5089 = vrot.lane.b32.xlu0 %v4974, 32
    %v5090 = vpop.permute.xlu0 %5089
    %5091 = vrot.lane.b32.xlu0 %v4976, 32
    %v5092 = vpop.permute.xlu0 %5091
    %5093 = vrot.lane.b32.xlu0 %v4978, 32
    %v5094 = vpop.permute.xlu0 %5093
    %5095 = vrot.lane.b32.xlu0 %v4980, 32
    %v5096 = vpop.permute.xlu0 %5095
    %5097 = vrot.lane.b32.xlu0 %v4982, 32
    %v5098 = vpop.permute.xlu0 %5097
    %5099 = vrot.lane.b32.xlu0 %v4984, 32
    %v5100 = vpop.permute.xlu0 %5099
    %5101 = vrot.lane.b32.xlu0 %v4987, 32
    %v5102 = vpop.permute.xlu0 %5101
    %5103 = vrot.lane.b32.xlu0 %v4989, 32
    %v5104 = vpop.permute.xlu0 %5103
    %5105 = vrot.lane.b32.xlu0 %v4991, 32
    %v5106 = vpop.permute.xlu0 %5105
    %5107 = vrot.lane.b32.xlu0 %v4993, 32
    %v5108 = vpop.permute.xlu0 %5107
    %5109 = vrot.lane.b32.xlu0 %v4995, 32
    %v5110 = vpop.permute.xlu0 %5109
    %5111 = vrot.lane.b32.xlu0 %v4997, 32
    %v5112 = vpop.permute.xlu0 %5111
    %5113 = vrot.lane.b32.xlu0 %v4999, 32
    %v5114 = vpop.permute.xlu0 %5113
    %5115 = vrot.lane.b32.xlu0 %v5002, 32
    %v5116 = vpop.permute.xlu0 %5115
    %5117 = vrot.lane.b32.xlu0 %v5004, 32
    %v5118 = vpop.permute.xlu0 %5117
    %5119 = vrot.lane.b32.xlu0 %v5006, 32
    %v5120 = vpop.permute.xlu0 %5119
    %5121 = vrot.lane.b32.xlu0 %v5008, 32
    %v5122 = vpop.permute.xlu0 %5121
    %5123 = vrot.lane.b32.xlu0 %v5010, 32
    %v5124 = vpop.permute.xlu0 %5123
    %5125 = vrot.lane.b32.xlu0 %v5012, 32
    %v5126 = vpop.permute.xlu0 %5125
    %5127 = vrot.lane.b32.xlu0 %v5014, 32
    %v5128 = vpop.permute.xlu0 %5127
    %5129 = vrot.lane.b32.xlu0 %v5017, 32
    %v5130 = vpop.permute.xlu0 %5129
    %5131 = vrot.lane.b32.xlu0 %v5019, 32
    %v5132 = vpop.permute.xlu0 %5131
    %5133 = vrot.lane.b32.xlu0 %v5021, 32
    %v5134 = vpop.permute.xlu0 %5133
    %5135 = vrot.lane.b32.xlu0 %v5023, 32
    %v5136 = vpop.permute.xlu0 %5135
    %5137 = vrot.lane.b32.xlu0 %v5025, 32
    %v5138 = vpop.permute.xlu0 %5137
    %5139 = vrot.lane.b32.xlu0 %v5027, 32
    %v5140 = vpop.permute.xlu0 %5139
    %5141 = vrot.lane.b32.xlu0 %v5029, 32
    %v5142 = vpop.permute.xlu0 %5141
    %5143 = vrot.lane.b32.xlu0 %v5032, 32
    %v5144 = vpop.permute.xlu0 %5143
    %5145 = vrot.lane.b32.xlu0 %v5034, 32
    %v5146 = vpop.permute.xlu0 %5145
    %5147 = vrot.lane.b32.xlu0 %v5036, 32
    %v5148 = vpop.permute.xlu0 %5147
    %5149 = vrot.lane.b32.xlu0 %v5038, 32
    %v5150 = vpop.permute.xlu0 %5149
    %5151 = vrot.lane.b32.xlu0 %v5040, 32
    %v5152 = vpop.permute.xlu0 %5151
    %5153 = vrot.lane.b32.xlu0 %v5042, 32
    %v5154 = vpop.permute.xlu0 %5153
    %5155 = vrot.lane.b32.xlu0 %v5044, 32
    %v5156 = vpop.permute.xlu0 %5155
    %vm5213 = vcmask 1041408
    %v5214 = vrot.slane %v3752, 6
    %v5215 = vrot.slane %v3753, 6
    %v5216 = vsel %vm5213, %v5214, %v5215
    %v5217 = vrot.slane %v3754, 6
    %v5218 = vsel %vm5213, %v5215, %v5217
    %v5219 = vrot.slane %v3755, 6
    %v5220 = vsel %vm5213, %v5217, %v5219
    %v5221 = vrot.slane %v3756, 6
    %v5222 = vsel %vm5213, %v5219, %v5221
    %v5223 = vrot.slane %v3757, 6
    %v5224 = vsel %vm5213, %v5221, %v5223
    %v5225 = vrot.slane %v3758, 6
    %v5226 = vsel %vm5213, %v5223, %v5225
    %v5227 = vrot.slane %v3759, 6
    %v5228 = vsel %vm5213, %v5225, %v5227
    %v5229 = vrot.slane %v3760, 6
    %v5230 = vrot.slane %v3761, 6
    %v5231 = vsel %vm5213, %v5229, %v5230
    %v5232 = vrot.slane %v3762, 6
    %v5233 = vsel %vm5213, %v5230, %v5232
    %v5234 = vrot.slane %v3763, 6
    %v5235 = vsel %vm5213, %v5232, %v5234
    %v5236 = vrot.slane %v3764, 6
    %v5237 = vsel %vm5213, %v5234, %v5236
    %v5238 = vrot.slane %v3765, 6
    %v5239 = vsel %vm5213, %v5236, %v5238
    %v5240 = vrot.slane %v3766, 6
    %v5241 = vsel %vm5213, %v5238, %v5240
    %v5242 = vrot.slane %v3767, 6
    %v5243 = vsel %vm5213, %v5240, %v5242
    %v5244 = vrot.slane %v3768, 6
    %v5245 = vrot.slane %v3769, 6
    %v5246 = vsel %vm5213, %v5244, %v5245
    %v5247 = vrot.slane %v3770, 6
    %v5248 = vsel %vm5213, %v5245, %v5247
    %v5249 = vrot.slane %v3771, 6
    %v5250 = vsel %vm5213, %v5247, %v5249
    %v5251 = vrot.slane %v3772, 6
    %v5252 = vsel %vm5213, %v5249, %v5251
    %v5253 = vrot.slane %v3773, 6
    %v5254 = vsel %vm5213, %v5251, %v5253
    %v5255 = vrot.slane %v3774, 6
    %v5256 = vsel %vm5213, %v5253, %v5255
    %v5257 = vrot.slane %v3775, 6
    %v5258 = vsel %vm5213, %v5255, %v5257
    %v5259 = vrot.slane %v3776, 6
    %v5260 = vrot.slane %v3777, 6
    %v5261 = vsel %vm5213, %v5259, %v5260
    %v5262 = vrot.slane %v3778, 6
    %v5263 = vsel %vm5213, %v5260, %v5262
    %v5264 = vrot.slane %v3779, 6
    %v5265 = vsel %vm5213, %v5262, %v5264
    %v5266 = vrot.slane %v3780, 6
    %v5267 = vsel %vm5213, %v5264, %v5266
    %v5268 = vrot.slane %v3781, 6
    %v5269 = vsel %vm5213, %v5266, %v5268
    %v5270 = vrot.slane %v3782, 6
    %v5271 = vsel %vm5213, %v5268, %v5270
    %v5272 = vrot.slane %v3783, 6
    %v5273 = vsel %vm5213, %v5270, %v5272
    %v5274 = vrot.slane %v3784, 6
    %v5275 = vrot.slane %v3785, 6
    %v5276 = vsel %vm5213, %v5274, %v5275
    %v5277 = vrot.slane %v3786, 6
    %v5278 = vsel %vm5213, %v5275, %v5277
    %v5279 = vrot.slane %v3787, 6
    %v5280 = vsel %vm5213, %v5277, %v5279
    %v5281 = vrot.slane %v3788, 6
    %v5282 = vsel %vm5213, %v5279, %v5281
    %v5283 = vrot.slane %v3789, 6
    %v5284 = vsel %vm5213, %v5281, %v5283
    %v5285 = vrot.slane %v3790, 6
    %v5286 = vsel %vm5213, %v5283, %v5285
    %v5287 = vrot.slane %v3791, 6
    %v5288 = vsel %vm5213, %v5285, %v5287
    %v5289 = vrot.slane %v3792, 6
    %v5290 = vrot.slane %v3793, 6
    %v5291 = vsel %vm5213, %v5289, %v5290
    %v5292 = vrot.slane %v3794, 6
    %v5293 = vsel %vm5213, %v5290, %v5292
    %v5294 = vrot.slane %v3795, 6
    %v5295 = vsel %vm5213, %v5292, %v5294
    %v5296 = vrot.slane %v3796, 6
    %v5297 = vsel %vm5213, %v5294, %v5296
    %v5298 = vrot.slane %v3797, 6
    %v5299 = vsel %vm5213, %v5296, %v5298
    %v5300 = vrot.slane %v3798, 6
    %v5301 = vsel %vm5213, %v5298, %v5300
    %v5302 = vrot.slane %v3799, 6
    %v5303 = vsel %vm5213, %v5300, %v5302
    %v5304 = vrot.slane %v3800, 6
    %v5305 = vrot.slane %v3801, 6
    %v5306 = vsel %vm5213, %v5304, %v5305
    %v5307 = vrot.slane %v3802, 6
    %v5308 = vsel %vm5213, %v5305, %v5307
    %v5309 = vrot.slane %v3803, 6
    %v5310 = vsel %vm5213, %v5307, %v5309
    %v5311 = vrot.slane %v3804, 6
    %v5312 = vsel %vm5213, %v5309, %v5311
    %v5313 = vrot.slane %v3805, 6
    %v5314 = vsel %vm5213, %v5311, %v5313
    %v5315 = vrot.slane %v3806, 6
    %v5316 = vsel %vm5213, %v5313, %v5315
    %v5317 = vrot.slane %v3807, 6
    %v5318 = vsel %vm5213, %v5315, %v5317
    %v5319 = vrot.slane %v3808, 6
    %v5320 = vrot.slane %v3809, 6
    %v5321 = vsel %vm5213, %v5319, %v5320
    %v5322 = vrot.slane %v3810, 6
    %v5323 = vsel %vm5213, %v5320, %v5322
    %v5324 = vrot.slane %v3811, 6
    %v5325 = vsel %vm5213, %v5322, %v5324
    %v5326 = vrot.slane %v3812, 6
    %v5327 = vsel %vm5213, %v5324, %v5326
    %v5328 = vrot.slane %v3813, 6
    %v5329 = vsel %vm5213, %v5326, %v5328
    %v5330 = vrot.slane %v3814, 6
    %v5331 = vsel %vm5213, %v5328, %v5330
    %v5332 = vrot.slane %v3815, 6
    %v5333 = vsel %vm5213, %v5330, %v5332
    %5334 = vrot.lane.b32.xlu0 %v5216, 64
    %v5335 = vpop.permute.xlu0 %5334
    %5336 = vrot.lane.b32.xlu0 %v5218, 64
    %v5337 = vpop.permute.xlu0 %5336
    %5338 = vrot.lane.b32.xlu0 %v5220, 64
    %v5339 = vpop.permute.xlu0 %5338
    %5340 = vrot.lane.b32.xlu0 %v5222, 64
    %v5341 = vpop.permute.xlu0 %5340
    %5342 = vrot.lane.b32.xlu0 %v5224, 64
    %v5343 = vpop.permute.xlu0 %5342
    %5344 = vrot.lane.b32.xlu0 %v5226, 64
    %v5345 = vpop.permute.xlu0 %5344
    %5346 = vrot.lane.b32.xlu0 %v5228, 64
    %v5347 = vpop.permute.xlu0 %5346
    %5348 = vrot.lane.b32.xlu0 %v5231, 64
    %v5349 = vpop.permute.xlu0 %5348
    %5350 = vrot.lane.b32.xlu0 %v5233, 64
    %v5351 = vpop.permute.xlu0 %5350
    %5352 = vrot.lane.b32.xlu0 %v5235, 64
    %v5353 = vpop.permute.xlu0 %5352
    %5354 = vrot.lane.b32.xlu0 %v5237, 64
    %v5355 = vpop.permute.xlu0 %5354
    %5356 = vrot.lane.b32.xlu0 %v5239, 64
    %v5357 = vpop.permute.xlu0 %5356
    %5358 = vrot.lane.b32.xlu0 %v5241, 64
    %v5359 = vpop.permute.xlu0 %5358
    %5360 = vrot.lane.b32.xlu0 %v5243, 64
    %v5361 = vpop.permute.xlu0 %5360
    %5362 = vrot.lane.b32.xlu0 %v5246, 64
    %v5363 = vpop.permute.xlu0 %5362
    %5364 = vrot.lane.b32.xlu0 %v5248, 64
    %v5365 = vpop.permute.xlu0 %5364
    %5366 = vrot.lane.b32.xlu0 %v5250, 64
    %v5367 = vpop.permute.xlu0 %5366
    %5368 = vrot.lane.b32.xlu0 %v5252, 64
    %v5369 = vpop.permute.xlu0 %5368
    %5370 = vrot.lane.b32.xlu0 %v5254, 64
    %v5371 = vpop.permute.xlu0 %5370
    %5372 = vrot.lane.b32.xlu0 %v5256, 64
    %v5373 = vpop.permute.xlu0 %5372
    %5374 = vrot.lane.b32.xlu0 %v5258, 64
    %v5375 = vpop.permute.xlu0 %5374
    %5376 = vrot.lane.b32.xlu0 %v5261, 64
    %v5377 = vpop.permute.xlu0 %5376
    %5378 = vrot.lane.b32.xlu0 %v5263, 64
    %v5379 = vpop.permute.xlu0 %5378
    %5380 = vrot.lane.b32.xlu0 %v5265, 64
    %v5381 = vpop.permute.xlu0 %5380
    %5382 = vrot.lane.b32.xlu0 %v5267, 64
    %v5383 = vpop.permute.xlu0 %5382
    %5384 = vrot.lane.b32.xlu0 %v5269, 64
    %v5385 = vpop.permute.xlu0 %5384
    %5386 = vrot.lane.b32.xlu0 %v5271, 64
    %v5387 = vpop.permute.xlu0 %5386
    %5388 = vrot.lane.b32.xlu0 %v5273, 64
    %v5389 = vpop.permute.xlu0 %5388
    %5390 = vrot.lane.b32.xlu0 %v5276, 64
    %v5391 = vpop.permute.xlu0 %5390
    %5392 = vrot.lane.b32.xlu0 %v5278, 64
    %v5393 = vpop.permute.xlu0 %5392
    %5394 = vrot.lane.b32.xlu0 %v5280, 64
    %v5395 = vpop.permute.xlu0 %5394
    %5396 = vrot.lane.b32.xlu0 %v5282, 64
    %v5397 = vpop.permute.xlu0 %5396
    %5398 = vrot.lane.b32.xlu0 %v5284, 64
    %v5399 = vpop.permute.xlu0 %5398
    %5400 = vrot.lane.b32.xlu0 %v5286, 64
    %v5401 = vpop.permute.xlu0 %5400
    %5402 = vrot.lane.b32.xlu0 %v5288, 64
    %v5403 = vpop.permute.xlu0 %5402
    %5404 = vrot.lane.b32.xlu0 %v5291, 64
    %v5405 = vpop.permute.xlu0 %5404
    %5406 = vrot.lane.b32.xlu0 %v5293, 64
    %v5407 = vpop.permute.xlu0 %5406
    %5408 = vrot.lane.b32.xlu0 %v5295, 64
    %v5409 = vpop.permute.xlu0 %5408
    %5410 = vrot.lane.b32.xlu0 %v5297, 64
    %v5411 = vpop.permute.xlu0 %5410
    %5412 = vrot.lane.b32.xlu0 %v5299, 64
    %v5413 = vpop.permute.xlu0 %5412
    %5414 = vrot.lane.b32.xlu0 %v5301, 64
    %v5415 = vpop.permute.xlu0 %5414
    %5416 = vrot.lane.b32.xlu0 %v5303, 64
    %v5417 = vpop.permute.xlu0 %5416
    %5418 = vrot.lane.b32.xlu0 %v5306, 64
    %v5419 = vpop.permute.xlu0 %5418
    %5420 = vrot.lane.b32.xlu0 %v5308, 64
    %v5421 = vpop.permute.xlu0 %5420
    %5422 = vrot.lane.b32.xlu0 %v5310, 64
    %v5423 = vpop.permute.xlu0 %5422
    %5424 = vrot.lane.b32.xlu0 %v5312, 64
    %v5425 = vpop.permute.xlu0 %5424
    %5426 = vrot.lane.b32.xlu0 %v5314, 64
    %v5427 = vpop.permute.xlu0 %5426
    %5428 = vrot.lane.b32.xlu0 %v5316, 64
    %v5429 = vpop.permute.xlu0 %5428
    %5430 = vrot.lane.b32.xlu0 %v5318, 64
    %v5431 = vpop.permute.xlu0 %5430
    %5432 = vrot.lane.b32.xlu0 %v5321, 64
    %v5433 = vpop.permute.xlu0 %5432
    %5434 = vrot.lane.b32.xlu0 %v5323, 64
    %v5435 = vpop.permute.xlu0 %5434
    %5436 = vrot.lane.b32.xlu0 %v5325, 64
    %v5437 = vpop.permute.xlu0 %5436
    %5438 = vrot.lane.b32.xlu0 %v5327, 64
    %v5439 = vpop.permute.xlu0 %5438
    %5440 = vrot.lane.b32.xlu0 %v5329, 64
    %v5441 = vpop.permute.xlu0 %5440
    %5442 = vrot.lane.b32.xlu0 %v5331, 64
    %v5443 = vpop.permute.xlu0 %5442
    %5444 = vrot.lane.b32.xlu0 %v5333, 64
    %v5445 = vpop.permute.xlu0 %5444
    %vm5502 = vcmask 1040384
    %v5503 = vrot.slane %v3752, 7
    %v5504 = vrot.slane %v3753, 7
    %v5505 = vsel %vm5502, %v5503, %v5504
    %v5506 = vrot.slane %v3754, 7
    %v5507 = vsel %vm5502, %v5504, %v5506
    %v5508 = vrot.slane %v3755, 7
    %v5509 = vsel %vm5502, %v5506, %v5508
    %v5510 = vrot.slane %v3756, 7
    %v5511 = vsel %vm5502, %v5508, %v5510
    %v5512 = vrot.slane %v3757, 7
    %v5513 = vsel %vm5502, %v5510, %v5512
    %v5514 = vrot.slane %v3758, 7
    %v5515 = vsel %vm5502, %v5512, %v5514
    %v5516 = vrot.slane %v3759, 7
    %v5517 = vsel %vm5502, %v5514, %v5516
    %v5518 = vrot.slane %v3760, 7
    %v5519 = vrot.slane %v3761, 7
    %v5520 = vsel %vm5502, %v5518, %v5519
    %v5521 = vrot.slane %v3762, 7
    %v5522 = vsel %vm5502, %v5519, %v5521
    %v5523 = vrot.slane %v3763, 7
    %v5524 = vsel %vm5502, %v5521, %v5523
    %v5525 = vrot.slane %v3764, 7
    %v5526 = vsel %vm5502, %v5523, %v5525
    %v5527 = vrot.slane %v3765, 7
    %v5528 = vsel %vm5502, %v5525, %v5527
    %v5529 = vrot.slane %v3766, 7
    %v5530 = vsel %vm5502, %v5527, %v5529
    %v5531 = vrot.slane %v3767, 7
    %v5532 = vsel %vm5502, %v5529, %v5531
    %v5533 = vrot.slane %v3768, 7
    %v5534 = vrot.slane %v3769, 7
    %v5535 = vsel %vm5502, %v5533, %v5534
    %v5536 = vrot.slane %v3770, 7
    %v5537 = vsel %vm5502, %v5534, %v5536
    %v5538 = vrot.slane %v3771, 7
    %v5539 = vsel %vm5502, %v5536, %v5538
    %v5540 = vrot.slane %v3772, 7
    %v5541 = vsel %vm5502, %v5538, %v5540
    %v5542 = vrot.slane %v3773, 7
    %v5543 = vsel %vm5502, %v5540, %v5542
    %v5544 = vrot.slane %v3774, 7
    %v5545 = vsel %vm5502, %v5542, %v5544
    %v5546 = vrot.slane %v3775, 7
    %v5547 = vsel %vm5502, %v5544, %v5546
    %v5548 = vrot.slane %v3776, 7
    %v5549 = vrot.slane %v3777, 7
    %v5550 = vsel %vm5502, %v5548, %v5549
    %v5551 = vrot.slane %v3778, 7
    %v5552 = vsel %vm5502, %v5549, %v5551
    %v5553 = vrot.slane %v3779, 7
    %v5554 = vsel %vm5502, %v5551, %v5553
    %v5555 = vrot.slane %v3780, 7
    %v5556 = vsel %vm5502, %v5553, %v5555
    %v5557 = vrot.slane %v3781, 7
    %v5558 = vsel %vm5502, %v5555, %v5557
    %v5559 = vrot.slane %v3782, 7
    %v5560 = vsel %vm5502, %v5557, %v5559
    %v5561 = vrot.slane %v3783, 7
    %v5562 = vsel %vm5502, %v5559, %v5561
    %v5563 = vrot.slane %v3784, 7
    %v5564 = vrot.slane %v3785, 7
    %v5565 = vsel %vm5502, %v5563, %v5564
    %v5566 = vrot.slane %v3786, 7
    %v5567 = vsel %vm5502, %v5564, %v5566
    %v5568 = vrot.slane %v3787, 7
    %v5569 = vsel %vm5502, %v5566, %v5568
    %v5570 = vrot.slane %v3788, 7
    %v5571 = vsel %vm5502, %v5568, %v5570
    %v5572 = vrot.slane %v3789, 7
    %v5573 = vsel %vm5502, %v5570, %v5572
    %v5574 = vrot.slane %v3790, 7
    %v5575 = vsel %vm5502, %v5572, %v5574
    %v5576 = vrot.slane %v3791, 7
    %v5577 = vsel %vm5502, %v5574, %v5576
    %v5578 = vrot.slane %v3792, 7
    %v5579 = vrot.slane %v3793, 7
    %v5580 = vsel %vm5502, %v5578, %v5579
    %v5581 = vrot.slane %v3794, 7
    %v5582 = vsel %vm5502, %v5579, %v5581
    %v5583 = vrot.slane %v3795, 7
    %v5584 = vsel %vm5502, %v5581, %v5583
    %v5585 = vrot.slane %v3796, 7
    %v5586 = vsel %vm5502, %v5583, %v5585
    %v5587 = vrot.slane %v3797, 7
    %v5588 = vsel %vm5502, %v5585, %v5587
    %v5589 = vrot.slane %v3798, 7
    %v5590 = vsel %vm5502, %v5587, %v5589
    %v5591 = vrot.slane %v3799, 7
    %v5592 = vsel %vm5502, %v5589, %v5591
    %v5593 = vrot.slane %v3800, 7
    %v5594 = vrot.slane %v3801, 7
    %v5595 = vsel %vm5502, %v5593, %v5594
    %v5596 = vrot.slane %v3802, 7
    %v5597 = vsel %vm5502, %v5594, %v5596
    %v5598 = vrot.slane %v3803, 7
    %v5599 = vsel %vm5502, %v5596, %v5598
    %v5600 = vrot.slane %v3804, 7
    %v5601 = vsel %vm5502, %v5598, %v5600
    %v5602 = vrot.slane %v3805, 7
    %v5603 = vsel %vm5502, %v5600, %v5602
    %v5604 = vrot.slane %v3806, 7
    %v5605 = vsel %vm5502, %v5602, %v5604
    %v5606 = vrot.slane %v3807, 7
    %v5607 = vsel %vm5502, %v5604, %v5606
    %v5608 = vrot.slane %v3808, 7
    %v5609 = vrot.slane %v3809, 7
    %v5610 = vsel %vm5502, %v5608, %v5609
    %v5611 = vrot.slane %v3810, 7
    %v5612 = vsel %vm5502, %v5609, %v5611
    %v5613 = vrot.slane %v3811, 7
    %v5614 = vsel %vm5502, %v5611, %v5613
    %v5615 = vrot.slane %v3812, 7
    %v5616 = vsel %vm5502, %v5613, %v5615
    %v5617 = vrot.slane %v3813, 7
    %v5618 = vsel %vm5502, %v5615, %v5617
    %v5619 = vrot.slane %v3814, 7
    %v5620 = vsel %vm5502, %v5617, %v5619
    %v5621 = vrot.slane %v3815, 7
    %v5622 = vsel %vm5502, %v5619, %v5621
    %5623 = vrot.lane.b32.xlu0 %v5505, 96
    %v5624 = vpop.permute.xlu0 %5623
    %5625 = vrot.lane.b32.xlu0 %v5507, 96
    %v5626 = vpop.permute.xlu0 %5625
    %5627 = vrot.lane.b32.xlu0 %v5509, 96
    %v5628 = vpop.permute.xlu0 %5627
    %5629 = vrot.lane.b32.xlu0 %v5511, 96
    %v5630 = vpop.permute.xlu0 %5629
    %5631 = vrot.lane.b32.xlu0 %v5513, 96
    %v5632 = vpop.permute.xlu0 %5631
    %5633 = vrot.lane.b32.xlu0 %v5515, 96
    %v5634 = vpop.permute.xlu0 %5633
    %5635 = vrot.lane.b32.xlu0 %v5517, 96
    %v5636 = vpop.permute.xlu0 %5635
    %5637 = vrot.lane.b32.xlu0 %v5520, 96
    %v5638 = vpop.permute.xlu0 %5637
    %5639 = vrot.lane.b32.xlu0 %v5522, 96
    %v5640 = vpop.permute.xlu0 %5639
    %5641 = vrot.lane.b32.xlu0 %v5524, 96
    %v5642 = vpop.permute.xlu0 %5641
    %5643 = vrot.lane.b32.xlu0 %v5526, 96
    %v5644 = vpop.permute.xlu0 %5643
    %5645 = vrot.lane.b32.xlu0 %v5528, 96
    %v5646 = vpop.permute.xlu0 %5645
    %5647 = vrot.lane.b32.xlu0 %v5530, 96
    %v5648 = vpop.permute.xlu0 %5647
    %5649 = vrot.lane.b32.xlu0 %v5532, 96
    %v5650 = vpop.permute.xlu0 %5649
    %5651 = vrot.lane.b32.xlu0 %v5535, 96
    %v5652 = vpop.permute.xlu0 %5651
    %5653 = vrot.lane.b32.xlu0 %v5537, 96
    %v5654 = vpop.permute.xlu0 %5653
    %5655 = vrot.lane.b32.xlu0 %v5539, 96
    %v5656 = vpop.permute.xlu0 %5655
    %5657 = vrot.lane.b32.xlu0 %v5541, 96
    %v5658 = vpop.permute.xlu0 %5657
    %5659 = vrot.lane.b32.xlu0 %v5543, 96
    %v5660 = vpop.permute.xlu0 %5659
    %5661 = vrot.lane.b32.xlu0 %v5545, 96
    %v5662 = vpop.permute.xlu0 %5661
    %5663 = vrot.lane.b32.xlu0 %v5547, 96
    %v5664 = vpop.permute.xlu0 %5663
    %5665 = vrot.lane.b32.xlu0 %v5550, 96
    %v5666 = vpop.permute.xlu0 %5665
    %5667 = vrot.lane.b32.xlu0 %v5552, 96
    %v5668 = vpop.permute.xlu0 %5667
    %5669 = vrot.lane.b32.xlu0 %v5554, 96
    %v5670 = vpop.permute.xlu0 %5669
    %5671 = vrot.lane.b32.xlu0 %v5556, 96
    %v5672 = vpop.permute.xlu0 %5671
    %5673 = vrot.lane.b32.xlu0 %v5558, 96
    %v5674 = vpop.permute.xlu0 %5673
    %5675 = vrot.lane.b32.xlu0 %v5560, 96
    %v5676 = vpop.permute.xlu0 %5675
    %5677 = vrot.lane.b32.xlu0 %v5562, 96
    %v5678 = vpop.permute.xlu0 %5677
    %5679 = vrot.lane.b32.xlu0 %v5565, 96
    %v5680 = vpop.permute.xlu0 %5679
    %5681 = vrot.lane.b32.xlu0 %v5567, 96
    %v5682 = vpop.permute.xlu0 %5681
    %5683 = vrot.lane.b32.xlu0 %v5569, 96
    %v5684 = vpop.permute.xlu0 %5683
    %5685 = vrot.lane.b32.xlu0 %v5571, 96
    %v5686 = vpop.permute.xlu0 %5685
    %5687 = vrot.lane.b32.xlu0 %v5573, 96
    %v5688 = vpop.permute.xlu0 %5687
    %5689 = vrot.lane.b32.xlu0 %v5575, 96
    %v5690 = vpop.permute.xlu0 %5689
    %5691 = vrot.lane.b32.xlu0 %v5577, 96
    %v5692 = vpop.permute.xlu0 %5691
    %5693 = vrot.lane.b32.xlu0 %v5580, 96
    %v5694 = vpop.permute.xlu0 %5693
    %5695 = vrot.lane.b32.xlu0 %v5582, 96
    %v5696 = vpop.permute.xlu0 %5695
    %5697 = vrot.lane.b32.xlu0 %v5584, 96
    %v5698 = vpop.permute.xlu0 %5697
    %5699 = vrot.lane.b32.xlu0 %v5586, 96
    %v5700 = vpop.permute.xlu0 %5699
    %5701 = vrot.lane.b32.xlu0 %v5588, 96
    %v5702 = vpop.permute.xlu0 %5701
    %5703 = vrot.lane.b32.xlu0 %v5590, 96
    %v5704 = vpop.permute.xlu0 %5703
    %5705 = vrot.lane.b32.xlu0 %v5592, 96
    %v5706 = vpop.permute.xlu0 %5705
    %5707 = vrot.lane.b32.xlu0 %v5595, 96
    %v5708 = vpop.permute.xlu0 %5707
    %5709 = vrot.lane.b32.xlu0 %v5597, 96
    %v5710 = vpop.permute.xlu0 %5709
    %5711 = vrot.lane.b32.xlu0 %v5599, 96
    %v5712 = vpop.permute.xlu0 %5711
    %5713 = vrot.lane.b32.xlu0 %v5601, 96
    %v5714 = vpop.permute.xlu0 %5713
    %5715 = vrot.lane.b32.xlu0 %v5603, 96
    %v5716 = vpop.permute.xlu0 %5715
    %5717 = vrot.lane.b32.xlu0 %v5605, 96
    %v5718 = vpop.permute.xlu0 %5717
    %5719 = vrot.lane.b32.xlu0 %v5607, 96
    %v5720 = vpop.permute.xlu0 %5719
    %5721 = vrot.lane.b32.xlu0 %v5610, 96
    %v5722 = vpop.permute.xlu0 %5721
    %5723 = vrot.lane.b32.xlu0 %v5612, 96
    %v5724 = vpop.permute.xlu0 %5723
    %5725 = vrot.lane.b32.xlu0 %v5614, 96
    %v5726 = vpop.permute.xlu0 %5725
    %5727 = vrot.lane.b32.xlu0 %v5616, 96
    %v5728 = vpop.permute.xlu0 %5727
    %5729 = vrot.lane.b32.xlu0 %v5618, 96
    %v5730 = vpop.permute.xlu0 %5729
    %5731 = vrot.lane.b32.xlu0 %v5620, 96
    %v5732 = vpop.permute.xlu0 %5731
    %5733 = vrot.lane.b32.xlu0 %v5622, 96
    %v5734 = vpop.permute.xlu0 %5733
    %v5791 = vsel %vm3331, %v3752, %v4002
    %v5792 = vsel %vm3331, %v3753, %v4004
    %v5793 = vsel %vm3331, %v3754, %v4006
    %v5794 = vsel %vm3331, %v3755, %v4008
    %v5795 = vsel %vm3331, %v3756, %v4010
    %v5796 = vsel %vm3331, %v3757, %v4012
    %v5797 = vsel %vm3331, %v3758, %v4014
    %v5798 = vsel %vm3331, %v3760, %v4016
    %v5799 = vsel %vm3331, %v3761, %v4018
    %v5800 = vsel %vm3331, %v3762, %v4020
    %v5801 = vsel %vm3331, %v3763, %v4022
    %v5802 = vsel %vm3331, %v3764, %v4024
    %v5803 = vsel %vm3331, %v3765, %v4026
    %v5804 = vsel %vm3331, %v3766, %v4028
    %v5805 = vsel %vm3331, %v3768, %v4030
    %v5806 = vsel %vm3331, %v3769, %v4032
    %v5807 = vsel %vm3331, %v3770, %v4034
    %v5808 = vsel %vm3331, %v3771, %v4036
    %v5809 = vsel %vm3331, %v3772, %v4038
    %v5810 = vsel %vm3331, %v3773, %v4040
    %v5811 = vsel %vm3331, %v3774, %v4042
    %v5812 = vsel %vm3331, %v3776, %v4044
    %v5813 = vsel %vm3331, %v3777, %v4046
    %v5814 = vsel %vm3331, %v3778, %v4048
    %v5815 = vsel %vm3331, %v3779, %v4050
    %v5816 = vsel %vm3331, %v3780, %v4052
    %v5817 = vsel %vm3331, %v3781, %v4054
    %v5818 = vsel %vm3331, %v3782, %v4056
    %v5819 = vsel %vm3331, %v3784, %v4058
    %v5820 = vsel %vm3331, %v3785, %v4060
    %v5821 = vsel %vm3331, %v3786, %v4062
    %v5822 = vsel %vm3331, %v3787, %v4064
    %v5823 = vsel %vm3331, %v3788, %v4066
    %v5824 = vsel %vm3331, %v3789, %v4068
    %v5825 = vsel %vm3331, %v3790, %v4070
    %v5826 = vsel %vm3331, %v3792, %v4072
    %v5827 = vsel %vm3331, %v3793, %v4074
    %v5828 = vsel %vm3331, %v3794, %v4076
    %v5829 = vsel %vm3331, %v3795, %v4078
    %v5830 = vsel %vm3331, %v3796, %v4080
    %v5831 = vsel %vm3331, %v3797, %v4082
    %v5832 = vsel %vm3331, %v3798, %v4084
    %v5833 = vsel %vm3331, %v3800, %v4086
    %v5834 = vsel %vm3331, %v3801, %v4088
    %v5835 = vsel %vm3331, %v3802, %v4090
    %v5836 = vsel %vm3331, %v3803, %v4092
    %v5837 = vsel %vm3331, %v3804, %v4094
    %v5838 = vsel %vm3331, %v3805, %v4096
    %v5839 = vsel %vm3331, %v3806, %v4098
    %v5840 = vsel %vm3331, %v3808, %v4100
    %v5841 = vsel %vm3331, %v3809, %v4102
    %v5842 = vsel %vm3331, %v3810, %v4104
    %v5843 = vsel %vm3331, %v3811, %v4106
    %v5844 = vsel %vm3331, %v3812, %v4108
    %v5845 = vsel %vm3331, %v3813, %v4110
    %v5846 = vsel %vm3331, %v3814, %v4112
    %vm5847 = vcmask 523264
    %v5848 = vsel %vm5847, %v5791, %v4291
    %v5849 = vsel %vm5847, %v5792, %v4293
    %v5850 = vsel %vm5847, %v5793, %v4295
    %v5851 = vsel %vm5847, %v5794, %v4297
    %v5852 = vsel %vm5847, %v5795, %v4299
    %v5853 = vsel %vm5847, %v5796, %v4301
    %v5854 = vsel %vm5847, %v5797, %v4303
    %v5855 = vsel %vm5847, %v5798, %v4305
    %v5856 = vsel %vm5847, %v5799, %v4307
    %v5857 = vsel %vm5847, %v5800, %v4309
    %v5858 = vsel %vm5847, %v5801, %v4311
    %v5859 = vsel %vm5847, %v5802, %v4313
    %v5860 = vsel %vm5847, %v5803, %v4315
    %v5861 = vsel %vm5847, %v5804, %v4317
    %v5862 = vsel %vm5847, %v5805, %v4319
    %v5863 = vsel %vm5847, %v5806, %v4321
    %v5864 = vsel %vm5847, %v5807, %v4323
    %v5865 = vsel %vm5847, %v5808, %v4325
    %v5866 = vsel %vm5847, %v5809, %v4327
    %v5867 = vsel %vm5847, %v5810, %v4329
    %v5868 = vsel %vm5847, %v5811, %v4331
    %v5869 = vsel %vm5847, %v5812, %v4333
    %v5870 = vsel %vm5847, %v5813, %v4335
    %v5871 = vsel %vm5847, %v5814, %v4337
    %v5872 = vsel %vm5847, %v5815, %v4339
    %v5873 = vsel %vm5847, %v5816, %v4341
    %v5874 = vsel %vm5847, %v5817, %v4343
    %v5875 = vsel %vm5847, %v5818, %v4345
    %v5876 = vsel %vm5847, %v5819, %v4347
    %v5877 = vsel %vm5847, %v5820, %v4349
    %v5878 = vsel %vm5847, %v5821, %v4351
    %v5879 = vsel %vm5847, %v5822, %v4353
    %v5880 = vsel %vm5847, %v5823, %v4355
    %v5881 = vsel %vm5847, %v5824, %v4357
    %v5882 = vsel %vm5847, %v5825, %v4359
    %v5883 = vsel %vm5847, %v5826, %v4361
    %v5884 = vsel %vm5847, %v5827, %v4363
    %v5885 = vsel %vm5847, %v5828, %v4365
    %v5886 = vsel %vm5847, %v5829, %v4367
    %v5887 = vsel %vm5847, %v5830, %v4369
    %v5888 = vsel %vm5847, %v5831, %v4371
    %v5889 = vsel %vm5847, %v5832, %v4373
    %v5890 = vsel %vm5847, %v5833, %v4375
    %v5891 = vsel %vm5847, %v5834, %v4377
    %v5892 = vsel %vm5847, %v5835, %v4379
    %v5893 = vsel %vm5847, %v5836, %v4381
    %v5894 = vsel %vm5847, %v5837, %v4383
    %v5895 = vsel %vm5847, %v5838, %v4385
    %v5896 = vsel %vm5847, %v5839, %v4387
    %v5897 = vsel %vm5847, %v5840, %v4389
    %v5898 = vsel %vm5847, %v5841, %v4391
    %v5899 = vsel %vm5847, %v5842, %v4393
    %v5900 = vsel %vm5847, %v5843, %v4395
    %v5901 = vsel %vm5847, %v5844, %v4397
    %v5902 = vsel %vm5847, %v5845, %v4399
    %v5903 = vsel %vm5847, %v5846, %v4401
    %vm5904 = vcmask 785408
    %v5905 = vsel %vm5904, %v5848, %v4580
    %v5906 = vsel %vm5904, %v5849, %v4582
    %v5907 = vsel %vm5904, %v5850, %v4584
    %v5908 = vsel %vm5904, %v5851, %v4586
    %v5909 = vsel %vm5904, %v5852, %v4588
    %v5910 = vsel %vm5904, %v5853, %v4590
    %v5911 = vsel %vm5904, %v5854, %v4592
    %v5912 = vsel %vm5904, %v5855, %v4594
    %v5913 = vsel %vm5904, %v5856, %v4596
    %v5914 = vsel %vm5904, %v5857, %v4598
    %v5915 = vsel %vm5904, %v5858, %v4600
    %v5916 = vsel %vm5904, %v5859, %v4602
    %v5917 = vsel %vm5904, %v5860, %v4604
    %v5918 = vsel %vm5904, %v5861, %v4606
    %v5919 = vsel %vm5904, %v5862, %v4608
    %v5920 = vsel %vm5904, %v5863, %v4610
    %v5921 = vsel %vm5904, %v5864, %v4612
    %v5922 = vsel %vm5904, %v5865, %v4614
    %v5923 = vsel %vm5904, %v5866, %v4616
    %v5924 = vsel %vm5904, %v5867, %v4618
    %v5925 = vsel %vm5904, %v5868, %v4620
    %v5926 = vsel %vm5904, %v5869, %v4622
    %v5927 = vsel %vm5904, %v5870, %v4624
    %v5928 = vsel %vm5904, %v5871, %v4626
    %v5929 = vsel %vm5904, %v5872, %v4628
    %v5930 = vsel %vm5904, %v5873, %v4630
    %v5931 = vsel %vm5904, %v5874, %v4632
    %v5932 = vsel %vm5904, %v5875, %v4634
    %v5933 = vsel %vm5904, %v5876, %v4636
    %v5934 = vsel %vm5904, %v5877, %v4638
    %v5935 = vsel %vm5904, %v5878, %v4640
    %v5936 = vsel %vm5904, %v5879, %v4642
    %v5937 = vsel %vm5904, %v5880, %v4644
    %v5938 = vsel %vm5904, %v5881, %v4646
    %v5939 = vsel %vm5904, %v5882, %v4648
    %v5940 = vsel %vm5904, %v5883, %v4650
    %v5941 = vsel %vm5904, %v5884, %v4652
    %v5942 = vsel %vm5904, %v5885, %v4654
    %v5943 = vsel %vm5904, %v5886, %v4656
    %v5944 = vsel %vm5904, %v5887, %v4658
    %v5945 = vsel %vm5904, %v5888, %v4660
    %v5946 = vsel %vm5904, %v5889, %v4662
    %v5947 = vsel %vm5904, %v5890, %v4664
    %v5948 = vsel %vm5904, %v5891, %v4666
    %v5949 = vsel %vm5904, %v5892, %v4668
    %v5950 = vsel %vm5904, %v5893, %v4670
    %v5951 = vsel %vm5904, %v5894, %v4672
    %v5952 = vsel %vm5904, %v5895, %v4674
    %v5953 = vsel %vm5904, %v5896, %v4676
    %v5954 = vsel %vm5904, %v5897, %v4678
    %v5955 = vsel %vm5904, %v5898, %v4680
    %v5956 = vsel %vm5904, %v5899, %v4682
    %v5957 = vsel %vm5904, %v5900, %v4684
    %v5958 = vsel %vm5904, %v5901, %v4686
    %v5959 = vsel %vm5904, %v5902, %v4688
    %v5960 = vsel %vm5904, %v5903, %v4690
    %v5961 = vsel %vm3331, %v4750, %v5046
    %v5962 = vsel %vm3331, %v4752, %v5048
    %v5963 = vsel %vm3331, %v4754, %v5050
    %v5964 = vsel %vm3331, %v4756, %v5052
    %v5965 = vsel %vm3331, %v4758, %v5054
    %v5966 = vsel %vm3331, %v4760, %v5056
    %v5967 = vsel %vm3331, %v4762, %v5058
    %v5968 = vsel %vm3331, %v4765, %v5060
    %v5969 = vsel %vm3331, %v4767, %v5062
    %v5970 = vsel %vm3331, %v4769, %v5064
    %v5971 = vsel %vm3331, %v4771, %v5066
    %v5972 = vsel %vm3331, %v4773, %v5068
    %v5973 = vsel %vm3331, %v4775, %v5070
    %v5974 = vsel %vm3331, %v4777, %v5072
    %v5975 = vsel %vm3331, %v4780, %v5074
    %v5976 = vsel %vm3331, %v4782, %v5076
    %v5977 = vsel %vm3331, %v4784, %v5078
    %v5978 = vsel %vm3331, %v4786, %v5080
    %v5979 = vsel %vm3331, %v4788, %v5082
    %v5980 = vsel %vm3331, %v4790, %v5084
    %v5981 = vsel %vm3331, %v4792, %v5086
    %v5982 = vsel %vm3331, %v4795, %v5088
    %v5983 = vsel %vm3331, %v4797, %v5090
    %v5984 = vsel %vm3331, %v4799, %v5092
    %v5985 = vsel %vm3331, %v4801, %v5094
    %v5986 = vsel %vm3331, %v4803, %v5096
    %v5987 = vsel %vm3331, %v4805, %v5098
    %v5988 = vsel %vm3331, %v4807, %v5100
    %v5989 = vsel %vm3331, %v4810, %v5102
    %v5990 = vsel %vm3331, %v4812, %v5104
    %v5991 = vsel %vm3331, %v4814, %v5106
    %v5992 = vsel %vm3331, %v4816, %v5108
    %v5993 = vsel %vm3331, %v4818, %v5110
    %v5994 = vsel %vm3331, %v4820, %v5112
    %v5995 = vsel %vm3331, %v4822, %v5114
    %v5996 = vsel %vm3331, %v4825, %v5116
    %v5997 = vsel %vm3331, %v4827, %v5118
    %v5998 = vsel %vm3331, %v4829, %v5120
    %v5999 = vsel %vm3331, %v4831, %v5122
    %v6000 = vsel %vm3331, %v4833, %v5124
    %v6001 = vsel %vm3331, %v4835, %v5126
    %v6002 = vsel %vm3331, %v4837, %v5128
    %v6003 = vsel %vm3331, %v4840, %v5130
    %v6004 = vsel %vm3331, %v4842, %v5132
    %v6005 = vsel %vm3331, %v4844, %v5134
    %v6006 = vsel %vm3331, %v4846, %v5136
    %v6007 = vsel %vm3331, %v4848, %v5138
    %v6008 = vsel %vm3331, %v4850, %v5140
    %v6009 = vsel %vm3331, %v4852, %v5142
    %v6010 = vsel %vm3331, %v4855, %v5144
    %v6011 = vsel %vm3331, %v4857, %v5146
    %v6012 = vsel %vm3331, %v4859, %v5148
    %v6013 = vsel %vm3331, %v4861, %v5150
    %v6014 = vsel %vm3331, %v4863, %v5152
    %v6015 = vsel %vm3331, %v4865, %v5154
    %v6016 = vsel %vm3331, %v4867, %v5156
    %v6017 = vsel %vm5847, %v5961, %v5335
    %v6018 = vsel %vm5847, %v5962, %v5337
    %v6019 = vsel %vm5847, %v5963, %v5339
    %v6020 = vsel %vm5847, %v5964, %v5341
    %v6021 = vsel %vm5847, %v5965, %v5343
    %v6022 = vsel %vm5847, %v5966, %v5345
    %v6023 = vsel %vm5847, %v5967, %v5347
    %v6024 = vsel %vm5847, %v5968, %v5349
    %v6025 = vsel %vm5847, %v5969, %v5351
    %v6026 = vsel %vm5847, %v5970, %v5353
    %v6027 = vsel %vm5847, %v5971, %v5355
    %v6028 = vsel %vm5847, %v5972, %v5357
    %v6029 = vsel %vm5847, %v5973, %v5359
    %v6030 = vsel %vm5847, %v5974, %v5361
    %v6031 = vsel %vm5847, %v5975, %v5363
    %v6032 = vsel %vm5847, %v5976, %v5365
    %v6033 = vsel %vm5847, %v5977, %v5367
    %v6034 = vsel %vm5847, %v5978, %v5369
    %v6035 = vsel %vm5847, %v5979, %v5371
    %v6036 = vsel %vm5847, %v5980, %v5373
    %v6037 = vsel %vm5847, %v5981, %v5375
    %v6038 = vsel %vm5847, %v5982, %v5377
    %v6039 = vsel %vm5847, %v5983, %v5379
    %v6040 = vsel %vm5847, %v5984, %v5381
    %v6041 = vsel %vm5847, %v5985, %v5383
    %v6042 = vsel %vm5847, %v5986, %v5385
    %v6043 = vsel %vm5847, %v5987, %v5387
    %v6044 = vsel %vm5847, %v5988, %v5389
    %v6045 = vsel %vm5847, %v5989, %v5391
    %v6046 = vsel %vm5847, %v5990, %v5393
    %v6047 = vsel %vm5847, %v5991, %v5395
    %v6048 = vsel %vm5847, %v5992, %v5397
    %v6049 = vsel %vm5847, %v5993, %v5399
    %v6050 = vsel %vm5847, %v5994, %v5401
    %v6051 = vsel %vm5847, %v5995, %v5403
    %v6052 = vsel %vm5847, %v5996, %v5405
    %v6053 = vsel %vm5847, %v5997, %v5407
    %v6054 = vsel %vm5847, %v5998, %v5409
    %v6055 = vsel %vm5847, %v5999, %v5411
    %v6056 = vsel %vm5847, %v6000, %v5413
    %v6057 = vsel %vm5847, %v6001, %v5415
    %v6058 = vsel %vm5847, %v6002, %v5417
    %v6059 = vsel %vm5847, %v6003, %v5419
    %v6060 = vsel %vm5847, %v6004, %v5421
    %v6061 = vsel %vm5847, %v6005, %v5423
    %v6062 = vsel %vm5847, %v6006, %v5425
    %v6063 = vsel %vm5847, %v6007, %v5427
    %v6064 = vsel %vm5847, %v6008, %v5429
    %v6065 = vsel %vm5847, %v6009, %v5431
    %v6066 = vsel %vm5847, %v6010, %v5433
    %v6067 = vsel %vm5847, %v6011, %v5435
    %v6068 = vsel %vm5847, %v6012, %v5437
    %v6069 = vsel %vm5847, %v6013, %v5439
    %v6070 = vsel %vm5847, %v6014, %v5441
    %v6071 = vsel %vm5847, %v6015, %v5443
    %v6072 = vsel %vm5847, %v6016, %v5445
    %v6073 = vsel %vm5904, %v6017, %v5624
    %v6074 = vsel %vm5904, %v6018, %v5626
    %v6075 = vsel %vm5904, %v6019, %v5628
    %v6076 = vsel %vm5904, %v6020, %v5630
    %v6077 = vsel %vm5904, %v6021, %v5632
    %v6078 = vsel %vm5904, %v6022, %v5634
    %v6079 = vsel %vm5904, %v6023, %v5636
    %v6080 = vsel %vm5904, %v6024, %v5638
    %v6081 = vsel %vm5904, %v6025, %v5640
    %v6082 = vsel %vm5904, %v6026, %v5642
    %v6083 = vsel %vm5904, %v6027, %v5644
    %v6084 = vsel %vm5904, %v6028, %v5646
    %v6085 = vsel %vm5904, %v6029, %v5648
    %v6086 = vsel %vm5904, %v6030, %v5650
    %v6087 = vsel %vm5904, %v6031, %v5652
    %v6088 = vsel %vm5904, %v6032, %v5654
    %v6089 = vsel %vm5904, %v6033, %v5656
    %v6090 = vsel %vm5904, %v6034, %v5658
    %v6091 = vsel %vm5904, %v6035, %v5660
    %v6092 = vsel %vm5904, %v6036, %v5662
    %v6093 = vsel %vm5904, %v6037, %v5664
    %v6094 = vsel %vm5904, %v6038, %v5666
    %v6095 = vsel %vm5904, %v6039, %v5668
    %v6096 = vsel %vm5904, %v6040, %v5670
    %v6097 = vsel %vm5904, %v6041, %v5672
    %v6098 = vsel %vm5904, %v6042, %v5674
    %v6099 = vsel %vm5904, %v6043, %v5676
    %v6100 = vsel %vm5904, %v6044, %v5678
    %v6101 = vsel %vm5904, %v6045, %v5680
    %v6102 = vsel %vm5904, %v6046, %v5682
    %v6103 = vsel %vm5904, %v6047, %v5684
    %v6104 = vsel %vm5904, %v6048, %v5686
    %v6105 = vsel %vm5904, %v6049, %v5688
    %v6106 = vsel %vm5904, %v6050, %v5690
    %v6107 = vsel %vm5904, %v6051, %v5692
    %v6108 = vsel %vm5904, %v6052, %v5694
    %v6109 = vsel %vm5904, %v6053, %v5696
    %v6110 = vsel %vm5904, %v6054, %v5698
    %v6111 = vsel %vm5904, %v6055, %v5700
    %v6112 = vsel %vm5904, %v6056, %v5702
    %v6113 = vsel %vm5904, %v6057, %v5704
    %v6114 = vsel %vm5904, %v6058, %v5706
    %v6115 = vsel %vm5904, %v6059, %v5708
    %v6116 = vsel %vm5904, %v6060, %v5710
    %v6117 = vsel %vm5904, %v6061, %v5712
    %v6118 = vsel %vm5904, %v6062, %v5714
    %v6119 = vsel %vm5904, %v6063, %v5716
    %v6120 = vsel %vm5904, %v6064, %v5718
    %v6121 = vsel %vm5904, %v6065, %v5720
    %v6122 = vsel %vm5904, %v6066, %v5722
    %v6123 = vsel %vm5904, %v6067, %v5724
    %v6124 = vsel %vm5904, %v6068, %v5726
    %v6125 = vsel %vm5904, %v6069, %v5728
    %v6126 = vsel %vm5904, %v6070, %v5730
    %v6127 = vsel %vm5904, %v6071, %v5732
    %v6128 = vsel %vm5904, %v6072, %v5734
    %v6129 = vpack.c.bf16 %v5906, %v5905
    %v6130 = vpack.c.bf16 %v6074, %v6073
    %v6131 = vpack.c.bf16 %v5908, %v5907
    %v6132 = vpack.c.bf16 %v6076, %v6075
    %v6133 = vpack.c.bf16 %v5910, %v5909
    %v6134 = vpack.c.bf16 %v6078, %v6077
    %v6135 = vpack.c.bf16 %v5912, %v5911
    %v6136 = vpack.c.bf16 %v6080, %v6079
    %v6137 = vpack.c.bf16 %v5914, %v5913
    %v6138 = vpack.c.bf16 %v6082, %v6081
    %v6139 = vpack.c.bf16 %v5916, %v5915
    %v6140 = vpack.c.bf16 %v6084, %v6083
    %v6141 = vpack.c.bf16 %v5918, %v5917
    %v6142 = vpack.c.bf16 %v6086, %v6085
    %v6143 = vpack.c.bf16 %v5920, %v5919
    %v6144 = vpack.c.bf16 %v6088, %v6087
    %v6145 = vpack.c.bf16 %v5922, %v5921
    %v6146 = vpack.c.bf16 %v6090, %v6089
    %v6147 = vpack.c.bf16 %v5924, %v5923
    %v6148 = vpack.c.bf16 %v6092, %v6091
    %v6149 = vpack.c.bf16 %v5926, %v5925
    %v6150 = vpack.c.bf16 %v6094, %v6093
    %v6151 = vpack.c.bf16 %v5928, %v5927
    %v6152 = vpack.c.bf16 %v6096, %v6095
    %v6153 = vpack.c.bf16 %v5930, %v5929
    %v6154 = vpack.c.bf16 %v6098, %v6097
    %v6155 = vpack.c.bf16 %v5932, %v5931
    %v6156 = vpack.c.bf16 %v6100, %v6099
    %v6157 = vpack.c.bf16 %v5934, %v5933
    %v6158 = vpack.c.bf16 %v6102, %v6101
    %v6159 = vpack.c.bf16 %v5936, %v5935
    %v6160 = vpack.c.bf16 %v6104, %v6103
    %v6161 = vpack.c.bf16 %v5938, %v5937
    %v6162 = vpack.c.bf16 %v6106, %v6105
    %v6163 = vpack.c.bf16 %v5940, %v5939
    %v6164 = vpack.c.bf16 %v6108, %v6107
    %v6165 = vpack.c.bf16 %v5942, %v5941
    %v6166 = vpack.c.bf16 %v6110, %v6109
    %v6167 = vpack.c.bf16 %v5944, %v5943
    %v6168 = vpack.c.bf16 %v6112, %v6111
    %v6169 = vpack.c.bf16 %v5946, %v5945
    %v6170 = vpack.c.bf16 %v6114, %v6113
    %v6171 = vpack.c.bf16 %v5948, %v5947
    %v6172 = vpack.c.bf16 %v6116, %v6115
    %v6173 = vpack.c.bf16 %v5950, %v5949
    %v6174 = vpack.c.bf16 %v6118, %v6117
    %v6175 = vpack.c.bf16 %v5952, %v5951
    %v6176 = vpack.c.bf16 %v6120, %v6119
    %v6177 = vpack.c.bf16 %v5954, %v5953
    %v6178 = vpack.c.bf16 %v6122, %v6121
    %v6179 = vpack.c.bf16 %v5956, %v5955
    %v6180 = vpack.c.bf16 %v6124, %v6123
    %v6181 = vpack.c.bf16 %v5958, %v5957
    %v6182 = vpack.c.bf16 %v6126, %v6125
    %v6183 = vpack.c.bf16 %v5960, %v5959
    %v6184 = vpack.c.bf16 %v6128, %v6127
    %v6185 = vld [vmem:[%s6] sm:$0xf]
    %v6186 = vld [vmem:[%s6 + $0x4] sm:$0xf]
    %v6187 = vld [vmem:[%s6 + $0x8] sm:$0xf]
    %v6188 = vld [vmem:[%s6 + $0xc] sm:$0xf]
    %v6189 = vld [vmem:[%s6 + $0x10] sm:$0xf]
    %v6190 = vld [vmem:[%s6 + $0x14] sm:$0xf]
    %v6191 = vld [vmem:[%s6 + $0x18] sm:$0xf]
    %v6192 = vld [vmem:[%s6 + $0x1c] sm:$0xf]
    %v6193 = vld [vmem:[%s6 + $0x20] sm:$0xf]
    %v6194 = vld [vmem:[%s6 + $0x24] sm:$0xf]
    %v6195 = vld [vmem:[%s6 + $0x28] sm:$0xf]
    %v6196 = vld [vmem:[%s6 + $0x2c] sm:$0xf]
    %v6197 = vld [vmem:[%s6 + $0x30] sm:$0xf]
    %v6198 = vld [vmem:[%s6 + $0x34] sm:$0xf]
    %v6199 = vld [vmem:[%s6 + $0x38] sm:$0xf]
    %v6200 = vld [vmem:[%s6 + $0x3c] sm:$0xf]
    %v6201 = vld [vmem:[%s6 + $0x40] sm:$0xf]
    %v6202 = vld [vmem:[%s6 + $0x44] sm:$0xf]
    %v6203 = vld [vmem:[%s6 + $0x48] sm:$0xf]
    %v6204 = vld [vmem:[%s6 + $0x4c] sm:$0xf]
    %v6205 = vld [vmem:[%s6 + $0x50] sm:$0xf]
    %v6206 = vld [vmem:[%s6 + $0x54] sm:$0xf]
    %v6207 = vld [vmem:[%s6 + $0x58] sm:$0xf]
    %v6208 = vld [vmem:[%s6 + $0x5c] sm:$0xf]
    %v6209 = vld [vmem:[%s6 + $0x60] sm:$0xf]
    %v6210 = vld [vmem:[%s6 + $0x64] sm:$0xf]
    %v6211 = vld [vmem:[%s6 + $0x68] sm:$0xf]
    %v6212 = vld [vmem:[%s6 + $0x6c] sm:$0xf]
    %v6213 = vld [vmem:[%s6 + $0x70] sm:$0xf]
    %v6214 = vld [vmem:[%s6 + $0x74] sm:$0xf]
    %v6215 = vld [vmem:[%s6 + $0x78] sm:$0xf]
    %v6216 = vld [vmem:[%s6 + $0x7c] sm:$0xf]
    %v6249 = vunpack.c.l.b16 %v6185
    %v6250 = vunpack.c.l.b16 %v6186
    %v6251 = vunpack.c.l.b16 %v6187
    %v6252 = vunpack.c.l.b16 %v6188
    %v6253 = vunpack.c.l.b16 %v6189
    %v6254 = vunpack.c.l.b16 %v6190
    %v6255 = vunpack.c.l.b16 %v6191
    %v6256 = vunpack.c.l.b16 %v6192
    %v6257 = vunpack.c.l.b16 %v6193
    %v6258 = vunpack.c.l.b16 %v6194
    %v6259 = vunpack.c.l.b16 %v6195
    %v6260 = vunpack.c.l.b16 %v6196
    %v6261 = vunpack.c.l.b16 %v6197
    %v6262 = vunpack.c.l.b16 %v6198
    %v6263 = vunpack.c.l.b16 %v6199
    %v6264 = vunpack.c.l.b16 %v6200
    %v6265 = vunpack.c.l.b16 %v6201
    %v6266 = vunpack.c.l.b16 %v6202
    %v6267 = vunpack.c.l.b16 %v6203
    %v6268 = vunpack.c.l.b16 %v6204
    %v6269 = vunpack.c.l.b16 %v6205
    %v6270 = vunpack.c.l.b16 %v6206
    %v6271 = vunpack.c.l.b16 %v6207
    %v6272 = vunpack.c.l.b16 %v6208
    %v6273 = vunpack.c.l.b16 %v6209
    %v6274 = vunpack.c.l.b16 %v6210
    %v6275 = vunpack.c.l.b16 %v6211
    %v6276 = vunpack.c.l.b16 %v6212
    %v6277 = vunpack.c.l.b16 %v6213
    %v6278 = vunpack.c.l.b16 %v6214
    %v6279 = vunpack.c.l.b16 %v6215
    %v6280 = vunpack.c.l.b16 %v6216
    %v6281 = vpack.c.b16 %v6250, %v6249
    %v6282 = vpack.c.b16 %v6252, %v6251
    %v6283 = vpack.c.b16 %v6254, %v6253
    %v6284 = vpack.c.b16 %v6256, %v6255
    %v6285 = vpack.c.b16 %v6258, %v6257
    %v6286 = vpack.c.b16 %v6260, %v6259
    %v6287 = vpack.c.b16 %v6262, %v6261
    %v6288 = vpack.c.b16 %v6264, %v6263
    %v6289 = vpack.c.b16 %v6266, %v6265
    %v6290 = vpack.c.b16 %v6268, %v6267
    %v6291 = vpack.c.b16 %v6270, %v6269
    %v6292 = vpack.c.b16 %v6272, %v6271
    %v6293 = vpack.c.b16 %v6274, %v6273
    %v6294 = vpack.c.b16 %v6276, %v6275
    %v6295 = vpack.c.b16 %v6278, %v6277
    %v6296 = vpack.c.b16 %v6280, %v6279
    %6313 = vmatprep.subr.bf16.mxu0 0
    %6314 = vmatpush1.bf16.msra.mxu0 %v6281
    %6315 = vmatprep.subr.bf16.mxu0 0
    %6316 = vmatpush1.bf16.msra.mxu0 %v6282
    %6317 = vmatprep.subr.bf16.mxu0 0
    %6318 = vmatpush1.bf16.msra.mxu0 %v6283
    %6319 = vmatprep.subr.bf16.mxu0 0
    %6320 = vmatpush1.bf16.msra.mxu0 %v6284
    %6321 = vmatprep.subr.bf16.mxu0 0
    %6322 = vmatpush1.bf16.msra.mxu0 %v6285
    %6323 = vmatprep.subr.bf16.mxu0 0
    %6324 = vmatpush1.bf16.msra.mxu0 %v6286
    %6325 = vmatprep.subr.bf16.mxu0 0
    %6326 = vmatpush1.bf16.msra.mxu0 %v6287
    %6327 = vmatprep.subr.bf16.mxu0 0
    %6328 = vmatpush1.bf16.msra.mxu0 %v6288
    %6329 = vmatprep.subr.bf16.mxu0 0
    %6330 = vmatpush1.bf16.msra.mxu0 %v6289
    %6331 = vmatprep.subr.bf16.mxu0 0
    %6332 = vmatpush1.bf16.msra.mxu0 %v6290
    %6333 = vmatprep.subr.bf16.mxu0 0
    %6334 = vmatpush1.bf16.msra.mxu0 %v6291
    %6335 = vmatprep.subr.bf16.mxu0 0
    %6336 = vmatpush1.bf16.msra.mxu0 %v6292
    %6337 = vmatprep.subr.bf16.mxu0 0
    %6338 = vmatpush1.bf16.msra.mxu0 %v6293
    %6339 = vmatprep.subr.bf16.mxu0 0
    %6340 = vmatpush1.bf16.msra.mxu0 %v6294
    %6341 = vmatprep.subr.bf16.mxu0 0
    %6342 = vmatpush1.bf16.msra.mxu0 %v6295
    %6343 = vmatprep.subr.bf16.mxu0 0
    %6344 = vmatpush1.bf16.msra.mxu0 %v6296
    %6345 = vmatprep.mubr.bf16.mxu0 %v6130
    %6346 = vmatmul.mubr.bf16.gmra.mrb[0].mxu0 %v6129
    %v6347 = vpop.f32.mrb[0].mxu0
    %v6348 = vadd.f32 0.0, %v6347
    %v6349 = vpop.f32.mrb[0].mxu0
    %v6350 = vpop.f32.mrb[0].mxu0
    %v6351 = vadd.f32 0.0, %v6350
    %v6352 = vpop.f32.mrb[0].mxu0
    %6353 = vmatprep.mubr.bf16.mxu0 %v6132
    %6354 = vmatmul.mubr.bf16.gmra.mrb[0].mxu0 %v6131
    %v6355 = vpop.f32.mrb[0].mxu0
    %v6356 = vadd.f32 0.0, %v6355
    %v6357 = vpop.f32.mrb[0].mxu0
    %v6358 = vpop.f32.mrb[0].mxu0
    %v6359 = vadd.f32 0.0, %v6358
    %v6360 = vpop.f32.mrb[0].mxu0
    %6361 = vmatprep.mubr.bf16.mxu0 %v6134
    %6362 = vmatmul.mubr.bf16.gmra.mrb[0].mxu0 %v6133
    %v6363 = vpop.f32.mrb[0].mxu0
    %v6364 = vadd.f32 0.0, %v6363
    %v6365 = vpop.f32.mrb[0].mxu0
    %v6366 = vpop.f32.mrb[0].mxu0
    %v6367 = vadd.f32 0.0, %v6366
    %v6368 = vpop.f32.mrb[0].mxu0
    %6369 = vmatprep.mubr.bf16.mxu0 %v6136
    %6370 = vmatmul.mubr.bf16.gmra.mrb[0].mxu0 %v6135
    %v6371 = vpop.f32.mrb[0].mxu0
    %v6372 = vadd.f32 0.0, %v6371
    %v6373 = vpop.f32.mrb[0].mxu0
    %v6374 = vpop.f32.mrb[0].mxu0
    %v6375 = vadd.f32 0.0, %v6374
    %v6376 = vpop.f32.mrb[0].mxu0
    %6377 = vmatprep.mubr.bf16.mxu0 %v6138
    %6378 = vmatmul.mubr.bf16.gmra.mrb[0].mxu0 %v6137
    %v6379 = vpop.f32.mrb[0].mxu0
    %v6380 = vadd.f32 0.0, %v6379
    %v6381 = vpop.f32.mrb[0].mxu0
    %v6382 = vpop.f32.mrb[0].mxu0
    %v6383 = vadd.f32 0.0, %v6382
    %v6384 = vpop.f32.mrb[0].mxu0
    %6385 = vmatprep.mubr.bf16.mxu0 %v6140
    %6386 = vmatmul.mubr.bf16.gmra.mrb[0].mxu0 %v6139
    %v6387 = vpop.f32.mrb[0].mxu0
    %v6388 = vadd.f32 0.0, %v6387
    %v6389 = vpop.f32.mrb[0].mxu0
    %v6390 = vpop.f32.mrb[0].mxu0
    %v6391 = vadd.f32 0.0, %v6390
    %v6392 = vpop.f32.mrb[0].mxu0
    %6393 = vmatprep.mubr.bf16.mxu0 %v6142
    %6394 = vmatmul.mubr.bf16.gmra.mrb[0].mxu0 %v6141
    %v6395 = vpop.f32.mrb[0].mxu0
    %v6396 = vadd.f32 0.0, %v6395
    %v6397 = vpop.f32.mrb[0].mxu0
    %v6398 = vpop.f32.mrb[0].mxu0
    %v6399 = vadd.f32 0.0, %v6398
    %v6400 = vpop.f32.mrb[0].mxu0
    %6401 = vmatprep.mubr.bf16.mxu0 %v6144
    %6402 = vmatmul.mubr.bf16.gmra.mrb[0].mxu0 %v6143
    %v6403 = vpop.f32.mrb[0].mxu0
    %v6404 = vadd.f32 0.0, %v6403
    %v6405 = vpop.f32.mrb[0].mxu0
    %v6406 = vpop.f32.mrb[0].mxu0
    %v6407 = vadd.f32 0.0, %v6406
    %v6408 = vpop.f32.mrb[0].mxu0
    %6409 = vmatprep.mubr.bf16.mxu0 %v6146
    %6410 = vmatmul.mubr.bf16.gmra.mrb[0].mxu0 %v6145
    %v6411 = vpop.f32.mrb[0].mxu0
    %v6412 = vadd.f32 0.0, %v6411
    %v6413 = vpop.f32.mrb[0].mxu0
    %v6414 = vpop.f32.mrb[0].mxu0
    %v6415 = vadd.f32 0.0, %v6414
    %v6416 = vpop.f32.mrb[0].mxu0
    %6417 = vmatprep.mubr.bf16.mxu0 %v6148
    %6418 = vmatmul.mubr.bf16.gmra.mrb[0].mxu0 %v6147
    %v6419 = vpop.f32.mrb[0].mxu0
    %v6420 = vadd.f32 0.0, %v6419
    %v6421 = vpop.f32.mrb[0].mxu0
    %v6422 = vpop.f32.mrb[0].mxu0
    %v6423 = vadd.f32 0.0, %v6422
    %v6424 = vpop.f32.mrb[0].mxu0
    %6425 = vmatprep.mubr.bf16.mxu0 %v6150
    %6426 = vmatmul.mubr.bf16.gmra.mrb[0].mxu0 %v6149
    %v6427 = vpop.f32.mrb[0].mxu0
    %v6428 = vadd.f32 0.0, %v6427
    %v6429 = vpop.f32.mrb[0].mxu0
    %v6430 = vpop.f32.mrb[0].mxu0
    %v6431 = vadd.f32 0.0, %v6430
    %v6432 = vpop.f32.mrb[0].mxu0
    %6433 = vmatprep.mubr.bf16.mxu0 %v6152
    %6434 = vmatmul.mubr.bf16.gmra.mrb[0].mxu0 %v6151
    %v6435 = vpop.f32.mrb[0].mxu0
    %v6436 = vadd.f32 0.0, %v6435
    %v6437 = vpop.f32.mrb[0].mxu0
    %v6438 = vpop.f32.mrb[0].mxu0
    %v6439 = vadd.f32 0.0, %v6438
    %v6440 = vpop.f32.mrb[0].mxu0
    %6441 = vmatprep.mubr.bf16.mxu0 %v6154
    %6442 = vmatmul.mubr.bf16.gmra.mrb[0].mxu0 %v6153
    %v6443 = vpop.f32.mrb[0].mxu0
    %v6444 = vadd.f32 0.0, %v6443
    %v6445 = vpop.f32.mrb[0].mxu0
    %v6446 = vpop.f32.mrb[0].mxu0
    %v6447 = vadd.f32 0.0, %v6446
    %v6448 = vpop.f32.mrb[0].mxu0
    %6449 = vmatprep.mubr.bf16.mxu0 %v6156
    %6450 = vmatmul.mubr.bf16.gmra.mrb[0].mxu0 %v6155
    %v6451 = vpop.f32.mrb[0].mxu0
    %v6452 = vadd.f32 0.0, %v6451
    %v6453 = vpop.f32.mrb[0].mxu0
    %v6454 = vpop.f32.mrb[0].mxu0
    %v6455 = vadd.f32 0.0, %v6454
    %v6456 = vpop.f32.mrb[0].mxu0
    %6457 = vmatprep.mubr.bf16.mxu0 %v6158
    %6458 = vmatmul.mubr.bf16.gmra.mrb[0].mxu0 %v6157
    %v6459 = vpop.f32.mrb[0].mxu0
    %v6460 = vadd.f32 0.0, %v6459
    %v6461 = vpop.f32.mrb[0].mxu0
    %v6462 = vpop.f32.mrb[0].mxu0
    %v6463 = vadd.f32 0.0, %v6462
    %v6464 = vpop.f32.mrb[0].mxu0
    %6465 = vmatprep.mubr.bf16.mxu0 %v6160
    %6466 = vmatmul.mubr.bf16.gmra.mrb[0].mxu0 %v6159
    %v6467 = vpop.f32.mrb[0].mxu0
    %v6468 = vadd.f32 0.0, %v6467
    %v6469 = vpop.f32.mrb[0].mxu0
    %v6470 = vpop.f32.mrb[0].mxu0
    %v6471 = vadd.f32 0.0, %v6470
    %v6472 = vpop.f32.mrb[0].mxu0
    %6473 = vmatprep.mubr.bf16.mxu0 %v6162
    %6474 = vmatmul.mubr.bf16.gmra.mrb[0].mxu0 %v6161
    %v6475 = vpop.f32.mrb[0].mxu0
    %v6476 = vadd.f32 0.0, %v6475
    %v6477 = vpop.f32.mrb[0].mxu0
    %v6478 = vpop.f32.mrb[0].mxu0
    %v6479 = vadd.f32 0.0, %v6478
    %v6480 = vpop.f32.mrb[0].mxu0
    %6481 = vmatprep.mubr.bf16.mxu0 %v6164
    %6482 = vmatmul.mubr.bf16.gmra.mrb[0].mxu0 %v6163
    %v6483 = vpop.f32.mrb[0].mxu0
    %v6484 = vadd.f32 0.0, %v6483
    %v6485 = vpop.f32.mrb[0].mxu0
    %v6486 = vpop.f32.mrb[0].mxu0
    %v6487 = vadd.f32 0.0, %v6486
    %v6488 = vpop.f32.mrb[0].mxu0
    %6489 = vmatprep.mubr.bf16.mxu0 %v6166
    %6490 = vmatmul.mubr.bf16.gmra.mrb[0].mxu0 %v6165
    %v6491 = vpop.f32.mrb[0].mxu0
    %v6492 = vadd.f32 0.0, %v6491
    %v6493 = vpop.f32.mrb[0].mxu0
    %v6494 = vpop.f32.mrb[0].mxu0
    %v6495 = vadd.f32 0.0, %v6494
    %v6496 = vpop.f32.mrb[0].mxu0
    %6497 = vmatprep.mubr.bf16.mxu0 %v6168
    %6498 = vmatmul.mubr.bf16.gmra.mrb[0].mxu0 %v6167
    %v6499 = vpop.f32.mrb[0].mxu0
    %v6500 = vadd.f32 0.0, %v6499
    %v6501 = vpop.f32.mrb[0].mxu0
    %v6502 = vpop.f32.mrb[0].mxu0
    %v6503 = vadd.f32 0.0, %v6502
    %v6504 = vpop.f32.mrb[0].mxu0
    %6505 = vmatprep.mubr.bf16.mxu0 %v6170
    %6506 = vmatmul.mubr.bf16.gmra.mrb[0].mxu0 %v6169
    %v6507 = vpop.f32.mrb[0].mxu0
    %v6508 = vadd.f32 0.0, %v6507
    %v6509 = vpop.f32.mrb[0].mxu0
    %v6510 = vpop.f32.mrb[0].mxu0
    %v6511 = vadd.f32 0.0, %v6510
    %v6512 = vpop.f32.mrb[0].mxu0
    %6513 = vmatprep.mubr.bf16.mxu0 %v6172
    %6514 = vmatmul.mubr.bf16.gmra.mrb[0].mxu0 %v6171
    %v6515 = vpop.f32.mrb[0].mxu0
    %v6516 = vadd.f32 0.0, %v6515
    %v6517 = vpop.f32.mrb[0].mxu0
    %v6518 = vpop.f32.mrb[0].mxu0
    %v6519 = vadd.f32 0.0, %v6518
    %v6520 = vpop.f32.mrb[0].mxu0
    %6521 = vmatprep.mubr.bf16.mxu0 %v6174
    %6522 = vmatmul.mubr.bf16.gmra.mrb[0].mxu0 %v6173
    %v6523 = vpop.f32.mrb[0].mxu0
    %v6524 = vadd.f32 0.0, %v6523
    %v6525 = vpop.f32.mrb[0].mxu0
    %v6526 = vpop.f32.mrb[0].mxu0
    %v6527 = vadd.f32 0.0, %v6526
    %v6528 = vpop.f32.mrb[0].mxu0
    %6529 = vmatprep.mubr.bf16.mxu0 %v6176
    %6530 = vmatmul.mubr.bf16.gmra.mrb[0].mxu0 %v6175
    %v6531 = vpop.f32.mrb[0].mxu0
    %v6532 = vadd.f32 0.0, %v6531
    %v6533 = vpop.f32.mrb[0].mxu0
    %v6534 = vpop.f32.mrb[0].mxu0
    %v6535 = vadd.f32 0.0, %v6534
    %v6536 = vpop.f32.mrb[0].mxu0
    %6537 = vmatprep.mubr.bf16.mxu0 %v6178
    %6538 = vmatmul.mubr.bf16.gmra.mrb[0].mxu0 %v6177
    %v6539 = vpop.f32.mrb[0].mxu0
    %v6540 = vadd.f32 0.0, %v6539
    %v6541 = vpop.f32.mrb[0].mxu0
    %v6542 = vpop.f32.mrb[0].mxu0
    %v6543 = vadd.f32 0.0, %v6542
    %v6544 = vpop.f32.mrb[0].mxu0
    %6545 = vmatprep.mubr.bf16.mxu0 %v6180
    %6546 = vmatmul.mubr.bf16.gmra.mrb[0].mxu0 %v6179
    %v6547 = vpop.f32.mrb[0].mxu0
    %v6548 = vadd.f32 0.0, %v6547
    %v6549 = vpop.f32.mrb[0].mxu0
    %v6550 = vpop.f32.mrb[0].mxu0
    %v6551 = vadd.f32 0.0, %v6550
    %v6552 = vpop.f32.mrb[0].mxu0
    %6553 = vmatprep.mubr.bf16.mxu0 %v6182
    %6554 = vmatmul.mubr.bf16.gmra.mrb[0].mxu0 %v6181
    %v6555 = vpop.f32.mrb[0].mxu0
    %v6556 = vadd.f32 0.0, %v6555
    %v6557 = vpop.f32.mrb[0].mxu0
    %v6558 = vpop.f32.mrb[0].mxu0
    %v6559 = vadd.f32 0.0, %v6558
    %v6560 = vpop.f32.mrb[0].mxu0
    %6561 = vmatprep.mubr.bf16.mxu0 %v6184
    %6562 = vmatmul.mubr.bf16.gmra.mrb[0].mxu0 %v6183
    %v6563 = vpop.f32.mrb[0].mxu0
    %v6564 = vadd.f32 0.0, %v6563
    %v6565 = vpop.f32.mrb[0].mxu0
    %v6566 = vpop.f32.mrb[0].mxu0
    %v6567 = vadd.f32 0.0, %v6566
    %v6568 = vpop.f32.mrb[0].mxu0
    %6569 = vdwg.mxu0
    %v6570 = vld [vmem:[%s7] sm:$0x1]
    %v6572 = vlaneseq
    %v6573 = vshrl.u32 %v6572, 7
    %v6574 = vsub.s32 0, %v6573
    %v6575 = vrot.slane %v6570, %v6574
    %v6577 = vadd.f32 %v6348, %v6575
    %v6578 = vadd.f32 %v6351, %v6575
    %v6579 = vadd.f32 %v6356, %v6575
    %v6580 = vadd.f32 %v6359, %v6575
    %v6581 = vadd.f32 %v6364, %v6575
    %v6582 = vadd.f32 %v6367, %v6575
    %v6583 = vadd.f32 %v6372, %v6575
    %v6584 = vadd.f32 %v6375, %v6575
    %v6585 = vadd.f32 %v6380, %v6575
    %v6586 = vadd.f32 %v6383, %v6575
    %v6587 = vadd.f32 %v6388, %v6575
    %v6588 = vadd.f32 %v6391, %v6575
    %v6589 = vadd.f32 %v6396, %v6575
    %v6590 = vadd.f32 %v6399, %v6575
    %v6591 = vadd.f32 %v6404, %v6575
    %v6592 = vadd.f32 %v6407, %v6575
    %v6593 = vadd.f32 %v6412, %v6575
    %v6594 = vadd.f32 %v6415, %v6575
    %v6595 = vadd.f32 %v6420, %v6575
    %v6596 = vadd.f32 %v6423, %v6575
    %v6597 = vadd.f32 %v6428, %v6575
    %v6598 = vadd.f32 %v6431, %v6575
    %v6599 = vadd.f32 %v6436, %v6575
    %v6600 = vadd.f32 %v6439, %v6575
    %v6601 = vadd.f32 %v6444, %v6575
    %v6602 = vadd.f32 %v6447, %v6575
    %v6603 = vadd.f32 %v6452, %v6575
    %v6604 = vadd.f32 %v6455, %v6575
    %v6605 = vadd.f32 %v6460, %v6575
    %v6606 = vadd.f32 %v6463, %v6575
    %v6607 = vadd.f32 %v6468, %v6575
    %v6608 = vadd.f32 %v6471, %v6575
    %v6609 = vadd.f32 %v6476, %v6575
    %v6610 = vadd.f32 %v6479, %v6575
    %v6611 = vadd.f32 %v6484, %v6575
    %v6612 = vadd.f32 %v6487, %v6575
    %v6613 = vadd.f32 %v6492, %v6575
    %v6614 = vadd.f32 %v6495, %v6575
    %v6615 = vadd.f32 %v6500, %v6575
    %v6616 = vadd.f32 %v6503, %v6575
    %v6617 = vadd.f32 %v6508, %v6575
    %v6618 = vadd.f32 %v6511, %v6575
    %v6619 = vadd.f32 %v6516, %v6575
    %v6620 = vadd.f32 %v6519, %v6575
    %v6621 = vadd.f32 %v6524, %v6575
    %v6622 = vadd.f32 %v6527, %v6575
    %v6623 = vadd.f32 %v6532, %v6575
    %v6624 = vadd.f32 %v6535, %v6575
    %v6625 = vadd.f32 %v6540, %v6575
    %v6626 = vadd.f32 %v6543, %v6575
    %v6627 = vadd.f32 %v6548, %v6575
    %v6628 = vadd.f32 %v6551, %v6575
    %v6629 = vadd.f32 %v6556, %v6575
    %v6630 = vadd.f32 %v6559, %v6575
    %v6631 = vadd.f32 %v6564, %v6575
    %v6632 = vadd.f32 %v6567, %v6575
    %v6633 = vsel %vm3331, %v6577, 0.0
    %v6634 = vsel %vm3331, %v6578, 0.0
    %v6635 = vadd.f32 %v6633, %v6634
    %v6636 = vsel %vm3331, %v6579, 0.0
    %v6637 = vadd.f32 %v6635, %v6636
    %v6638 = vsel %vm3331, %v6580, 0.0
    %v6639 = vadd.f32 %v6637, %v6638
    %v6640 = vsel %vm3331, %v6581, 0.0
    %v6641 = vadd.f32 %v6639, %v6640
    %v6642 = vsel %vm3331, %v6582, 0.0
    %v6643 = vadd.f32 %v6641, %v6642
    %vm6644 = vcmask 259072
    %v6645 = vsel %vm6644, %v6583, 0.0
    %v6646 = vadd.f32 %v6643, %v6645
    %v6647 = vsel %vm3331, %v6584, 0.0
    %v6648 = vadd.f32 %v6646, %v6647
    %v6649 = vsel %vm3331, %v6585, 0.0
    %v6650 = vadd.f32 %v6648, %v6649
    %v6651 = vsel %vm3331, %v6586, 0.0
    %v6652 = vadd.f32 %v6650, %v6651
    %v6653 = vsel %vm3331, %v6587, 0.0
    %v6654 = vadd.f32 %v6652, %v6653
    %v6655 = vsel %vm3331, %v6588, 0.0
    %v6656 = vadd.f32 %v6654, %v6655
    %v6657 = vsel %vm3331, %v6589, 0.0
    %v6658 = vadd.f32 %v6656, %v6657
    %v6659 = vsel %vm6644, %v6590, 0.0
    %v6660 = vadd.f32 %v6658, %v6659
    %v6661 = vsel %vm3331, %v6591, 0.0
    %v6662 = vadd.f32 %v6660, %v6661
    %v6663 = vsel %vm3331, %v6592, 0.0
    %v6664 = vadd.f32 %v6662, %v6663
    %v6665 = vsel %vm3331, %v6593, 0.0
    %v6666 = vadd.f32 %v6664, %v6665
    %v6667 = vsel %vm3331, %v6594, 0.0
    %v6668 = vadd.f32 %v6666, %v6667
    %v6669 = vsel %vm3331, %v6595, 0.0
    %v6670 = vadd.f32 %v6668, %v6669
    %v6671 = vsel %vm3331, %v6596, 0.0
    %v6672 = vadd.f32 %v6670, %v6671
    %v6673 = vsel %vm6644, %v6597, 0.0
    %v6674 = vadd.f32 %v6672, %v6673
    %v6675 = vsel %vm3331, %v6598, 0.0
    %v6676 = vadd.f32 %v6674, %v6675
    %v6677 = vsel %vm3331, %v6599, 0.0
    %v6678 = vadd.f32 %v6676, %v6677
    %v6679 = vsel %vm3331, %v6600, 0.0
    %v6680 = vadd.f32 %v6678, %v6679
    %v6681 = vsel %vm3331, %v6601, 0.0
    %v6682 = vadd.f32 %v6680, %v6681
    %v6683 = vsel %vm3331, %v6602, 0.0
    %v6684 = vadd.f32 %v6682, %v6683
    %v6685 = vsel %vm3331, %v6603, 0.0
    %v6686 = vadd.f32 %v6684, %v6685
    %v6687 = vsel %vm6644, %v6604, 0.0
    %v6688 = vadd.f32 %v6686, %v6687
    %v6689 = vsel %vm3331, %v6605, 0.0
    %v6690 = vadd.f32 %v6688, %v6689
    %v6691 = vsel %vm3331, %v6606, 0.0
    %v6692 = vadd.f32 %v6690, %v6691
    %v6693 = vsel %vm3331, %v6607, 0.0
    %v6694 = vadd.f32 %v6692, %v6693
    %v6695 = vsel %vm3331, %v6608, 0.0
    %v6696 = vadd.f32 %v6694, %v6695
    %v6697 = vsel %vm3331, %v6609, 0.0
    %v6698 = vadd.f32 %v6696, %v6697
    %v6699 = vsel %vm3331, %v6610, 0.0
    %v6700 = vadd.f32 %v6698, %v6699
    %v6701 = vsel %vm6644, %v6611, 0.0
    %v6702 = vadd.f32 %v6700, %v6701
    %v6703 = vsel %vm3331, %v6612, 0.0
    %v6704 = vadd.f32 %v6702, %v6703
    %v6705 = vsel %vm3331, %v6613, 0.0
    %v6706 = vadd.f32 %v6704, %v6705
    %v6707 = vsel %vm3331, %v6614, 0.0
    %v6708 = vadd.f32 %v6706, %v6707
    %v6709 = vsel %vm3331, %v6615, 0.0
    %v6710 = vadd.f32 %v6708, %v6709
    %v6711 = vsel %vm3331, %v6616, 0.0
    %v6712 = vadd.f32 %v6710, %v6711
    %v6713 = vsel %vm3331, %v6617, 0.0
    %v6714 = vadd.f32 %v6712, %v6713
    %v6715 = vsel %vm6644, %v6618, 0.0
    %v6716 = vadd.f32 %v6714, %v6715
    %v6717 = vsel %vm3331, %v6619, 0.0
    %v6718 = vadd.f32 %v6716, %v6717
    %v6719 = vsel %vm3331, %v6620, 0.0
    %v6720 = vadd.f32 %v6718, %v6719
    %v6721 = vsel %vm3331, %v6621, 0.0
    %v6722 = vadd.f32 %v6720, %v6721
    %v6723 = vsel %vm3331, %v6622, 0.0
    %v6724 = vadd.f32 %v6722, %v6723
    %v6725 = vsel %vm3331, %v6623, 0.0
    %v6726 = vadd.f32 %v6724, %v6725
    %v6727 = vsel %vm3331, %v6624, 0.0
    %v6728 = vadd.f32 %v6726, %v6727
    %v6729 = vsel %vm6644, %v6625, 0.0
    %v6730 = vadd.f32 %v6728, %v6729
    %v6731 = vsel %vm3331, %v6626, 0.0
    %v6732 = vadd.f32 %v6730, %v6731
    %v6733 = vsel %vm3331, %v6627, 0.0
    %v6734 = vadd.f32 %v6732, %v6733
    %v6735 = vsel %vm3331, %v6628, 0.0
    %v6736 = vadd.f32 %v6734, %v6735
    %v6737 = vsel %vm3331, %v6629, 0.0
    %v6738 = vadd.f32 %v6736, %v6737
    %v6739 = vsel %vm3331, %v6630, 0.0
    %v6740 = vadd.f32 %v6738, %v6739
    %v6741 = vsel %vm3331, %v6631, 0.0
    %v6742 = vadd.f32 %v6740, %v6741
    %v6743 = vsel %vm6644, %v6632, 0.0
    %v6744 = vadd.f32 %v6742, %v6743
    %v6745 = vrot.slane %v6744, 4
    %v6746 = vadd.f32 %v6744, %v6745
    %v6747 = vrot.slane %v6746, 2
    %v6748 = vadd.f32 %v6746, %v6747
    %v6749 = vrot.slane %v6748, 1
    %v6750 = vadd.f32 %v6748, %v6749
    %v6751 = vrcp.pop 432.0
    %v6752 = vmul.f32 %v6750, %v6751
    %v6753 = vmul.f32 %v6577, %v6577
    %v6754 = vmul.f32 %v6578, %v6578
    %v6755 = vmul.f32 %v6579, %v6579
    %v6756 = vmul.f32 %v6580, %v6580
    %v6757 = vmul.f32 %v6581, %v6581
    %v6758 = vmul.f32 %v6582, %v6582
    %v6759 = vmul.f32 %v6583, %v6583
    %v6760 = vmul.f32 %v6584, %v6584
    %v6761 = vmul.f32 %v6585, %v6585
    %v6762 = vmul.f32 %v6586, %v6586
    %v6763 = vmul.f32 %v6587, %v6587
    %v6764 = vmul.f32 %v6588, %v6588
    %v6765 = vmul.f32 %v6589, %v6589
    %v6766 = vmul.f32 %v6590, %v6590
    %v6767 = vmul.f32 %v6591, %v6591
    %v6768 = vmul.f32 %v6592, %v6592
    %v6769 = vmul.f32 %v6593, %v6593
    %v6770 = vmul.f32 %v6594, %v6594
    %v6771 = vmul.f32 %v6595, %v6595
    %v6772 = vmul.f32 %v6596, %v6596
    %v6773 = vmul.f32 %v6597, %v6597
    %v6774 = vmul.f32 %v6598, %v6598
    %v6775 = vmul.f32 %v6599, %v6599
    %v6776 = vmul.f32 %v6600, %v6600
    %v6777 = vmul.f32 %v6601, %v6601
    %v6778 = vmul.f32 %v6602, %v6602
    %v6779 = vmul.f32 %v6603, %v6603
    %v6780 = vmul.f32 %v6604, %v6604
    %v6781 = vmul.f32 %v6605, %v6605
    %v6782 = vmul.f32 %v6606, %v6606
    %v6783 = vmul.f32 %v6607, %v6607
    %v6784 = vmul.f32 %v6608, %v6608
    %v6785 = vmul.f32 %v6609, %v6609
    %v6786 = vmul.f32 %v6610, %v6610
    %v6787 = vmul.f32 %v6611, %v6611
    %v6788 = vmul.f32 %v6612, %v6612
    %v6789 = vmul.f32 %v6613, %v6613
    %v6790 = vmul.f32 %v6614, %v6614
    %v6791 = vmul.f32 %v6615, %v6615
    %v6792 = vmul.f32 %v6616, %v6616
    %v6793 = vmul.f32 %v6617, %v6617
    %v6794 = vmul.f32 %v6618, %v6618
    %v6795 = vmul.f32 %v6619, %v6619
    %v6796 = vmul.f32 %v6620, %v6620
    %v6797 = vmul.f32 %v6621, %v6621
    %v6798 = vmul.f32 %v6622, %v6622
    %v6799 = vmul.f32 %v6623, %v6623
    %v6800 = vmul.f32 %v6624, %v6624
    %v6801 = vmul.f32 %v6625, %v6625
    %v6802 = vmul.f32 %v6626, %v6626
    %v6803 = vmul.f32 %v6627, %v6627
    %v6804 = vmul.f32 %v6628, %v6628
    %v6805 = vmul.f32 %v6629, %v6629
    %v6806 = vmul.f32 %v6630, %v6630
    %v6807 = vmul.f32 %v6631, %v6631
    %v6808 = vmul.f32 %v6632, %v6632
    %v6809 = vsel %vm3331, %v6753, 0.0
    %v6810 = vsel %vm3331, %v6754, 0.0
    %v6811 = vadd.f32 %v6809, %v6810
    %v6812 = vsel %vm3331, %v6755, 0.0
    %v6813 = vadd.f32 %v6811, %v6812
    %v6814 = vsel %vm3331, %v6756, 0.0
    %v6815 = vadd.f32 %v6813, %v6814
    %v6816 = vsel %vm3331, %v6757, 0.0
    %v6817 = vadd.f32 %v6815, %v6816
    %v6818 = vsel %vm3331, %v6758, 0.0
    %v6819 = vadd.f32 %v6817, %v6818
    %v6820 = vsel %vm6644, %v6759, 0.0
    %v6821 = vadd.f32 %v6819, %v6820
    %v6822 = vsel %vm3331, %v6760, 0.0
    %v6823 = vadd.f32 %v6821, %v6822
    %v6824 = vsel %vm3331, %v6761, 0.0
    %v6825 = vadd.f32 %v6823, %v6824
    %v6826 = vsel %vm3331, %v6762, 0.0
    %v6827 = vadd.f32 %v6825, %v6826
    %v6828 = vsel %vm3331, %v6763, 0.0
    %v6829 = vadd.f32 %v6827, %v6828
    %v6830 = vsel %vm3331, %v6764, 0.0
    %v6831 = vadd.f32 %v6829, %v6830
    %v6832 = vsel %vm3331, %v6765, 0.0
    %v6833 = vadd.f32 %v6831, %v6832
    %v6834 = vsel %vm6644, %v6766, 0.0
    %v6835 = vadd.f32 %v6833, %v6834
    %v6836 = vsel %vm3331, %v6767, 0.0
    %v6837 = vadd.f32 %v6835, %v6836
    %v6838 = vsel %vm3331, %v6768, 0.0
    %v6839 = vadd.f32 %v6837, %v6838
    %v6840 = vsel %vm3331, %v6769, 0.0
    %v6841 = vadd.f32 %v6839, %v6840
    %v6842 = vsel %vm3331, %v6770, 0.0
    %v6843 = vadd.f32 %v6841, %v6842
    %v6844 = vsel %vm3331, %v6771, 0.0
    %v6845 = vadd.f32 %v6843, %v6844
    %v6846 = vsel %vm3331, %v6772, 0.0
    %v6847 = vadd.f32 %v6845, %v6846
    %v6848 = vsel %vm6644, %v6773, 0.0
    %v6849 = vadd.f32 %v6847, %v6848
    %v6850 = vsel %vm3331, %v6774, 0.0
    %v6851 = vadd.f32 %v6849, %v6850
    %v6852 = vsel %vm3331, %v6775, 0.0
    %v6853 = vadd.f32 %v6851, %v6852
    %v6854 = vsel %vm3331, %v6776, 0.0
    %v6855 = vadd.f32 %v6853, %v6854
    %v6856 = vsel %vm3331, %v6777, 0.0
    %v6857 = vadd.f32 %v6855, %v6856
    %v6858 = vsel %vm3331, %v6778, 0.0
    %v6859 = vadd.f32 %v6857, %v6858
    %v6860 = vsel %vm3331, %v6779, 0.0
    %v6861 = vadd.f32 %v6859, %v6860
    %v6862 = vsel %vm6644, %v6780, 0.0
    %v6863 = vadd.f32 %v6861, %v6862
    %v6864 = vsel %vm3331, %v6781, 0.0
    %v6865 = vadd.f32 %v6863, %v6864
    %v6866 = vsel %vm3331, %v6782, 0.0
    %v6867 = vadd.f32 %v6865, %v6866
    %v6868 = vsel %vm3331, %v6783, 0.0
    %v6869 = vadd.f32 %v6867, %v6868
    %v6870 = vsel %vm3331, %v6784, 0.0
    %v6871 = vadd.f32 %v6869, %v6870
    %v6872 = vsel %vm3331, %v6785, 0.0
    %v6873 = vadd.f32 %v6871, %v6872
    %v6874 = vsel %vm3331, %v6786, 0.0
    %v6875 = vadd.f32 %v6873, %v6874
    %v6876 = vsel %vm6644, %v6787, 0.0
    %v6877 = vadd.f32 %v6875, %v6876
    %v6878 = vsel %vm3331, %v6788, 0.0
    %v6879 = vadd.f32 %v6877, %v6878
    %v6880 = vsel %vm3331, %v6789, 0.0
    %v6881 = vadd.f32 %v6879, %v6880
    %v6882 = vsel %vm3331, %v6790, 0.0
    %v6883 = vadd.f32 %v6881, %v6882
    %v6884 = vsel %vm3331, %v6791, 0.0
    %v6885 = vadd.f32 %v6883, %v6884
    %v6886 = vsel %vm3331, %v6792, 0.0
    %v6887 = vadd.f32 %v6885, %v6886
    %v6888 = vsel %vm3331, %v6793, 0.0
    %v6889 = vadd.f32 %v6887, %v6888
    %v6890 = vsel %vm6644, %v6794, 0.0
    %v6891 = vadd.f32 %v6889, %v6890
    %v6892 = vsel %vm3331, %v6795, 0.0
    %v6893 = vadd.f32 %v6891, %v6892
    %v6894 = vsel %vm3331, %v6796, 0.0
    %v6895 = vadd.f32 %v6893, %v6894
    %v6896 = vsel %vm3331, %v6797, 0.0
    %v6897 = vadd.f32 %v6895, %v6896
    %v6898 = vsel %vm3331, %v6798, 0.0
    %v6899 = vadd.f32 %v6897, %v6898
    %v6900 = vsel %vm3331, %v6799, 0.0
    %v6901 = vadd.f32 %v6899, %v6900
    %v6902 = vsel %vm3331, %v6800, 0.0
    %v6903 = vadd.f32 %v6901, %v6902
    %v6904 = vsel %vm6644, %v6801, 0.0
    %v6905 = vadd.f32 %v6903, %v6904
    %v6906 = vsel %vm3331, %v6802, 0.0
    %v6907 = vadd.f32 %v6905, %v6906
    %v6908 = vsel %vm3331, %v6803, 0.0
    %v6909 = vadd.f32 %v6907, %v6908
    %v6910 = vsel %vm3331, %v6804, 0.0
    %v6911 = vadd.f32 %v6909, %v6910
    %v6912 = vsel %vm3331, %v6805, 0.0
    %v6913 = vadd.f32 %v6911, %v6912
    %v6914 = vsel %vm3331, %v6806, 0.0
    %v6915 = vadd.f32 %v6913, %v6914
    %v6916 = vsel %vm3331, %v6807, 0.0
    %v6917 = vadd.f32 %v6915, %v6916
    %v6918 = vsel %vm6644, %v6808, 0.0
    %v6919 = vadd.f32 %v6917, %v6918
    %v6920 = vrot.slane %v6919, 4
    %v6921 = vadd.f32 %v6919, %v6920
    %v6922 = vrot.slane %v6921, 2
    %v6923 = vadd.f32 %v6921, %v6922
    %v6924 = vrot.slane %v6923, 1
    %v6925 = vadd.f32 %v6923, %v6924
    %v6926 = vmul.f32 %v6925, %v6751
    %v6927 = vmul.f32 %v6752, %v6752
    %v6928 = vsub.f32 %v6926, %v6927
    %v6929 = vmax.f32 %v6928, 0.0
    %v6930 = vld [vmem:[%s8] sm:$0x1]
    %v6931 = vadd.f32 %v6929, 1e-05
    %v6932 = vrsqrt.pop %v6931
    %v6933 = vmul.f32 %v6930, %v6932
    %v6934 = vld [vmem:[%s9] sm:$0x1]
    %v6935 = vmul.f32 %v6752, %v6933
    %v6936 = vsub.f32 %v6934, %v6935
    %v6938 = vlaneseq
    %v6939 = vshrl.u32 %v6938, 7
    %v6940 = vsub.s32 0, %v6939
    %v6941 = vrot.slane %v6933, %v6940
    %v6943 = vmul.f32 %v6577, %v6941
    %v6944 = vmul.f32 %v6578, %v6941
    %v6945 = vmul.f32 %v6579, %v6941
    %v6946 = vmul.f32 %v6580, %v6941
    %v6947 = vmul.f32 %v6581, %v6941
    %v6948 = vmul.f32 %v6582, %v6941
    %v6949 = vmul.f32 %v6583, %v6941
    %v6950 = vmul.f32 %v6584, %v6941
    %v6951 = vmul.f32 %v6585, %v6941
    %v6952 = vmul.f32 %v6586, %v6941
    %v6953 = vmul.f32 %v6587, %v6941
    %v6954 = vmul.f32 %v6588, %v6941
    %v6955 = vmul.f32 %v6589, %v6941
    %v6956 = vmul.f32 %v6590, %v6941
    %v6957 = vmul.f32 %v6591, %v6941
    %v6958 = vmul.f32 %v6592, %v6941
    %v6959 = vmul.f32 %v6593, %v6941
    %v6960 = vmul.f32 %v6594, %v6941
    %v6961 = vmul.f32 %v6595, %v6941
    %v6962 = vmul.f32 %v6596, %v6941
    %v6963 = vmul.f32 %v6597, %v6941
    %v6964 = vmul.f32 %v6598, %v6941
    %v6965 = vmul.f32 %v6599, %v6941
    %v6966 = vmul.f32 %v6600, %v6941
    %v6967 = vmul.f32 %v6601, %v6941
    %v6968 = vmul.f32 %v6602, %v6941
    %v6969 = vmul.f32 %v6603, %v6941
    %v6970 = vmul.f32 %v6604, %v6941
    %v6971 = vmul.f32 %v6605, %v6941
    %v6972 = vmul.f32 %v6606, %v6941
    %v6973 = vmul.f32 %v6607, %v6941
    %v6974 = vmul.f32 %v6608, %v6941
    %v6975 = vmul.f32 %v6609, %v6941
    %v6976 = vmul.f32 %v6610, %v6941
    %v6977 = vmul.f32 %v6611, %v6941
    %v6978 = vmul.f32 %v6612, %v6941
    %v6979 = vmul.f32 %v6613, %v6941
    %v6980 = vmul.f32 %v6614, %v6941
    %v6981 = vmul.f32 %v6615, %v6941
    %v6982 = vmul.f32 %v6616, %v6941
    %v6983 = vmul.f32 %v6617, %v6941
    %v6984 = vmul.f32 %v6618, %v6941
    %v6985 = vmul.f32 %v6619, %v6941
    %v6986 = vmul.f32 %v6620, %v6941
    %v6987 = vmul.f32 %v6621, %v6941
    %v6988 = vmul.f32 %v6622, %v6941
    %v6989 = vmul.f32 %v6623, %v6941
    %v6990 = vmul.f32 %v6624, %v6941
    %v6991 = vmul.f32 %v6625, %v6941
    %v6992 = vmul.f32 %v6626, %v6941
    %v6993 = vmul.f32 %v6627, %v6941
    %v6994 = vmul.f32 %v6628, %v6941
    %v6995 = vmul.f32 %v6629, %v6941
    %v6996 = vmul.f32 %v6630, %v6941
    %v6997 = vmul.f32 %v6631, %v6941
    %v6998 = vmul.f32 %v6632, %v6941
    %v7000 = vlaneseq
    %v7001 = vshrl.u32 %v7000, 7
    %v7002 = vsub.s32 0, %v7001
    %v7003 = vrot.slane %v6936, %v7002
    %v7005 = vadd.f32 %v6943, %v7003
    %v7006 = vadd.f32 %v6944, %v7003
    %v7007 = vadd.f32 %v6945, %v7003
    %v7008 = vadd.f32 %v6946, %v7003
    %v7009 = vadd.f32 %v6947, %v7003
    %v7010 = vadd.f32 %v6948, %v7003
    %v7011 = vadd.f32 %v6949, %v7003
    %v7012 = vadd.f32 %v6950, %v7003
    %v7013 = vadd.f32 %v6951, %v7003
    %v7014 = vadd.f32 %v6952, %v7003
    %v7015 = vadd.f32 %v6953, %v7003
    %v7016 = vadd.f32 %v6954, %v7003
    %v7017 = vadd.f32 %v6955, %v7003
    %v7018 = vadd.f32 %v6956, %v7003
    %v7019 = vadd.f32 %v6957, %v7003
    %v7020 = vadd.f32 %v6958, %v7003
    %v7021 = vadd.f32 %v6959, %v7003
    %v7022 = vadd.f32 %v6960, %v7003
    %v7023 = vadd.f32 %v6961, %v7003
    %v7024 = vadd.f32 %v6962, %v7003
    %v7025 = vadd.f32 %v6963, %v7003
    %v7026 = vadd.f32 %v6964, %v7003
    %v7027 = vadd.f32 %v6965, %v7003
    %v7028 = vadd.f32 %v6966, %v7003
    %v7029 = vadd.f32 %v6967, %v7003
    %v7030 = vadd.f32 %v6968, %v7003
    %v7031 = vadd.f32 %v6969, %v7003
    %v7032 = vadd.f32 %v6970, %v7003
    %v7033 = vadd.f32 %v6971, %v7003
    %v7034 = vadd.f32 %v6972, %v7003
    %v7035 = vadd.f32 %v6973, %v7003
    %v7036 = vadd.f32 %v6974, %v7003
    %v7037 = vadd.f32 %v6975, %v7003
    %v7038 = vadd.f32 %v6976, %v7003
    %v7039 = vadd.f32 %v6977, %v7003
    %v7040 = vadd.f32 %v6978, %v7003
    %v7041 = vadd.f32 %v6979, %v7003
    %v7042 = vadd.f32 %v6980, %v7003
    %v7043 = vadd.f32 %v6981, %v7003
    %v7044 = vadd.f32 %v6982, %v7003
    %v7045 = vadd.f32 %v6983, %v7003
    %v7046 = vadd.f32 %v6984, %v7003
    %v7047 = vadd.f32 %v6985, %v7003
    %v7048 = vadd.f32 %v6986, %v7003
    %v7049 = vadd.f32 %v6987, %v7003
    %v7050 = vadd.f32 %v6988, %v7003
    %v7051 = vadd.f32 %v6989, %v7003
    %v7052 = vadd.f32 %v6990, %v7003
    %v7053 = vadd.f32 %v6991, %v7003
    %v7054 = vadd.f32 %v6992, %v7003
    %v7055 = vadd.f32 %v6993, %v7003
    %v7056 = vadd.f32 %v6994, %v7003
    %v7057 = vadd.f32 %v6995, %v7003
    %v7058 = vadd.f32 %v6996, %v7003
    %v7059 = vadd.f32 %v6997, %v7003
    %v7060 = vadd.f32 %v6998, %v7003
    %v7117 = vrot.slane %v7005, 1
    %v7118 = vrot.slane %v7006, 1
    %v7119 = vsel %vm3880, %v7117, %v7118
    %v7120 = vrot.slane %v7007, 1
    %v7121 = vsel %vm3880, %v7118, %v7120
    %v7122 = vrot.slane %v7008, 1
    %v7123 = vsel %vm3880, %v7120, %v7122
    %v7124 = vrot.slane %v7009, 1
    %v7125 = vsel %vm3880, %v7122, %v7124
    %v7126 = vrot.slane %v7010, 1
    %v7127 = vsel %vm3880, %v7124, %v7126
    %v7128 = vrot.slane %v7011, 1
    %v7129 = vsel %vm3880, %v7126, %v7128
    %v7130 = vrot.slane %v7012, 1
    %v7131 = vrot.slane %v7013, 1
    %v7132 = vsel %vm3880, %v7130, %v7131
    %v7133 = vrot.slane %v7014, 1
    %v7134 = vsel %vm3880, %v7131, %v7133
    %v7135 = vrot.slane %v7015, 1
    %v7136 = vsel %vm3880, %v7133, %v7135
    %v7137 = vrot.slane %v7016, 1
    %v7138 = vsel %vm3880, %v7135, %v7137
    %v7139 = vrot.slane %v7017, 1
    %v7140 = vsel %vm3880, %v7137, %v7139
    %v7141 = vrot.slane %v7018, 1
    %v7142 = vsel %vm3880, %v7139, %v7141
    %v7143 = vrot.slane %v7019, 1
    %v7144 = vrot.slane %v7020, 1
    %v7145 = vsel %vm3880, %v7143, %v7144
    %v7146 = vrot.slane %v7021, 1
    %v7147 = vsel %vm3880, %v7144, %v7146
    %v7148 = vrot.slane %v7022, 1
    %v7149 = vsel %vm3880, %v7146, %v7148
    %v7150 = vrot.slane %v7023, 1
    %v7151 = vsel %vm3880, %v7148, %v7150
    %v7152 = vrot.slane %v7024, 1
    %v7153 = vsel %vm3880, %v7150, %v7152
    %v7154 = vrot.slane %v7025, 1
    %v7155 = vsel %vm3880, %v7152, %v7154
    %v7156 = vrot.slane %v7026, 1
    %v7157 = vrot.slane %v7027, 1
    %v7158 = vsel %vm3880, %v7156, %v7157
    %v7159 = vrot.slane %v7028, 1
    %v7160 = vsel %vm3880, %v7157, %v7159
    %v7161 = vrot.slane %v7029, 1
    %v7162 = vsel %vm3880, %v7159, %v7161
    %v7163 = vrot.slane %v7030, 1
    %v7164 = vsel %vm3880, %v7161, %v7163
    %v7165 = vrot.slane %v7031, 1
    %v7166 = vsel %vm3880, %v7163, %v7165
    %v7167 = vrot.slane %v7032, 1
    %v7168 = vsel %vm3880, %v7165, %v7167
    %v7169 = vrot.slane %v7033, 1
    %v7170 = vrot.slane %v7034, 1
    %v7171 = vsel %vm3880, %v7169, %v7170
    %v7172 = vrot.slane %v7035, 1
    %v7173 = vsel %vm3880, %v7170, %v7172
    %v7174 = vrot.slane %v7036, 1
    %v7175 = vsel %vm3880, %v7172, %v7174
    %v7176 = vrot.slane %v7037, 1
    %v7177 = vsel %vm3880, %v7174, %v7176
    %v7178 = vrot.slane %v7038, 1
    %v7179 = vsel %vm3880, %v7176, %v7178
    %v7180 = vrot.slane %v7039, 1
    %v7181 = vsel %vm3880, %v7178, %v7180
    %v7182 = vrot.slane %v7040, 1
    %v7183 = vrot.slane %v7041, 1
    %v7184 = vsel %vm3880, %v7182, %v7183
    %v7185 = vrot.slane %v7042, 1
    %v7186 = vsel %vm3880, %v7183, %v7185
    %v7187 = vrot.slane %v7043, 1
    %v7188 = vsel %vm3880, %v7185, %v7187
    %v7189 = vrot.slane %v7044, 1
    %v7190 = vsel %vm3880, %v7187, %v7189
    %v7191 = vrot.slane %v7045, 1
    %v7192 = vsel %vm3880, %v7189, %v7191
    %v7193 = vrot.slane %v7046, 1
    %v7194 = vsel %vm3880, %v7191, %v7193
    %v7195 = vrot.slane %v7047, 1
    %v7196 = vrot.slane %v7048, 1
    %v7197 = vsel %vm3880, %v7195, %v7196
    %v7198 = vrot.slane %v7049, 1
    %v7199 = vsel %vm3880, %v7196, %v7198
    %v7200 = vrot.slane %v7050, 1
    %v7201 = vsel %vm3880, %v7198, %v7200
    %v7202 = vrot.slane %v7051, 1
    %v7203 = vsel %vm3880, %v7200, %v7202
    %v7204 = vrot.slane %v7052, 1
    %v7205 = vsel %vm3880, %v7202, %v7204
    %v7206 = vrot.slane %v7053, 1
    %v7207 = vsel %vm3880, %v7204, %v7206
    %v7208 = vrot.slane %v7054, 1
    %v7209 = vrot.slane %v7055, 1
    %v7210 = vsel %vm3880, %v7208, %v7209
    %v7211 = vrot.slane %v7056, 1
    %v7212 = vsel %vm3880, %v7209, %v7211
    %v7213 = vrot.slane %v7057, 1
    %v7214 = vsel %vm3880, %v7211, %v7213
    %v7215 = vrot.slane %v7058, 1
    %v7216 = vsel %vm3880, %v7213, %v7215
    %v7217 = vrot.slane %v7059, 1
    %v7218 = vsel %vm3880, %v7215, %v7217
    %v7219 = vrot.slane %v7060, 1
    %v7220 = vsel %vm3880, %v7217, %v7219
    %7221 = vrot.lane.b32.xlu0 %v7119, 32
    %v7222 = vpop.permute.xlu0 %7221
    %7223 = vrot.lane.b32.xlu0 %v7121, 32
    %v7224 = vpop.permute.xlu0 %7223
    %7225 = vrot.lane.b32.xlu0 %v7123, 32
    %v7226 = vpop.permute.xlu0 %7225
    %7227 = vrot.lane.b32.xlu0 %v7125, 32
    %v7228 = vpop.permute.xlu0 %7227
    %7229 = vrot.lane.b32.xlu0 %v7127, 32
    %v7230 = vpop.permute.xlu0 %7229
    %7231 = vrot.lane.b32.xlu0 %v7129, 32
    %v7232 = vpop.permute.xlu0 %7231
    %7233 = vrot.lane.b32.xlu0 %v7132, 32
    %v7234 = vpop.permute.xlu0 %7233
    %7235 = vrot.lane.b32.xlu0 %v7134, 32
    %v7236 = vpop.permute.xlu0 %7235
    %7237 = vrot.lane.b32.xlu0 %v7136, 32
    %v7238 = vpop.permute.xlu0 %7237
    %7239 = vrot.lane.b32.xlu0 %v7138, 32
    %v7240 = vpop.permute.xlu0 %7239
    %7241 = vrot.lane.b32.xlu0 %v7140, 32
    %v7242 = vpop.permute.xlu0 %7241
    %7243 = vrot.lane.b32.xlu0 %v7142, 32
    %v7244 = vpop.permute.xlu0 %7243
    %7245 = vrot.lane.b32.xlu0 %v7145, 32
    %v7246 = vpop.permute.xlu0 %7245
    %7247 = vrot.lane.b32.xlu0 %v7147, 32
    %v7248 = vpop.permute.xlu0 %7247
    %7249 = vrot.lane.b32.xlu0 %v7149, 32
    %v7250 = vpop.permute.xlu0 %7249
    %7251 = vrot.lane.b32.xlu0 %v7151, 32
    %v7252 = vpop.permute.xlu0 %7251
    %7253 = vrot.lane.b32.xlu0 %v7153, 32
    %v7254 = vpop.permute.xlu0 %7253
    %7255 = vrot.lane.b32.xlu0 %v7155, 32
    %v7256 = vpop.permute.xlu0 %7255
    %7257 = vrot.lane.b32.xlu0 %v7158, 32
    %v7258 = vpop.permute.xlu0 %7257
    %7259 = vrot.lane.b32.xlu0 %v7160, 32
    %v7260 = vpop.permute.xlu0 %7259
    %7261 = vrot.lane.b32.xlu0 %v7162, 32
    %v7262 = vpop.permute.xlu0 %7261
    %7263 = vrot.lane.b32.xlu0 %v7164, 32
    %v7264 = vpop.permute.xlu0 %7263
    %7265 = vrot.lane.b32.xlu0 %v7166, 32
    %v7266 = vpop.permute.xlu0 %7265
    %7267 = vrot.lane.b32.xlu0 %v7168, 32
    %v7268 = vpop.permute.xlu0 %7267
    %7269 = vrot.lane.b32.xlu0 %v7171, 32
    %v7270 = vpop.permute.xlu0 %7269
    %7271 = vrot.lane.b32.xlu0 %v7173, 32
    %v7272 = vpop.permute.xlu0 %7271
    %7273 = vrot.lane.b32.xlu0 %v7175, 32
    %v7274 = vpop.permute.xlu0 %7273
    %7275 = vrot.lane.b32.xlu0 %v7177, 32
    %v7276 = vpop.permute.xlu0 %7275
    %7277 = vrot.lane.b32.xlu0 %v7179, 32
    %v7278 = vpop.permute.xlu0 %7277
    %7279 = vrot.lane.b32.xlu0 %v7181, 32
    %v7280 = vpop.permute.xlu0 %7279
    %7281 = vrot.lane.b32.xlu0 %v7184, 32
    %v7282 = vpop.permute.xlu0 %7281
    %7283 = vrot.lane.b32.xlu0 %v7186, 32
    %v7284 = vpop.permute.xlu0 %7283
    %7285 = vrot.lane.b32.xlu0 %v7188, 32
    %v7286 = vpop.permute.xlu0 %7285
    %7287 = vrot.lane.b32.xlu0 %v7190, 32
    %v7288 = vpop.permute.xlu0 %7287
    %7289 = vrot.lane.b32.xlu0 %v7192, 32
    %v7290 = vpop.permute.xlu0 %7289
    %7291 = vrot.lane.b32.xlu0 %v7194, 32
    %v7292 = vpop.permute.xlu0 %7291
    %7293 = vrot.lane.b32.xlu0 %v7197, 32
    %v7294 = vpop.permute.xlu0 %7293
    %7295 = vrot.lane.b32.xlu0 %v7199, 32
    %v7296 = vpop.permute.xlu0 %7295
    %7297 = vrot.lane.b32.xlu0 %v7201, 32
    %v7298 = vpop.permute.xlu0 %7297
    %7299 = vrot.lane.b32.xlu0 %v7203, 32
    %v7300 = vpop.permute.xlu0 %7299
    %7301 = vrot.lane.b32.xlu0 %v7205, 32
    %v7302 = vpop.permute.xlu0 %7301
    %7303 = vrot.lane.b32.xlu0 %v7207, 32
    %v7304 = vpop.permute.xlu0 %7303
    %7305 = vrot.lane.b32.xlu0 %v7210, 32
    %v7306 = vpop.permute.xlu0 %7305
    %7307 = vrot.lane.b32.xlu0 %v7212, 32
    %v7308 = vpop.permute.xlu0 %7307
    %7309 = vrot.lane.b32.xlu0 %v7214, 32
    %v7310 = vpop.permute.xlu0 %7309
    %7311 = vrot.lane.b32.xlu0 %v7216, 32
    %v7312 = vpop.permute.xlu0 %7311
    %7313 = vrot.lane.b32.xlu0 %v7218, 32
    %v7314 = vpop.permute.xlu0 %7313
    %7315 = vrot.lane.b32.xlu0 %v7220, 32
    %v7316 = vpop.permute.xlu0 %7315
    %v7365 = vrot.slane %v7005, 2
    %v7366 = vrot.slane %v7006, 2
    %v7367 = vsel %vm4169, %v7365, %v7366
    %v7368 = vrot.slane %v7007, 2
    %v7369 = vsel %vm4169, %v7366, %v7368
    %v7370 = vrot.slane %v7008, 2
    %v7371 = vsel %vm4169, %v7368, %v7370
    %v7372 = vrot.slane %v7009, 2
    %v7373 = vsel %vm4169, %v7370, %v7372
    %v7374 = vrot.slane %v7010, 2
    %v7375 = vsel %vm4169, %v7372, %v7374
    %v7376 = vrot.slane %v7011, 2
    %v7377 = vsel %vm4169, %v7374, %v7376
    %v7378 = vrot.slane %v7012, 2
    %v7379 = vrot.slane %v7013, 2
    %v7380 = vsel %vm4169, %v7378, %v7379
    %v7381 = vrot.slane %v7014, 2
    %v7382 = vsel %vm4169, %v7379, %v7381
    %v7383 = vrot.slane %v7015, 2
    %v7384 = vsel %vm4169, %v7381, %v7383
    %v7385 = vrot.slane %v7016, 2
    %v7386 = vsel %vm4169, %v7383, %v7385
    %v7387 = vrot.slane %v7017, 2
    %v7388 = vsel %vm4169, %v7385, %v7387
    %v7389 = vrot.slane %v7018, 2
    %v7390 = vsel %vm4169, %v7387, %v7389
    %v7391 = vrot.slane %v7019, 2
    %v7392 = vrot.slane %v7020, 2
    %v7393 = vsel %vm4169, %v7391, %v7392
    %v7394 = vrot.slane %v7021, 2
    %v7395 = vsel %vm4169, %v7392, %v7394
    %v7396 = vrot.slane %v7022, 2
    %v7397 = vsel %vm4169, %v7394, %v7396
    %v7398 = vrot.slane %v7023, 2
    %v7399 = vsel %vm4169, %v7396, %v7398
    %v7400 = vrot.slane %v7024, 2
    %v7401 = vsel %vm4169, %v7398, %v7400
    %v7402 = vrot.slane %v7025, 2
    %v7403 = vsel %vm4169, %v7400, %v7402
    %v7404 = vrot.slane %v7026, 2
    %v7405 = vrot.slane %v7027, 2
    %v7406 = vsel %vm4169, %v7404, %v7405
    %v7407 = vrot.slane %v7028, 2
    %v7408 = vsel %vm4169, %v7405, %v7407
    %v7409 = vrot.slane %v7029, 2
    %v7410 = vsel %vm4169, %v7407, %v7409
    %v7411 = vrot.slane %v7030, 2
    %v7412 = vsel %vm4169, %v7409, %v7411
    %v7413 = vrot.slane %v7031, 2
    %v7414 = vsel %vm4169, %v7411, %v7413
    %v7415 = vrot.slane %v7032, 2
    %v7416 = vsel %vm4169, %v7413, %v7415
    %v7417 = vrot.slane %v7033, 2
    %v7418 = vrot.slane %v7034, 2
    %v7419 = vsel %vm4169, %v7417, %v7418
    %v7420 = vrot.slane %v7035, 2
    %v7421 = vsel %vm4169, %v7418, %v7420
    %v7422 = vrot.slane %v7036, 2
    %v7423 = vsel %vm4169, %v7420, %v7422
    %v7424 = vrot.slane %v7037, 2
    %v7425 = vsel %vm4169, %v7422, %v7424
    %v7426 = vrot.slane %v7038, 2
    %v7427 = vsel %vm4169, %v7424, %v7426
    %v7428 = vrot.slane %v7039, 2
    %v7429 = vsel %vm4169, %v7426, %v7428
    %v7430 = vrot.slane %v7040, 2
    %v7431 = vrot.slane %v7041, 2
    %v7432 = vsel %vm4169, %v7430, %v7431
    %v7433 = vrot.slane %v7042, 2
    %v7434 = vsel %vm4169, %v7431, %v7433
    %v7435 = vrot.slane %v7043, 2
    %v7436 = vsel %vm4169, %v7433, %v7435
    %v7437 = vrot.slane %v7044, 2
    %v7438 = vsel %vm4169, %v7435, %v7437
    %v7439 = vrot.slane %v7045, 2
    %v7440 = vsel %vm4169, %v7437, %v7439
    %v7441 = vrot.slane %v7046, 2
    %v7442 = vsel %vm4169, %v7439, %v7441
    %v7443 = vrot.slane %v7047, 2
    %v7444 = vrot.slane %v7048, 2
    %v7445 = vsel %vm4169, %v7443, %v7444
    %v7446 = vrot.slane %v7049, 2
    %v7447 = vsel %vm4169, %v7444, %v7446
    %v7448 = vrot.slane %v7050, 2
    %v7449 = vsel %vm4169, %v7446, %v7448
    %v7450 = vrot.slane %v7051, 2
    %v7451 = vsel %vm4169, %v7448, %v7450
    %v7452 = vrot.slane %v7052, 2
    %v7453 = vsel %vm4169, %v7450, %v7452
    %v7454 = vrot.slane %v7053, 2
    %v7455 = vsel %vm4169, %v7452, %v7454
    %v7456 = vrot.slane %v7054, 2
    %v7457 = vrot.slane %v7055, 2
    %v7458 = vsel %vm4169, %v7456, %v7457
    %v7459 = vrot.slane %v7056, 2
    %v7460 = vsel %vm4169, %v7457, %v7459
    %v7461 = vrot.slane %v7057, 2
    %v7462 = vsel %vm4169, %v7459, %v7461
    %v7463 = vrot.slane %v7058, 2
    %v7464 = vsel %vm4169, %v7461, %v7463
    %v7465 = vrot.slane %v7059, 2
    %v7466 = vsel %vm4169, %v7463, %v7465
    %v7467 = vrot.slane %v7060, 2
    %v7468 = vsel %vm4169, %v7465, %v7467
    %7469 = vrot.lane.b32.xlu0 %v7367, 64
    %v7470 = vpop.permute.xlu0 %7469
    %7471 = vrot.lane.b32.xlu0 %v7369, 64
    %v7472 = vpop.permute.xlu0 %7471
    %7473 = vrot.lane.b32.xlu0 %v7371, 64
    %v7474 = vpop.permute.xlu0 %7473
    %7475 = vrot.lane.b32.xlu0 %v7373, 64
    %v7476 = vpop.permute.xlu0 %7475
    %7477 = vrot.lane.b32.xlu0 %v7375, 64
    %v7478 = vpop.permute.xlu0 %7477
    %7479 = vrot.lane.b32.xlu0 %v7377, 64
    %v7480 = vpop.permute.xlu0 %7479
    %7481 = vrot.lane.b32.xlu0 %v7380, 64
    %v7482 = vpop.permute.xlu0 %7481
    %7483 = vrot.lane.b32.xlu0 %v7382, 64
    %v7484 = vpop.permute.xlu0 %7483
    %7485 = vrot.lane.b32.xlu0 %v7384, 64
    %v7486 = vpop.permute.xlu0 %7485
    %7487 = vrot.lane.b32.xlu0 %v7386, 64
    %v7488 = vpop.permute.xlu0 %7487
    %7489 = vrot.lane.b32.xlu0 %v7388, 64
    %v7490 = vpop.permute.xlu0 %7489
    %7491 = vrot.lane.b32.xlu0 %v7390, 64
    %v7492 = vpop.permute.xlu0 %7491
    %7493 = vrot.lane.b32.xlu0 %v7393, 64
    %v7494 = vpop.permute.xlu0 %7493
    %7495 = vrot.lane.b32.xlu0 %v7395, 64
    %v7496 = vpop.permute.xlu0 %7495
    %7497 = vrot.lane.b32.xlu0 %v7397, 64
    %v7498 = vpop.permute.xlu0 %7497
    %7499 = vrot.lane.b32.xlu0 %v7399, 64
    %v7500 = vpop.permute.xlu0 %7499
    %7501 = vrot.lane.b32.xlu0 %v7401, 64
    %v7502 = vpop.permute.xlu0 %7501
    %7503 = vrot.lane.b32.xlu0 %v7403, 64
    %v7504 = vpop.permute.xlu0 %7503
    %7505 = vrot.lane.b32.xlu0 %v7406, 64
    %v7506 = vpop.permute.xlu0 %7505
    %7507 = vrot.lane.b32.xlu0 %v7408, 64
    %v7508 = vpop.permute.xlu0 %7507
    %7509 = vrot.lane.b32.xlu0 %v7410, 64
    %v7510 = vpop.permute.xlu0 %7509
    %7511 = vrot.lane.b32.xlu0 %v7412, 64
    %v7512 = vpop.permute.xlu0 %7511
    %7513 = vrot.lane.b32.xlu0 %v7414, 64
    %v7514 = vpop.permute.xlu0 %7513
    %7515 = vrot.lane.b32.xlu0 %v7416, 64
    %v7516 = vpop.permute.xlu0 %7515
    %7517 = vrot.lane.b32.xlu0 %v7419, 64
    %v7518 = vpop.permute.xlu0 %7517
    %7519 = vrot.lane.b32.xlu0 %v7421, 64
    %v7520 = vpop.permute.xlu0 %7519
    %7521 = vrot.lane.b32.xlu0 %v7423, 64
    %v7522 = vpop.permute.xlu0 %7521
    %7523 = vrot.lane.b32.xlu0 %v7425, 64
    %v7524 = vpop.permute.xlu0 %7523
    %7525 = vrot.lane.b32.xlu0 %v7427, 64
    %v7526 = vpop.permute.xlu0 %7525
    %7527 = vrot.lane.b32.xlu0 %v7429, 64
    %v7528 = vpop.permute.xlu0 %7527
    %7529 = vrot.lane.b32.xlu0 %v7432, 64
    %v7530 = vpop.permute.xlu0 %7529
    %7531 = vrot.lane.b32.xlu0 %v7434, 64
    %v7532 = vpop.permute.xlu0 %7531
    %7533 = vrot.lane.b32.xlu0 %v7436, 64
    %v7534 = vpop.permute.xlu0 %7533
    %7535 = vrot.lane.b32.xlu0 %v7438, 64
    %v7536 = vpop.permute.xlu0 %7535
    %7537 = vrot.lane.b32.xlu0 %v7440, 64
    %v7538 = vpop.permute.xlu0 %7537
    %7539 = vrot.lane.b32.xlu0 %v7442, 64
    %v7540 = vpop.permute.xlu0 %7539
    %7541 = vrot.lane.b32.xlu0 %v7445, 64
    %v7542 = vpop.permute.xlu0 %7541
    %7543 = vrot.lane.b32.xlu0 %v7447, 64
    %v7544 = vpop.permute.xlu0 %7543
    %7545 = vrot.lane.b32.xlu0 %v7449, 64
    %v7546 = vpop.permute.xlu0 %7545
    %7547 = vrot.lane.b32.xlu0 %v7451, 64
    %v7548 = vpop.permute.xlu0 %7547
    %7549 = vrot.lane.b32.xlu0 %v7453, 64
    %v7550 = vpop.permute.xlu0 %7549
    %7551 = vrot.lane.b32.xlu0 %v7455, 64
    %v7552 = vpop.permute.xlu0 %7551
    %7553 = vrot.lane.b32.xlu0 %v7458, 64
    %v7554 = vpop.permute.xlu0 %7553
    %7555 = vrot.lane.b32.xlu0 %v7460, 64
    %v7556 = vpop.permute.xlu0 %7555
    %7557 = vrot.lane.b32.xlu0 %v7462, 64
    %v7558 = vpop.permute.xlu0 %7557
    %7559 = vrot.lane.b32.xlu0 %v7464, 64
    %v7560 = vpop.permute.xlu0 %7559
    %7561 = vrot.lane.b32.xlu0 %v7466, 64
    %v7562 = vpop.permute.xlu0 %7561
    %7563 = vrot.lane.b32.xlu0 %v7468, 64
    %v7564 = vpop.permute.xlu0 %7563
    %v7613 = vrot.slane %v7005, 3
    %v7614 = vrot.slane %v7006, 3
    %v7615 = vsel %vm4458, %v7613, %v7614
    %v7616 = vrot.slane %v7007, 3
    %v7617 = vsel %vm4458, %v7614, %v7616
    %v7618 = vrot.slane %v7008, 3
    %v7619 = vsel %vm4458, %v7616, %v7618
    %v7620 = vrot.slane %v7009, 3
    %v7621 = vsel %vm4458, %v7618, %v7620
    %v7622 = vrot.slane %v7010, 3
    %v7623 = vsel %vm4458, %v7620, %v7622
    %v7624 = vrot.slane %v7011, 3
    %v7625 = vsel %vm4458, %v7622, %v7624
    %v7626 = vrot.slane %v7012, 3
    %v7627 = vrot.slane %v7013, 3
    %v7628 = vsel %vm4458, %v7626, %v7627
    %v7629 = vrot.slane %v7014, 3
    %v7630 = vsel %vm4458, %v7627, %v7629
    %v7631 = vrot.slane %v7015, 3
    %v7632 = vsel %vm4458, %v7629, %v7631
    %v7633 = vrot.slane %v7016, 3
    %v7634 = vsel %vm4458, %v7631, %v7633
    %v7635 = vrot.slane %v7017, 3
    %v7636 = vsel %vm4458, %v7633, %v7635
    %v7637 = vrot.slane %v7018, 3
    %v7638 = vsel %vm4458, %v7635, %v7637
    %v7639 = vrot.slane %v7019, 3
    %v7640 = vrot.slane %v7020, 3
    %v7641 = vsel %vm4458, %v7639, %v7640
    %v7642 = vrot.slane %v7021, 3
    %v7643 = vsel %vm4458, %v7640, %v7642
    %v7644 = vrot.slane %v7022, 3
    %v7645 = vsel %vm4458, %v7642, %v7644
    %v7646 = vrot.slane %v7023, 3
    %v7647 = vsel %vm4458, %v7644, %v7646
    %v7648 = vrot.slane %v7024, 3
    %v7649 = vsel %vm4458, %v7646, %v7648
    %v7650 = vrot.slane %v7025, 3
    %v7651 = vsel %vm4458, %v7648, %v7650
    %v7652 = vrot.slane %v7026, 3
    %v7653 = vrot.slane %v7027, 3
    %v7654 = vsel %vm4458, %v7652, %v7653
    %v7655 = vrot.slane %v7028, 3
    %v7656 = vsel %vm4458, %v7653, %v7655
    %v7657 = vrot.slane %v7029, 3
    %v7658 = vsel %vm4458, %v7655, %v7657
    %v7659 = vrot.slane %v7030, 3
    %v7660 = vsel %vm4458, %v7657, %v7659
    %v7661 = vrot.slane %v7031, 3
    %v7662 = vsel %vm4458, %v7659, %v7661
    %v7663 = vrot.slane %v7032, 3
    %v7664 = vsel %vm4458, %v7661, %v7663
    %v7665 = vrot.slane %v7033, 3
    %v7666 = vrot.slane %v7034, 3
    %v7667 = vsel %vm4458, %v7665, %v7666
    %v7668 = vrot.slane %v7035, 3
    %v7669 = vsel %vm4458, %v7666, %v7668
    %v7670 = vrot.slane %v7036, 3
    %v7671 = vsel %vm4458, %v7668, %v7670
    %v7672 = vrot.slane %v7037, 3
    %v7673 = vsel %vm4458, %v7670, %v7672
    %v7674 = vrot.slane %v7038, 3
    %v7675 = vsel %vm4458, %v7672, %v7674
    %v7676 = vrot.slane %v7039, 3
    %v7677 = vsel %vm4458, %v7674, %v7676
    %v7678 = vrot.slane %v7040, 3
    %v7679 = vrot.slane %v7041, 3
    %v7680 = vsel %vm4458, %v7678, %v7679
    %v7681 = vrot.slane %v7042, 3
    %v7682 = vsel %vm4458, %v7679, %v7681
    %v7683 = vrot.slane %v7043, 3
    %v7684 = vsel %vm4458, %v7681, %v7683
    %v7685 = vrot.slane %v7044, 3
    %v7686 = vsel %vm4458, %v7683, %v7685
    %v7687 = vrot.slane %v7045, 3
    %v7688 = vsel %vm4458, %v7685, %v7687
    %v7689 = vrot.slane %v7046, 3
    %v7690 = vsel %vm4458, %v7687, %v7689
    %v7691 = vrot.slane %v7047, 3
    %v7692 = vrot.slane %v7048, 3
    %v7693 = vsel %vm4458, %v7691, %v7692
    %v7694 = vrot.slane %v7049, 3
    %v7695 = vsel %vm4458, %v7692, %v7694
    %v7696 = vrot.slane %v7050, 3
    %v7697 = vsel %vm4458, %v7694, %v7696
    %v7698 = vrot.slane %v7051, 3
    %v7699 = vsel %vm4458, %v7696, %v7698
    %v7700 = vrot.slane %v7052, 3
    %v7701 = vsel %vm4458, %v7698, %v7700
    %v7702 = vrot.slane %v7053, 3
    %v7703 = vsel %vm4458, %v7700, %v7702
    %v7704 = vrot.slane %v7054, 3
    %v7705 = vrot.slane %v7055, 3
    %v7706 = vsel %vm4458, %v7704, %v7705
    %v7707 = vrot.slane %v7056, 3
    %v7708 = vsel %vm4458, %v7705, %v7707
    %v7709 = vrot.slane %v7057, 3
    %v7710 = vsel %vm4458, %v7707, %v7709
    %v7711 = vrot.slane %v7058, 3
    %v7712 = vsel %vm4458, %v7709, %v7711
    %v7713 = vrot.slane %v7059, 3
    %v7714 = vsel %vm4458, %v7711, %v7713
    %v7715 = vrot.slane %v7060, 3
    %v7716 = vsel %vm4458, %v7713, %v7715
    %7717 = vrot.lane.b32.xlu0 %v7615, 96
    %v7718 = vpop.permute.xlu0 %7717
    %7719 = vrot.lane.b32.xlu0 %v7617, 96
    %v7720 = vpop.permute.xlu0 %7719
    %7721 = vrot.lane.b32.xlu0 %v7619, 96
    %v7722 = vpop.permute.xlu0 %7721
    %7723 = vrot.lane.b32.xlu0 %v7621, 96
    %v7724 = vpop.permute.xlu0 %7723
    %7725 = vrot.lane.b32.xlu0 %v7623, 96
    %v7726 = vpop.permute.xlu0 %7725
    %7727 = vrot.lane.b32.xlu0 %v7625, 96
    %v7728 = vpop.permute.xlu0 %7727
    %7729 = vrot.lane.b32.xlu0 %v7628, 96
    %v7730 = vpop.permute.xlu0 %7729
    %7731 = vrot.lane.b32.xlu0 %v7630, 96
    %v7732 = vpop.permute.xlu0 %7731
    %7733 = vrot.lane.b32.xlu0 %v7632, 96
    %v7734 = vpop.permute.xlu0 %7733
    %7735 = vrot.lane.b32.xlu0 %v7634, 96
    %v7736 = vpop.permute.xlu0 %7735
    %7737 = vrot.lane.b32.xlu0 %v7636, 96
    %v7738 = vpop.permute.xlu0 %7737
    %7739 = vrot.lane.b32.xlu0 %v7638, 96
    %v7740 = vpop.permute.xlu0 %7739
    %7741 = vrot.lane.b32.xlu0 %v7641, 96
    %v7742 = vpop.permute.xlu0 %7741
    %7743 = vrot.lane.b32.xlu0 %v7643, 96
    %v7744 = vpop.permute.xlu0 %7743
    %7745 = vrot.lane.b32.xlu0 %v7645, 96
    %v7746 = vpop.permute.xlu0 %7745
    %7747 = vrot.lane.b32.xlu0 %v7647, 96
    %v7748 = vpop.permute.xlu0 %7747
    %7749 = vrot.lane.b32.xlu0 %v7649, 96
    %v7750 = vpop.permute.xlu0 %7749
    %7751 = vrot.lane.b32.xlu0 %v7651, 96
    %v7752 = vpop.permute.xlu0 %7751
    %7753 = vrot.lane.b32.xlu0 %v7654, 96
    %v7754 = vpop.permute.xlu0 %7753
    %7755 = vrot.lane.b32.xlu0 %v7656, 96
    %v7756 = vpop.permute.xlu0 %7755
    %7757 = vrot.lane.b32.xlu0 %v7658, 96
    %v7758 = vpop.permute.xlu0 %7757
    %7759 = vrot.lane.b32.xlu0 %v7660, 96
    %v7760 = vpop.permute.xlu0 %7759
    %7761 = vrot.lane.b32.xlu0 %v7662, 96
    %v7762 = vpop.permute.xlu0 %7761
    %7763 = vrot.lane.b32.xlu0 %v7664, 96
    %v7764 = vpop.permute.xlu0 %7763
    %7765 = vrot.lane.b32.xlu0 %v7667, 96
    %v7766 = vpop.permute.xlu0 %7765
    %7767 = vrot.lane.b32.xlu0 %v7669, 96
    %v7768 = vpop.permute.xlu0 %7767
    %7769 = vrot.lane.b32.xlu0 %v7671, 96
    %v7770 = vpop.permute.xlu0 %7769
    %7771 = vrot.lane.b32.xlu0 %v7673, 96
    %v7772 = vpop.permute.xlu0 %7771
    %7773 = vrot.lane.b32.xlu0 %v7675, 96
    %v7774 = vpop.permute.xlu0 %7773
    %7775 = vrot.lane.b32.xlu0 %v7677, 96
    %v7776 = vpop.permute.xlu0 %7775
    %7777 = vrot.lane.b32.xlu0 %v7680, 96
    %v7778 = vpop.permute.xlu0 %7777
    %7779 = vrot.lane.b32.xlu0 %v7682, 96
    %v7780 = vpop.permute.xlu0 %7779
    %7781 = vrot.lane.b32.xlu0 %v7684, 96
    %v7782 = vpop.permute.xlu0 %7781
    %7783 = vrot.lane.b32.xlu0 %v7686, 96
    %v7784 = vpop.permute.xlu0 %7783
    %7785 = vrot.lane.b32.xlu0 %v7688, 96
    %v7786 = vpop.permute.xlu0 %7785
    %7787 = vrot.lane.b32.xlu0 %v7690, 96
    %v7788 = vpop.permute.xlu0 %7787
    %7789 = vrot.lane.b32.xlu0 %v7693, 96
    %v7790 = vpop.permute.xlu0 %7789
    %7791 = vrot.lane.b32.xlu0 %v7695, 96
    %v7792 = vpop.permute.xlu0 %7791
    %7793 = vrot.lane.b32.xlu0 %v7697, 96
    %v7794 = vpop.permute.xlu0 %7793
    %7795 = vrot.lane.b32.xlu0 %v7699, 96
    %v7796 = vpop.permute.xlu0 %7795
    %7797 = vrot.lane.b32.xlu0 %v7701, 96
    %v7798 = vpop.permute.xlu0 %7797
    %7799 = vrot.lane.b32.xlu0 %v7703, 96
    %v7800 = vpop.permute.xlu0 %7799
    %7801 = vrot.lane.b32.xlu0 %v7706, 96
    %v7802 = vpop.permute.xlu0 %7801
    %7803 = vrot.lane.b32.xlu0 %v7708, 96
    %v7804 = vpop.permute.xlu0 %7803
    %7805 = vrot.lane.b32.xlu0 %v7710, 96
    %v7806 = vpop.permute.xlu0 %7805
    %7807 = vrot.lane.b32.xlu0 %v7712, 96
    %v7808 = vpop.permute.xlu0 %7807
    %7809 = vrot.lane.b32.xlu0 %v7714, 96
    %v7810 = vpop.permute.xlu0 %7809
    %7811 = vrot.lane.b32.xlu0 %v7716, 96
    %v7812 = vpop.permute.xlu0 %7811
    %v7861 = vrot.slane %v7005, 4
    %v7862 = vrot.slane %v7006, 4
    %v7863 = vsel %vm4747, %v7861, %v7862
    %v7864 = vrot.slane %v7007, 4
    %v7865 = vsel %vm4747, %v7862, %v7864
    %v7866 = vrot.slane %v7008, 4
    %v7867 = vsel %vm4747, %v7864, %v7866
    %v7868 = vrot.slane %v7009, 4
    %v7869 = vsel %vm4747, %v7866, %v7868
    %v7870 = vrot.slane %v7010, 4
    %v7871 = vsel %vm4747, %v7868, %v7870
    %v7872 = vrot.slane %v7011, 4
    %v7873 = vsel %vm4747, %v7870, %v7872
    %v7874 = vrot.slane %v7012, 4
    %v7875 = vrot.slane %v7013, 4
    %v7876 = vsel %vm4747, %v7874, %v7875
    %v7877 = vrot.slane %v7014, 4
    %v7878 = vsel %vm4747, %v7875, %v7877
    %v7879 = vrot.slane %v7015, 4
    %v7880 = vsel %vm4747, %v7877, %v7879
    %v7881 = vrot.slane %v7016, 4
    %v7882 = vsel %vm4747, %v7879, %v7881
    %v7883 = vrot.slane %v7017, 4
    %v7884 = vsel %vm4747, %v7881, %v7883
    %v7885 = vrot.slane %v7018, 4
    %v7886 = vsel %vm4747, %v7883, %v7885
    %v7887 = vrot.slane %v7019, 4
    %v7888 = vrot.slane %v7020, 4
    %v7889 = vsel %vm4747, %v7887, %v7888
    %v7890 = vrot.slane %v7021, 4
    %v7891 = vsel %vm4747, %v7888, %v7890
    %v7892 = vrot.slane %v7022, 4
    %v7893 = vsel %vm4747, %v7890, %v7892
    %v7894 = vrot.slane %v7023, 4
    %v7895 = vsel %vm4747, %v7892, %v7894
    %v7896 = vrot.slane %v7024, 4
    %v7897 = vsel %vm4747, %v7894, %v7896
    %v7898 = vrot.slane %v7025, 4
    %v7899 = vsel %vm4747, %v7896, %v7898
    %v7900 = vrot.slane %v7026, 4
    %v7901 = vrot.slane %v7027, 4
    %v7902 = vsel %vm4747, %v7900, %v7901
    %v7903 = vrot.slane %v7028, 4
    %v7904 = vsel %vm4747, %v7901, %v7903
    %v7905 = vrot.slane %v7029, 4
    %v7906 = vsel %vm4747, %v7903, %v7905
    %v7907 = vrot.slane %v7030, 4
    %v7908 = vsel %vm4747, %v7905, %v7907
    %v7909 = vrot.slane %v7031, 4
    %v7910 = vsel %vm4747, %v7907, %v7909
    %v7911 = vrot.slane %v7032, 4
    %v7912 = vsel %vm4747, %v7909, %v7911
    %v7913 = vrot.slane %v7033, 4
    %v7914 = vrot.slane %v7034, 4
    %v7915 = vsel %vm4747, %v7913, %v7914
    %v7916 = vrot.slane %v7035, 4
    %v7917 = vsel %vm4747, %v7914, %v7916
    %v7918 = vrot.slane %v7036, 4
    %v7919 = vsel %vm4747, %v7916, %v7918
    %v7920 = vrot.slane %v7037, 4
    %v7921 = vsel %vm4747, %v7918, %v7920
    %v7922 = vrot.slane %v7038, 4
    %v7923 = vsel %vm4747, %v7920, %v7922
    %v7924 = vrot.slane %v7039, 4
    %v7925 = vsel %vm4747, %v7922, %v7924
    %v7926 = vrot.slane %v7040, 4
    %v7927 = vrot.slane %v7041, 4
    %v7928 = vsel %vm4747, %v7926, %v7927
    %v7929 = vrot.slane %v7042, 4
    %v7930 = vsel %vm4747, %v7927, %v7929
    %v7931 = vrot.slane %v7043, 4
    %v7932 = vsel %vm4747, %v7929, %v7931
    %v7933 = vrot.slane %v7044, 4
    %v7934 = vsel %vm4747, %v7931, %v7933
    %v7935 = vrot.slane %v7045, 4
    %v7936 = vsel %vm4747, %v7933, %v7935
    %v7937 = vrot.slane %v7046, 4
    %v7938 = vsel %vm4747, %v7935, %v7937
    %v7939 = vrot.slane %v7047, 4
    %v7940 = vrot.slane %v7048, 4
    %v7941 = vsel %vm4747, %v7939, %v7940
    %v7942 = vrot.slane %v7049, 4
    %v7943 = vsel %vm4747, %v7940, %v7942
    %v7944 = vrot.slane %v7050, 4
    %v7945 = vsel %vm4747, %v7942, %v7944
    %v7946 = vrot.slane %v7051, 4
    %v7947 = vsel %vm4747, %v7944, %v7946
    %v7948 = vrot.slane %v7052, 4
    %v7949 = vsel %vm4747, %v7946, %v7948
    %v7950 = vrot.slane %v7053, 4
    %v7951 = vsel %vm4747, %v7948, %v7950
    %v7952 = vrot.slane %v7054, 4
    %v7953 = vrot.slane %v7055, 4
    %v7954 = vsel %vm4747, %v7952, %v7953
    %v7955 = vrot.slane %v7056, 4
    %v7956 = vsel %vm4747, %v7953, %v7955
    %v7957 = vrot.slane %v7057, 4
    %v7958 = vsel %vm4747, %v7955, %v7957
    %v7959 = vrot.slane %v7058, 4
    %v7960 = vsel %vm4747, %v7957, %v7959
    %v7961 = vrot.slane %v7059, 4
    %v7962 = vsel %vm4747, %v7959, %v7961
    %v7963 = vrot.slane %v7060, 4
    %v7964 = vsel %vm4747, %v7961, %v7963
    %v8013 = vrot.slane %v7005, 5
    %v8014 = vrot.slane %v7006, 5
    %v8015 = vsel %vm4924, %v8013, %v8014
    %v8016 = vrot.slane %v7007, 5
    %v8017 = vsel %vm4924, %v8014, %v8016
    %v8018 = vrot.slane %v7008, 5
    %v8019 = vsel %vm4924, %v8016, %v8018
    %v8020 = vrot.slane %v7009, 5
    %v8021 = vsel %vm4924, %v8018, %v8020
    %v8022 = vrot.slane %v7010, 5
    %v8023 = vsel %vm4924, %v8020, %v8022
    %v8024 = vrot.slane %v7011, 5
    %v8025 = vsel %vm4924, %v8022, %v8024
    %v8026 = vrot.slane %v7012, 5
    %v8027 = vrot.slane %v7013, 5
    %v8028 = vsel %vm4924, %v8026, %v8027
    %v8029 = vrot.slane %v7014, 5
    %v8030 = vsel %vm4924, %v8027, %v8029
    %v8031 = vrot.slane %v7015, 5
    %v8032 = vsel %vm4924, %v8029, %v8031
    %v8033 = vrot.slane %v7016, 5
    %v8034 = vsel %vm4924, %v8031, %v8033
    %v8035 = vrot.slane %v7017, 5
    %v8036 = vsel %vm4924, %v8033, %v8035
    %v8037 = vrot.slane %v7018, 5
    %v8038 = vsel %vm4924, %v8035, %v8037
    %v8039 = vrot.slane %v7019, 5
    %v8040 = vrot.slane %v7020, 5
    %v8041 = vsel %vm4924, %v8039, %v8040
    %v8042 = vrot.slane %v7021, 5
    %v8043 = vsel %vm4924, %v8040, %v8042
    %v8044 = vrot.slane %v7022, 5
    %v8045 = vsel %vm4924, %v8042, %v8044
    %v8046 = vrot.slane %v7023, 5
    %v8047 = vsel %vm4924, %v8044, %v8046
    %v8048 = vrot.slane %v7024, 5
    %v8049 = vsel %vm4924, %v8046, %v8048
    %v8050 = vrot.slane %v7025, 5
    %v8051 = vsel %vm4924, %v8048, %v8050
    %v8052 = vrot.slane %v7026, 5
    %v8053 = vrot.slane %v7027, 5
    %v8054 = vsel %vm4924, %v8052, %v8053
    %v8055 = vrot.slane %v7028, 5
    %v8056 = vsel %vm4924, %v8053, %v8055
    %v8057 = vrot.slane %v7029, 5
    %v8058 = vsel %vm4924, %v8055, %v8057
    %v8059 = vrot.slane %v7030, 5
    %v8060 = vsel %vm4924, %v8057, %v8059
    %v8061 = vrot.slane %v7031, 5
    %v8062 = vsel %vm4924, %v8059, %v8061
    %v8063 = vrot.slane %v7032, 5
    %v8064 = vsel %vm4924, %v8061, %v8063
    %v8065 = vrot.slane %v7033, 5
    %v8066 = vrot.slane %v7034, 5
    %v8067 = vsel %vm4924, %v8065, %v8066
    %v8068 = vrot.slane %v7035, 5
    %v8069 = vsel %vm4924, %v8066, %v8068
    %v8070 = vrot.slane %v7036, 5
    %v8071 = vsel %vm4924, %v8068, %v8070
    %v8072 = vrot.slane %v7037, 5
    %v8073 = vsel %vm4924, %v8070, %v8072
    %v8074 = vrot.slane %v7038, 5
    %v8075 = vsel %vm4924, %v8072, %v8074
    %v8076 = vrot.slane %v7039, 5
    %v8077 = vsel %vm4924, %v8074, %v8076
    %v8078 = vrot.slane %v7040, 5
    %v8079 = vrot.slane %v7041, 5
    %v8080 = vsel %vm4924, %v8078, %v8079
    %v8081 = vrot.slane %v7042, 5
    %v8082 = vsel %vm4924, %v8079, %v8081
    %v8083 = vrot.slane %v7043, 5
    %v8084 = vsel %vm4924, %v8081, %v8083
    %v8085 = vrot.slane %v7044, 5
    %v8086 = vsel %vm4924, %v8083, %v8085
    %v8087 = vrot.slane %v7045, 5
    %v8088 = vsel %vm4924, %v8085, %v8087
    %v8089 = vrot.slane %v7046, 5
    %v8090 = vsel %vm4924, %v8087, %v8089
    %v8091 = vrot.slane %v7047, 5
    %v8092 = vrot.slane %v7048, 5
    %v8093 = vsel %vm4924, %v8091, %v8092
    %v8094 = vrot.slane %v7049, 5
    %v8095 = vsel %vm4924, %v8092, %v8094
    %v8096 = vrot.slane %v7050, 5
    %v8097 = vsel %vm4924, %v8094, %v8096
    %v8098 = vrot.slane %v7051, 5
    %v8099 = vsel %vm4924, %v8096, %v8098
    %v8100 = vrot.slane %v7052, 5
    %v8101 = vsel %vm4924, %v8098, %v8100
    %v8102 = vrot.slane %v7053, 5
    %v8103 = vsel %vm4924, %v8100, %v8102
    %v8104 = vrot.slane %v7054, 5
    %v8105 = vrot.slane %v7055, 5
    %v8106 = vsel %vm4924, %v8104, %v8105
    %v8107 = vrot.slane %v7056, 5
    %v8108 = vsel %vm4924, %v8105, %v8107
    %v8109 = vrot.slane %v7057, 5
    %v8110 = vsel %vm4924, %v8107, %v8109
    %v8111 = vrot.slane %v7058, 5
    %v8112 = vsel %vm4924, %v8109, %v8111
    %v8113 = vrot.slane %v7059, 5
    %v8114 = vsel %vm4924, %v8111, %v8113
    %v8115 = vrot.slane %v7060, 5
    %v8116 = vsel %vm4924, %v8113, %v8115
    %8117 = vrot.lane.b32.xlu0 %v8015, 32
    %v8118 = vpop.permute.xlu0 %8117
    %8119 = vrot.lane.b32.xlu0 %v8017, 32
    %v8120 = vpop.permute.xlu0 %8119
    %8121 = vrot.lane.b32.xlu0 %v8019, 32
    %v8122 = vpop.permute.xlu0 %8121
    %8123 = vrot.lane.b32.xlu0 %v8021, 32
    %v8124 = vpop.permute.xlu0 %8123
    %8125 = vrot.lane.b32.xlu0 %v8023, 32
    %v8126 = vpop.permute.xlu0 %8125
    %8127 = vrot.lane.b32.xlu0 %v8025, 32
    %v8128 = vpop.permute.xlu0 %8127
    %8129 = vrot.lane.b32.xlu0 %v8028, 32
    %v8130 = vpop.permute.xlu0 %8129
    %8131 = vrot.lane.b32.xlu0 %v8030, 32
    %v8132 = vpop.permute.xlu0 %8131
    %8133 = vrot.lane.b32.xlu0 %v8032, 32
    %v8134 = vpop.permute.xlu0 %8133
    %8135 = vrot.lane.b32.xlu0 %v8034, 32
    %v8136 = vpop.permute.xlu0 %8135
    %8137 = vrot.lane.b32.xlu0 %v8036, 32
    %v8138 = vpop.permute.xlu0 %8137
    %8139 = vrot.lane.b32.xlu0 %v8038, 32
    %v8140 = vpop.permute.xlu0 %8139
    %8141 = vrot.lane.b32.xlu0 %v8041, 32
    %v8142 = vpop.permute.xlu0 %8141
    %8143 = vrot.lane.b32.xlu0 %v8043, 32
    %v8144 = vpop.permute.xlu0 %8143
    %8145 = vrot.lane.b32.xlu0 %v8045, 32
    %v8146 = vpop.permute.xlu0 %8145
    %8147 = vrot.lane.b32.xlu0 %v8047, 32
    %v8148 = vpop.permute.xlu0 %8147
    %8149 = vrot.lane.b32.xlu0 %v8049, 32
    %v8150 = vpop.permute.xlu0 %8149
    %8151 = vrot.lane.b32.xlu0 %v8051, 32
    %v8152 = vpop.permute.xlu0 %8151
    %8153 = vrot.lane.b32.xlu0 %v8054, 32
    %v8154 = vpop.permute.xlu0 %8153
    %8155 = vrot.lane.b32.xlu0 %v8056, 32
    %v8156 = vpop.permute.xlu0 %8155
    %8157 = vrot.lane.b32.xlu0 %v8058, 32
    %v8158 = vpop.permute.xlu0 %8157
    %8159 = vrot.lane.b32.xlu0 %v8060, 32
    %v8160 = vpop.permute.xlu0 %8159
    %8161 = vrot.lane.b32.xlu0 %v8062, 32
    %v8162 = vpop.permute.xlu0 %8161
    %8163 = vrot.lane.b32.xlu0 %v8064, 32
    %v8164 = vpop.permute.xlu0 %8163
    %8165 = vrot.lane.b32.xlu0 %v8067, 32
    %v8166 = vpop.permute.xlu0 %8165
    %8167 = vrot.lane.b32.xlu0 %v8069, 32
    %v8168 = vpop.permute.xlu0 %8167
    %8169 = vrot.lane.b32.xlu0 %v8071, 32
    %v8170 = vpop.permute.xlu0 %8169
    %8171 = vrot.lane.b32.xlu0 %v8073, 32
    %v8172 = vpop.permute.xlu0 %8171
    %8173 = vrot.lane.b32.xlu0 %v8075, 32
    %v8174 = vpop.permute.xlu0 %8173
    %8175 = vrot.lane.b32.xlu0 %v8077, 32
    %v8176 = vpop.permute.xlu0 %8175
    %8177 = vrot.lane.b32.xlu0 %v8080, 32
    %v8178 = vpop.permute.xlu0 %8177
    %8179 = vrot.lane.b32.xlu0 %v8082, 32
    %v8180 = vpop.permute.xlu0 %8179
    %8181 = vrot.lane.b32.xlu0 %v8084, 32
    %v8182 = vpop.permute.xlu0 %8181
    %8183 = vrot.lane.b32.xlu0 %v8086, 32
    %v8184 = vpop.permute.xlu0 %8183
    %8185 = vrot.lane.b32.xlu0 %v8088, 32
    %v8186 = vpop.permute.xlu0 %8185
    %8187 = vrot.lane.b32.xlu0 %v8090, 32
    %v8188 = vpop.permute.xlu0 %8187
    %8189 = vrot.lane.b32.xlu0 %v8093, 32
    %v8190 = vpop.permute.xlu0 %8189
    %8191 = vrot.lane.b32.xlu0 %v8095, 32
    %v8192 = vpop.permute.xlu0 %8191
    %8193 = vrot.lane.b32.xlu0 %v8097, 32
    %v8194 = vpop.permute.xlu0 %8193
    %8195 = vrot.lane.b32.xlu0 %v8099, 32
    %v8196 = vpop.permute.xlu0 %8195
    %8197 = vrot.lane.b32.xlu0 %v8101, 32
    %v8198 = vpop.permute.xlu0 %8197
    %8199 = vrot.lane.b32.xlu0 %v8103, 32
    %v8200 = vpop.permute.xlu0 %8199
    %8201 = vrot.lane.b32.xlu0 %v8106, 32
    %v8202 = vpop.permute.xlu0 %8201
    %8203 = vrot.lane.b32.xlu0 %v8108, 32
    %v8204 = vpop.permute.xlu0 %8203
    %8205 = vrot.lane.b32.xlu0 %v8110, 32
    %v8206 = vpop.permute.xlu0 %8205
    %8207 = vrot.lane.b32.xlu0 %v8112, 32
    %v8208 = vpop.permute.xlu0 %8207
    %8209 = vrot.lane.b32.xlu0 %v8114, 32
    %v8210 = vpop.permute.xlu0 %8209
    %8211 = vrot.lane.b32.xlu0 %v8116, 32
    %v8212 = vpop.permute.xlu0 %8211
    %v8261 = vrot.slane %v7005, 6
    %v8262 = vrot.slane %v7006, 6
    %v8263 = vsel %vm5213, %v8261, %v8262
    %v8264 = vrot.slane %v7007, 6
    %v8265 = vsel %vm5213, %v8262, %v8264
    %v8266 = vrot.slane %v7008, 6
    %v8267 = vsel %vm5213, %v8264, %v8266
    %v8268 = vrot.slane %v7009, 6
    %v8269 = vsel %vm5213, %v8266, %v8268
    %v8270 = vrot.slane %v7010, 6
    %v8271 = vsel %vm5213, %v8268, %v8270
    %v8272 = vrot.slane %v7011, 6
    %v8273 = vsel %vm5213, %v8270, %v8272
    %v8274 = vrot.slane %v7012, 6
    %v8275 = vrot.slane %v7013, 6
    %v8276 = vsel %vm5213, %v8274, %v8275
    %v8277 = vrot.slane %v7014, 6
    %v8278 = vsel %vm5213, %v8275, %v8277
    %v8279 = vrot.slane %v7015, 6
    %v8280 = vsel %vm5213, %v8277, %v8279
    %v8281 = vrot.slane %v7016, 6
    %v8282 = vsel %vm5213, %v8279, %v8281
    %v8283 = vrot.slane %v7017, 6
    %v8284 = vsel %vm5213, %v8281, %v8283
    %v8285 = vrot.slane %v7018, 6
    %v8286 = vsel %vm5213, %v8283, %v8285
    %v8287 = vrot.slane %v7019, 6
    %v8288 = vrot.slane %v7020, 6
    %v8289 = vsel %vm5213, %v8287, %v8288
    %v8290 = vrot.slane %v7021, 6
    %v8291 = vsel %vm5213, %v8288, %v8290
    %v8292 = vrot.slane %v7022, 6
    %v8293 = vsel %vm5213, %v8290, %v8292
    %v8294 = vrot.slane %v7023, 6
    %v8295 = vsel %vm5213, %v8292, %v8294
    %v8296 = vrot.slane %v7024, 6
    %v8297 = vsel %vm5213, %v8294, %v8296
    %v8298 = vrot.slane %v7025, 6
    %v8299 = vsel %vm5213, %v8296, %v8298
    %v8300 = vrot.slane %v7026, 6
    %v8301 = vrot.slane %v7027, 6
    %v8302 = vsel %vm5213, %v8300, %v8301
    %v8303 = vrot.slane %v7028, 6
    %v8304 = vsel %vm5213, %v8301, %v8303
    %v8305 = vrot.slane %v7029, 6
    %v8306 = vsel %vm5213, %v8303, %v8305
    %v8307 = vrot.slane %v7030, 6
    %v8308 = vsel %vm5213, %v8305, %v8307
    %v8309 = vrot.slane %v7031, 6
    %v8310 = vsel %vm5213, %v8307, %v8309
    %v8311 = vrot.slane %v7032, 6
    %v8312 = vsel %vm5213, %v8309, %v8311
    %v8313 = vrot.slane %v7033, 6
    %v8314 = vrot.slane %v7034, 6
    %v8315 = vsel %vm5213, %v8313, %v8314
    %v8316 = vrot.slane %v7035, 6
    %v8317 = vsel %vm5213, %v8314, %v8316
    %v8318 = vrot.slane %v7036, 6
    %v8319 = vsel %vm5213, %v8316, %v8318
    %v8320 = vrot.slane %v7037, 6
    %v8321 = vsel %vm5213, %v8318, %v8320
    %v8322 = vrot.slane %v7038, 6
    %v8323 = vsel %vm5213, %v8320, %v8322
    %v8324 = vrot.slane %v7039, 6
    %v8325 = vsel %vm5213, %v8322, %v8324
    %v8326 = vrot.slane %v7040, 6
    %v8327 = vrot.slane %v7041, 6
    %v8328 = vsel %vm5213, %v8326, %v8327
    %v8329 = vrot.slane %v7042, 6
    %v8330 = vsel %vm5213, %v8327, %v8329
    %v8331 = vrot.slane %v7043, 6
    %v8332 = vsel %vm5213, %v8329, %v8331
    %v8333 = vrot.slane %v7044, 6
    %v8334 = vsel %vm5213, %v8331, %v8333
    %v8335 = vrot.slane %v7045, 6
    %v8336 = vsel %vm5213, %v8333, %v8335
    %v8337 = vrot.slane %v7046, 6
    %v8338 = vsel %vm5213, %v8335, %v8337
    %v8339 = vrot.slane %v7047, 6
    %v8340 = vrot.slane %v7048, 6
    %v8341 = vsel %vm5213, %v8339, %v8340
    %v8342 = vrot.slane %v7049, 6
    %v8343 = vsel %vm5213, %v8340, %v8342
    %v8344 = vrot.slane %v7050, 6
    %v8345 = vsel %vm5213, %v8342, %v8344
    %v8346 = vrot.slane %v7051, 6
    %v8347 = vsel %vm5213, %v8344, %v8346
    %v8348 = vrot.slane %v7052, 6
    %v8349 = vsel %vm5213, %v8346, %v8348
    %v8350 = vrot.slane %v7053, 6
    %v8351 = vsel %vm5213, %v8348, %v8350
    %v8352 = vrot.slane %v7054, 6
    %v8353 = vrot.slane %v7055, 6
    %v8354 = vsel %vm5213, %v8352, %v8353
    %v8355 = vrot.slane %v7056, 6
    %v8356 = vsel %vm5213, %v8353, %v8355
    %v8357 = vrot.slane %v7057, 6
    %v8358 = vsel %vm5213, %v8355, %v8357
    %v8359 = vrot.slane %v7058, 6
    %v8360 = vsel %vm5213, %v8357, %v8359
    %v8361 = vrot.slane %v7059, 6
    %v8362 = vsel %vm5213, %v8359, %v8361
    %v8363 = vrot.slane %v7060, 6
    %v8364 = vsel %vm5213, %v8361, %v8363
    %8365 = vrot.lane.b32.xlu0 %v8263, 64
    %v8366 = vpop.permute.xlu0 %8365
    %8367 = vrot.lane.b32.xlu0 %v8265, 64
    %v8368 = vpop.permute.xlu0 %8367
    %8369 = vrot.lane.b32.xlu0 %v8267, 64
    %v8370 = vpop.permute.xlu0 %8369
    %8371 = vrot.lane.b32.xlu0 %v8269, 64
    %v8372 = vpop.permute.xlu0 %8371
    %8373 = vrot.lane.b32.xlu0 %v8271, 64
    %v8374 = vpop.permute.xlu0 %8373
    %8375 = vrot.lane.b32.xlu0 %v8273, 64
    %v8376 = vpop.permute.xlu0 %8375
    %8377 = vrot.lane.b32.xlu0 %v8276, 64
    %v8378 = vpop.permute.xlu0 %8377
    %8379 = vrot.lane.b32.xlu0 %v8278, 64
    %v8380 = vpop.permute.xlu0 %8379
    %8381 = vrot.lane.b32.xlu0 %v8280, 64
    %v8382 = vpop.permute.xlu0 %8381
    %8383 = vrot.lane.b32.xlu0 %v8282, 64
    %v8384 = vpop.permute.xlu0 %8383
    %8385 = vrot.lane.b32.xlu0 %v8284, 64
    %v8386 = vpop.permute.xlu0 %8385
    %8387 = vrot.lane.b32.xlu0 %v8286, 64
    %v8388 = vpop.permute.xlu0 %8387
    %8389 = vrot.lane.b32.xlu0 %v8289, 64
    %v8390 = vpop.permute.xlu0 %8389
    %8391 = vrot.lane.b32.xlu0 %v8291, 64
    %v8392 = vpop.permute.xlu0 %8391
    %8393 = vrot.lane.b32.xlu0 %v8293, 64
    %v8394 = vpop.permute.xlu0 %8393
    %8395 = vrot.lane.b32.xlu0 %v8295, 64
    %v8396 = vpop.permute.xlu0 %8395
    %8397 = vrot.lane.b32.xlu0 %v8297, 64
    %v8398 = vpop.permute.xlu0 %8397
    %8399 = vrot.lane.b32.xlu0 %v8299, 64
    %v8400 = vpop.permute.xlu0 %8399
    %8401 = vrot.lane.b32.xlu0 %v8302, 64
    %v8402 = vpop.permute.xlu0 %8401
    %8403 = vrot.lane.b32.xlu0 %v8304, 64
    %v8404 = vpop.permute.xlu0 %8403
    %8405 = vrot.lane.b32.xlu0 %v8306, 64
    %v8406 = vpop.permute.xlu0 %8405
    %8407 = vrot.lane.b32.xlu0 %v8308, 64
    %v8408 = vpop.permute.xlu0 %8407
    %8409 = vrot.lane.b32.xlu0 %v8310, 64
    %v8410 = vpop.permute.xlu0 %8409
    %8411 = vrot.lane.b32.xlu0 %v8312, 64
    %v8412 = vpop.permute.xlu0 %8411
    %8413 = vrot.lane.b32.xlu0 %v8315, 64
    %v8414 = vpop.permute.xlu0 %8413
    %8415 = vrot.lane.b32.xlu0 %v8317, 64
    %v8416 = vpop.permute.xlu0 %8415
    %8417 = vrot.lane.b32.xlu0 %v8319, 64
    %v8418 = vpop.permute.xlu0 %8417
    %8419 = vrot.lane.b32.xlu0 %v8321, 64
    %v8420 = vpop.permute.xlu0 %8419
    %8421 = vrot.lane.b32.xlu0 %v8323, 64
    %v8422 = vpop.permute.xlu0 %8421
    %8423 = vrot.lane.b32.xlu0 %v8325, 64
    %v8424 = vpop.permute.xlu0 %8423
    %8425 = vrot.lane.b32.xlu0 %v8328, 64
    %v8426 = vpop.permute.xlu0 %8425
    %8427 = vrot.lane.b32.xlu0 %v8330, 64
    %v8428 = vpop.permute.xlu0 %8427
    %8429 = vrot.lane.b32.xlu0 %v8332, 64
    %v8430 = vpop.permute.xlu0 %8429
    %8431 = vrot.lane.b32.xlu0 %v8334, 64
    %v8432 = vpop.permute.xlu0 %8431
    %8433 = vrot.lane.b32.xlu0 %v8336, 64
    %v8434 = vpop.permute.xlu0 %8433
    %8435 = vrot.lane.b32.xlu0 %v8338, 64
    %v8436 = vpop.permute.xlu0 %8435
    %8437 = vrot.lane.b32.xlu0 %v8341, 64
    %v8438 = vpop.permute.xlu0 %8437
    %8439 = vrot.lane.b32.xlu0 %v8343, 64
    %v8440 = vpop.permute.xlu0 %8439
    %8441 = vrot.lane.b32.xlu0 %v8345, 64
    %v8442 = vpop.permute.xlu0 %8441
    %8443 = vrot.lane.b32.xlu0 %v8347, 64
    %v8444 = vpop.permute.xlu0 %8443
    %8445 = vrot.lane.b32.xlu0 %v8349, 64
    %v8446 = vpop.permute.xlu0 %8445
    %8447 = vrot.lane.b32.xlu0 %v8351, 64
    %v8448 = vpop.permute.xlu0 %8447
    %8449 = vrot.lane.b32.xlu0 %v8354, 64
    %v8450 = vpop.permute.xlu0 %8449
    %8451 = vrot.lane.b32.xlu0 %v8356, 64
    %v8452 = vpop.permute.xlu0 %8451
    %8453 = vrot.lane.b32.xlu0 %v8358, 64
    %v8454 = vpop.permute.xlu0 %8453
    %8455 = vrot.lane.b32.xlu0 %v8360, 64
    %v8456 = vpop.permute.xlu0 %8455
    %8457 = vrot.lane.b32.xlu0 %v8362, 64
    %v8458 = vpop.permute.xlu0 %8457
    %8459 = vrot.lane.b32.xlu0 %v8364, 64
    %v8460 = vpop.permute.xlu0 %8459
    %v8509 = vrot.slane %v7005, 7
    %v8510 = vrot.slane %v7006, 7
    %v8511 = vsel %vm5502, %v8509, %v8510
    %v8512 = vrot.slane %v7007, 7
    %v8513 = vsel %vm5502, %v8510, %v8512
    %v8514 = vrot.slane %v7008, 7
    %v8515 = vsel %vm5502, %v8512, %v8514
    %v8516 = vrot.slane %v7009, 7
    %v8517 = vsel %vm5502, %v8514, %v8516
    %v8518 = vrot.slane %v7010, 7
    %v8519 = vsel %vm5502, %v8516, %v8518
    %v8520 = vrot.slane %v7011, 7
    %v8521 = vsel %vm5502, %v8518, %v8520
    %v8522 = vrot.slane %v7012, 7
    %v8523 = vrot.slane %v7013, 7
    %v8524 = vsel %vm5502, %v8522, %v8523
    %v8525 = vrot.slane %v7014, 7
    %v8526 = vsel %vm5502, %v8523, %v8525
    %v8527 = vrot.slane %v7015, 7
    %v8528 = vsel %vm5502, %v8525, %v8527
    %v8529 = vrot.slane %v7016, 7
    %v8530 = vsel %vm5502, %v8527, %v8529
    %v8531 = vrot.slane %v7017, 7
    %v8532 = vsel %vm5502, %v8529, %v8531
    %v8533 = vrot.slane %v7018, 7
    %v8534 = vsel %vm5502, %v8531, %v8533
    %v8535 = vrot.slane %v7019, 7
    %v8536 = vrot.slane %v7020, 7
    %v8537 = vsel %vm5502, %v8535, %v8536
    %v8538 = vrot.slane %v7021, 7
    %v8539 = vsel %vm5502, %v8536, %v8538
    %v8540 = vrot.slane %v7022, 7
    %v8541 = vsel %vm5502, %v8538, %v8540
    %v8542 = vrot.slane %v7023, 7
    %v8543 = vsel %vm5502, %v8540, %v8542
    %v8544 = vrot.slane %v7024, 7
    %v8545 = vsel %vm5502, %v8542, %v8544
    %v8546 = vrot.slane %v7025, 7
    %v8547 = vsel %vm5502, %v8544, %v8546
    %v8548 = vrot.slane %v7026, 7
    %v8549 = vrot.slane %v7027, 7
    %v8550 = vsel %vm5502, %v8548, %v8549
    %v8551 = vrot.slane %v7028, 7
    %v8552 = vsel %vm5502, %v8549, %v8551
    %v8553 = vrot.slane %v7029, 7
    %v8554 = vsel %vm5502, %v8551, %v8553
    %v8555 = vrot.slane %v7030, 7
    %v8556 = vsel %vm5502, %v8553, %v8555
    %v8557 = vrot.slane %v7031, 7
    %v8558 = vsel %vm5502, %v8555, %v8557
    %v8559 = vrot.slane %v7032, 7
    %v8560 = vsel %vm5502, %v8557, %v8559
    %v8561 = vrot.slane %v7033, 7
    %v8562 = vrot.slane %v7034, 7
    %v8563 = vsel %vm5502, %v8561, %v8562
    %v8564 = vrot.slane %v7035, 7
    %v8565 = vsel %vm5502, %v8562, %v8564
    %v8566 = vrot.slane %v7036, 7
    %v8567 = vsel %vm5502, %v8564, %v8566
    %v8568 = vrot.slane %v7037, 7
    %v8569 = vsel %vm5502, %v8566, %v8568
    %v8570 = vrot.slane %v7038, 7
    %v8571 = vsel %vm5502, %v8568, %v8570
    %v8572 = vrot.slane %v7039, 7
    %v8573 = vsel %vm5502, %v8570, %v8572
    %v8574 = vrot.slane %v7040, 7
    %v8575 = vrot.slane %v7041, 7
    %v8576 = vsel %vm5502, %v8574, %v8575
    %v8577 = vrot.slane %v7042, 7
    %v8578 = vsel %vm5502, %v8575, %v8577
    %v8579 = vrot.slane %v7043, 7
    %v8580 = vsel %vm5502, %v8577, %v8579
    %v8581 = vrot.slane %v7044, 7
    %v8582 = vsel %vm5502, %v8579, %v8581
    %v8583 = vrot.slane %v7045, 7
    %v8584 = vsel %vm5502, %v8581, %v8583
    %v8585 = vrot.slane %v7046, 7
    %v8586 = vsel %vm5502, %v8583, %v8585
    %v8587 = vrot.slane %v7047, 7
    %v8588 = vrot.slane %v7048, 7
    %v8589 = vsel %vm5502, %v8587, %v8588
    %v8590 = vrot.slane %v7049, 7
    %v8591 = vsel %vm5502, %v8588, %v8590
    %v8592 = vrot.slane %v7050, 7
    %v8593 = vsel %vm5502, %v8590, %v8592
    %v8594 = vrot.slane %v7051, 7
    %v8595 = vsel %vm5502, %v8592, %v8594
    %v8596 = vrot.slane %v7052, 7
    %v8597 = vsel %vm5502, %v8594, %v8596
    %v8598 = vrot.slane %v7053, 7
    %v8599 = vsel %vm5502, %v8596, %v8598
    %v8600 = vrot.slane %v7054, 7
    %v8601 = vrot.slane %v7055, 7
    %v8602 = vsel %vm5502, %v8600, %v8601
    %v8603 = vrot.slane %v7056, 7
    %v8604 = vsel %vm5502, %v8601, %v8603
    %v8605 = vrot.slane %v7057, 7
    %v8606 = vsel %vm5502, %v8603, %v8605
    %v8607 = vrot.slane %v7058, 7
    %v8608 = vsel %vm5502, %v8605, %v8607
    %v8609 = vrot.slane %v7059, 7
    %v8610 = vsel %vm5502, %v8607, %v8609
    %v8611 = vrot.slane %v7060, 7
    %v8612 = vsel %vm5502, %v8609, %v8611
    %8613 = vrot.lane.b32.xlu0 %v8511, 96
    %v8614 = vpop.permute.xlu0 %8613
    %8615 = vrot.lane.b32.xlu0 %v8513, 96
    %v8616 = vpop.permute.xlu0 %8615
    %8617 = vrot.lane.b32.xlu0 %v8515, 96
    %v8618 = vpop.permute.xlu0 %8617
    %8619 = vrot.lane.b32.xlu0 %v8517, 96
    %v8620 = vpop.permute.xlu0 %8619
    %8621 = vrot.lane.b32.xlu0 %v8519, 96
    %v8622 = vpop.permute.xlu0 %8621
    %8623 = vrot.lane.b32.xlu0 %v8521, 96
    %v8624 = vpop.permute.xlu0 %8623
    %8625 = vrot.lane.b32.xlu0 %v8524, 96
    %v8626 = vpop.permute.xlu0 %8625
    %8627 = vrot.lane.b32.xlu0 %v8526, 96
    %v8628 = vpop.permute.xlu0 %8627
    %8629 = vrot.lane.b32.xlu0 %v8528, 96
    %v8630 = vpop.permute.xlu0 %8629
    %8631 = vrot.lane.b32.xlu0 %v8530, 96
    %v8632 = vpop.permute.xlu0 %8631
    %8633 = vrot.lane.b32.xlu0 %v8532, 96
    %v8634 = vpop.permute.xlu0 %8633
    %8635 = vrot.lane.b32.xlu0 %v8534, 96
    %v8636 = vpop.permute.xlu0 %8635
    %8637 = vrot.lane.b32.xlu0 %v8537, 96
    %v8638 = vpop.permute.xlu0 %8637
    %8639 = vrot.lane.b32.xlu0 %v8539, 96
    %v8640 = vpop.permute.xlu0 %8639
    %8641 = vrot.lane.b32.xlu0 %v8541, 96
    %v8642 = vpop.permute.xlu0 %8641
    %8643 = vrot.lane.b32.xlu0 %v8543, 96
    %v8644 = vpop.permute.xlu0 %8643
    %8645 = vrot.lane.b32.xlu0 %v8545, 96
    %v8646 = vpop.permute.xlu0 %8645
    %8647 = vrot.lane.b32.xlu0 %v8547, 96
    %v8648 = vpop.permute.xlu0 %8647
    %8649 = vrot.lane.b32.xlu0 %v8550, 96
    %v8650 = vpop.permute.xlu0 %8649
    %8651 = vrot.lane.b32.xlu0 %v8552, 96
    %v8652 = vpop.permute.xlu0 %8651
    %8653 = vrot.lane.b32.xlu0 %v8554, 96
    %v8654 = vpop.permute.xlu0 %8653
    %8655 = vrot.lane.b32.xlu0 %v8556, 96
    %v8656 = vpop.permute.xlu0 %8655
    %8657 = vrot.lane.b32.xlu0 %v8558, 96
    %v8658 = vpop.permute.xlu0 %8657
    %8659 = vrot.lane.b32.xlu0 %v8560, 96
    %v8660 = vpop.permute.xlu0 %8659
    %8661 = vrot.lane.b32.xlu0 %v8563, 96
    %v8662 = vpop.permute.xlu0 %8661
    %8663 = vrot.lane.b32.xlu0 %v8565, 96
    %v8664 = vpop.permute.xlu0 %8663
    %8665 = vrot.lane.b32.xlu0 %v8567, 96
    %v8666 = vpop.permute.xlu0 %8665
    %8667 = vrot.lane.b32.xlu0 %v8569, 96
    %v8668 = vpop.permute.xlu0 %8667
    %8669 = vrot.lane.b32.xlu0 %v8571, 96
    %v8670 = vpop.permute.xlu0 %8669
    %8671 = vrot.lane.b32.xlu0 %v8573, 96
    %v8672 = vpop.permute.xlu0 %8671
    %8673 = vrot.lane.b32.xlu0 %v8576, 96
    %v8674 = vpop.permute.xlu0 %8673
    %8675 = vrot.lane.b32.xlu0 %v8578, 96
    %v8676 = vpop.permute.xlu0 %8675
    %8677 = vrot.lane.b32.xlu0 %v8580, 96
    %v8678 = vpop.permute.xlu0 %8677
    %8679 = vrot.lane.b32.xlu0 %v8582, 96
    %v8680 = vpop.permute.xlu0 %8679
    %8681 = vrot.lane.b32.xlu0 %v8584, 96
    %v8682 = vpop.permute.xlu0 %8681
    %8683 = vrot.lane.b32.xlu0 %v8586, 96
    %v8684 = vpop.permute.xlu0 %8683
    %8685 = vrot.lane.b32.xlu0 %v8589, 96
    %v8686 = vpop.permute.xlu0 %8685
    %8687 = vrot.lane.b32.xlu0 %v8591, 96
    %v8688 = vpop.permute.xlu0 %8687
    %8689 = vrot.lane.b32.xlu0 %v8593, 96
    %v8690 = vpop.permute.xlu0 %8689
    %8691 = vrot.lane.b32.xlu0 %v8595, 96
    %v8692 = vpop.permute.xlu0 %8691
    %8693 = vrot.lane.b32.xlu0 %v8597, 96
    %v8694 = vpop.permute.xlu0 %8693
    %8695 = vrot.lane.b32.xlu0 %v8599, 96
    %v8696 = vpop.permute.xlu0 %8695
    %8697 = vrot.lane.b32.xlu0 %v8602, 96
    %v8698 = vpop.permute.xlu0 %8697
    %8699 = vrot.lane.b32.xlu0 %v8604, 96
    %v8700 = vpop.permute.xlu0 %8699
    %8701 = vrot.lane.b32.xlu0 %v8606, 96
    %v8702 = vpop.permute.xlu0 %8701
    %8703 = vrot.lane.b32.xlu0 %v8608, 96
    %v8704 = vpop.permute.xlu0 %8703
    %8705 = vrot.lane.b32.xlu0 %v8610, 96
    %v8706 = vpop.permute.xlu0 %8705
    %8707 = vrot.lane.b32.xlu0 %v8612, 96
    %v8708 = vpop.permute.xlu0 %8707
    %v8757 = vsel %vm3331, %v7005, %v7222
    %v8758 = vsel %vm3331, %v7006, %v7224
    %v8759 = vsel %vm3331, %v7007, %v7226
    %v8760 = vsel %vm3331, %v7008, %v7228
    %v8761 = vsel %vm3331, %v7009, %v7230
    %v8762 = vsel %vm3331, %v7010, %v7232
    %v8763 = vsel %vm3331, %v7012, %v7234
    %v8764 = vsel %vm3331, %v7013, %v7236
    %v8765 = vsel %vm3331, %v7014, %v7238
    %v8766 = vsel %vm3331, %v7015, %v7240
    %v8767 = vsel %vm3331, %v7016, %v7242
    %v8768 = vsel %vm3331, %v7017, %v7244
    %v8769 = vsel %vm3331, %v7019, %v7246
    %v8770 = vsel %vm3331, %v7020, %v7248
    %v8771 = vsel %vm3331, %v7021, %v7250
    %v8772 = vsel %vm3331, %v7022, %v7252
    %v8773 = vsel %vm3331, %v7023, %v7254
    %v8774 = vsel %vm3331, %v7024, %v7256
    %v8775 = vsel %vm3331, %v7026, %v7258
    %v8776 = vsel %vm3331, %v7027, %v7260
    %v8777 = vsel %vm3331, %v7028, %v7262
    %v8778 = vsel %vm3331, %v7029, %v7264
    %v8779 = vsel %vm3331, %v7030, %v7266
    %v8780 = vsel %vm3331, %v7031, %v7268
    %v8781 = vsel %vm3331, %v7033, %v7270
    %v8782 = vsel %vm3331, %v7034, %v7272
    %v8783 = vsel %vm3331, %v7035, %v7274
    %v8784 = vsel %vm3331, %v7036, %v7276
    %v8785 = vsel %vm3331, %v7037, %v7278
    %v8786 = vsel %vm3331, %v7038, %v7280
    %v8787 = vsel %vm3331, %v7040, %v7282
    %v8788 = vsel %vm3331, %v7041, %v7284
    %v8789 = vsel %vm3331, %v7042, %v7286
    %v8790 = vsel %vm3331, %v7043, %v7288
    %v8791 = vsel %vm3331, %v7044, %v7290
    %v8792 = vsel %vm3331, %v7045, %v7292
    %v8793 = vsel %vm3331, %v7047, %v7294
    %v8794 = vsel %vm3331, %v7048, %v7296
    %v8795 = vsel %vm3331, %v7049, %v7298
    %v8796 = vsel %vm3331, %v7050, %v7300
    %v8797 = vsel %vm3331, %v7051, %v7302
    %v8798 = vsel %vm3331, %v7052, %v7304
    %v8799 = vsel %vm3331, %v7054, %v7306
    %v8800 = vsel %vm3331, %v7055, %v7308
    %v8801 = vsel %vm3331, %v7056, %v7310
    %v8802 = vsel %vm3331, %v7057, %v7312
    %v8803 = vsel %vm3331, %v7058, %v7314
    %v8804 = vsel %vm3331, %v7059, %v7316
    %v8805 = vsel %vm5847, %v8757, %v7470
    %v8806 = vsel %vm5847, %v8758, %v7472
    %v8807 = vsel %vm5847, %v8759, %v7474
    %v8808 = vsel %vm5847, %v8760, %v7476
    %v8809 = vsel %vm5847, %v8761, %v7478
    %v8810 = vsel %vm5847, %v8762, %v7480
    %v8811 = vsel %vm5847, %v8763, %v7482
    %v8812 = vsel %vm5847, %v8764, %v7484
    %v8813 = vsel %vm5847, %v8765, %v7486
    %v8814 = vsel %vm5847, %v8766, %v7488
    %v8815 = vsel %vm5847, %v8767, %v7490
    %v8816 = vsel %vm5847, %v8768, %v7492
    %v8817 = vsel %vm5847, %v8769, %v7494
    %v8818 = vsel %vm5847, %v8770, %v7496
    %v8819 = vsel %vm5847, %v8771, %v7498
    %v8820 = vsel %vm5847, %v8772, %v7500
    %v8821 = vsel %vm5847, %v8773, %v7502
    %v8822 = vsel %vm5847, %v8774, %v7504
    %v8823 = vsel %vm5847, %v8775, %v7506
    %v8824 = vsel %vm5847, %v8776, %v7508
    %v8825 = vsel %vm5847, %v8777, %v7510
    %v8826 = vsel %vm5847, %v8778, %v7512
    %v8827 = vsel %vm5847, %v8779, %v7514
    %v8828 = vsel %vm5847, %v8780, %v7516
    %v8829 = vsel %vm5847, %v8781, %v7518
    %v8830 = vsel %vm5847, %v8782, %v7520
    %v8831 = vsel %vm5847, %v8783, %v7522
    %v8832 = vsel %vm5847, %v8784, %v7524
    %v8833 = vsel %vm5847, %v8785, %v7526
    %v8834 = vsel %vm5847, %v8786, %v7528
    %v8835 = vsel %vm5847, %v8787, %v7530
    %v8836 = vsel %vm5847, %v8788, %v7532
    %v8837 = vsel %vm5847, %v8789, %v7534
    %v8838 = vsel %vm5847, %v8790, %v7536
    %v8839 = vsel %vm5847, %v8791, %v7538
    %v8840 = vsel %vm5847, %v8792, %v7540
    %v8841 = vsel %vm5847, %v8793, %v7542
    %v8842 = vsel %vm5847, %v8794, %v7544
    %v8843 = vsel %vm5847, %v8795, %v7546
    %v8844 = vsel %vm5847, %v8796, %v7548
    %v8845 = vsel %vm5847, %v8797, %v7550
    %v8846 = vsel %vm5847, %v8798, %v7552
    %v8847 = vsel %vm5847, %v8799, %v7554
    %v8848 = vsel %vm5847, %v8800, %v7556
    %v8849 = vsel %vm5847, %v8801, %v7558
    %v8850 = vsel %vm5847, %v8802, %v7560
    %v8851 = vsel %vm5847, %v8803, %v7562
    %v8852 = vsel %vm5847, %v8804, %v7564
    %v8853 = vsel %vm5904, %v8805, %v7718
    %v8854 = vsel %vm5904, %v8806, %v7720
    %v8855 = vsel %vm5904, %v8807, %v7722
    %v8856 = vsel %vm5904, %v8808, %v7724
    %v8857 = vsel %vm5904, %v8809, %v7726
    %v8858 = vsel %vm5904, %v8810, %v7728
    %v8859 = vsel %vm5904, %v8811, %v7730
    %v8860 = vsel %vm5904, %v8812, %v7732
    %v8861 = vsel %vm5904, %v8813, %v7734
    %v8862 = vsel %vm5904, %v8814, %v7736
    %v8863 = vsel %vm5904, %v8815, %v7738
    %v8864 = vsel %vm5904, %v8816, %v7740
    %v8865 = vsel %vm5904, %v8817, %v7742
    %v8866 = vsel %vm5904, %v8818, %v7744
    %v8867 = vsel %vm5904, %v8819, %v7746
    %v8868 = vsel %vm5904, %v8820, %v7748
    %v8869 = vsel %vm5904, %v8821, %v7750
    %v8870 = vsel %vm5904, %v8822, %v7752
    %v8871 = vsel %vm5904, %v8823, %v7754
    %v8872 = vsel %vm5904, %v8824, %v7756
    %v8873 = vsel %vm5904, %v8825, %v7758
    %v8874 = vsel %vm5904, %v8826, %v7760
    %v8875 = vsel %vm5904, %v8827, %v7762
    %v8876 = vsel %vm5904, %v8828, %v7764
    %v8877 = vsel %vm5904, %v8829, %v7766
    %v8878 = vsel %vm5904, %v8830, %v7768
    %v8879 = vsel %vm5904, %v8831, %v7770
    %v8880 = vsel %vm5904, %v8832, %v7772
    %v8881 = vsel %vm5904, %v8833, %v7774
    %v8882 = vsel %vm5904, %v8834, %v7776
    %v8883 = vsel %vm5904, %v8835, %v7778
    %v8884 = vsel %vm5904, %v8836, %v7780
    %v8885 = vsel %vm5904, %v8837, %v7782
    %v8886 = vsel %vm5904, %v8838, %v7784
    %v8887 = vsel %vm5904, %v8839, %v7786
    %v8888 = vsel %vm5904, %v8840, %v7788
    %v8889 = vsel %vm5904, %v8841, %v7790
    %v8890 = vsel %vm5904, %v8842, %v7792
    %v8891 = vsel %vm5904, %v8843, %v7794
    %v8892 = vsel %vm5904, %v8844, %v7796
    %v8893 = vsel %vm5904, %v8845, %v7798
    %v8894 = vsel %vm5904, %v8846, %v7800
    %v8895 = vsel %vm5904, %v8847, %v7802
    %v8896 = vsel %vm5904, %v8848, %v7804
    %v8897 = vsel %vm5904, %v8849, %v7806
    %v8898 = vsel %vm5904, %v8850, %v7808
    %v8899 = vsel %vm5904, %v8851, %v7810
    %v8900 = vsel %vm5904, %v8852, %v7812
    %v8901 = vsel %vm3331, %v7863, %v8118
    %v8902 = vsel %vm3331, %v7865, %v8120
    %v8903 = vsel %vm3331, %v7867, %v8122
    %v8904 = vsel %vm3331, %v7869, %v8124
    %v8905 = vsel %vm3331, %v7871, %v8126
    %v8906 = vsel %vm3331, %v7873, %v8128
    %v8907 = vsel %vm3331, %v7876, %v8130
    %v8908 = vsel %vm3331, %v7878, %v8132
    %v8909 = vsel %vm3331, %v7880, %v8134
    %v8910 = vsel %vm3331, %v7882, %v8136
    %v8911 = vsel %vm3331, %v7884, %v8138
    %v8912 = vsel %vm3331, %v7886, %v8140
    %v8913 = vsel %vm3331, %v7889, %v8142
    %v8914 = vsel %vm3331, %v7891, %v8144
    %v8915 = vsel %vm3331, %v7893, %v8146
    %v8916 = vsel %vm3331, %v7895, %v8148
    %v8917 = vsel %vm3331, %v7897, %v8150
    %v8918 = vsel %vm3331, %v7899, %v8152
    %v8919 = vsel %vm3331, %v7902, %v8154
    %v8920 = vsel %vm3331, %v7904, %v8156
    %v8921 = vsel %vm3331, %v7906, %v8158
    %v8922 = vsel %vm3331, %v7908, %v8160
    %v8923 = vsel %vm3331, %v7910, %v8162
    %v8924 = vsel %vm3331, %v7912, %v8164
    %v8925 = vsel %vm3331, %v7915, %v8166
    %v8926 = vsel %vm3331, %v7917, %v8168
    %v8927 = vsel %vm3331, %v7919, %v8170
    %v8928 = vsel %vm3331, %v7921, %v8172
    %v8929 = vsel %vm3331, %v7923, %v8174
    %v8930 = vsel %vm3331, %v7925, %v8176
    %v8931 = vsel %vm3331, %v7928, %v8178
    %v8932 = vsel %vm3331, %v7930, %v8180
    %v8933 = vsel %vm3331, %v7932, %v8182
    %v8934 = vsel %vm3331, %v7934, %v8184
    %v8935 = vsel %vm3331, %v7936, %v8186
    %v8936 = vsel %vm3331, %v7938, %v8188
    %v8937 = vsel %vm3331, %v7941, %v8190
    %v8938 = vsel %vm3331, %v7943, %v8192
    %v8939 = vsel %vm3331, %v7945, %v8194
    %v8940 = vsel %vm3331, %v7947, %v8196
    %v8941 = vsel %vm3331, %v7949, %v8198
    %v8942 = vsel %vm3331, %v7951, %v8200
    %v8943 = vsel %vm3331, %v7954, %v8202
    %v8944 = vsel %vm3331, %v7956, %v8204
    %v8945 = vsel %vm3331, %v7958, %v8206
    %v8946 = vsel %vm3331, %v7960, %v8208
    %v8947 = vsel %vm3331, %v7962, %v8210
    %v8948 = vsel %vm3331, %v7964, %v8212
    %v8949 = vsel %vm5847, %v8901, %v8366
    %v8950 = vsel %vm5847, %v8902, %v8368
    %v8951 = vsel %vm5847, %v8903, %v8370
    %v8952 = vsel %vm5847, %v8904, %v8372
    %v8953 = vsel %vm5847, %v8905, %v8374
    %v8954 = vsel %vm5847, %v8906, %v8376
    %v8955 = vsel %vm5847, %v8907, %v8378
    %v8956 = vsel %vm5847, %v8908, %v8380
    %v8957 = vsel %vm5847, %v8909, %v8382
    %v8958 = vsel %vm5847, %v8910, %v8384
    %v8959 = vsel %vm5847, %v8911, %v8386
    %v8960 = vsel %vm5847, %v8912, %v8388
    %v8961 = vsel %vm5847, %v8913, %v8390
    %v8962 = vsel %vm5847, %v8914, %v8392
    %v8963 = vsel %vm5847, %v8915, %v8394
    %v8964 = vsel %vm5847, %v8916, %v8396
    %v8965 = vsel %vm5847, %v8917, %v8398
    %v8966 = vsel %vm5847, %v8918, %v8400
    %v8967 = vsel %vm5847, %v8919, %v8402
    %v8968 = vsel %vm5847, %v8920, %v8404
    %v8969 = vsel %vm5847, %v8921, %v8406
    %v8970 = vsel %vm5847, %v8922, %v8408
    %v8971 = vsel %vm5847, %v8923, %v8410
    %v8972 = vsel %vm5847, %v8924, %v8412
    %v8973 = vsel %vm5847, %v8925, %v8414
    %v8974 = vsel %vm5847, %v8926, %v8416
    %v8975 = vsel %vm5847, %v8927, %v8418
    %v8976 = vsel %vm5847, %v8928, %v8420
    %v8977 = vsel %vm5847, %v8929, %v8422
    %v8978 = vsel %vm5847, %v8930, %v8424
    %v8979 = vsel %vm5847, %v8931, %v8426
    %v8980 = vsel %vm5847, %v8932, %v8428
    %v8981 = vsel %vm5847, %v8933, %v8430
    %v8982 = vsel %vm5847, %v8934, %v8432
    %v8983 = vsel %vm5847, %v8935, %v8434
    %v8984 = vsel %vm5847, %v8936, %v8436
    %v8985 = vsel %vm5847, %v8937, %v8438
    %v8986 = vsel %vm5847, %v8938, %v8440
    %v8987 = vsel %vm5847, %v8939, %v8442
    %v8988 = vsel %vm5847, %v8940, %v8444
    %v8989 = vsel %vm5847, %v8941, %v8446
    %v8990 = vsel %vm5847, %v8942, %v8448
    %v8991 = vsel %vm5847, %v8943, %v8450
    %v8992 = vsel %vm5847, %v8944, %v8452
    %v8993 = vsel %vm5847, %v8945, %v8454
    %v8994 = vsel %vm5847, %v8946, %v8456
    %v8995 = vsel %vm5847, %v8947, %v8458
    %v8996 = vsel %vm5847, %v8948, %v8460
    %v8997 = vsel %vm5904, %v8949, %v8614
    %v8998 = vsel %vm5904, %v8950, %v8616
    %v8999 = vsel %vm5904, %v8951, %v8618
    %v9000 = vsel %vm5904, %v8952, %v8620
    %v9001 = vsel %vm5904, %v8953, %v8622
    %v9002 = vsel %vm5904, %v8954, %v8624
    %v9003 = vsel %vm5904, %v8955, %v8626
    %v9004 = vsel %vm5904, %v8956, %v8628
    %v9005 = vsel %vm5904, %v8957, %v8630
    %v9006 = vsel %vm5904, %v8958, %v8632
    %v9007 = vsel %vm5904, %v8959, %v8634
    %v9008 = vsel %vm5904, %v8960, %v8636
    %v9009 = vsel %vm5904, %v8961, %v8638
    %v9010 = vsel %vm5904, %v8962, %v8640
    %v9011 = vsel %vm5904, %v8963, %v8642
    %v9012 = vsel %vm5904, %v8964, %v8644
    %v9013 = vsel %vm5904, %v8965, %v8646
    %v9014 = vsel %vm5904, %v8966, %v8648
    %v9015 = vsel %vm5904, %v8967, %v8650
    %v9016 = vsel %vm5904, %v8968, %v8652
    %v9017 = vsel %vm5904, %v8969, %v8654
    %v9018 = vsel %vm5904, %v8970, %v8656
    %v9019 = vsel %vm5904, %v8971, %v8658
    %v9020 = vsel %vm5904, %v8972, %v8660
    %v9021 = vsel %vm5904, %v8973, %v8662
    %v9022 = vsel %vm5904, %v8974, %v8664
    %v9023 = vsel %vm5904, %v8975, %v8666
    %v9024 = vsel %vm5904, %v8976, %v8668
    %v9025 = vsel %vm5904, %v8977, %v8670
    %v9026 = vsel %vm5904, %v8978, %v8672
    %v9027 = vsel %vm5904, %v8979, %v8674
    %v9028 = vsel %vm5904, %v8980, %v8676
    %v9029 = vsel %vm5904, %v8981, %v8678
    %v9030 = vsel %vm5904, %v8982, %v8680
    %v9031 = vsel %vm5904, %v8983, %v8682
    %v9032 = vsel %vm5904, %v8984, %v8684
    %v9033 = vsel %vm5904, %v8985, %v8686
    %v9034 = vsel %vm5904, %v8986, %v8688
    %v9035 = vsel %vm5904, %v8987, %v8690
    %v9036 = vsel %vm5904, %v8988, %v8692
    %v9037 = vsel %vm5904, %v8989, %v8694
    %v9038 = vsel %vm5904, %v8990, %v8696
    %v9039 = vsel %vm5904, %v8991, %v8698
    %v9040 = vsel %vm5904, %v8992, %v8700
    %v9041 = vsel %vm5904, %v8993, %v8702
    %v9042 = vsel %vm5904, %v8994, %v8704
    %v9043 = vsel %vm5904, %v8995, %v8706
    %v9044 = vsel %vm5904, %v8996, %v8708
    %v9045 = vpack.c.bf16 %v8854, %v8853
    %v9046 = vpack.c.bf16 %v8998, %v8997
    %v9047 = vpack.c.bf16 %v8856, %v8855
    %v9048 = vpack.c.bf16 %v9000, %v8999
    %v9049 = vpack.c.bf16 %v8858, %v8857
    %v9050 = vpack.c.bf16 %v9002, %v9001
    %v9051 = vpack.c.bf16 %v8860, %v8859
    %v9052 = vpack.c.bf16 %v9004, %v9003
    %v9053 = vpack.c.bf16 %v8862, %v8861
    %v9054 = vpack.c.bf16 %v9006, %v9005
    %v9055 = vpack.c.bf16 %v8864, %v8863
    %v9056 = vpack.c.bf16 %v9008, %v9007
    %v9057 = vpack.c.bf16 %v8866, %v8865
    %v9058 = vpack.c.bf16 %v9010, %v9009
    %v9059 = vpack.c.bf16 %v8868, %v8867
    %v9060 = vpack.c.bf16 %v9012, %v9011
    %v9061 = vpack.c.bf16 %v8870, %v8869
    %v9062 = vpack.c.bf16 %v9014, %v9013
    %v9063 = vpack.c.bf16 %v8872, %v8871
    %v9064 = vpack.c.bf16 %v9016, %v9015
    %v9065 = vpack.c.bf16 %v8874, %v8873
    %v9066 = vpack.c.bf16 %v9018, %v9017
    %v9067 = vpack.c.bf16 %v8876, %v8875
    %v9068 = vpack.c.bf16 %v9020, %v9019
    %v9069 = vpack.c.bf16 %v8878, %v8877
    %v9070 = vpack.c.bf16 %v9022, %v9021
    %v9071 = vpack.c.bf16 %v8880, %v8879
    %v9072 = vpack.c.bf16 %v9024, %v9023
    %v9073 = vpack.c.bf16 %v8882, %v8881
    %v9074 = vpack.c.bf16 %v9026, %v9025
    %v9075 = vpack.c.bf16 %v8884, %v8883
    %v9076 = vpack.c.bf16 %v9028, %v9027
    %v9077 = vpack.c.bf16 %v8886, %v8885
    %v9078 = vpack.c.bf16 %v9030, %v9029
    %v9079 = vpack.c.bf16 %v8888, %v8887
    %v9080 = vpack.c.bf16 %v9032, %v9031
    %v9081 = vpack.c.bf16 %v8890, %v8889
    %v9082 = vpack.c.bf16 %v9034, %v9033
    %v9083 = vpack.c.bf16 %v8892, %v8891
    %v9084 = vpack.c.bf16 %v9036, %v9035
    %v9085 = vpack.c.bf16 %v8894, %v8893
    %v9086 = vpack.c.bf16 %v9038, %v9037
    %v9087 = vpack.c.bf16 %v8896, %v8895
    %v9088 = vpack.c.bf16 %v9040, %v9039
    %v9089 = vpack.c.bf16 %v8898, %v8897
    %v9090 = vpack.c.bf16 %v9042, %v9041
    %v9091 = vpack.c.bf16 %v8900, %v8899
    %v9092 = vpack.c.bf16 %v9044, %v9043
    %v9093 = vld [vmem:[%s10] sm:$0xf]
    %v9094 = vld [vmem:[%s10 + $0x4] sm:$0xf]
    %v9095 = vld [vmem:[%s10 + $0x8] sm:$0xf]
    %v9096 = vld [vmem:[%s10 + $0xc] sm:$0xf]
    %v9097 = vld [vmem:[%s10 + $0x10] sm:$0xf]
    %v9098 = vld [vmem:[%s10 + $0x14] sm:$0xf]
    %v9099 = vld [vmem:[%s10 + $0x18] sm:$0xf]
    %v9100 = vld [vmem:[%s10 + $0x1c] sm:$0xf]
    %v9101 = vld [vmem:[%s10 + $0x20] sm:$0xf]
    %v9102 = vld [vmem:[%s10 + $0x24] sm:$0xf]
    %v9103 = vld [vmem:[%s10 + $0x28] sm:$0xf]
    %v9104 = vld [vmem:[%s10 + $0x2c] sm:$0xf]
    %v9105 = vld [vmem:[%s10 + $0x30] sm:$0xf]
    %v9106 = vld [vmem:[%s10 + $0x34] sm:$0xf]
    %v9107 = vld [vmem:[%s10 + $0x38] sm:$0xf]
    %v9108 = vld [vmem:[%s10 + $0x3c] sm:$0xf]
    %v9109 = vld [vmem:[%s10 + $0x40] sm:$0xf]
    %v9110 = vld [vmem:[%s10 + $0x44] sm:$0xf]
    %v9111 = vld [vmem:[%s10 + $0x48] sm:$0xf]
    %v9112 = vld [vmem:[%s10 + $0x4c] sm:$0xf]
    %v9113 = vld [vmem:[%s10 + $0x50] sm:$0xf]
    %v9114 = vld [vmem:[%s10 + $0x54] sm:$0xf]
    %v9115 = vld [vmem:[%s10 + $0x58] sm:$0xf]
    %v9116 = vld [vmem:[%s10 + $0x5c] sm:$0xf]
    %v9117 = vld [vmem:[%s10 + $0x60] sm:$0xf]
    %v9118 = vld [vmem:[%s10 + $0x64] sm:$0xf]
    %v9119 = vld [vmem:[%s10 + $0x68] sm:$0xf]
    %v9120 = vld [vmem:[%s10 + $0x6c] sm:$0xf]
    %v9121 = vld [vmem:[%s10 + $0x70] sm:$0xf]
    %v9122 = vld [vmem:[%s10 + $0x74] sm:$0xf]
    %v9123 = vld [vmem:[%s10 + $0x78] sm:$0xf]
    %v9124 = vld [vmem:[%s10 + $0x7c] sm:$0xf]
    %v9157 = vunpack.c.l.b16 %v9093
    %v9158 = vunpack.c.l.b16 %v9094
    %v9159 = vunpack.c.l.b16 %v9095
    %v9160 = vunpack.c.l.b16 %v9096
    %v9161 = vunpack.c.l.b16 %v9097
    %v9162 = vunpack.c.l.b16 %v9098
    %v9163 = vunpack.c.l.b16 %v9099
    %v9164 = vunpack.c.l.b16 %v9100
    %v9165 = vunpack.c.l.b16 %v9101
    %v9166 = vunpack.c.l.b16 %v9102
    %v9167 = vunpack.c.l.b16 %v9103
    %v9168 = vunpack.c.l.b16 %v9104
    %v9169 = vunpack.c.l.b16 %v9105
    %v9170 = vunpack.c.l.b16 %v9106
    %v9171 = vunpack.c.l.b16 %v9107
    %v9172 = vunpack.c.l.b16 %v9108
    %v9173 = vunpack.c.l.b16 %v9109
    %v9174 = vunpack.c.l.b16 %v9110
    %v9175 = vunpack.c.l.b16 %v9111
    %v9176 = vunpack.c.l.b16 %v9112
    %v9177 = vunpack.c.l.b16 %v9113
    %v9178 = vunpack.c.l.b16 %v9114
    %v9179 = vunpack.c.l.b16 %v9115
    %v9180 = vunpack.c.l.b16 %v9116
    %v9181 = vunpack.c.l.b16 %v9117
    %v9182 = vunpack.c.l.b16 %v9118
    %v9183 = vunpack.c.l.b16 %v9119
    %v9184 = vunpack.c.l.b16 %v9120
    %v9185 = vunpack.c.l.b16 %v9121
    %v9186 = vunpack.c.l.b16 %v9122
    %v9187 = vunpack.c.l.b16 %v9123
    %v9188 = vunpack.c.l.b16 %v9124
    %v9189 = vpack.c.b16 %v9158, %v9157
    %v9190 = vpack.c.b16 %v9160, %v9159
    %v9191 = vpack.c.b16 %v9162, %v9161
    %v9192 = vpack.c.b16 %v9164, %v9163
    %v9193 = vpack.c.b16 %v9166, %v9165
    %v9194 = vpack.c.b16 %v9168, %v9167
    %v9195 = vpack.c.b16 %v9170, %v9169
    %v9196 = vpack.c.b16 %v9172, %v9171
    %v9197 = vpack.c.b16 %v9174, %v9173
    %v9198 = vpack.c.b16 %v9176, %v9175
    %v9199 = vpack.c.b16 %v9178, %v9177
    %v9200 = vpack.c.b16 %v9180, %v9179
    %v9201 = vpack.c.b16 %v9182, %v9181
    %v9202 = vpack.c.b16 %v9184, %v9183
    %v9203 = vpack.c.b16 %v9186, %v9185
    %v9204 = vpack.c.b16 %v9188, %v9187
    %9221 = vmatprep.subr.bf16.mxu0 0
    %9222 = vmatpush1.bf16.msra.mxu0 %v9189
    %9223 = vmatprep.subr.bf16.mxu0 0
    %9224 = vmatpush1.bf16.msra.mxu0 %v9190
    %9225 = vmatprep.subr.bf16.mxu0 0
    %9226 = vmatpush1.bf16.msra.mxu0 %v9191
    %9227 = vmatprep.subr.bf16.mxu0 0
    %9228 = vmatpush1.bf16.msra.mxu0 %v9192
    %9229 = vmatprep.subr.bf16.mxu0 0
    %9230 = vmatpush1.bf16.msra.mxu0 %v9193
    %9231 = vmatprep.subr.bf16.mxu0 0
    %9232 = vmatpush1.bf16.msra.mxu0 %v9194
    %9233 = vmatprep.subr.bf16.mxu0 0
    %9234 = vmatpush1.bf16.msra.mxu0 %v9195
    %9235 = vmatprep.subr.bf16.mxu0 0
    %9236 = vmatpush1.bf16.msra.mxu0 %v9196
    %9237 = vmatprep.subr.bf16.mxu0 0
    %9238 = vmatpush1.bf16.msra.mxu0 %v9197
    %9239 = vmatprep.subr.bf16.mxu0 0
    %9240 = vmatpush1.bf16.msra.mxu0 %v9198
    %9241 = vmatprep.subr.bf16.mxu0 0
    %9242 = vmatpush1.bf16.msra.mxu0 %v9199
    %9243 = vmatprep.subr.bf16.mxu0 0
    %9244 = vmatpush1.bf16.msra.mxu0 %v9200
    %9245 = vmatprep.subr.bf16.mxu0 0
    %9246 = vmatpush1.bf16.msra.mxu0 %v9201
    %9247 = vmatprep.subr.bf16.mxu0 0
    %9248 = vmatpush1.bf16.msra.mxu0 %v9202
    %9249 = vmatprep.subr.bf16.mxu0 0
    %9250 = vmatpush1.bf16.msra.mxu0 %v9203
    %9251 = vmatprep.subr.bf16.mxu0 0
    %9252 = vmatpush1.bf16.msra.mxu0 %v9204
    %9253 = vmatprep.mubr.bf16.mxu0 %v9046
    %9254 = vmatmul.mubr.bf16.gmra.mrb[0].mxu0 %v9045
    %v9255 = vpop.f32.mrb[0].mxu0
    %v9256 = vadd.f32 0.0, %v9255
    %v9257 = vpop.f32.mrb[0].mxu0
    %v9258 = vpop.f32.mrb[0].mxu0
    %v9259 = vadd.f32 0.0, %v9258
    %v9260 = vpop.f32.mrb[0].mxu0
    %9261 = vmatprep.mubr.bf16.mxu0 %v9048
    %9262 = vmatmul.mubr.bf16.gmra.mrb[0].mxu0 %v9047
    %v9263 = vpop.f32.mrb[0].mxu0
    %v9264 = vadd.f32 0.0, %v9263
    %v9265 = vpop.f32.mrb[0].mxu0
    %v9266 = vpop.f32.mrb[0].mxu0
    %v9267 = vadd.f32 0.0, %v9266
    %v9268 = vpop.f32.mrb[0].mxu0
    %9269 = vmatprep.mubr.bf16.mxu0 %v9050
    %9270 = vmatmul.mubr.bf16.gmra.mrb[0].mxu0 %v9049
    %v9271 = vpop.f32.mrb[0].mxu0
    %v9272 = vadd.f32 0.0, %v9271
    %v9273 = vpop.f32.mrb[0].mxu0
    %v9274 = vpop.f32.mrb[0].mxu0
    %v9275 = vadd.f32 0.0, %v9274
    %v9276 = vpop.f32.mrb[0].mxu0
    %9277 = vmatprep.mubr.bf16.mxu0 %v9052
    %9278 = vmatmul.mubr.bf16.gmra.mrb[0].mxu0 %v9051
    %v9279 = vpop.f32.mrb[0].mxu0
    %v9280 = vadd.f32 0.0, %v9279
    %v9281 = vpop.f32.mrb[0].mxu0
    %v9282 = vpop.f32.mrb[0].mxu0
    %v9283 = vadd.f32 0.0, %v9282
    %v9284 = vpop.f32.mrb[0].mxu0
    %9285 = vmatprep.mubr.bf16.mxu0 %v9054
    %9286 = vmatmul.mubr.bf16.gmra.mrb[0].mxu0 %v9053
    %v9287 = vpop.f32.mrb[0].mxu0
    %v9288 = vadd.f32 0.0, %v9287
    %v9289 = vpop.f32.mrb[0].mxu0
    %v9290 = vpop.f32.mrb[0].mxu0
    %v9291 = vadd.f32 0.0, %v9290
    %v9292 = vpop.f32.mrb[0].mxu0
    %9293 = vmatprep.mubr.bf16.mxu0 %v9056
    %9294 = vmatmul.mubr.bf16.gmra.mrb[0].mxu0 %v9055
    %v9295 = vpop.f32.mrb[0].mxu0
    %v9296 = vadd.f32 0.0, %v9295
    %v9297 = vpop.f32.mrb[0].mxu0
    %v9298 = vpop.f32.mrb[0].mxu0
    %v9299 = vadd.f32 0.0, %v9298
    %v9300 = vpop.f32.mrb[0].mxu0
    %9301 = vmatprep.mubr.bf16.mxu0 %v9058
    %9302 = vmatmul.mubr.bf16.gmra.mrb[0].mxu0 %v9057
    %v9303 = vpop.f32.mrb[0].mxu0
    %v9304 = vadd.f32 0.0, %v9303
    %v9305 = vpop.f32.mrb[0].mxu0
    %v9306 = vpop.f32.mrb[0].mxu0
    %v9307 = vadd.f32 0.0, %v9306
    %v9308 = vpop.f32.mrb[0].mxu0
    %9309 = vmatprep.mubr.bf16.mxu0 %v9060
    %9310 = vmatmul.mubr.bf16.gmra.mrb[0].mxu0 %v9059
    %v9311 = vpop.f32.mrb[0].mxu0
    %v9312 = vadd.f32 0.0, %v9311
    %v9313 = vpop.f32.mrb[0].mxu0
    %v9314 = vpop.f32.mrb[0].mxu0
    %v9315 = vadd.f32 0.0, %v9314
    %v9316 = vpop.f32.mrb[0].mxu0
    %9317 = vmatprep.mubr.bf16.mxu0 %v9062
    %9318 = vmatmul.mubr.bf16.gmra.mrb[0].mxu0 %v9061
    %v9319 = vpop.f32.mrb[0].mxu0
    %v9320 = vadd.f32 0.0, %v9319
    %v9321 = vpop.f32.mrb[0].mxu0
    %v9322 = vpop.f32.mrb[0].mxu0
    %v9323 = vadd.f32 0.0, %v9322
    %v9324 = vpop.f32.mrb[0].mxu0
    %9325 = vmatprep.mubr.bf16.mxu0 %v9064
    %9326 = vmatmul.mubr.bf16.gmra.mrb[0].mxu0 %v9063
    %v9327 = vpop.f32.mrb[0].mxu0
    %v9328 = vadd.f32 0.0, %v9327
    %v9329 = vpop.f32.mrb[0].mxu0
    %v9330 = vpop.f32.mrb[0].mxu0
    %v9331 = vadd.f32 0.0, %v9330
    %v9332 = vpop.f32.mrb[0].mxu0
    %9333 = vmatprep.mubr.bf16.mxu0 %v9066
    %9334 = vmatmul.mubr.bf16.gmra.mrb[0].mxu0 %v9065
    %v9335 = vpop.f32.mrb[0].mxu0
    %v9336 = vadd.f32 0.0, %v9335
    %v9337 = vpop.f32.mrb[0].mxu0
    %v9338 = vpop.f32.mrb[0].mxu0
    %v9339 = vadd.f32 0.0, %v9338
    %v9340 = vpop.f32.mrb[0].mxu0
    %9341 = vmatprep.mubr.bf16.mxu0 %v9068
    %9342 = vmatmul.mubr.bf16.gmra.mrb[0].mxu0 %v9067
    %v9343 = vpop.f32.mrb[0].mxu0
    %v9344 = vadd.f32 0.0, %v9343
    %v9345 = vpop.f32.mrb[0].mxu0
    %v9346 = vpop.f32.mrb[0].mxu0
    %v9347 = vadd.f32 0.0, %v9346
    %v9348 = vpop.f32.mrb[0].mxu0
    %9349 = vmatprep.mubr.bf16.mxu0 %v9070
    %9350 = vmatmul.mubr.bf16.gmra.mrb[0].mxu0 %v9069
    %v9351 = vpop.f32.mrb[0].mxu0
    %v9352 = vadd.f32 0.0, %v9351
    %v9353 = vpop.f32.mrb[0].mxu0
    %v9354 = vpop.f32.mrb[0].mxu0
    %v9355 = vadd.f32 0.0, %v9354
    %v9356 = vpop.f32.mrb[0].mxu0
    %9357 = vmatprep.mubr.bf16.mxu0 %v9072
    %9358 = vmatmul.mubr.bf16.gmra.mrb[0].mxu0 %v9071
    %v9359 = vpop.f32.mrb[0].mxu0
    %v9360 = vadd.f32 0.0, %v9359
    %v9361 = vpop.f32.mrb[0].mxu0
    %v9362 = vpop.f32.mrb[0].mxu0
    %v9363 = vadd.f32 0.0, %v9362
    %v9364 = vpop.f32.mrb[0].mxu0
    %9365 = vmatprep.mubr.bf16.mxu0 %v9074
    %9366 = vmatmul.mubr.bf16.gmra.mrb[0].mxu0 %v9073
    %v9367 = vpop.f32.mrb[0].mxu0
    %v9368 = vadd.f32 0.0, %v9367
    %v9369 = vpop.f32.mrb[0].mxu0
    %v9370 = vpop.f32.mrb[0].mxu0
    %v9371 = vadd.f32 0.0, %v9370
    %v9372 = vpop.f32.mrb[0].mxu0
    %9373 = vmatprep.mubr.bf16.mxu0 %v9076
    %9374 = vmatmul.mubr.bf16.gmra.mrb[0].mxu0 %v9075
    %v9375 = vpop.f32.mrb[0].mxu0
    %v9376 = vadd.f32 0.0, %v9375
    %v9377 = vpop.f32.mrb[0].mxu0
    %v9378 = vpop.f32.mrb[0].mxu0
    %v9379 = vadd.f32 0.0, %v9378
    %v9380 = vpop.f32.mrb[0].mxu0
    %9381 = vmatprep.mubr.bf16.mxu0 %v9078
    %9382 = vmatmul.mubr.bf16.gmra.mrb[0].mxu0 %v9077
    %v9383 = vpop.f32.mrb[0].mxu0
    %v9384 = vadd.f32 0.0, %v9383
    %v9385 = vpop.f32.mrb[0].mxu0
    %v9386 = vpop.f32.mrb[0].mxu0
    %v9387 = vadd.f32 0.0, %v9386
    %v9388 = vpop.f32.mrb[0].mxu0
    %9389 = vmatprep.mubr.bf16.mxu0 %v9080
    %9390 = vmatmul.mubr.bf16.gmra.mrb[0].mxu0 %v9079
    %v9391 = vpop.f32.mrb[0].mxu0
    %v9392 = vadd.f32 0.0, %v9391
    %v9393 = vpop.f32.mrb[0].mxu0
    %v9394 = vpop.f32.mrb[0].mxu0
    %v9395 = vadd.f32 0.0, %v9394
    %v9396 = vpop.f32.mrb[0].mxu0
    %9397 = vmatprep.mubr.bf16.mxu0 %v9082
    %9398 = vmatmul.mubr.bf16.gmra.mrb[0].mxu0 %v9081
    %v9399 = vpop.f32.mrb[0].mxu0
    %v9400 = vadd.f32 0.0, %v9399
    %v9401 = vpop.f32.mrb[0].mxu0
    %v9402 = vpop.f32.mrb[0].mxu0
    %v9403 = vadd.f32 0.0, %v9402
    %v9404 = vpop.f32.mrb[0].mxu0
    %9405 = vmatprep.mubr.bf16.mxu0 %v9084
    %9406 = vmatmul.mubr.bf16.gmra.mrb[0].mxu0 %v9083
    %v9407 = vpop.f32.mrb[0].mxu0
    %v9408 = vadd.f32 0.0, %v9407
    %v9409 = vpop.f32.mrb[0].mxu0
    %v9410 = vpop.f32.mrb[0].mxu0
    %v9411 = vadd.f32 0.0, %v9410
    %v9412 = vpop.f32.mrb[0].mxu0
    %9413 = vmatprep.mubr.bf16.mxu0 %v9086
    %9414 = vmatmul.mubr.bf16.gmra.mrb[0].mxu0 %v9085
    %v9415 = vpop.f32.mrb[0].mxu0
    %v9416 = vadd.f32 0.0, %v9415
    %v9417 = vpop.f32.mrb[0].mxu0
    %v9418 = vpop.f32.mrb[0].mxu0
    %v9419 = vadd.f32 0.0, %v9418
    %v9420 = vpop.f32.mrb[0].mxu0
    %9421 = vmatprep.mubr.bf16.mxu0 %v9088
    %9422 = vmatmul.mubr.bf16.gmra.mrb[0].mxu0 %v9087
    %v9423 = vpop.f32.mrb[0].mxu0
    %v9424 = vadd.f32 0.0, %v9423
    %v9425 = vpop.f32.mrb[0].mxu0
    %v9426 = vpop.f32.mrb[0].mxu0
    %v9427 = vadd.f32 0.0, %v9426
    %v9428 = vpop.f32.mrb[0].mxu0
    %9429 = vmatprep.mubr.bf16.mxu0 %v9090
    %9430 = vmatmul.mubr.bf16.gmra.mrb[0].mxu0 %v9089
    %v9431 = vpop.f32.mrb[0].mxu0
    %v9432 = vadd.f32 0.0, %v9431
    %v9433 = vpop.f32.mrb[0].mxu0
    %v9434 = vpop.f32.mrb[0].mxu0
    %v9435 = vadd.f32 0.0, %v9434
    %v9436 = vpop.f32.mrb[0].mxu0
    %9437 = vmatprep.mubr.bf16.mxu0 %v9092
    %9438 = vmatmul.mubr.bf16.gmra.mrb[0].mxu0 %v9091
    %v9439 = vpop.f32.mrb[0].mxu0
    %v9440 = vadd.f32 0.0, %v9439
    %v9441 = vpop.f32.mrb[0].mxu0
    %v9442 = vpop.f32.mrb[0].mxu0
    %v9443 = vadd.f32 0.0, %v9442
    %v9444 = vpop.f32.mrb[0].mxu0
    %9445 = vdwg.mxu0
    %v9446 = vld [vmem:[%s11] sm:$0x1]
    %v9448 = vlaneseq
    %v9449 = vshrl.u32 %v9448, 7
    %v9450 = vsub.s32 0, %v9449
    %v9451 = vrot.slane %v9446, %v9450
    %v9453 = vadd.f32 %v9256, %v9451
    %v9454 = vadd.f32 %v9259, %v9451
    %v9455 = vadd.f32 %v9264, %v9451
    %v9456 = vadd.f32 %v9267, %v9451
    %v9457 = vadd.f32 %v9272, %v9451
    %v9458 = vadd.f32 %v9275, %v9451
    %v9459 = vadd.f32 %v9280, %v9451
    %v9460 = vadd.f32 %v9283, %v9451
    %v9461 = vadd.f32 %v9288, %v9451
    %v9462 = vadd.f32 %v9291, %v9451
    %v9463 = vadd.f32 %v9296, %v9451
    %v9464 = vadd.f32 %v9299, %v9451
    %v9465 = vadd.f32 %v9304, %v9451
    %v9466 = vadd.f32 %v9307, %v9451
    %v9467 = vadd.f32 %v9312, %v9451
    %v9468 = vadd.f32 %v9315, %v9451
    %v9469 = vadd.f32 %v9320, %v9451
    %v9470 = vadd.f32 %v9323, %v9451
    %v9471 = vadd.f32 %v9328, %v9451
    %v9472 = vadd.f32 %v9331, %v9451
    %v9473 = vadd.f32 %v9336, %v9451
    %v9474 = vadd.f32 %v9339, %v9451
    %v9475 = vadd.f32 %v9344, %v9451
    %v9476 = vadd.f32 %v9347, %v9451
    %v9477 = vadd.f32 %v9352, %v9451
    %v9478 = vadd.f32 %v9355, %v9451
    %v9479 = vadd.f32 %v9360, %v9451
    %v9480 = vadd.f32 %v9363, %v9451
    %v9481 = vadd.f32 %v9368, %v9451
    %v9482 = vadd.f32 %v9371, %v9451
    %v9483 = vadd.f32 %v9376, %v9451
    %v9484 = vadd.f32 %v9379, %v9451
    %v9485 = vadd.f32 %v9384, %v9451
    %v9486 = vadd.f32 %v9387, %v9451
    %v9487 = vadd.f32 %v9392, %v9451
    %v9488 = vadd.f32 %v9395, %v9451
    %v9489 = vadd.f32 %v9400, %v9451
    %v9490 = vadd.f32 %v9403, %v9451
    %v9491 = vadd.f32 %v9408, %v9451
    %v9492 = vadd.f32 %v9411, %v9451
    %v9493 = vadd.f32 %v9416, %v9451
    %v9494 = vadd.f32 %v9419, %v9451
    %v9495 = vadd.f32 %v9424, %v9451
    %v9496 = vadd.f32 %v9427, %v9451
    %v9497 = vadd.f32 %v9432, %v9451
    %v9498 = vadd.f32 %v9435, %v9451
    %v9499 = vadd.f32 %v9440, %v9451
    %v9500 = vadd.f32 %v9443, %v9451
    %vm9501 = vcmask 130048
    %v9502 = vsel %vm9501, %v9453, 0.0
    %v9503 = vsel %vm9501, %v9454, 0.0
    %v9504 = vadd.f32 %v9502, %v9503
    %v9505 = vsel %vm9501, %v9455, 0.0
    %v9506 = vadd.f32 %v9504, %v9505
    %v9507 = vsel %vm9501, %v9456, 0.0
    %v9508 = vadd.f32 %v9506, %v9507
    %v9509 = vsel %vm9501, %v9457, 0.0
    %v9510 = vadd.f32 %v9508, %v9509
    %vm9511 = vcmask 129024
    %v9512 = vsel %vm9511, %v9458, 0.0
    %v9513 = vadd.f32 %v9510, %v9512
    %v9514 = vsel %vm9501, %v9459, 0.0
    %v9515 = vadd.f32 %v9513, %v9514
    %v9516 = vsel %vm9501, %v9460, 0.0
    %v9517 = vadd.f32 %v9515, %v9516
    %v9518 = vsel %vm9501, %v9461, 0.0
    %v9519 = vadd.f32 %v9517, %v9518
    %v9520 = vsel %vm9501, %v9462, 0.0
    %v9521 = vadd.f32 %v9519, %v9520
    %v9522 = vsel %vm9501, %v9463, 0.0
    %v9523 = vadd.f32 %v9521, %v9522
    %v9524 = vsel %vm9511, %v9464, 0.0
    %v9525 = vadd.f32 %v9523, %v9524
    %v9526 = vsel %vm9501, %v9465, 0.0
    %v9527 = vadd.f32 %v9525, %v9526
    %v9528 = vsel %vm9501, %v9466, 0.0
    %v9529 = vadd.f32 %v9527, %v9528
    %v9530 = vsel %vm9501, %v9467, 0.0
    %v9531 = vadd.f32 %v9529, %v9530
    %v9532 = vsel %vm9501, %v9468, 0.0
    %v9533 = vadd.f32 %v9531, %v9532
    %v9534 = vsel %vm9501, %v9469, 0.0
    %v9535 = vadd.f32 %v9533, %v9534
    %v9536 = vsel %vm9511, %v9470, 0.0
    %v9537 = vadd.f32 %v9535, %v9536
    %v9538 = vsel %vm9501, %v9471, 0.0
    %v9539 = vadd.f32 %v9537, %v9538
    %v9540 = vsel %vm9501, %v9472, 0.0
    %v9541 = vadd.f32 %v9539, %v9540
    %v9542 = vsel %vm9501, %v9473, 0.0
    %v9543 = vadd.f32 %v9541, %v9542
    %v9544 = vsel %vm9501, %v9474, 0.0
    %v9545 = vadd.f32 %v9543, %v9544
    %v9546 = vsel %vm9501, %v9475, 0.0
    %v9547 = vadd.f32 %v9545, %v9546
    %v9548 = vsel %vm9511, %v9476, 0.0
    %v9549 = vadd.f32 %v9547, %v9548
    %v9550 = vsel %vm9501, %v9477, 0.0
    %v9551 = vadd.f32 %v9549, %v9550
    %v9552 = vsel %vm9501, %v9478, 0.0
    %v9553 = vadd.f32 %v9551, %v9552
    %v9554 = vsel %vm9501, %v9479, 0.0
    %v9555 = vadd.f32 %v9553, %v9554
    %v9556 = vsel %vm9501, %v9480, 0.0
    %v9557 = vadd.f32 %v9555, %v9556
    %v9558 = vsel %vm9501, %v9481, 0.0
    %v9559 = vadd.f32 %v9557, %v9558
    %v9560 = vsel %vm9511, %v9482, 0.0
    %v9561 = vadd.f32 %v9559, %v9560
    %v9562 = vsel %vm9501, %v9483, 0.0
    %v9563 = vadd.f32 %v9561, %v9562
    %v9564 = vsel %vm9501, %v9484, 0.0
    %v9565 = vadd.f32 %v9563, %v9564
    %v9566 = vsel %vm9501, %v9485, 0.0
    %v9567 = vadd.f32 %v9565, %v9566
    %v9568 = vsel %vm9501, %v9486, 0.0
    %v9569 = vadd.f32 %v9567, %v9568
    %v9570 = vsel %vm9501, %v9487, 0.0
    %v9571 = vadd.f32 %v9569, %v9570
    %v9572 = vsel %vm9511, %v9488, 0.0
    %v9573 = vadd.f32 %v9571, %v9572
    %v9574 = vsel %vm9501, %v9489, 0.0
    %v9575 = vadd.f32 %v9573, %v9574
    %v9576 = vsel %vm9501, %v9490, 0.0
    %v9577 = vadd.f32 %v9575, %v9576
    %v9578 = vsel %vm9501, %v9491, 0.0
    %v9579 = vadd.f32 %v9577, %v9578
    %v9580 = vsel %vm9501, %v9492, 0.0
    %v9581 = vadd.f32 %v9579, %v9580
    %v9582 = vsel %vm9501, %v9493, 0.0
    %v9583 = vadd.f32 %v9581, %v9582
    %v9584 = vsel %vm9511, %v9494, 0.0
    %v9585 = vadd.f32 %v9583, %v9584
    %v9586 = vsel %vm9501, %v9495, 0.0
    %v9587 = vadd.f32 %v9585, %v9586
    %v9588 = vsel %vm9501, %v9496, 0.0
    %v9589 = vadd.f32 %v9587, %v9588
    %v9590 = vsel %vm9501, %v9497, 0.0
    %v9591 = vadd.f32 %v9589, %v9590
    %v9592 = vsel %vm9501, %v9498, 0.0
    %v9593 = vadd.f32 %v9591, %v9592
    %v9594 = vsel %vm9501, %v9499, 0.0
    %v9595 = vadd.f32 %v9593, %v9594
    %v9596 = vsel %vm9511, %v9500, 0.0
    %v9597 = vadd.f32 %v9595, %v9596
    %v9598 = vrot.slane %v9597, 4
    %v9599 = vadd.f32 %v9597, %v9598
    %v9600 = vrot.slane %v9599, 2
    %v9601 = vadd.f32 %v9599, %v9600
    %v9602 = vrot.slane %v9601, 1
    %v9603 = vadd.f32 %v9601, %v9602
    %v9604 = vrcp.pop 376.0
    %v9605 = vmul.f32 %v9603, %v9604
    %v9606 = vmul.f32 %v9453, %v9453
    %v9607 = vmul.f32 %v9454, %v9454
    %v9608 = vmul.f32 %v9455, %v9455
    %v9609 = vmul.f32 %v9456, %v9456
    %v9610 = vmul.f32 %v9457, %v9457
    %v9611 = vmul.f32 %v9458, %v9458
    %v9612 = vmul.f32 %v9459, %v9459
    %v9613 = vmul.f32 %v9460, %v9460
    %v9614 = vmul.f32 %v9461, %v9461
    %v9615 = vmul.f32 %v9462, %v9462
    %v9616 = vmul.f32 %v9463, %v9463
    %v9617 = vmul.f32 %v9464, %v9464
    %v9618 = vmul.f32 %v9465, %v9465
    %v9619 = vmul.f32 %v9466, %v9466
    %v9620 = vmul.f32 %v9467, %v9467
    %v9621 = vmul.f32 %v9468, %v9468
    %v9622 = vmul.f32 %v9469, %v9469
    %v9623 = vmul.f32 %v9470, %v9470
    %v9624 = vmul.f32 %v9471, %v9471
    %v9625 = vmul.f32 %v9472, %v9472
    %v9626 = vmul.f32 %v9473, %v9473
    %v9627 = vmul.f32 %v9474, %v9474
    %v9628 = vmul.f32 %v9475, %v9475
    %v9629 = vmul.f32 %v9476, %v9476
    %v9630 = vmul.f32 %v9477, %v9477
    %v9631 = vmul.f32 %v9478, %v9478
    %v9632 = vmul.f32 %v9479, %v9479
    %v9633 = vmul.f32 %v9480, %v9480
    %v9634 = vmul.f32 %v9481, %v9481
    %v9635 = vmul.f32 %v9482, %v9482
    %v9636 = vmul.f32 %v9483, %v9483
    %v9637 = vmul.f32 %v9484, %v9484
    %v9638 = vmul.f32 %v9485, %v9485
    %v9639 = vmul.f32 %v9486, %v9486
    %v9640 = vmul.f32 %v9487, %v9487
    %v9641 = vmul.f32 %v9488, %v9488
    %v9642 = vmul.f32 %v9489, %v9489
    %v9643 = vmul.f32 %v9490, %v9490
    %v9644 = vmul.f32 %v9491, %v9491
    %v9645 = vmul.f32 %v9492, %v9492
    %v9646 = vmul.f32 %v9493, %v9493
    %v9647 = vmul.f32 %v9494, %v9494
    %v9648 = vmul.f32 %v9495, %v9495
    %v9649 = vmul.f32 %v9496, %v9496
    %v9650 = vmul.f32 %v9497, %v9497
    %v9651 = vmul.f32 %v9498, %v9498
    %v9652 = vmul.f32 %v9499, %v9499
    %v9653 = vmul.f32 %v9500, %v9500
    %v9654 = vsel %vm9501, %v9606, 0.0
    %v9655 = vsel %vm9501, %v9607, 0.0
    %v9656 = vadd.f32 %v9654, %v9655
    %v9657 = vsel %vm9501, %v9608, 0.0
    %v9658 = vadd.f32 %v9656, %v9657
    %v9659 = vsel %vm9501, %v9609, 0.0
    %v9660 = vadd.f32 %v9658, %v9659
    %v9661 = vsel %vm9501, %v9610, 0.0
    %v9662 = vadd.f32 %v9660, %v9661
    %v9663 = vsel %vm9511, %v9611, 0.0
    %v9664 = vadd.f32 %v9662, %v9663
    %v9665 = vsel %vm9501, %v9612, 0.0
    %v9666 = vadd.f32 %v9664, %v9665
    %v9667 = vsel %vm9501, %v9613, 0.0
    %v9668 = vadd.f32 %v9666, %v9667
    %v9669 = vsel %vm9501, %v9614, 0.0
    %v9670 = vadd.f32 %v9668, %v9669
    %v9671 = vsel %vm9501, %v9615, 0.0
    %v9672 = vadd.f32 %v9670, %v9671
    %v9673 = vsel %vm9501, %v9616, 0.0
    %v9674 = vadd.f32 %v9672, %v9673
    %v9675 = vsel %vm9511, %v9617, 0.0
    %v9676 = vadd.f32 %v9674, %v9675
    %v9677 = vsel %vm9501, %v9618, 0.0
    %v9678 = vadd.f32 %v9676, %v9677
    %v9679 = vsel %vm9501, %v9619, 0.0
    %v9680 = vadd.f32 %v9678, %v9679
    %v9681 = vsel %vm9501, %v9620, 0.0
    %v9682 = vadd.f32 %v9680, %v9681
    %v9683 = vsel %vm9501, %v9621, 0.0
    %v9684 = vadd.f32 %v9682, %v9683
    %v9685 = vsel %vm9501, %v9622, 0.0
    %v9686 = vadd.f32 %v9684, %v9685
    %v9687 = vsel %vm9511, %v9623, 0.0
    %v9688 = vadd.f32 %v9686, %v9687
    %v9689 = vsel %vm9501, %v9624, 0.0
    %v9690 = vadd.f32 %v9688, %v9689
    %v9691 = vsel %vm9501, %v9625, 0.0
    %v9692 = vadd.f32 %v9690, %v9691
    %v9693 = vsel %vm9501, %v9626, 0.0
    %v9694 = vadd.f32 %v9692, %v9693
    %v9695 = vsel %vm9501, %v9627, 0.0
    %v9696 = vadd.f32 %v9694, %v9695
    %v9697 = vsel %vm9501, %v9628, 0.0
    %v9698 = vadd.f32 %v9696, %v9697
    %v9699 = vsel %vm9511, %v9629, 0.0
    %v9700 = vadd.f32 %v9698, %v9699
    %v9701 = vsel %vm9501, %v9630, 0.0
    %v9702 = vadd.f32 %v9700, %v9701
    %v9703 = vsel %vm9501, %v9631, 0.0
    %v9704 = vadd.f32 %v9702, %v9703
    %v9705 = vsel %vm9501, %v9632, 0.0
    %v9706 = vadd.f32 %v9704, %v9705
    %v9707 = vsel %vm9501, %v9633, 0.0
    %v9708 = vadd.f32 %v9706, %v9707
    %v9709 = vsel %vm9501, %v9634, 0.0
    %v9710 = vadd.f32 %v9708, %v9709
    %v9711 = vsel %vm9511, %v9635, 0.0
    %v9712 = vadd.f32 %v9710, %v9711
    %v9713 = vsel %vm9501, %v9636, 0.0
    %v9714 = vadd.f32 %v9712, %v9713
    %v9715 = vsel %vm9501, %v9637, 0.0
    %v9716 = vadd.f32 %v9714, %v9715
    %v9717 = vsel %vm9501, %v9638, 0.0
    %v9718 = vadd.f32 %v9716, %v9717
    %v9719 = vsel %vm9501, %v9639, 0.0
    %v9720 = vadd.f32 %v9718, %v9719
    %v9721 = vsel %vm9501, %v9640, 0.0
    %v9722 = vadd.f32 %v9720, %v9721
    %v9723 = vsel %vm9511, %v9641, 0.0
    %v9724 = vadd.f32 %v9722, %v9723
    %v9725 = vsel %vm9501, %v9642, 0.0
    %v9726 = vadd.f32 %v9724, %v9725
    %v9727 = vsel %vm9501, %v9643, 0.0
    %v9728 = vadd.f32 %v9726, %v9727
    %v9729 = vsel %vm9501, %v9644, 0.0
    %v9730 = vadd.f32 %v9728, %v9729
    %v9731 = vsel %vm9501, %v9645, 0.0
    %v9732 = vadd.f32 %v9730, %v9731
    %v9733 = vsel %vm9501, %v9646, 0.0
    %v9734 = vadd.f32 %v9732, %v9733
    %v9735 = vsel %vm9511, %v9647, 0.0
    %v9736 = vadd.f32 %v9734, %v9735
    %v9737 = vsel %vm9501, %v9648, 0.0
    %v9738 = vadd.f32 %v9736, %v9737
    %v9739 = vsel %vm9501, %v9649, 0.0
    %v9740 = vadd.f32 %v9738, %v9739
    %v9741 = vsel %vm9501, %v9650, 0.0
    %v9742 = vadd.f32 %v9740, %v9741
    %v9743 = vsel %vm9501, %v9651, 0.0
    %v9744 = vadd.f32 %v9742, %v9743
    %v9745 = vsel %vm9501, %v9652, 0.0
    %v9746 = vadd.f32 %v9744, %v9745
    %v9747 = vsel %vm9511, %v9653, 0.0
    %v9748 = vadd.f32 %v9746, %v9747
    %v9749 = vrot.slane %v9748, 4
    %v9750 = vadd.f32 %v9748, %v9749
    %v9751 = vrot.slane %v9750, 2
    %v9752 = vadd.f32 %v9750, %v9751
    %v9753 = vrot.slane %v9752, 1
    %v9754 = vadd.f32 %v9752, %v9753
    %v9755 = vmul.f32 %v9754, %v9604
    %v9756 = vmul.f32 %v9605, %v9605
    %v9757 = vsub.f32 %v9755, %v9756
    %v9758 = vmax.f32 %v9757, 0.0
    %v9759 = vld [vmem:[%s12] sm:$0x1]
    %v9760 = vadd.f32 %v9758, 1e-05
    %v9761 = vrsqrt.pop %v9760
    %v9762 = vmul.f32 %v9759, %v9761
    %v9763 = vld [vmem:[%s13] sm:$0x1]
    %v9764 = vmul.f32 %v9605, %v9762
    %v9765 = vsub.f32 %v9763, %v9764
    %v9767 = vlaneseq
    %v9768 = vshrl.u32 %v9767, 7
    %v9769 = vsub.s32 0, %v9768
    %v9770 = vrot.slane %v9762, %v9769
    %v9772 = vmul.f32 %v9453, %v9770
    %v9773 = vmul.f32 %v9454, %v9770
    %v9774 = vmul.f32 %v9455, %v9770
    %v9775 = vmul.f32 %v9456, %v9770
    %v9776 = vmul.f32 %v9459, %v9770
    %v9777 = vmul.f32 %v9460, %v9770
    %v9778 = vmul.f32 %v9461, %v9770
    %v9779 = vmul.f32 %v9462, %v9770
    %v9780 = vmul.f32 %v9465, %v9770
    %v9781 = vmul.f32 %v9466, %v9770
    %v9782 = vmul.f32 %v9467, %v9770
    %v9783 = vmul.f32 %v9468, %v9770
    %v9784 = vmul.f32 %v9471, %v9770
    %v9785 = vmul.f32 %v9472, %v9770
    %v9786 = vmul.f32 %v9473, %v9770
    %v9787 = vmul.f32 %v9474, %v9770
    %v9788 = vmul.f32 %v9477, %v9770
    %v9789 = vmul.f32 %v9478, %v9770
    %v9790 = vmul.f32 %v9479, %v9770
    %v9791 = vmul.f32 %v9480, %v9770
    %v9792 = vmul.f32 %v9483, %v9770
    %v9793 = vmul.f32 %v9484, %v9770
    %v9794 = vmul.f32 %v9485, %v9770
    %v9795 = vmul.f32 %v9486, %v9770
    %v9796 = vmul.f32 %v9489, %v9770
    %v9797 = vmul.f32 %v9490, %v9770
    %v9798 = vmul.f32 %v9491, %v9770
    %v9799 = vmul.f32 %v9492, %v9770
    %v9800 = vmul.f32 %v9495, %v9770
    %v9801 = vmul.f32 %v9496, %v9770
    %v9802 = vmul.f32 %v9497, %v9770
    %v9803 = vmul.f32 %v9498, %v9770
    %v9805 = vlaneseq
    %v9806 = vshrl.u32 %v9805, 7
    %v9807 = vsub.s32 0, %v9806
    %v9808 = vrot.slane %v9765, %v9807
    %v9810 = vadd.f32 %v9772, %v9808
    %v9811 = vadd.f32 %v9773, %v9808
    %v9812 = vadd.f32 %v9774, %v9808
    %v9813 = vadd.f32 %v9775, %v9808
    %v9814 = vadd.f32 %v9776, %v9808
    %v9815 = vadd.f32 %v9777, %v9808
    %v9816 = vadd.f32 %v9778, %v9808
    %v9817 = vadd.f32 %v9779, %v9808
    %v9818 = vadd.f32 %v9780, %v9808
    %v9819 = vadd.f32 %v9781, %v9808
    %v9820 = vadd.f32 %v9782, %v9808
    %v9821 = vadd.f32 %v9783, %v9808
    %v9822 = vadd.f32 %v9784, %v9808
    %v9823 = vadd.f32 %v9785, %v9808
    %v9824 = vadd.f32 %v9786, %v9808
    %v9825 = vadd.f32 %v9787, %v9808
    %v9826 = vadd.f32 %v9788, %v9808
    %v9827 = vadd.f32 %v9789, %v9808
    %v9828 = vadd.f32 %v9790, %v9808
    %v9829 = vadd.f32 %v9791, %v9808
    %v9830 = vadd.f32 %v9792, %v9808
    %v9831 = vadd.f32 %v9793, %v9808
    %v9832 = vadd.f32 %v9794, %v9808
    %v9833 = vadd.f32 %v9795, %v9808
    %v9834 = vadd.f32 %v9796, %v9808
    %v9835 = vadd.f32 %v9797, %v9808
    %v9836 = vadd.f32 %v9798, %v9808
    %v9837 = vadd.f32 %v9799, %v9808
    %v9838 = vadd.f32 %v9800, %v9808
    %v9839 = vadd.f32 %v9801, %v9808
    %v9840 = vadd.f32 %v9802, %v9808
    %v9841 = vadd.f32 %v9803, %v9808
    %v9842 = vsel %vm9501, %v9810, -inf
    %v9843 = vsel %vm9501, %v9811, -inf
    %v9844 = vmax.f32 %v9842, %v9843
    %v9845 = vrot.slane %v9844, 4
    %v9846 = vmax.f32 %v9844, %v9845
    %v9847 = vrot.slane %v9846, 2
    %v9848 = vmax.f32 %v9846, %v9847
    %v9849 = vrot.slane %v9848, 1
    %v9850 = vmax.f32 %v9848, %v9849
    %v9851 = vsel %vm9501, %v9812, -inf
    %v9852 = vsel %vm9501, %v9813, -inf
    %v9853 = vmax.f32 %v9851, %v9852
    %v9854 = vrot.slane %v9853, 4
    %v9855 = vmax.f32 %v9853, %v9854
    %v9856 = vrot.slane %v9855, 2
    %v9857 = vmax.f32 %v9855, %v9856
    %v9858 = vrot.slane %v9857, 1
    %v9859 = vmax.f32 %v9857, %v9858
    %v9860 = vsel %vm9501, %v9814, -inf
    %v9861 = vsel %vm9501, %v9815, -inf
    %v9862 = vmax.f32 %v9860, %v9861
    %v9863 = vrot.slane %v9862, 4
    %v9864 = vmax.f32 %v9862, %v9863
    %v9865 = vrot.slane %v9864, 2
    %v9866 = vmax.f32 %v9864, %v9865
    %v9867 = vrot.slane %v9866, 1
    %v9868 = vmax.f32 %v9866, %v9867
    %v9869 = vsel %vm9501, %v9816, -inf
    %v9870 = vsel %vm9501, %v9817, -inf
    %v9871 = vmax.f32 %v9869, %v9870
    %v9872 = vrot.slane %v9871, 4
    %v9873 = vmax.f32 %v9871, %v9872
    %v9874 = vrot.slane %v9873, 2
    %v9875 = vmax.f32 %v9873, %v9874
    %v9876 = vrot.slane %v9875, 1
    %v9877 = vmax.f32 %v9875, %v9876
    %v9878 = vsel %vm9501, %v9818, -inf
    %v9879 = vsel %vm9501, %v9819, -inf
    %v9880 = vmax.f32 %v9878, %v9879
    %v9881 = vrot.slane %v9880, 4
    %v9882 = vmax.f32 %v9880, %v9881
    %v9883 = vrot.slane %v9882, 2
    %v9884 = vmax.f32 %v9882, %v9883
    %v9885 = vrot.slane %v9884, 1
    %v9886 = vmax.f32 %v9884, %v9885
    %v9887 = vsel %vm9501, %v9820, -inf
    %v9888 = vsel %vm9501, %v9821, -inf
    %v9889 = vmax.f32 %v9887, %v9888
    %v9890 = vrot.slane %v9889, 4
    %v9891 = vmax.f32 %v9889, %v9890
    %v9892 = vrot.slane %v9891, 2
    %v9893 = vmax.f32 %v9891, %v9892
    %v9894 = vrot.slane %v9893, 1
    %v9895 = vmax.f32 %v9893, %v9894
    %v9896 = vsel %vm9501, %v9822, -inf
    %v9897 = vsel %vm9501, %v9823, -inf
    %v9898 = vmax.f32 %v9896, %v9897
    %v9899 = vrot.slane %v9898, 4
    %v9900 = vmax.f32 %v9898, %v9899
    %v9901 = vrot.slane %v9900, 2
    %v9902 = vmax.f32 %v9900, %v9901
    %v9903 = vrot.slane %v9902, 1
    %v9904 = vmax.f32 %v9902, %v9903
    %v9905 = vsel %vm9501, %v9824, -inf
    %v9906 = vsel %vm9501, %v9825, -inf
    %v9907 = vmax.f32 %v9905, %v9906
    %v9908 = vrot.slane %v9907, 4
    %v9909 = vmax.f32 %v9907, %v9908
    %v9910 = vrot.slane %v9909, 2
    %v9911 = vmax.f32 %v9909, %v9910
    %v9912 = vrot.slane %v9911, 1
    %v9913 = vmax.f32 %v9911, %v9912
    %v9914 = vsel %vm9501, %v9826, -inf
    %v9915 = vsel %vm9501, %v9827, -inf
    %v9916 = vmax.f32 %v9914, %v9915
    %v9917 = vrot.slane %v9916, 4
    %v9918 = vmax.f32 %v9916, %v9917
    %v9919 = vrot.slane %v9918, 2
    %v9920 = vmax.f32 %v9918, %v9919
    %v9921 = vrot.slane %v9920, 1
    %v9922 = vmax.f32 %v9920, %v9921
    %v9923 = vsel %vm9501, %v9828, -inf
    %v9924 = vsel %vm9501, %v9829, -inf
    %v9925 = vmax.f32 %v9923, %v9924
    %v9926 = vrot.slane %v9925, 4
    %v9927 = vmax.f32 %v9925, %v9926
    %v9928 = vrot.slane %v9927, 2
    %v9929 = vmax.f32 %v9927, %v9928
    %v9930 = vrot.slane %v9929, 1
    %v9931 = vmax.f32 %v9929, %v9930
    %v9932 = vsel %vm9501, %v9830, -inf
    %v9933 = vsel %vm9501, %v9831, -inf
    %v9934 = vmax.f32 %v9932, %v9933
    %v9935 = vrot.slane %v9934, 4
    %v9936 = vmax.f32 %v9934, %v9935
    %v9937 = vrot.slane %v9936, 2
    %v9938 = vmax.f32 %v9936, %v9937
    %v9939 = vrot.slane %v9938, 1
    %v9940 = vmax.f32 %v9938, %v9939
    %v9941 = vsel %vm9501, %v9832, -inf
    %v9942 = vsel %vm9501, %v9833, -inf
    %v9943 = vmax.f32 %v9941, %v9942
    %v9944 = vrot.slane %v9943, 4
    %v9945 = vmax.f32 %v9943, %v9944
    %v9946 = vrot.slane %v9945, 2
    %v9947 = vmax.f32 %v9945, %v9946
    %v9948 = vrot.slane %v9947, 1
    %v9949 = vmax.f32 %v9947, %v9948
    %v9950 = vsel %vm9501, %v9834, -inf
    %v9951 = vsel %vm9501, %v9835, -inf
    %v9952 = vmax.f32 %v9950, %v9951
    %v9953 = vrot.slane %v9952, 4
    %v9954 = vmax.f32 %v9952, %v9953
    %v9955 = vrot.slane %v9954, 2
    %v9956 = vmax.f32 %v9954, %v9955
    %v9957 = vrot.slane %v9956, 1
    %v9958 = vmax.f32 %v9956, %v9957
    %v9959 = vsel %vm9501, %v9836, -inf
    %v9960 = vsel %vm9501, %v9837, -inf
    %v9961 = vmax.f32 %v9959, %v9960
    %v9962 = vrot.slane %v9961, 4
    %v9963 = vmax.f32 %v9961, %v9962
    %v9964 = vrot.slane %v9963, 2
    %v9965 = vmax.f32 %v9963, %v9964
    %v9966 = vrot.slane %v9965, 1
    %v9967 = vmax.f32 %v9965, %v9966
    %v9968 = vsel %vm9501, %v9838, -inf
    %v9969 = vsel %vm9501, %v9839, -inf
    %v9970 = vmax.f32 %v9968, %v9969
    %v9971 = vrot.slane %v9970, 4
    %v9972 = vmax.f32 %v9970, %v9971
    %v9973 = vrot.slane %v9972, 2
    %v9974 = vmax.f32 %v9972, %v9973
    %v9975 = vrot.slane %v9974, 1
    %v9976 = vmax.f32 %v9974, %v9975
    %v9977 = vsel %vm9501, %v9840, -inf
    %v9978 = vsel %vm9501, %v9841, -inf
    %v9979 = vmax.f32 %v9977, %v9978
    %v9980 = vrot.slane %v9979, 4
    %v9981 = vmax.f32 %v9979, %v9980
    %v9982 = vrot.slane %v9981, 2
    %v9983 = vmax.f32 %v9981, %v9982
    %v9984 = vrot.slane %v9983, 1
    %v9985 = vmax.f32 %v9983, %v9984
    %vm10002 = vcmask 1041409
    %v10003 = vsel %vm10002, %v9859, %v9850
    %v10004 = vsel %vm10002, %v9877, %v9868
    %v10005 = vsel %vm10002, %v9895, %v9886
    %v10006 = vsel %vm10002, %v9913, %v9904
    %v10007 = vsel %vm10002, %v9931, %v9922
    %v10008 = vsel %vm10002, %v9949, %v9940
    %v10009 = vsel %vm10002, %v9967, %v9958
    %v10010 = vsel %vm10002, %v9985, %v9976
    %v10019 = vcombine.low %v10003, %v10005
    %v10021 = vunpack.c.l.s4 1983009808
    %v10022 = vunpack.c.0.s8 %v10021
    %v10023 = vlaneseq
    %v10024 = vshrl.u32 %v10023, 7
    %v10025 = vsub.s32 %v10022, %v10024
    %v10026 = vrot.slane %v10019, %v10025
    %v10027 = vcombine.low %v10004, %v10006
    %v10029 = vunpack.c.l.s4 1983009808
    %v10030 = vunpack.c.0.s8 %v10029
    %v10031 = vlaneseq
    %v10032 = vshrl.u32 %v10031, 7
    %v10033 = vsub.s32 %v10030, %v10032
    %v10034 = vrot.slane %v10027, %v10033
    %v10035 = vcombine.low %v10007, %v10009
    %v10037 = vunpack.c.l.s4 1983009808
    %v10038 = vunpack.c.0.s8 %v10037
    %v10039 = vlaneseq
    %v10040 = vshrl.u32 %v10039, 7
    %v10041 = vsub.s32 %v10038, %v10040
    %v10042 = vrot.slane %v10035, %v10041
    %v10043 = vcombine.low %v10008, %v10010
    %v10045 = vunpack.c.l.s4 1983009808
    %v10046 = vunpack.c.0.s8 %v10045
    %v10047 = vlaneseq
    %v10048 = vshrl.u32 %v10047, 7
    %v10049 = vsub.s32 %v10046, %v10048
    %v10050 = vrot.slane %v10043, %v10049
    %v10051 = vcombine.low %v10026, %v10034
    %v10053 = vunpack.c.l.s4 1934713408
    %v10054 = vunpack.c.0.s8 %v10053
    %v10055 = vlaneseq
    %v10056 = vshrl.u32 %v10055, 7
    %v10057 = vsub.s32 %v10054, %v10056
    %v10058 = vrot.slane %v10051, %v10057
    %v10059 = vcombine.low %v10042, %v10050
    %v10061 = vunpack.c.l.s4 1934713408
    %v10062 = vunpack.c.0.s8 %v10061
    %v10063 = vlaneseq
    %v10064 = vshrl.u32 %v10063, 7
    %v10065 = vsub.s32 %v10062, %v10064
    %v10066 = vrot.slane %v10059, %v10065
    %v10067 = vcombine.low %v10058, %v10066
    %v10068 = vcombine.high %v10058, %v10066
    %10070 = vrot.lane.b32.xlu0 %v10068, 16
    %v10071 = vpop.permute.xlu0 %10070
    %v10073 = vsel %vm9501, %v10067, %v10071
    %v10074 = vpack.c.bf16 %v10073, %v10073
    %v10075 = vld [vmem:[%s14] sm:$0xf]
    %v10076 = vld [vmem:[%s14 + $0x4] sm:$0xf]
    %v10077 = vld [vmem:[%s14 + $0x8] sm:$0xf]
    %v10078 = vld [vmem:[%s14 + $0xc] sm:$0xf]
    %v10079 = vld [vmem:[%s15] sm:$0x1]
    %v10081 = vlaneseq
    %v10082 = vshrl.u32 %v10081, 7
    %v10083 = vsub.s32 0, %v10082
    %v10084 = vrot.slane %v10079, %v10083
    %v10090 = vunpack.c.l.b16 %v10075
    %v10091 = vunpack.c.l.b16 %v10076
    %v10092 = vunpack.c.l.b16 %v10077
    %v10093 = vunpack.c.l.b16 %v10078
    %v10094 = vpack.c.b16 %v10091, %v10090
    %v10095 = vpack.c.b16 %v10093, %v10092
    %v10099 = vsel %vm3331, %v10074, 0
    %10101 = vmatprep.subr.bf16.mxu0 0
    %10102 = vmatpush1.bf16.msra.mxu0 %v10094
    %10103 = vmatprep.subr.bf16.mxu0 0
    %10104 = vmatpush1.bf16.msra.mxu0 %v10095
    %10105 = vmatprep.subr.bf16.mxu0 0
    %10106 = vmatpush1.bf16.msra.mxu0 0
    %10107 = vmatprep.subr.bf16.mxu0 0
    %10108 = vmatpush1.bf16.msra.mxu0 0
    %10109 = vmatprep.subr.bf16.mxu0 0
    %10110 = vmatpush1.bf16.msra.mxu0 0
    %10111 = vmatprep.subr.bf16.mxu0 0
    %10112 = vmatpush1.bf16.msra.mxu0 0
    %10113 = vmatprep.subr.bf16.mxu0 0
    %10114 = vmatpush1.bf16.msra.mxu0 0
    %10115 = vmatprep.subr.bf16.mxu0 0
    %10116 = vmatpush1.bf16.msra.mxu0 0
    %10117 = vmatprep.subr.bf16.mxu0 0
    %10118 = vmatpush1.bf16.msra.mxu0 0
    %10119 = vmatprep.subr.bf16.mxu0 0
    %10120 = vmatpush1.bf16.msra.mxu0 0
    %10121 = vmatprep.subr.bf16.mxu0 0
    %10122 = vmatpush1.bf16.msra.mxu0 0
    %10123 = vmatprep.subr.bf16.mxu0 0
    %10124 = vmatpush1.bf16.msra.mxu0 0
    %10125 = vmatprep.subr.bf16.mxu0 0
    %10126 = vmatpush1.bf16.msra.mxu0 0
    %10127 = vmatprep.subr.bf16.mxu0 0
    %10128 = vmatpush1.bf16.msra.mxu0 0
    %10129 = vmatprep.subr.bf16.mxu0 0
    %10130 = vmatpush1.bf16.msra.mxu0 0
    %10131 = vmatprep.subr.bf16.mxu0 0
    %10132 = vmatpush1.bf16.msra.mxu0 0
    %10133 = vmatprep.mubr.bf16.mxu0 0
    %10134 = vmatmul.mubr.bf16.gmra.mrb[0].mxu0 %v10099
    %v10135 = vpop.f32.mrb[0].mxu0
    %v10136 = vadd.f32 %v10084, %v10135
    %v10137 = vpop.f32.mrb[0].mxu0
    %v10138 = vpop.f32.mrb[0].mxu0
    %v10139 = vpop.f32.mrb[0].mxu0
    %10140 = vdwg.mxu0
    %vm10141 = vcmp.gt.f32.partialorder %v10136, 0.0
    %v10142 = vmul.f32 %v10136, 0.2
    %v10143 = vsel %vm10141, %v10136, %v10142
    %v10144 = vpack.c.bf16 %v10143, %v10143
    %v10145 = vld [vmem:[%s16] sm:$0xf]
    %v10146 = vld [vmem:[%s16 + $0x4] sm:$0xf]
    %v10147 = vld [vmem:[%s16 + $0x8] sm:$0xf]
    %v10148 = vld [vmem:[%s16 + $0xc] sm:$0xf]
    %v10149 = vld [vmem:[%s17] sm:$0x1]
    %v10151 = vlaneseq
    %v10152 = vshrl.u32 %v10151, 7
    %v10153 = vsub.s32 0, %v10152
    %v10154 = vrot.slane %v10149, %v10153
    %v10160 = vunpack.c.l.b16 %v10145
    %v10161 = vunpack.c.l.b16 %v10146
    %v10162 = vunpack.c.l.b16 %v10147
    %v10163 = vunpack.c.l.b16 %v10148
    %v10164 = vpack.c.b16 %v10161, %v10160
    %v10165 = vpack.c.b16 %v10163, %v10162
    %v10169 = vsel %vm3331, %v10144, 0
    %10171 = vmatprep.subr.bf16.mxu0 0
    %10172 = vmatpush1.bf16.msra.mxu0 %v10164
    %10173 = vmatprep.subr.bf16.mxu0 0
    %10174 = vmatpush1.bf16.msra.mxu0 %v10165
    %10175 = vmatprep.subr.bf16.mxu0 0
    %10176 = vmatpush1.bf16.msra.mxu0 0
    %10177 = vmatprep.subr.bf16.mxu0 0
    %10178 = vmatpush1.bf16.msra.mxu0 0
    %10179 = vmatprep.subr.bf16.mxu0 0
    %10180 = vmatpush1.bf16.msra.mxu0 0
    %10181 = vmatprep.subr.bf16.mxu0 0
    %10182 = vmatpush1.bf16.msra.mxu0 0
    %10183 = vmatprep.subr.bf16.mxu0 0
    %10184 = vmatpush1.bf16.msra.mxu0 0
    %10185 = vmatprep.subr.bf16.mxu0 0
    %10186 = vmatpush1.bf16.msra.mxu0 0
    %10187 = vmatprep.subr.bf16.mxu0 0
    %10188 = vmatpush1.bf16.msra.mxu0 0
    %10189 = vmatprep.subr.bf16.mxu0 0
    %10190 = vmatpush1.bf16.msra.mxu0 0
    %10191 = vmatprep.subr.bf16.mxu0 0
    %10192 = vmatpush1.bf16.msra.mxu0 0
    %10193 = vmatprep.subr.bf16.mxu0 0
    %10194 = vmatpush1.bf16.msra.mxu0 0
    %10195 = vmatprep.subr.bf16.mxu0 0
    %10196 = vmatpush1.bf16.msra.mxu0 0
    %10197 = vmatprep.subr.bf16.mxu0 0
    %10198 = vmatpush1.bf16.msra.mxu0 0
    %10199 = vmatprep.subr.bf16.mxu0 0
    %10200 = vmatpush1.bf16.msra.mxu0 0
    %10201 = vmatprep.subr.bf16.mxu0 0
    %10202 = vmatpush1.bf16.msra.mxu0 0
    %10203 = vmatprep.mubr.bf16.mxu0 0
    %10204 = vmatmul.mubr.bf16.gmra.mrb[0].mxu0 %v10169
    %v10205 = vpop.f32.mrb[0].mxu0
    %v10206 = vadd.f32 %v10154, %v10205
    %v10207 = vpop.f32.mrb[0].mxu0
    %v10208 = vpop.f32.mrb[0].mxu0
    %v10209 = vpop.f32.mrb[0].mxu0
    %10210 = vdwg.mxu0
    %v10212 = vcombine.high %v10206, %v10206
    %vm10214 = vcmask 60416
    %10215 = vst.msk [vmem:[#allocation2] sm:$0xf] %vm10214, %v10206
    %10216 = vst.msk [vmem:[#allocation2 + $0x4] sm:$0xf] %vm10214, %v10212
    // Predicated region
    $region74: #{tpu_custom_call.1} parent=1 // pred_check
      _
    $region75: #{tpu_custom_call.1} parent=1 // pred_check_branch
      %10218 = sbr.rel (0) target = $region77
    $region76: #{tpu_custom_call.1} parent=1 // pred_region
      %s10220 = ssub.s32 128, 128
      %10221 = vsyncadd [#allocation3], %s10220
      %s10222 = sshll.u32 [#allocation2], 4
      %s10223 = int_to_ptr.vmem [resolvable:$true] %s10222
      %10228 = dma.vmem_to_hbm [thread:$0]  %s10223, 128, %s18, [#allocation3], 64, 64, 4
    $region77: #{tpu_custom_call.1} parent=1 // pred_fallthru
      _
    // Predicated region
    $region78: #{tpu_custom_call.1} parent=1 // pred_check
      _
    $region79: #{tpu_custom_call.1} parent=1 // pred_check_branch
      %10230 = sbr.rel (0) target = $region81
    $region80: #{tpu_custom_call.1} parent=1 // pred_region
      %10231 = dma.done [#allocation3], 128
    $region81: #{tpu_custom_call.1} parent=1 // pred_fallthru
      _
    %10232 = vsyncpa [#allocation3], 1

</llo_original>
